<compile_context>
chip_gen: v7x
topology: tpu7x:2x2x1
jax: 0.10.0
libtpu: 0.0.40
codegen_flags: <defaults>
</compile_context>

<pallas_src>
import functools
import math

import jax
import jax.numpy as jnp
from jax.experimental import pallas as pl
from jax.experimental.pallas import tpu as pltpu


# ----------------------------------------------------------------------------
# In-kernel helpers
# ----------------------------------------------------------------------------
def _gelu(x):
    # TODO(synk): torch F.gelu default is the exact erf-GELU; we use the tanh
    # approximation for guaranteed Mosaic lowering (EUP tanh).
    c = 0.7978845608028654  # sqrt(2/pi)
    return 0.5 * x * (1.0 + jnp.tanh(c * (x + 0.044715 * x * x * x)))


_ROW_PARAMS = pltpu.CompilerParams(
    dimension_semantics=("parallel",),
    vmem_limit_bytes=32 * 1024 * 1024,
)


# ----------------------------------------------------------------------------
# Pallas kernels
# ----------------------------------------------------------------------------
def _linear_kernel(x_ref, w_ref, b_ref, o_ref, *, act):
    """o = act(x @ w + b); x:(T,Cin) f32, w:(Cin,Cout) bf16, b:(1,Cout) f32."""
    x = x_ref[...].astype(jnp.bfloat16)
    y = jnp.dot(x, w_ref[...], preferred_element_type=jnp.float32)
    y = y + b_ref[...]
    if act == "gelu":
        y = _gelu(y)
    o_ref[...] = y.astype(o_ref.dtype)


def _branch_add_kernel(x_ref, w_ref, b_ref, s_ref, o_ref, *, act):
    """o = act(spectral + x @ w + b) — fuses 1x1 conv, residual add, GELU."""
    x = x_ref[...].astype(jnp.bfloat16)
    y = jnp.dot(x, w_ref[...], preferred_element_type=jnp.float32)
    y = y + b_ref[...] + s_ref[...]
    if act == "gelu":
        y = _gelu(y)
    o_ref[...] = y.astype(o_ref.dtype)


def _mlp_head_kernel(x_ref, w1_ref, b1_ref, w2_ref, b2_ref, o_ref):
    """o = gelu(x @ w1 + b1) @ w2 + b2 — fc1+fc2 fused, intermediate stays in VMEM/vregs."""
    x = x_ref[...].astype(jnp.bfloat16)
    h = jnp.dot(x, w1_ref[...], preferred_element_type=jnp.float32) + b1_ref[...]
    h = _gelu(h)
    y = jnp.dot(h.astype(jnp.bfloat16), w2_ref[...],
                preferred_element_type=jnp.float32) + b2_ref[...]
    o_ref[...] = y.astype(o_ref.dtype)


def _spectral_kernel(g_ref, xs_ref, w1_ref, w2_ref, o_ref, *, B, Cout, Er):
    """Fused FNO-corner LoRA-MoE spectral mixing for a tile of `tm` frequency modes.

    Per mode m (complex, split into real/imag; scaling pre-folded into the B stack):
        out[m] = x[m] @ W[m] + (gates ∘ (x[m] @ A[m])) @ B[m]

    xs : (tm, 2B, C)   rows [:B] = Re(x), rows [B:] = Im(x)            (f32, cast to bf16)
    w1 : (tm, C, 2*Cout + 2*Er)  = [Wr | Wi | Ar | Ai]                 (bf16)
    w2 : (tm, Er, 2*Cout)        = [scaling*Br | scaling*Bi]           (bf16)
    g  : (B, Er)  real per-rank expert gates (shared across modes)     (f32)
    o  : (tm, 2B, Cout) rows [:B] = Re(out), rows [B:] = Im(out)       (f32)
    All contractions are mode-batched MXU matmuls with lane-dense RHS.
    """
    xs = xs_ref[...].astype(jnp.bfloat16)                       # (tm, 2B, C)
    g = g_ref[...]                                              # (B, Er)

    # ---- stage 1: one fat matmul computes x{r,i} @ {Wr,Wi,Ar,Ai} ----
    p = jnp.einsum('mrc,mck->mrk', xs, w1_ref[...],
                   preferred_element_type=jnp.float32)          # (tm, 2B, 2*Cout+2*Er)
    pr = p[:, :B, :]                                            # products with Re(x)
    pi = p[:, B:, :]                                            # products with Im(x)

    base_r = pr[:, :, :Cout] - pi[:, :, Cout:2 * Cout]          # xr@Wr - xi@Wi
    base_i = pr[:, :, Cout:2 * Cout] + pi[:, :, :Cout]          # xr@Wi + xi@Wr

    a0 = 2 * Cout
    tr = (pr[:, :, a0:a0 + Er] - pi[:, :, a0 + Er:]) * g        # Re(x@A) * gates
    ti = (pr[:, :, a0 + Er:] + pi[:, :, a0:a0 + Er]) * g        # Im(x@A) * gates

    # ---- stage 2: one fat matmul computes t{r,i} @ {Br,Bi} ----
    t = jnp.concatenate([tr, ti], axis=1).astype(jnp.bfloat16)  # (tm, 2B, Er)
    q = jnp.einsum('mre,mek->mrk', t, w2_ref[...],
                   preferred_element_type=jnp.float32)          # (tm, 2B, 2*Cout)
    qr = q[:, :B, :]
    qi = q[:, B:, :]
    u_r = qr[:, :, :Cout] - qi[:, :, Cout:]                     # tr@Br - ti@Bi
    u_i = qr[:, :, Cout:] + qi[:, :, :Cout]                     # tr@Bi + ti@Br

    out_r = base_r + u_r                                        # scaling already in w2
    out_i = base_i + u_i
    o_ref[...] = jnp.concatenate([out_r, out_i], axis=1).astype(o_ref.dtype)


# ----------------------------------------------------------------------------
# Pallas wrappers
# ----------------------------------------------------------------------------
def _row_tile(n, tile):
    # Biggest block that covers the rows in (usually) one grid step without raggedness.
    return min(tile, ((n + 7) // 8) * 8)


def pointwise_linear(x2d, w, b, act=None, tile=1024):
    n, cin = x2d.shape
    cout = w.shape[1]
    t = _row_tile(n, tile)
    return pl.pallas_call(
        functools.partial(_linear_kernel, act=act),
        out_shape=jax.ShapeDtypeStruct((n, cout), jnp.float32),
        grid=(pl.cdiv(n, t),),
        in_specs=[
            pl.BlockSpec((t, cin), lambda i: (i, 0)),
            pl.BlockSpec((cin, cout), lambda i: (0, 0)),
            pl.BlockSpec((1, cout), lambda i: (0, 0)),
        ],
        out_specs=pl.BlockSpec((t, cout), lambda i: (i, 0)),
        compiler_params=_ROW_PARAMS,
    )(x2d, w.astype(jnp.bfloat16), b.reshape(1, cout))


def branch_add(x2d, w, b, spec2d, act=None, tile=1024):
    n, cin = x2d.shape
    cout = w.shape[1]
    t = _row_tile(n, tile)
    return pl.pallas_call(
        functools.partial(_branch_add_kernel, act=act),
        out_shape=jax.ShapeDtypeStruct((n, cout), jnp.float32),
        grid=(pl.cdiv(n, t),),
        in_specs=[
            pl.BlockSpec((t, cin), lambda i: (i, 0)),
            pl.BlockSpec((cin, cout), lambda i: (0, 0)),
            pl.BlockSpec((1, cout), lambda i: (0, 0)),
            pl.BlockSpec((t, cout), lambda i: (i, 0)),
        ],
        out_specs=pl.BlockSpec((t, cout), lambda i: (i, 0)),
        compiler_params=_ROW_PARAMS,
    )(x2d, w.astype(jnp.bfloat16), b.reshape(1, cout), spec2d)


def mlp_head(x2d, w1, b1, w2, b2, tile=1024):
    n, cin = x2d.shape
    hid = w1.shape[1]
    cout = w2.shape[1]
    t = _row_tile(n, tile)
    return pl.pallas_call(
        _mlp_head_kernel,
        out_shape=jax.ShapeDtypeStruct((n, cout), jnp.float32),
        grid=(pl.cdiv(n, t),),
        in_specs=[
            pl.BlockSpec((t, cin), lambda i: (i, 0)),
            pl.BlockSpec((cin, hid), lambda i: (0, 0)),
            pl.BlockSpec((1, hid), lambda i: (0, 0)),
            pl.BlockSpec((hid, cout), lambda i: (0, 0)),
            pl.BlockSpec((1, cout), lambda i: (0, 0)),
        ],
        out_specs=pl.BlockSpec((t, cout), lambda i: (i, 0)),
        compiler_params=_ROW_PARAMS,
    )(x2d, w1.astype(jnp.bfloat16), b1.reshape(1, hid),
      w2.astype(jnp.bfloat16), b2.reshape(1, cout))


def spectral_pallas(xs, gexp, w1cat, w2cat, *, B, Cout):
    """xs:(2M,2B,C) f32; gexp:(B,Er) f32; w1cat:(2M,C,2Cout+2Er) bf16; w2cat:(2M,Er,2Cout) bf16."""
    M2, twoB, C = xs.shape
    Er = w2cat.shape[1]
    K1 = w1cat.shape[-1]
    assert K1 == 2 * Cout + 2 * Er and twoB == 2 * B
    n_tiles = 2                      # one grid step per FNO corner -> 2 "parallel" steps (v7x TCs)
    tm = M2 // n_tiles
    return pl.pallas_call(
        functools.partial(_spectral_kernel, B=B, Cout=Cout, Er=Er),
        out_shape=jax.ShapeDtypeStruct((M2, twoB, Cout), jnp.float32),
        grid=(n_tiles,),
        in_specs=[
            pl.BlockSpec((B, Er), lambda i: (0, 0)),             # gates (shared)
            pl.BlockSpec((tm, twoB, C), lambda i: (i, 0, 0)),    # [xr;xi] per mode
            pl.BlockSpec((tm, C, K1), lambda i: (i, 0, 0)),      # [Wr|Wi|Ar|Ai]
            pl.BlockSpec((tm, Er, 2 * Cout), lambda i: (i, 0, 0)),  # [s*Br|s*Bi]
        ],
        out_specs=pl.BlockSpec((tm, twoB, Cout), lambda i: (i, 0, 0)),
        compiler_params=pltpu.CompilerParams(
            dimension_semantics=("parallel",),
            vmem_limit_bytes=32 * 1024 * 1024),
    )(gexp, xs, w1cat, w2cat)


# ----------------------------------------------------------------------------
# SpectralConv2d_fast_LoRA_MoE (assumed FNO-style definition)
# ----------------------------------------------------------------------------
def spectral_conv_lora_moe(x_nhwc, cp, modes1, modes2):
    """x_nhwc: (B,H,W,C) float32 -> (B,H,W,Cout) float32."""
    B, H, W, C = x_nhwc.shape
    Cout = C
    M = modes1 * modes2

    # TODO(synk): exact router definition not provided; using softmax over a linear
    # projection of spatially-pooled channel features (plain-JAX glue, tiny).
    pooled = jnp.mean(x_nhwc, axis=(1, 2))                                  # (B, C)
    gates = jax.nn.softmax(pooled @ cp["router_w"] + cp["router_b"], -1)    # (B, E)
    gexp = gates @ cp["expand"]                                             # (B, Er_pad)

    # rfft2 / irfft2 have no Pallas equivalent — kept in plain JAX (XLA FFT).
    x_ft = jnp.fft.rfft2(x_nhwc, axes=(1, 2))               # (B, H, Wf, C) c64
    Wf = W // 2 + 1

    # Both corners stacked along the mode axis; real/imag stacked along the row axis.
    xc = jnp.concatenate([x_ft[:, :modes1, :modes2, :],
                          x_ft[:, H - modes1:, :modes2, :]], axis=1)        # (B, 2*m1, m2, C)
    xc = xc.reshape(B, 2 * M, C)
    xs = jnp.concatenate([jnp.real(xc), jnp.imag(xc)], axis=0)              # (2B, 2M, C)
    xs = jnp.swapaxes(xs, 0, 1)                                             # (2M, 2B, C)

    out = spectral_pallas(xs, gexp, cp["w1cat"], cp["w2cat"], B=B, Cout=Cout)

    o = jnp.swapaxes(out, 0, 1)                                             # (2B, 2M, Cout)
    oc = jax.lax.complex(o[:B], o[B:]).reshape(B, 2, modes1, modes2, Cout)
    out_ft = jnp.zeros((B, H, Wf, Cout), dtype=jnp.complex64)
    out_ft = out_ft.at[:, :modes1, :modes2, :].set(oc[:, 0])
    out_ft = out_ft.at[:, H - modes1:, :modes2, :].set(oc[:, 1])
    return jnp.fft.irfft2(out_ft, s=(H, W), axes=(1, 2))                    # (B,H,W,Cout) f32


# ----------------------------------------------------------------------------
# FreqMoE forward
# ----------------------------------------------------------------------------
def freqmoe_forward(params, x, grid, modes1, modes2, padding=2):
    B, H, W, Cx = x.shape
    width = params["fc0_w"].shape[1]

    h = jnp.concatenate([x, grid], axis=-1)                    # (B,H,W,Cx+2)
    h = pointwise_linear(h.reshape(-1, h.shape[-1]),
                         params["fc0_w"], params["fc0_b"]).reshape(B, H, W, width)

    # F.pad([0,p,0,p]) on NCHW pads right of W and bottom of H
    h = jnp.pad(h, ((0, 0), (0, padding), (0, padding), (0, 0)))
    Hp, Wp = H + padding, W + padding

    for k in range(4):
        spec = spectral_conv_lora_moe(h, params[f"conv{k}"], modes1, modes2)
        act = "gelu" if k < 3 else None
        h = branch_add(h.reshape(-1, width),
                       params[f"w{k}_w"], params[f"w{k}_b"],
                       spec.reshape(-1, width), act=act).reshape(B, Hp, Wp, width)

    h = h[:, :H, :W, :]                                        # crop padding
    out = mlp_head(h.reshape(-1, width), params["fc1_w"], params["fc1_b"],
                   params["fc2_w"], params["fc2_b"])           # fc1 + GELU + fc2 fused
    num_channels = params["fc2_w"].shape[1]
    out = out.reshape(B, H, W, num_channels)
    return out[:, :, :, None, :]                               # unsqueeze(-2)


# ----------------------------------------------------------------------------
# Deterministic parameter init (shapes follow the PyTorch __init__).
# Spectral weights are stored pre-fused in the Pallas-friendly layout:
#   w1cat: (2M, C, 2*Cout + 2*Er_pad) = [Wr|Wi|Ar|Ai]   (bf16, Er padded to mult of 8)
#   w2cat: (2M, Er_pad, 2*Cout)       = [s*Br|s*Bi]     (bf16, LoRA scaling folded in)
#   expand: (E, Er_pad) gate expansion matrix (expert-major, rank-contiguous, zero-padded)
# ----------------------------------------------------------------------------
def init_params(key, num_channels, width, initial_step, modes1, modes2,
                rank=4, num_experts=15, scaling=0.1):
    keys = iter(jax.random.split(key, 256))
    nk = lambda: next(keys)

    def dense(fan_in, shape):
        bound = 1.0 / math.sqrt(fan_in)
        return jax.random.uniform(nk(), shape, jnp.float32, -bound, bound)

    p = {}
    c0 = initial_step * num_channels + 2
    p["fc0_w"], p["fc0_b"] = dense(c0, (c0, width)), dense(c0, (width,))
    p["fc1_w"], p["fc1_b"] = dense(width, (width, 128)), dense(width, (128,))
    p["fc2_w"], p["fc2_b"] = dense(128, (128, num_channels)), dense(128, (num_channels,))
    for k in range(4):
        p[f"w{k}_w"] = dense(width, (width, width))   # W[i,o] == torch conv weight[o,i,0,0]
        p[f"w{k}_b"] = dense(width, (width,))

    M = modes1 * modes2
    E, r = num_experts, rank
    Er = E * r
    Er_pad = ((Er + 7) // 8) * 8                      # 60 -> 64: aligned contraction/lane dims
    Cout = width
    scale = 1.0 / (width * width)

    expand = jnp.pad(jnp.repeat(jnp.eye(E, dtype=jnp.float32), r, axis=1),
                     ((0, 0), (0, Er_pad - Er)))      # (E, Er_pad)

    for k in range(4):
        w1_corners, w2_corners = [], []
        for _corner in range(2):
            wr = scale * jax.random.uniform(nk(), (M, width, Cout), jnp.float32)
            wi = scale * jax.random.uniform(nk(), (M, width, Cout), jnp.float32)
            ar = 0.02 * jax.random.normal(nk(), (M, width, Er), jnp.float32)
            ai = 0.02 * jax.random.normal(nk(), (M, width, Er), jnp.float32)
            br = 0.02 * jax.random.normal(nk(), (M, Er, Cout), jnp.float32)
            bi = 0.02 * jax.random.normal(nk(), (M, Er, Cout), jnp.float32)
            padA = ((0, 0), (0, 0), (0, Er_pad - Er))
            padB = ((0, 0), (0, Er_pad - Er), (0, 0))
            w1_corners.append(jnp.concatenate(
                [wr, wi, jnp.pad(ar, padA), jnp.pad(ai, padA)], axis=-1))
            w2_corners.append(jnp.concatenate(
                [scaling * jnp.pad(br, padB), scaling * jnp.pad(bi, padB)], axis=-1))
        p[f"conv{k}"] = {
            "w1cat": jnp.concatenate(w1_corners, axis=0).astype(jnp.bfloat16),
            "w2cat": jnp.concatenate(w2_corners, axis=0).astype(jnp.bfloat16),
            "router_w": dense(width, (width, E)),
            "router_b": dense(width, (E,)),
            "expand": expand,
        }
    return p


# ----------------------------------------------------------------------------
if __name__ == "__main__":
    # Small, module-consistent shapes
    batch, num_channels, spatial = 2, 4, 16
    initial_step, width, modes1, modes2 = 1, 32, 6, 6

    key = jax.random.PRNGKey(0)
    k_param, k_x = jax.random.split(key)

    params = init_params(k_param, num_channels, width, initial_step,
                         modes1, modes2, rank=4, num_experts=15, scaling=0.1)

    x = jax.random.normal(k_x, (batch, spatial, spatial, initial_step * num_channels),
                          jnp.float32)
    gx = jnp.linspace(0.0, 1.0, spatial, dtype=jnp.float32)
    gy = jnp.linspace(0.0, 1.0, spatial, dtype=jnp.float32)
    GX, GY = jnp.meshgrid(gx, gy, indexing="ij")
    grid = jnp.broadcast_to(jnp.stack([GX, GY], axis=-1)[None],
                            (batch, spatial, spatial, 2))

    fwd = jax.jit(functools.partial(freqmoe_forward, modes1=modes1, modes2=modes2))
    out = jax.block_until_ready(fwd(params, x, grid))
    assert out.shape == (batch, spatial, spatial, 1, num_channels), out.shape
    assert bool(jnp.all(jnp.isfinite(out)))
    print("KERNEL_OK")
</pallas_src>

<mosaic_0001>
module attributes {stable_mosaic.version = 11 : i64} {
  func.func @_linear_kernel(%arg0: i32, %arg1: memref<512x6xf32, #tpu.memory_space<vmem>>, %arg2: memref<6x32xbf16, #tpu.memory_space<vmem>>, %arg3: memref<1x32xf32, #tpu.memory_space<vmem>>, %arg4: memref<512x32xf32, #tpu.memory_space<vmem>>) attributes {dimension_semantics = [#tpu.dimension_semantics<parallel>], iteration_bounds = array<i64: 1>, scalar_prefetch = 0 : i64, scratch_operands = 0 : i64, tpu.core_type = #tpu.core_type<tc>, window_params = [{transform_indices = @transform_0, window_bounds = array<i64: 512, 6>}, {pipeline_mode = #tpu.pipeline_mode<synchronous>, transform_indices = @transform_1, window_bounds = array<i64: 6, 32>}, {pipeline_mode = #tpu.pipeline_mode<synchronous>, transform_indices = @transform_2, window_bounds = array<i64: 1, 32>}, {transform_indices = @transform_3, window_bounds = array<i64: 512, 32>}]} {
    %c0 = arith.constant 0 : index
    %c0_0 = arith.constant 0 : index
    %0 = vector.load %arg1[%c0, %c0_0] : memref<512x6xf32, #tpu.memory_space<vmem>>, vector<512x6xf32>
    %1 = arith.truncf %0 : vector<512x6xf32> to vector<512x6xbf16>
    %c0_1 = arith.constant 0 : index
    %c0_2 = arith.constant 0 : index
    %2 = vector.load %arg2[%c0_1, %c0_2] : memref<6x32xbf16, #tpu.memory_space<vmem>>, vector<6x32xbf16>
    %cst = arith.constant dense<0.000000e+00> : vector<512x32xf32>
    %3 = tpu.matmul %1, %2, %cst {dimension_numbers = #tpu.dot_dimension_numbers<[1], [0], [0], [1], [0, 0, 1, 1], [], []>} : vector<512x6xbf16>, vector<6x32xbf16>, vector<512x32xf32> -> vector<512x32xf32>
    %c0_3 = arith.constant 0 : index
    %c0_4 = arith.constant 0 : index
    %4 = vector.load %arg3[%c0_3, %c0_4] : memref<1x32xf32, #tpu.memory_space<vmem>>, vector<1x32xf32>
    %5 = vector.broadcast %4 : vector<1x32xf32> to vector<512x32xf32>
    %6 = arith.addf %3, %5 : vector<512x32xf32>
    %c0_5 = arith.constant 0 : index
    %c0_6 = arith.constant 0 : index
    %7 = vector.load %arg4[%c0_5, %c0_6] : memref<512x32xf32, #tpu.memory_space<vmem>>, vector<512x32xf32>
    tpu.vector_store %arg4[%c0_5, %c0_6], %6 {strides = array<i32>} : memref<512x32xf32, #tpu.memory_space<vmem>>, vector<512x32xf32>,
    return
  }
  func.func @transform_0(%arg0: i32) -> (i32, i32) {
    %c0_i32 = arith.constant 0 : i32
    %c0_i32_0 = arith.constant 0 : i32
    return %arg0, %c0_i32 : i32, i32
  }
  func.func @transform_1(%arg0: i32) -> (i32, i32) {
    %c0_i32 = arith.constant 0 : i32
    %c0_i32_0 = arith.constant 0 : i32
    %c0_i32_1 = arith.constant 0 : i32
    return %c0_i32, %c0_i32_0 : i32, i32
  }
  func.func @transform_2(%arg0: i32) -> (i32, i32) {
    %c0_i32 = arith.constant 0 : i32
    %c0_i32_0 = arith.constant 0 : i32
    %c0_i32_1 = arith.constant 0 : i32
    return %c0_i32, %c0_i32_0 : i32, i32
  }
  func.func @transform_3(%arg0: i32) -> (i32, i32) {
    %c0_i32 = arith.constant 0 : i32
    %c0_i32_0 = arith.constant 0 : i32
    return %arg0, %c0_i32 : i32, i32
  }
}

module attributes {stable_mosaic.version = 11 : i64} {
  func.func @_spectral_kernel(%arg0: i32, %arg1: memref<2x64xf32, #tpu.memory_space<vmem>>, %arg2: memref<36x4x32xf32, #tpu.memory_space<vmem>>, %arg3: memref<36x32x192xbf16, #tpu.memory_space<vmem>>, %arg4: memref<36x64x64xbf16, #tpu.memory_space<vmem>>, %arg5: memref<36x4x32xf32, #tpu.memory_space<vmem>>) attributes {dimension_semantics = [#tpu.dimension_semantics<parallel>], iteration_bounds = array<i64: 2>, scalar_prefetch = 0 : i64, scratch_operands = 0 : i64, tpu.core_type = #tpu.core_type<tc>, window_params = [{pipeline_mode = #tpu.pipeline_mode<synchronous>, transform_indices = @transform_0, window_bounds = array<i64: 2, 64>}, {transform_indices = @transform_1, window_bounds = array<i64: 36, 4, 32>}, {transform_indices = @transform_2, window_bounds = array<i64: 36, 32, 192>}, {transform_indices = @transform_3, window_bounds = array<i64: 36, 64, 64>}, {transform_indices = @transform_4, window_bounds = array<i64: 36, 4, 32>}]} {
    %c0 = arith.constant 0 : index
    %c0_0 = arith.constant 0 : index
    %c0_1 = arith.constant 0 : index
    %0 = vector.load %arg2[%c0, %c0_0, %c0_1] : memref<36x4x32xf32, #tpu.memory_space<vmem>>, vector<36x4x32xf32>
    %1 = arith.truncf %0 : vector<36x4x32xf32> to vector<36x4x32xbf16>
    %c0_2 = arith.constant 0 : index
    %c0_3 = arith.constant 0 : index
    %2 = vector.load %arg1[%c0_2, %c0_3] : memref<2x64xf32, #tpu.memory_space<vmem>>, vector<2x64xf32>
    %c0_4 = arith.constant 0 : index
    %c0_5 = arith.constant 0 : index
    %c0_6 = arith.constant 0 : index
    %3 = vector.load %arg3[%c0_4, %c0_5, %c0_6] : memref<36x32x192xbf16, #tpu.memory_space<vmem>>, vector<36x32x192xbf16>
    "tpu.trace_start"() <{level = 10 : i32, message = "mrc,mck->mrk"}> : () -> ()
    %cst = arith.constant dense<0.000000e+00> : vector<36x4x192xf32>
    %4 = tpu.matmul %1, %3, %cst {dimension_numbers = #tpu.dot_dimension_numbers<[2], [1], [1], [2], [0, 0, 0, 1, 1, 2], [0], [0]>} : vector<36x4x32xbf16>, vector<36x32x192xbf16>, vector<36x4x192xf32> -> vector<36x4x192xf32>
    "tpu.trace_stop"() : () -> ()
    %5 = vector.extract_strided_slice %4 {offsets = [0, 0, 0], sizes = [36, 2, 192], strides = [1, 1, 1]} : vector<36x4x192xf32> to vector<36x2x192xf32>
    %6 = vector.extract_strided_slice %4 {offsets = [0, 2, 0], sizes = [36, 2, 192], strides = [1, 1, 1]} : vector<36x4x192xf32> to vector<36x2x192xf32>
    %7 = vector.extract_strided_slice %5 {offsets = [0, 0, 0], sizes = [36, 2, 32], strides = [1, 1, 1]} : vector<36x2x192xf32> to vector<36x2x32xf32>
    %8 = vector.extract_strided_slice %6 {offsets = [0, 0, 32], sizes = [36, 2, 32], strides = [1, 1, 1]} : vector<36x2x192xf32> to vector<36x2x32xf32>
    %9 = arith.subf %7, %8 : vector<36x2x32xf32>
    %10 = vector.extract_strided_slice %5 {offsets = [0, 0, 32], sizes = [36, 2, 32], strides = [1, 1, 1]} : vector<36x2x192xf32> to vector<36x2x32xf32>
    %11 = vector.extract_strided_slice %6 {offsets = [0, 0, 0], sizes = [36, 2, 32], strides = [1, 1, 1]} : vector<36x2x192xf32> to vector<36x2x32xf32>
    %12 = arith.addf %10, %11 : vector<36x2x32xf32>
    %13 = vector.extract_strided_slice %5 {offsets = [0, 0, 64], sizes = [36, 2, 64], strides = [1, 1, 1]} : vector<36x2x192xf32> to vector<36x2x64xf32>
    %14 = vector.extract_strided_slice %6 {offsets = [0, 0, 128], sizes = [36, 2, 64], strides = [1, 1, 1]} : vector<36x2x192xf32> to vector<36x2x64xf32>
    %15 = arith.subf %13, %14 : vector<36x2x64xf32>
    %16 = vector.shape_cast %2 : vector<2x64xf32> to vector<1x2x64xf32>
    %17 = vector.broadcast %16 : vector<1x2x64xf32> to vector<36x2x64xf32>
    %18 = arith.mulf %15, %17 : vector<36x2x64xf32>
    %19 = vector.extract_strided_slice %5 {offsets = [0, 0, 128], sizes = [36, 2, 64], strides = [1, 1, 1]} : vector<36x2x192xf32> to vector<36x2x64xf32>
    %20 = vector.extract_strided_slice %6 {offsets = [0, 0, 64], sizes = [36, 2, 64], strides = [1, 1, 1]} : vector<36x2x192xf32> to vector<36x2x64xf32>
    %21 = arith.addf %19, %20 : vector<36x2x64xf32>
    %22 = vector.shape_cast %2 : vector<2x64xf32> to vector<1x2x64xf32>
    %23 = vector.broadcast %22 : vector<1x2x64xf32> to vector<36x2x64xf32>
    %24 = arith.mulf %21, %23 : vector<36x2x64xf32>
    %25 = tpu.concatenate %18, %24 in 1 : vector<36x2x64xf32>, vector<36x2x64xf32> -> vector<36x4x64xf32>
    %26 = arith.truncf %25 : vector<36x4x64xf32> to vector<36x4x64xbf16>
    %c0_7 = arith.constant 0 : index
    %c0_8 = arith.constant 0 : index
    %c0_9 = arith.constant 0 : index
    %27 = vector.load %arg4[%c0_7, %c0_8, %c0_9] : memref<36x64x64xbf16, #tpu.memory_space<vmem>>, vector<36x64x64xbf16>
    "tpu.trace_start"() <{level = 10 : i32, message = "mre,mek->mrk"}> : () -> ()
    %cst_10 = arith.constant dense<0.000000e+00> : vector<36x4x64xf32>
    %28 = tpu.matmul %26, %27, %cst_10 {dimension_numbers = #tpu.dot_dimension_numbers<[2], [1], [1], [2], [0, 0, 0, 1, 1, 2], [0], [0]>} : vector<36x4x64xbf16>, vector<36x64x64xbf16>, vector<36x4x64xf32> -> vector<36x4x64xf32>
    "tpu.trace_stop"() : () -> ()
    %29 = vector.extract_strided_slice %28 {offsets = [0, 0, 0], sizes = [36, 2, 64], strides = [1, 1, 1]} : vector<36x4x64xf32> to vector<36x2x64xf32>
    %30 = vector.extract_strided_slice %28 {offsets = [0, 2, 0], sizes = [36, 2, 64], strides = [1, 1, 1]} : vector<36x4x64xf32> to vector<36x2x64xf32>
    %31 = vector.extract_strided_slice %29 {offsets = [0, 0, 0], sizes = [36, 2, 32], strides = [1, 1, 1]} : vector<36x2x64xf32> to vector<36x2x32xf32>
    %32 = vector.extract_strided_slice %30 {offsets = [0, 0, 32], sizes = [36, 2, 32], strides = [1, 1, 1]} : vector<36x2x64xf32> to vector<36x2x32xf32>
    %33 = arith.subf %31, %32 : vector<36x2x32xf32>
    %34 = vector.extract_strided_slice %29 {offsets = [0, 0, 32], sizes = [36, 2, 32], strides = [1, 1, 1]} : vector<36x2x64xf32> to vector<36x2x32xf32>
    %35 = vector.extract_strided_slice %30 {offsets = [0, 0, 0], sizes = [36, 2, 32], strides = [1, 1, 1]} : vector<36x2x64xf32> to vector<36x2x32xf32>
    %36 = arith.addf %34, %35 : vector<36x2x32xf32>
    %37 = arith.addf %9, %33 : vector<36x2x32xf32>
    %38 = arith.addf %12, %36 : vector<36x2x32xf32>
    %39 = tpu.concatenate %37, %38 in 1 : vector<36x2x32xf32>, vector<36x2x32xf32> -> vector<36x4x32xf32>
    %c0_11 = arith.constant 0 : index
    %c0_12 = arith.constant 0 : index
    %c0_13 = arith.constant 0 : index
    %40 = vector.load %arg5[%c0_11, %c0_12, %c0_13] : memref<36x4x32xf32, #tpu.memory_space<vmem>>, vector<36x4x32xf32>
    tpu.vector_store %arg5[%c0_11, %c0_12, %c0_13], %39 {strides = array<i32>} : memref<36x4x32xf32, #tpu.memory_space<vmem>>, vector<36x4x32xf32>,
    return
  }
  func.func @transform_0(%arg0: i32) -> (i32, i32) {
    %c0_i32 = arith.constant 0 : i32
    %c0_i32_0 = arith.constant 0 : i32
    %c0_i32_1 = arith.constant 0 : i32
    return %c0_i32, %c0_i32_0 : i32, i32
  }
  func.func @transform_1(%arg0: i32) -> (i32, i32, i32) {
    %c0_i32 = arith.constant 0 : i32
    %c0_i32_0 = arith.constant 0 : i32
    %c0_i32_1 = arith.constant 0 : i32
    return %arg0, %c0_i32, %c0_i32_0 : i32, i32, i32
  }
  func.func @transform_2(%arg0: i32) -> (i32, i32, i32) {
    %c0_i32 = arith.constant 0 : i32
    %c0_i32_0 = arith.constant 0 : i32
    %c0_i32_1 = arith.constant 0 : i32
    return %arg0, %c0_i32, %c0_i32_0 : i32, i32, i32
  }
  func.func @transform_3(%arg0: i32) -> (i32, i32, i32) {
    %c0_i32 = arith.constant 0 : i32
    %c0_i32_0 = arith.constant 0 : i32
    %c0_i32_1 = arith.constant 0 : i32
    return %arg0, %c0_i32, %c0_i32_0 : i32, i32, i32
  }
  func.func @transform_4(%arg0: i32) -> (i32, i32, i32) {
    %c0_i32 = arith.constant 0 : i32
    %c0_i32_0 = arith.constant 0 : i32
    %c0_i32_1 = arith.constant 0 : i32
    return %arg0, %c0_i32, %c0_i32_0 : i32, i32, i32
  }
}

module attributes {stable_mosaic.version = 11 : i64} {
  func.func @_branch_add_kernel(%arg0: i32, %arg1: memref<648x32xf32, #tpu.memory_space<vmem>>, %arg2: memref<32x32xbf16, #tpu.memory_space<vmem>>, %arg3: memref<1x32xf32, #tpu.memory_space<vmem>>, %arg4: memref<648x32xf32, #tpu.memory_space<vmem>>, %arg5: memref<648x32xf32, #tpu.memory_space<vmem>>) attributes {dimension_semantics = [#tpu.dimension_semantics<parallel>], iteration_bounds = array<i64: 1>, scalar_prefetch = 0 : i64, scratch_operands = 0 : i64, tpu.core_type = #tpu.core_type<tc>, window_params = [{transform_indices = @transform_0, window_bounds = array<i64: 648, 32>}, {pipeline_mode = #tpu.pipeline_mode<synchronous>, transform_indices = @transform_1, window_bounds = array<i64: 32, 32>}, {pipeline_mode = #tpu.pipeline_mode<synchronous>, transform_indices = @transform_2, window_bounds = array<i64: 1, 32>}, {transform_indices = @transform_3, window_bounds = array<i64: 648, 32>}, {transform_indices = @transform_4, window_bounds = array<i64: 648, 32>}]} {
    %c0 = arith.constant 0 : index
    %c0_0 = arith.constant 0 : index
    %0 = vector.load %arg1[%c0, %c0_0] : memref<648x32xf32, #tpu.memory_space<vmem>>, vector<648x32xf32>
    %1 = arith.truncf %0 : vector<648x32xf32> to vector<648x32xbf16>
    %c0_1 = arith.constant 0 : index
    %c0_2 = arith.constant 0 : index
    %2 = vector.load %arg2[%c0_1, %c0_2] : memref<32x32xbf16, #tpu.memory_space<vmem>>, vector<32x32xbf16>
    %cst = arith.constant dense<0.000000e+00> : vector<648x32xf32>
    %3 = tpu.matmul %1, %2, %cst {dimension_numbers = #tpu.dot_dimension_numbers<[1], [0], [0], [1], [0, 0, 1, 1], [], []>} : vector<648x32xbf16>, vector<32x32xbf16>, vector<648x32xf32> -> vector<648x32xf32>
    %c0_3 = arith.constant 0 : index
    %c0_4 = arith.constant 0 : index
    %4 = vector.load %arg3[%c0_3, %c0_4] : memref<1x32xf32, #tpu.memory_space<vmem>>, vector<1x32xf32>
    %5 = vector.broadcast %4 : vector<1x32xf32> to vector<648x32xf32>
    %6 = arith.addf %3, %5 : vector<648x32xf32>
    %c0_5 = arith.constant 0 : index
    %c0_6 = arith.constant 0 : index
    %7 = vector.load %arg4[%c0_5, %c0_6] : memref<648x32xf32, #tpu.memory_space<vmem>>, vector<648x32xf32>
    %8 = arith.addf %6, %7 : vector<648x32xf32>
    %cst_7 = arith.constant 5.000000e-01 : f32
    %9 = vector.broadcast %cst_7 : f32 to vector<648x32xf32>
    %10 = arith.mulf %9, %8 : vector<648x32xf32>
    %cst_8 = arith.constant 4.471500e-02 : f32
    %11 = vector.broadcast %cst_8 : f32 to vector<648x32xf32>
    %12 = arith.mulf %11, %8 : vector<648x32xf32>
    %13 = arith.mulf %12, %8 : vector<648x32xf32>
    %14 = arith.mulf %13, %8 : vector<648x32xf32>
    %15 = arith.addf %8, %14 : vector<648x32xf32>
    %cst_9 = arith.constant 0.797884583 : f32
    %16 = vector.broadcast %cst_9 : f32 to vector<648x32xf32>
    %17 = arith.mulf %16, %15 : vector<648x32xf32>
    %18 = math.tanh %17 : vector<648x32xf32>
    %cst_10 = arith.constant 1.000000e+00 : f32
    %19 = vector.broadcast %cst_10 : f32 to vector<648x32xf32>
    %20 = arith.addf %19, %18 : vector<648x32xf32>
    %21 = arith.mulf %10, %20 : vector<648x32xf32>
    %c0_11 = arith.constant 0 : index
    %c0_12 = arith.constant 0 : index
    %22 = vector.load %arg5[%c0_11, %c0_12] : memref<648x32xf32, #tpu.memory_space<vmem>>, vector<648x32xf32>
    tpu.vector_store %arg5[%c0_11, %c0_12], %21 {strides = array<i32>} : memref<648x32xf32, #tpu.memory_space<vmem>>, vector<648x32xf32>,
    return
  }
  func.func @transform_0(%arg0: i32) -> (i32, i32) {
    %c0_i32 = arith.constant 0 : i32
    %c0_i32_0 = arith.constant 0 : i32
    return %arg0, %c0_i32 : i32, i32
  }
  func.func @transform_1(%arg0: i32) -> (i32, i32) {
    %c0_i32 = arith.constant 0 : i32
    %c0_i32_0 = arith.constant 0 : i32
    %c0_i32_1 = arith.constant 0 : i32
    return %c0_i32, %c0_i32_0 : i32, i32
  }
  func.func @transform_2(%arg0: i32) -> (i32, i32) {
    %c0_i32 = arith.constant 0 : i32
    %c0_i32_0 = arith.constant 0 : i32
    %c0_i32_1 = arith.constant 0 : i32
    return %c0_i32, %c0_i32_0 : i32, i32
  }
  func.func @transform_3(%arg0: i32) -> (i32, i32) {
    %c0_i32 = arith.constant 0 : i32
    %c0_i32_0 = arith.constant 0 : i32
    return %arg0, %c0_i32 : i32, i32
  }
  func.func @transform_4(%arg0: i32) -> (i32, i32) {
    %c0_i32 = arith.constant 0 : i32
    %c0_i32_0 = arith.constant 0 : i32
    return %arg0, %c0_i32 : i32, i32
  }
}

module attributes {stable_mosaic.version = 11 : i64} {
  func.func @_branch_add_kernel(%arg0: i32, %arg1: memref<648x32xf32, #tpu.memory_space<vmem>>, %arg2: memref<32x32xbf16, #tpu.memory_space<vmem>>, %arg3: memref<1x32xf32, #tpu.memory_space<vmem>>, %arg4: memref<648x32xf32, #tpu.memory_space<vmem>>, %arg5: memref<648x32xf32, #tpu.memory_space<vmem>>) attributes {dimension_semantics = [#tpu.dimension_semantics<parallel>], iteration_bounds = array<i64: 1>, scalar_prefetch = 0 : i64, scratch_operands = 0 : i64, tpu.core_type = #tpu.core_type<tc>, window_params = [{transform_indices = @transform_0, window_bounds = array<i64: 648, 32>}, {pipeline_mode = #tpu.pipeline_mode<synchronous>, transform_indices = @transform_1, window_bounds = array<i64: 32, 32>}, {pipeline_mode = #tpu.pipeline_mode<synchronous>, transform_indices = @transform_2, window_bounds = array<i64: 1, 32>}, {transform_indices = @transform_3, window_bounds = array<i64: 648, 32>}, {transform_indices = @transform_4, window_bounds = array<i64: 648, 32>}]} {
    %c0 = arith.constant 0 : index
    %c0_0 = arith.constant 0 : index
    %0 = vector.load %arg1[%c0, %c0_0] : memref<648x32xf32, #tpu.memory_space<vmem>>, vector<648x32xf32>
    %1 = arith.truncf %0 : vector<648x32xf32> to vector<648x32xbf16>
    %c0_1 = arith.constant 0 : index
    %c0_2 = arith.constant 0 : index
    %2 = vector.load %arg2[%c0_1, %c0_2] : memref<32x32xbf16, #tpu.memory_space<vmem>>, vector<32x32xbf16>
    %cst = arith.constant dense<0.000000e+00> : vector<648x32xf32>
    %3 = tpu.matmul %1, %2, %cst {dimension_numbers = #tpu.dot_dimension_numbers<[1], [0], [0], [1], [0, 0, 1, 1], [], []>} : vector<648x32xbf16>, vector<32x32xbf16>, vector<648x32xf32> -> vector<648x32xf32>
    %c0_3 = arith.constant 0 : index
    %c0_4 = arith.constant 0 : index
    %4 = vector.load %arg3[%c0_3, %c0_4] : memref<1x32xf32, #tpu.memory_space<vmem>>, vector<1x32xf32>
    %5 = vector.broadcast %4 : vector<1x32xf32> to vector<648x32xf32>
    %6 = arith.addf %3, %5 : vector<648x32xf32>
    %c0_5 = arith.constant 0 : index
    %c0_6 = arith.constant 0 : index
    %7 = vector.load %arg4[%c0_5, %c0_6] : memref<648x32xf32, #tpu.memory_space<vmem>>, vector<648x32xf32>
    %8 = arith.addf %6, %7 : vector<648x32xf32>
    %c0_7 = arith.constant 0 : index
    %c0_8 = arith.constant 0 : index
    %9 = vector.load %arg5[%c0_7, %c0_8] : memref<648x32xf32, #tpu.memory_space<vmem>>, vector<648x32xf32>
    tpu.vector_store %arg5[%c0_7, %c0_8], %8 {strides = array<i32>} : memref<648x32xf32, #tpu.memory_space<vmem>>, vector<648x32xf32>,
    return
  }
  func.func @transform_0(%arg0: i32) -> (i32, i32) {
    %c0_i32 = arith.constant 0 : i32
    %c0_i32_0 = arith.constant 0 : i32
    return %arg0, %c0_i32 : i32, i32
  }
  func.func @transform_1(%arg0: i32) -> (i32, i32) {
    %c0_i32 = arith.constant 0 : i32
    %c0_i32_0 = arith.constant 0 : i32
    %c0_i32_1 = arith.constant 0 : i32
    return %c0_i32, %c0_i32_0 : i32, i32
  }
  func.func @transform_2(%arg0: i32) -> (i32, i32) {
    %c0_i32 = arith.constant 0 : i32
    %c0_i32_0 = arith.constant 0 : i32
    %c0_i32_1 = arith.constant 0 : i32
    return %c0_i32, %c0_i32_0 : i32, i32
  }
  func.func @transform_3(%arg0: i32) -> (i32, i32) {
    %c0_i32 = arith.constant 0 : i32
    %c0_i32_0 = arith.constant 0 : i32
    return %arg0, %c0_i32 : i32, i32
  }
  func.func @transform_4(%arg0: i32) -> (i32, i32) {
    %c0_i32 = arith.constant 0 : i32
    %c0_i32_0 = arith.constant 0 : i32
    return %arg0, %c0_i32 : i32, i32
  }
}

module attributes {stable_mosaic.version = 11 : i64} {
  func.func @_mlp_head_kernel(%arg0: i32, %arg1: memref<512x32xf32, #tpu.memory_space<vmem>>, %arg2: memref<32x128xbf16, #tpu.memory_space<vmem>>, %arg3: memref<1x128xf32, #tpu.memory_space<vmem>>, %arg4: memref<128x4xbf16, #tpu.memory_space<vmem>>, %arg5: memref<1x4xf32, #tpu.memory_space<vmem>>, %arg6: memref<512x4xf32, #tpu.memory_space<vmem>>) attributes {dimension_semantics = [#tpu.dimension_semantics<parallel>], iteration_bounds = array<i64: 1>, scalar_prefetch = 0 : i64, scratch_operands = 0 : i64, tpu.core_type = #tpu.core_type<tc>, window_params = [{transform_indices = @transform_0, window_bounds = array<i64: 512, 32>}, {pipeline_mode = #tpu.pipeline_mode<synchronous>, transform_indices = @transform_1, window_bounds = array<i64: 32, 128>}, {pipeline_mode = #tpu.pipeline_mode<synchronous>, transform_indices = @transform_2, window_bounds = array<i64: 1, 128>}, {pipeline_mode = #tpu.pipeline_mode<synchronous>, transform_indices = @transform_3, window_bounds = array<i64: 128, 4>}, {pipeline_mode = #tpu.pipeline_mode<synchronous>, transform_indices = @transform_4, window_bounds = array<i64: 1, 4>}, {transform_indices = @transform_5, window_bounds = array<i64: 512, 4>}]} {
    %c0 = arith.constant 0 : index
    %c0_0 = arith.constant 0 : index
    %0 = vector.load %arg1[%c0, %c0_0] : memref<512x32xf32, #tpu.memory_space<vmem>>, vector<512x32xf32>
    %1 = arith.truncf %0 : vector<512x32xf32> to vector<512x32xbf16>
    %c0_1 = arith.constant 0 : index
    %c0_2 = arith.constant 0 : index
    %2 = vector.load %arg2[%c0_1, %c0_2] : memref<32x128xbf16, #tpu.memory_space<vmem>>, vector<32x128xbf16>
    %cst = arith.constant dense<0.000000e+00> : vector<512x128xf32>
    %3 = tpu.matmul %1, %2, %cst {dimension_numbers = #tpu.dot_dimension_numbers<[1], [0], [0], [1], [0, 0, 1, 1], [], []>} : vector<512x32xbf16>, vector<32x128xbf16>, vector<512x128xf32> -> vector<512x128xf32>
    %c0_3 = arith.constant 0 : index
    %c0_4 = arith.constant 0 : index
    %4 = vector.load %arg3[%c0_3, %c0_4] : memref<1x128xf32, #tpu.memory_space<vmem>>, vector<1x128xf32>
    %5 = vector.broadcast %4 : vector<1x128xf32> to vector<512x128xf32>
    %6 = arith.addf %3, %5 : vector<512x128xf32>
    %cst_5 = arith.constant 5.000000e-01 : f32
    %7 = vector.broadcast %cst_5 : f32 to vector<512x128xf32>
    %8 = arith.mulf %7, %6 : vector<512x128xf32>
    %cst_6 = arith.constant 4.471500e-02 : f32
    %9 = vector.broadcast %cst_6 : f32 to vector<512x128xf32>
    %10 = arith.mulf %9, %6 : vector<512x128xf32>
    %11 = arith.mulf %10, %6 : vector<512x128xf32>
    %12 = arith.mulf %11, %6 : vector<512x128xf32>
    %13 = arith.addf %6, %12 : vector<512x128xf32>
    %cst_7 = arith.constant 0.797884583 : f32
    %14 = vector.broadcast %cst_7 : f32 to vector<512x128xf32>
    %15 = arith.mulf %14, %13 : vector<512x128xf32>
    %16 = math.tanh %15 : vector<512x128xf32>
    %cst_8 = arith.constant 1.000000e+00 : f32
    %17 = vector.broadcast %cst_8 : f32 to vector<512x128xf32>
    %18 = arith.addf %17, %16 : vector<512x128xf32>
    %19 = arith.mulf %8, %18 : vector<512x128xf32>
    %20 = arith.truncf %19 : vector<512x128xf32> to vector<512x128xbf16>
    %c0_9 = arith.constant 0 : index
    %c0_10 = arith.constant 0 : index
    %21 = vector.load %arg4[%c0_9, %c0_10] : memref<128x4xbf16, #tpu.memory_space<vmem>>, vector<128x4xbf16>
    %cst_11 = arith.constant dense<0.000000e+00> : vector<512x4xf32>
    %22 = tpu.matmul %20, %21, %cst_11 {dimension_numbers = #tpu.dot_dimension_numbers<[1], [0], [0], [1], [0, 0, 1, 1], [], []>} : vector<512x128xbf16>, vector<128x4xbf16>, vector<512x4xf32> -> vector<512x4xf32>
    %c0_12 = arith.constant 0 : index
    %c0_13 = arith.constant 0 : index
    %23 = vector.load %arg5[%c0_12, %c0_13] : memref<1x4xf32, #tpu.memory_space<vmem>>, vector<1x4xf32>
    %24 = vector.broadcast %23 : vector<1x4xf32> to vector<512x4xf32>
    %25 = arith.addf %22, %24 : vector<512x4xf32>
    %c0_14 = arith.constant 0 : index
    %c0_15 = arith.constant 0 : index
    %26 = vector.load %arg6[%c0_14, %c0_15] : memref<512x4xf32, #tpu.memory_space<vmem>>, vector<512x4xf32>
    tpu.vector_store %arg6[%c0_14, %c0_15], %25 {strides = array<i32>} : memref<512x4xf32, #tpu.memory_space<vmem>>, vector<512x4xf32>,
    return
  }
  func.func @transform_0(%arg0: i32) -> (i32, i32) {
    %c0_i32 = arith.constant 0 : i32
    %c0_i32_0 = arith.constant 0 : i32
    return %arg0, %c0_i32 : i32, i32
  }
  func.func @transform_1(%arg0: i32) -> (i32, i32) {
    %c0_i32 = arith.constant 0 : i32
    %c0_i32_0 = arith.constant 0 : i32
    %c0_i32_1 = arith.constant 0 : i32
    return %c0_i32, %c0_i32_0 : i32, i32
  }
  func.func @transform_2(%arg0: i32) -> (i32, i32) {
    %c0_i32 = arith.constant 0 : i32
    %c0_i32_0 = arith.constant 0 : i32
    %c0_i32_1 = arith.constant 0 : i32
    return %c0_i32, %c0_i32_0 : i32, i32
  }
  func.func @transform_3(%arg0: i32) -> (i32, i32) {
    %c0_i32 = arith.constant 0 : i32
    %c0_i32_0 = arith.constant 0 : i32
    %c0_i32_1 = arith.constant 0 : i32
    return %c0_i32, %c0_i32_0 : i32, i32
  }
  func.func @transform_4(%arg0: i32) -> (i32, i32) {
    %c0_i32 = arith.constant 0 : i32
    %c0_i32_0 = arith.constant 0 : i32
    %c0_i32_1 = arith.constant 0 : i32
    return %c0_i32, %c0_i32_0 : i32, i32
  }
  func.func @transform_5(%arg0: i32) -> (i32, i32) {
    %c0_i32 = arith.constant 0 : i32
    %c0_i32_0 = arith.constant 0 : i32
    return %arg0, %c0_i32 : i32, i32
  }
}

</mosaic_0001>

<llo_original>
// kernel: freqmoe_forward.10
$region0: #{freqmoe_forward.10}
  #allocation0 [shape = 'u32[]', space=smem, size = 0x4, offset = 0x4, fixed_abs, tag = 'smem constant byte address 0x4 - core index']
  #allocation1 [shape = 'u32[144,128]{1,0:T(1,128)}', space=vmem, size = 0x12000, scoped, tag = 'internal scratch']
  %s0 = inlined_call_operand.vmem [shape: f32[512,6], index: 0, kind: input, shape index: {}]
  %s1 = inlined_call_operand.vmem [shape: bf16[6,32], index: 1, kind: input, shape index: {}]
  %s2 = inlined_call_operand.hbm [shape: f32[1,32], index: 2, kind: input, shape index: {}]
  %s3 = inlined_call_operand.vmem [shape: f32[512,32], index: 3, kind: output, shape index: {}]
  %s4 = sld [smem:[#allocation0]]
  $region26: #{freqmoe_forward.10} parent=0
    _
  %s6 = ssub.s32 1, %s4
  %s7 = scalar_select 0, %s6, %s4
  $region1: #{freqmoe_forward.10} parent=0
    #allocation2 [shape = 'u8[512]{0}', space=vmem, size = 0x400, scoped, tag = 'input window, operand 2, single buffered']
    #allocation3 [shape = 's32[1]{0}', space=sflag, size = 0x4, scoped, tag = 'scoped memory for freqmoe_forward.10']
    %8 = vsyncpa [#allocation3], 0
    // Predicated region
    $region2: #{freqmoe_forward.10} parent=1 // pred_check
      _
    $region3: #{freqmoe_forward.10} parent=1 // pred_check_branch
      %10 = sbr.rel (0) target = $region5
    $region4: #{freqmoe_forward.10} parent=1 // pred_region
      _
    $region5: #{freqmoe_forward.10} parent=1 // pred_fallthru
      _
    // Predicated region
    $region6: #{freqmoe_forward.10} parent=1 // pred_check
      _
    $region7: #{freqmoe_forward.10} parent=1 // pred_check_branch
      %12 = sbr.rel (0) target = $region9
    $region8: #{freqmoe_forward.10} parent=1 // pred_region
      _
    $region9: #{freqmoe_forward.10} parent=1 // pred_fallthru
      _
    // Predicated region
    $region10: #{freqmoe_forward.10} parent=1 // pred_check
      _
    $region11: #{freqmoe_forward.10} parent=1 // pred_check_branch
      %14 = sbr.rel (0) target = $region13
    $region12: #{freqmoe_forward.10} parent=1 // pred_region
      %s16 = ssub.s32 16, 16
      %17 = vsyncadd [#allocation3], %s16
      %s19 = sshll.u32 [#allocation2], 4
      %s20 = int_to_ptr.vmem [resolvable:$true] %s19
      %22 = dma.hbm_to_vmem [thread:$0]  %s2, 16, %s20, [#allocation3]
    $region13: #{freqmoe_forward.10} parent=1 // pred_fallthru
      _
    // Predicated region
    $region14: #{freqmoe_forward.10} parent=1 // pred_check
      _
    $region15: #{freqmoe_forward.10} parent=1 // pred_check_branch
      %24 = sbr.rel (0) target = $region17
    $region16: #{freqmoe_forward.10} parent=1 // pred_region
      %25 = dma.done [#allocation3], 16
    $region17: #{freqmoe_forward.10} parent=1 // pred_fallthru
      _
    %v27 = vld [vmem:[%s0] sm:$0xff]
    %v28 = vld [vmem:[%s0 + $0x8] sm:$0xff]
    %v29 = vld [vmem:[%s0 + $0x10] sm:$0xff]
    %v30 = vld [vmem:[%s0 + $0x18] sm:$0xff]
    %v31 = vld [vmem:[%s0 + $0x20] sm:$0xff]
    %v32 = vld [vmem:[%s0 + $0x28] sm:$0xff]
    %v33 = vld [vmem:[%s0 + $0x30] sm:$0xff]
    %v34 = vld [vmem:[%s0 + $0x38] sm:$0xff]
    %v35 = vld [vmem:[%s0 + $0x40] sm:$0xff]
    %v36 = vld [vmem:[%s0 + $0x48] sm:$0xff]
    %v37 = vld [vmem:[%s0 + $0x50] sm:$0xff]
    %v38 = vld [vmem:[%s0 + $0x58] sm:$0xff]
    %v39 = vld [vmem:[%s0 + $0x60] sm:$0xff]
    %v40 = vld [vmem:[%s0 + $0x68] sm:$0xff]
    %v41 = vld [vmem:[%s0 + $0x70] sm:$0xff]
    %v42 = vld [vmem:[%s0 + $0x78] sm:$0xff]
    %v43 = vld [vmem:[%s0 + $0x80] sm:$0xff]
    %v44 = vld [vmem:[%s0 + $0x88] sm:$0xff]
    %v45 = vld [vmem:[%s0 + $0x90] sm:$0xff]
    %v46 = vld [vmem:[%s0 + $0x98] sm:$0xff]
    %v47 = vld [vmem:[%s0 + $0xa0] sm:$0xff]
    %v48 = vld [vmem:[%s0 + $0xa8] sm:$0xff]
    %v49 = vld [vmem:[%s0 + $0xb0] sm:$0xff]
    %v50 = vld [vmem:[%s0 + $0xb8] sm:$0xff]
    %v51 = vld [vmem:[%s0 + $0xc0] sm:$0xff]
    %v52 = vld [vmem:[%s0 + $0xc8] sm:$0xff]
    %v53 = vld [vmem:[%s0 + $0xd0] sm:$0xff]
    %v54 = vld [vmem:[%s0 + $0xd8] sm:$0xff]
    %v55 = vld [vmem:[%s0 + $0xe0] sm:$0xff]
    %v56 = vld [vmem:[%s0 + $0xe8] sm:$0xff]
    %v57 = vld [vmem:[%s0 + $0xf0] sm:$0xff]
    %v58 = vld [vmem:[%s0 + $0xf8] sm:$0xff]
    %v59 = vld [vmem:[%s0 + $0x100] sm:$0xff]
    %v60 = vld [vmem:[%s0 + $0x108] sm:$0xff]
    %v61 = vld [vmem:[%s0 + $0x110] sm:$0xff]
    %v62 = vld [vmem:[%s0 + $0x118] sm:$0xff]
    %v63 = vld [vmem:[%s0 + $0x120] sm:$0xff]
    %v64 = vld [vmem:[%s0 + $0x128] sm:$0xff]
    %v65 = vld [vmem:[%s0 + $0x130] sm:$0xff]
    %v66 = vld [vmem:[%s0 + $0x138] sm:$0xff]
    %v67 = vld [vmem:[%s0 + $0x140] sm:$0xff]
    %v68 = vld [vmem:[%s0 + $0x148] sm:$0xff]
    %v69 = vld [vmem:[%s0 + $0x150] sm:$0xff]
    %v70 = vld [vmem:[%s0 + $0x158] sm:$0xff]
    %v71 = vld [vmem:[%s0 + $0x160] sm:$0xff]
    %v72 = vld [vmem:[%s0 + $0x168] sm:$0xff]
    %v73 = vld [vmem:[%s0 + $0x170] sm:$0xff]
    %v74 = vld [vmem:[%s0 + $0x178] sm:$0xff]
    %v75 = vld [vmem:[%s0 + $0x180] sm:$0xff]
    %v76 = vld [vmem:[%s0 + $0x188] sm:$0xff]
    %v77 = vld [vmem:[%s0 + $0x190] sm:$0xff]
    %v78 = vld [vmem:[%s0 + $0x198] sm:$0xff]
    %v79 = vld [vmem:[%s0 + $0x1a0] sm:$0xff]
    %v80 = vld [vmem:[%s0 + $0x1a8] sm:$0xff]
    %v81 = vld [vmem:[%s0 + $0x1b0] sm:$0xff]
    %v82 = vld [vmem:[%s0 + $0x1b8] sm:$0xff]
    %v83 = vld [vmem:[%s0 + $0x1c0] sm:$0xff]
    %v84 = vld [vmem:[%s0 + $0x1c8] sm:$0xff]
    %v85 = vld [vmem:[%s0 + $0x1d0] sm:$0xff]
    %v86 = vld [vmem:[%s0 + $0x1d8] sm:$0xff]
    %v87 = vld [vmem:[%s0 + $0x1e0] sm:$0xff]
    %v88 = vld [vmem:[%s0 + $0x1e8] sm:$0xff]
    %v89 = vld [vmem:[%s0 + $0x1f0] sm:$0xff]
    %v90 = vld [vmem:[%s0 + $0x1f8] sm:$0xff]
    %v91 = vpack.c.bf16 %v28, %v27
    %v92 = vpack.c.bf16 %v30, %v29
    %v93 = vpack.c.bf16 %v32, %v31
    %v94 = vpack.c.bf16 %v34, %v33
    %v95 = vpack.c.bf16 %v36, %v35
    %v96 = vpack.c.bf16 %v38, %v37
    %v97 = vpack.c.bf16 %v40, %v39
    %v98 = vpack.c.bf16 %v42, %v41
    %v99 = vpack.c.bf16 %v44, %v43
    %v100 = vpack.c.bf16 %v46, %v45
    %v101 = vpack.c.bf16 %v48, %v47
    %v102 = vpack.c.bf16 %v50, %v49
    %v103 = vpack.c.bf16 %v52, %v51
    %v104 = vpack.c.bf16 %v54, %v53
    %v105 = vpack.c.bf16 %v56, %v55
    %v106 = vpack.c.bf16 %v58, %v57
    %v107 = vpack.c.bf16 %v60, %v59
    %v108 = vpack.c.bf16 %v62, %v61
    %v109 = vpack.c.bf16 %v64, %v63
    %v110 = vpack.c.bf16 %v66, %v65
    %v111 = vpack.c.bf16 %v68, %v67
    %v112 = vpack.c.bf16 %v70, %v69
    %v113 = vpack.c.bf16 %v72, %v71
    %v114 = vpack.c.bf16 %v74, %v73
    %v115 = vpack.c.bf16 %v76, %v75
    %v116 = vpack.c.bf16 %v78, %v77
    %v117 = vpack.c.bf16 %v80, %v79
    %v118 = vpack.c.bf16 %v82, %v81
    %v119 = vpack.c.bf16 %v84, %v83
    %v120 = vpack.c.bf16 %v86, %v85
    %v121 = vpack.c.bf16 %v88, %v87
    %v122 = vpack.c.bf16 %v90, %v89
    %v123 = vld [vmem:[%s1] sm:$0x7]
    %v124 = vld [vmem:[#allocation2] sm:$0x1]
    %v126 = vlaneseq
    %v127 = vshrl.u32 %v126, 7
    %v128 = vsub.s32 0, %v127
    %v129 = vrot.slane %v124, %v128
    %vm131 = vcmask 48128
    %v133 = vsel %vm131, %v91, 0
    %v136 = vsel %vm131, %v92, 0
    %v139 = vsel %vm131, %v93, 0
    %v142 = vsel %vm131, %v94, 0
    %v145 = vsel %vm131, %v95, 0
    %v148 = vsel %vm131, %v96, 0
    %v151 = vsel %vm131, %v97, 0
    %v154 = vsel %vm131, %v98, 0
    %v157 = vsel %vm131, %v99, 0
    %v160 = vsel %vm131, %v100, 0
    %v163 = vsel %vm131, %v101, 0
    %v166 = vsel %vm131, %v102, 0
    %v169 = vsel %vm131, %v103, 0
    %v172 = vsel %vm131, %v104, 0
    %v175 = vsel %vm131, %v105, 0
    %v178 = vsel %vm131, %v106, 0
    %v181 = vsel %vm131, %v107, 0
    %v184 = vsel %vm131, %v108, 0
    %v187 = vsel %vm131, %v109, 0
    %v190 = vsel %vm131, %v110, 0
    %v193 = vsel %vm131, %v111, 0
    %v196 = vsel %vm131, %v112, 0
    %v199 = vsel %vm131, %v113, 0
    %v202 = vsel %vm131, %v114, 0
    %v205 = vsel %vm131, %v115, 0
    %v208 = vsel %vm131, %v116, 0
    %v211 = vsel %vm131, %v117, 0
    %v214 = vsel %vm131, %v118, 0
    %v217 = vsel %vm131, %v119, 0
    %v220 = vsel %vm131, %v120, 0
    %v223 = vsel %vm131, %v121, 0
    %v226 = vsel %vm131, %v122, 0
    %vm228 = vcmask 1042432
    %v230 = vsel %vm228, %v123, 0
    %232 = vmatprep.subr.bf16.mxu0 0
    %233 = vmatpush1.bf16.msra.mxu0 %v230
    %234 = vmatprep.subr.bf16.mxu0 0
    %235 = vmatpush1.bf16.msra.mxu0 0
    %236 = vmatprep.subr.bf16.mxu0 0
    %237 = vmatpush1.bf16.msra.mxu0 0
    %238 = vmatprep.subr.bf16.mxu0 0
    %239 = vmatpush1.bf16.msra.mxu0 0
    %240 = vmatprep.subr.bf16.mxu0 0
    %241 = vmatpush1.bf16.msra.mxu0 0
    %242 = vmatprep.subr.bf16.mxu0 0
    %243 = vmatpush1.bf16.msra.mxu0 0
    %244 = vmatprep.subr.bf16.mxu0 0
    %245 = vmatpush1.bf16.msra.mxu0 0
    %246 = vmatprep.subr.bf16.mxu0 0
    %247 = vmatpush1.bf16.msra.mxu0 0
    %248 = vmatprep.subr.bf16.mxu0 0
    %249 = vmatpush1.bf16.msra.mxu0 0
    %250 = vmatprep.subr.bf16.mxu0 0
    %251 = vmatpush1.bf16.msra.mxu0 0
    %252 = vmatprep.subr.bf16.mxu0 0
    %253 = vmatpush1.bf16.msra.mxu0 0
    %254 = vmatprep.subr.bf16.mxu0 0
    %255 = vmatpush1.bf16.msra.mxu0 0
    %256 = vmatprep.subr.bf16.mxu0 0
    %257 = vmatpush1.bf16.msra.mxu0 0
    %258 = vmatprep.subr.bf16.mxu0 0
    %259 = vmatpush1.bf16.msra.mxu0 0
    %260 = vmatprep.subr.bf16.mxu0 0
    %261 = vmatpush1.bf16.msra.mxu0 0
    %262 = vmatprep.subr.bf16.mxu0 0
    %263 = vmatpush1.bf16.msra.mxu0 0
    %264 = vmatprep.mubr.bf16.mxu0 0
    %265 = vmatmul.mubr.bf16.gmra.mrb[0].mxu0 %v133
    %v266 = vpop.f32.mrb[0].mxu0
    %v267 = vadd.f32 %v129, %v266
    %v268 = vpop.f32.mrb[0].mxu0
    %v269 = vpop.f32.mrb[0].mxu0
    %v270 = vadd.f32 %v129, %v269
    %v271 = vpop.f32.mrb[0].mxu0
    %272 = vmatprep.mubr.bf16.mxu0 0
    %273 = vmatmul.mubr.bf16.gmra.mrb[0].mxu0 %v136
    %v274 = vpop.f32.mrb[0].mxu0
    %v275 = vadd.f32 %v129, %v274
    %v276 = vpop.f32.mrb[0].mxu0
    %v277 = vpop.f32.mrb[0].mxu0
    %v278 = vadd.f32 %v129, %v277
    %v279 = vpop.f32.mrb[0].mxu0
    %280 = vmatprep.mubr.bf16.mxu0 0
    %281 = vmatmul.mubr.bf16.gmra.mrb[0].mxu0 %v139
    %v282 = vpop.f32.mrb[0].mxu0
    %v283 = vadd.f32 %v129, %v282
    %v284 = vpop.f32.mrb[0].mxu0
    %v285 = vpop.f32.mrb[0].mxu0
    %v286 = vadd.f32 %v129, %v285
    %v287 = vpop.f32.mrb[0].mxu0
    %288 = vmatprep.mubr.bf16.mxu0 0
    %289 = vmatmul.mubr.bf16.gmra.mrb[0].mxu0 %v142
    %v290 = vpop.f32.mrb[0].mxu0
    %v291 = vadd.f32 %v129, %v290
    %v292 = vpop.f32.mrb[0].mxu0
    %v293 = vpop.f32.mrb[0].mxu0
    %v294 = vadd.f32 %v129, %v293
    %v295 = vpop.f32.mrb[0].mxu0
    %296 = vmatprep.mubr.bf16.mxu0 0
    %297 = vmatmul.mubr.bf16.gmra.mrb[0].mxu0 %v145
    %v298 = vpop.f32.mrb[0].mxu0
    %v299 = vadd.f32 %v129, %v298
    %v300 = vpop.f32.mrb[0].mxu0
    %v301 = vpop.f32.mrb[0].mxu0
    %v302 = vadd.f32 %v129, %v301
    %v303 = vpop.f32.mrb[0].mxu0
    %304 = vmatprep.mubr.bf16.mxu0 0
    %305 = vmatmul.mubr.bf16.gmra.mrb[0].mxu0 %v148
    %v306 = vpop.f32.mrb[0].mxu0
    %v307 = vadd.f32 %v129, %v306
    %v308 = vpop.f32.mrb[0].mxu0
    %v309 = vpop.f32.mrb[0].mxu0
    %v310 = vadd.f32 %v129, %v309
    %v311 = vpop.f32.mrb[0].mxu0
    %312 = vmatprep.mubr.bf16.mxu0 0
    %313 = vmatmul.mubr.bf16.gmra.mrb[0].mxu0 %v151
    %v314 = vpop.f32.mrb[0].mxu0
    %v315 = vadd.f32 %v129, %v314
    %v316 = vpop.f32.mrb[0].mxu0
    %v317 = vpop.f32.mrb[0].mxu0
    %v318 = vadd.f32 %v129, %v317
    %v319 = vpop.f32.mrb[0].mxu0
    %320 = vmatprep.mubr.bf16.mxu0 0
    %321 = vmatmul.mubr.bf16.gmra.mrb[0].mxu0 %v154
    %v322 = vpop.f32.mrb[0].mxu0
    %v323 = vadd.f32 %v129, %v322
    %v324 = vpop.f32.mrb[0].mxu0
    %v325 = vpop.f32.mrb[0].mxu0
    %v326 = vadd.f32 %v129, %v325
    %v327 = vpop.f32.mrb[0].mxu0
    %328 = vmatprep.mubr.bf16.mxu0 0
    %329 = vmatmul.mubr.bf16.gmra.mrb[0].mxu0 %v157
    %v330 = vpop.f32.mrb[0].mxu0
    %v331 = vadd.f32 %v129, %v330
    %v332 = vpop.f32.mrb[0].mxu0
    %v333 = vpop.f32.mrb[0].mxu0
    %v334 = vadd.f32 %v129, %v333
    %v335 = vpop.f32.mrb[0].mxu0
    %336 = vmatprep.mubr.bf16.mxu0 0
    %337 = vmatmul.mubr.bf16.gmra.mrb[0].mxu0 %v160
    %v338 = vpop.f32.mrb[0].mxu0
    %v339 = vadd.f32 %v129, %v338
    %v340 = vpop.f32.mrb[0].mxu0
    %v341 = vpop.f32.mrb[0].mxu0
    %v342 = vadd.f32 %v129, %v341
    %v343 = vpop.f32.mrb[0].mxu0
    %344 = vmatprep.mubr.bf16.mxu0 0
    %345 = vmatmul.mubr.bf16.gmra.mrb[0].mxu0 %v163
    %v346 = vpop.f32.mrb[0].mxu0
    %v347 = vadd.f32 %v129, %v346
    %v348 = vpop.f32.mrb[0].mxu0
    %v349 = vpop.f32.mrb[0].mxu0
    %v350 = vadd.f32 %v129, %v349
    %v351 = vpop.f32.mrb[0].mxu0
    %352 = vmatprep.mubr.bf16.mxu0 0
    %353 = vmatmul.mubr.bf16.gmra.mrb[0].mxu0 %v166
    %v354 = vpop.f32.mrb[0].mxu0
    %v355 = vadd.f32 %v129, %v354
    %v356 = vpop.f32.mrb[0].mxu0
    %v357 = vpop.f32.mrb[0].mxu0
    %v358 = vadd.f32 %v129, %v357
    %v359 = vpop.f32.mrb[0].mxu0
    %360 = vmatprep.mubr.bf16.mxu0 0
    %361 = vmatmul.mubr.bf16.gmra.mrb[0].mxu0 %v169
    %v362 = vpop.f32.mrb[0].mxu0
    %v363 = vadd.f32 %v129, %v362
    %v364 = vpop.f32.mrb[0].mxu0
    %v365 = vpop.f32.mrb[0].mxu0
    %v366 = vadd.f32 %v129, %v365
    %v367 = vpop.f32.mrb[0].mxu0
    %368 = vmatprep.mubr.bf16.mxu0 0
    %369 = vmatmul.mubr.bf16.gmra.mrb[0].mxu0 %v172
    %v370 = vpop.f32.mrb[0].mxu0
    %v371 = vadd.f32 %v129, %v370
    %v372 = vpop.f32.mrb[0].mxu0
    %v373 = vpop.f32.mrb[0].mxu0
    %v374 = vadd.f32 %v129, %v373
    %v375 = vpop.f32.mrb[0].mxu0
    %376 = vmatprep.mubr.bf16.mxu0 0
    %377 = vmatmul.mubr.bf16.gmra.mrb[0].mxu0 %v175
    %v378 = vpop.f32.mrb[0].mxu0
    %v379 = vadd.f32 %v129, %v378
    %v380 = vpop.f32.mrb[0].mxu0
    %v381 = vpop.f32.mrb[0].mxu0
    %v382 = vadd.f32 %v129, %v381
    %v383 = vpop.f32.mrb[0].mxu0
    %384 = vmatprep.mubr.bf16.mxu0 0
    %385 = vmatmul.mubr.bf16.gmra.mrb[0].mxu0 %v178
    %v386 = vpop.f32.mrb[0].mxu0
    %v387 = vadd.f32 %v129, %v386
    %v388 = vpop.f32.mrb[0].mxu0
    %v389 = vpop.f32.mrb[0].mxu0
    %v390 = vadd.f32 %v129, %v389
    %v391 = vpop.f32.mrb[0].mxu0
    %392 = vmatprep.mubr.bf16.mxu0 0
    %393 = vmatmul.mubr.bf16.gmra.mrb[0].mxu0 %v181
    %v394 = vpop.f32.mrb[0].mxu0
    %v395 = vadd.f32 %v129, %v394
    %v396 = vpop.f32.mrb[0].mxu0
    %v397 = vpop.f32.mrb[0].mxu0
    %v398 = vadd.f32 %v129, %v397
    %v399 = vpop.f32.mrb[0].mxu0
    %400 = vmatprep.mubr.bf16.mxu0 0
    %401 = vmatmul.mubr.bf16.gmra.mrb[0].mxu0 %v184
    %v402 = vpop.f32.mrb[0].mxu0
    %v403 = vadd.f32 %v129, %v402
    %v404 = vpop.f32.mrb[0].mxu0
    %v405 = vpop.f32.mrb[0].mxu0
    %v406 = vadd.f32 %v129, %v405
    %v407 = vpop.f32.mrb[0].mxu0
    %408 = vmatprep.mubr.bf16.mxu0 0
    %409 = vmatmul.mubr.bf16.gmra.mrb[0].mxu0 %v187
    %v410 = vpop.f32.mrb[0].mxu0
    %v411 = vadd.f32 %v129, %v410
    %v412 = vpop.f32.mrb[0].mxu0
    %v413 = vpop.f32.mrb[0].mxu0
    %v414 = vadd.f32 %v129, %v413
    %v415 = vpop.f32.mrb[0].mxu0
    %416 = vmatprep.mubr.bf16.mxu0 0
    %417 = vmatmul.mubr.bf16.gmra.mrb[0].mxu0 %v190
    %v418 = vpop.f32.mrb[0].mxu0
    %v419 = vadd.f32 %v129, %v418
    %v420 = vpop.f32.mrb[0].mxu0
    %v421 = vpop.f32.mrb[0].mxu0
    %v422 = vadd.f32 %v129, %v421
    %v423 = vpop.f32.mrb[0].mxu0
    %424 = vmatprep.mubr.bf16.mxu0 0
    %425 = vmatmul.mubr.bf16.gmra.mrb[0].mxu0 %v193
    %v426 = vpop.f32.mrb[0].mxu0
    %v427 = vadd.f32 %v129, %v426
    %v428 = vpop.f32.mrb[0].mxu0
    %v429 = vpop.f32.mrb[0].mxu0
    %v430 = vadd.f32 %v129, %v429
    %v431 = vpop.f32.mrb[0].mxu0
    %432 = vmatprep.mubr.bf16.mxu0 0
    %433 = vmatmul.mubr.bf16.gmra.mrb[0].mxu0 %v196
    %v434 = vpop.f32.mrb[0].mxu0
    %v435 = vadd.f32 %v129, %v434
    %v436 = vpop.f32.mrb[0].mxu0
    %v437 = vpop.f32.mrb[0].mxu0
    %v438 = vadd.f32 %v129, %v437
    %v439 = vpop.f32.mrb[0].mxu0
    %440 = vmatprep.mubr.bf16.mxu0 0
    %441 = vmatmul.mubr.bf16.gmra.mrb[0].mxu0 %v199
    %v442 = vpop.f32.mrb[0].mxu0
    %v443 = vadd.f32 %v129, %v442
    %v444 = vpop.f32.mrb[0].mxu0
    %v445 = vpop.f32.mrb[0].mxu0
    %v446 = vadd.f32 %v129, %v445
    %v447 = vpop.f32.mrb[0].mxu0
    %448 = vmatprep.mubr.bf16.mxu0 0
    %449 = vmatmul.mubr.bf16.gmra.mrb[0].mxu0 %v202
    %v450 = vpop.f32.mrb[0].mxu0
    %v451 = vadd.f32 %v129, %v450
    %v452 = vpop.f32.mrb[0].mxu0
    %v453 = vpop.f32.mrb[0].mxu0
    %v454 = vadd.f32 %v129, %v453
    %v455 = vpop.f32.mrb[0].mxu0
    %456 = vmatprep.mubr.bf16.mxu0 0
    %457 = vmatmul.mubr.bf16.gmra.mrb[0].mxu0 %v205
    %v458 = vpop.f32.mrb[0].mxu0
    %v459 = vadd.f32 %v129, %v458
    %v460 = vpop.f32.mrb[0].mxu0
    %v461 = vpop.f32.mrb[0].mxu0
    %v462 = vadd.f32 %v129, %v461
    %v463 = vpop.f32.mrb[0].mxu0
    %464 = vmatprep.mubr.bf16.mxu0 0
    %465 = vmatmul.mubr.bf16.gmra.mrb[0].mxu0 %v208
    %v466 = vpop.f32.mrb[0].mxu0
    %v467 = vadd.f32 %v129, %v466
    %v468 = vpop.f32.mrb[0].mxu0
    %v469 = vpop.f32.mrb[0].mxu0
    %v470 = vadd.f32 %v129, %v469
    %v471 = vpop.f32.mrb[0].mxu0
    %472 = vmatprep.mubr.bf16.mxu0 0
    %473 = vmatmul.mubr.bf16.gmra.mrb[0].mxu0 %v211
    %v474 = vpop.f32.mrb[0].mxu0
    %v475 = vadd.f32 %v129, %v474
    %v476 = vpop.f32.mrb[0].mxu0
    %v477 = vpop.f32.mrb[0].mxu0
    %v478 = vadd.f32 %v129, %v477
    %v479 = vpop.f32.mrb[0].mxu0
    %480 = vmatprep.mubr.bf16.mxu0 0
    %481 = vmatmul.mubr.bf16.gmra.mrb[0].mxu0 %v214
    %v482 = vpop.f32.mrb[0].mxu0
    %v483 = vadd.f32 %v129, %v482
    %v484 = vpop.f32.mrb[0].mxu0
    %v485 = vpop.f32.mrb[0].mxu0
    %v486 = vadd.f32 %v129, %v485
    %v487 = vpop.f32.mrb[0].mxu0
    %488 = vmatprep.mubr.bf16.mxu0 0
    %489 = vmatmul.mubr.bf16.gmra.mrb[0].mxu0 %v217
    %v490 = vpop.f32.mrb[0].mxu0
    %v491 = vadd.f32 %v129, %v490
    %v492 = vpop.f32.mrb[0].mxu0
    %v493 = vpop.f32.mrb[0].mxu0
    %v494 = vadd.f32 %v129, %v493
    %v495 = vpop.f32.mrb[0].mxu0
    %496 = vmatprep.mubr.bf16.mxu0 0
    %497 = vmatmul.mubr.bf16.gmra.mrb[0].mxu0 %v220
    %v498 = vpop.f32.mrb[0].mxu0
    %v499 = vadd.f32 %v129, %v498
    %v500 = vpop.f32.mrb[0].mxu0
    %v501 = vpop.f32.mrb[0].mxu0
    %v502 = vadd.f32 %v129, %v501
    %v503 = vpop.f32.mrb[0].mxu0
    %504 = vmatprep.mubr.bf16.mxu0 0
    %505 = vmatmul.mubr.bf16.gmra.mrb[0].mxu0 %v223
    %v506 = vpop.f32.mrb[0].mxu0
    %v507 = vadd.f32 %v129, %v506
    %v508 = vpop.f32.mrb[0].mxu0
    %v509 = vpop.f32.mrb[0].mxu0
    %v510 = vadd.f32 %v129, %v509
    %v511 = vpop.f32.mrb[0].mxu0
    %512 = vmatprep.mubr.bf16.mxu0 0
    %513 = vmatmul.mubr.bf16.gmra.mrb[0].mxu0 %v226
    %v514 = vpop.f32.mrb[0].mxu0
    %v515 = vadd.f32 %v129, %v514
    %v516 = vpop.f32.mrb[0].mxu0
    %v517 = vpop.f32.mrb[0].mxu0
    %v518 = vadd.f32 %v129, %v517
    %v519 = vpop.f32.mrb[0].mxu0
    %520 = vdwg.mxu0
    %vm521 = vcmask 261120
    %522 = vst.msk [vmem:[%s3] sm:$0xff] %vm521, %v267
    %523 = vst.msk [vmem:[%s3 + $0x8] sm:$0xff] %vm521, %v270
    %524 = vst.msk [vmem:[%s3 + $0x10] sm:$0xff] %vm521, %v275
    %525 = vst.msk [vmem:[%s3 + $0x18] sm:$0xff] %vm521, %v278
    %526 = vst.msk [vmem:[%s3 + $0x20] sm:$0xff] %vm521, %v283
    %527 = vst.msk [vmem:[%s3 + $0x28] sm:$0xff] %vm521, %v286
    %528 = vst.msk [vmem:[%s3 + $0x30] sm:$0xff] %vm521, %v291
    %529 = vst.msk [vmem:[%s3 + $0x38] sm:$0xff] %vm521, %v294
    %530 = vst.msk [vmem:[%s3 + $0x40] sm:$0xff] %vm521, %v299
    %531 = vst.msk [vmem:[%s3 + $0x48] sm:$0xff] %vm521, %v302
    %532 = vst.msk [vmem:[%s3 + $0x50] sm:$0xff] %vm521, %v307
    %533 = vst.msk [vmem:[%s3 + $0x58] sm:$0xff] %vm521, %v310
    %534 = vst.msk [vmem:[%s3 + $0x60] sm:$0xff] %vm521, %v315
    %535 = vst.msk [vmem:[%s3 + $0x68] sm:$0xff] %vm521, %v318
    %536 = vst.msk [vmem:[%s3 + $0x70] sm:$0xff] %vm521, %v323
    %537 = vst.msk [vmem:[%s3 + $0x78] sm:$0xff] %vm521, %v326
    %538 = vst.msk [vmem:[%s3 + $0x80] sm:$0xff] %vm521, %v331
    %539 = vst.msk [vmem:[%s3 + $0x88] sm:$0xff] %vm521, %v334
    %540 = vst.msk [vmem:[%s3 + $0x90] sm:$0xff] %vm521, %v339
    %541 = vst.msk [vmem:[%s3 + $0x98] sm:$0xff] %vm521, %v342
    %542 = vst.msk [vmem:[%s3 + $0xa0] sm:$0xff] %vm521, %v347
    %543 = vst.msk [vmem:[%s3 + $0xa8] sm:$0xff] %vm521, %v350
    %544 = vst.msk [vmem:[%s3 + $0xb0] sm:$0xff] %vm521, %v355
    %545 = vst.msk [vmem:[%s3 + $0xb8] sm:$0xff] %vm521, %v358
    %546 = vst.msk [vmem:[%s3 + $0xc0] sm:$0xff] %vm521, %v363
    %547 = vst.msk [vmem:[%s3 + $0xc8] sm:$0xff] %vm521, %v366
    %548 = vst.msk [vmem:[%s3 + $0xd0] sm:$0xff] %vm521, %v371
    %549 = vst.msk [vmem:[%s3 + $0xd8] sm:$0xff] %vm521, %v374
    %550 = vst.msk [vmem:[%s3 + $0xe0] sm:$0xff] %vm521, %v379
    %551 = vst.msk [vmem:[%s3 + $0xe8] sm:$0xff] %vm521, %v382
    %552 = vst.msk [vmem:[%s3 + $0xf0] sm:$0xff] %vm521, %v387
    %553 = vst.msk [vmem:[%s3 + $0xf8] sm:$0xff] %vm521, %v390
    %554 = vst.msk [vmem:[%s3 + $0x100] sm:$0xff] %vm521, %v395
    %555 = vst.msk [vmem:[%s3 + $0x108] sm:$0xff] %vm521, %v398
    %556 = vst.msk [vmem:[%s3 + $0x110] sm:$0xff] %vm521, %v403
    %557 = vst.msk [vmem:[%s3 + $0x118] sm:$0xff] %vm521, %v406
    %558 = vst.msk [vmem:[%s3 + $0x120] sm:$0xff] %vm521, %v411
    %559 = vst.msk [vmem:[%s3 + $0x128] sm:$0xff] %vm521, %v414
    %560 = vst.msk [vmem:[%s3 + $0x130] sm:$0xff] %vm521, %v419
    %561 = vst.msk [vmem:[%s3 + $0x138] sm:$0xff] %vm521, %v422
    %562 = vst.msk [vmem:[%s3 + $0x140] sm:$0xff] %vm521, %v427
    %563 = vst.msk [vmem:[%s3 + $0x148] sm:$0xff] %vm521, %v430
    %564 = vst.msk [vmem:[%s3 + $0x150] sm:$0xff] %vm521, %v435
    %565 = vst.msk [vmem:[%s3 + $0x158] sm:$0xff] %vm521, %v438
    %566 = vst.msk [vmem:[%s3 + $0x160] sm:$0xff] %vm521, %v443
    %567 = vst.msk [vmem:[%s3 + $0x168] sm:$0xff] %vm521, %v446
    %568 = vst.msk [vmem:[%s3 + $0x170] sm:$0xff] %vm521, %v451
    %569 = vst.msk [vmem:[%s3 + $0x178] sm:$0xff] %vm521, %v454
    %570 = vst.msk [vmem:[%s3 + $0x180] sm:$0xff] %vm521, %v459
    %571 = vst.msk [vmem:[%s3 + $0x188] sm:$0xff] %vm521, %v462
    %572 = vst.msk [vmem:[%s3 + $0x190] sm:$0xff] %vm521, %v467
    %573 = vst.msk [vmem:[%s3 + $0x198] sm:$0xff] %vm521, %v470
    %574 = vst.msk [vmem:[%s3 + $0x1a0] sm:$0xff] %vm521, %v475
    %575 = vst.msk [vmem:[%s3 + $0x1a8] sm:$0xff] %vm521, %v478
    %576 = vst.msk [vmem:[%s3 + $0x1b0] sm:$0xff] %vm521, %v483
    %577 = vst.msk [vmem:[%s3 + $0x1b8] sm:$0xff] %vm521, %v486
    %578 = vst.msk [vmem:[%s3 + $0x1c0] sm:$0xff] %vm521, %v491
    %579 = vst.msk [vmem:[%s3 + $0x1c8] sm:$0xff] %vm521, %v494
    %580 = vst.msk [vmem:[%s3 + $0x1d0] sm:$0xff] %vm521, %v499
    %581 = vst.msk [vmem:[%s3 + $0x1d8] sm:$0xff] %vm521, %v502
    %582 = vst.msk [vmem:[%s3 + $0x1e0] sm:$0xff] %vm521, %v507
    %583 = vst.msk [vmem:[%s3 + $0x1e8] sm:$0xff] %vm521, %v510
    %584 = vst.msk [vmem:[%s3 + $0x1f0] sm:$0xff] %vm521, %v515
    %585 = vst.msk [vmem:[%s3 + $0x1f8] sm:$0xff] %vm521, %v518
    // Predicated region
    $region18: #{freqmoe_forward.10} parent=1 // pred_check
      _
    $region19: #{freqmoe_forward.10} parent=1 // pred_check_branch
      %587 = sbr.rel (0) target = $region21
    $region20: #{freqmoe_forward.10} parent=1 // pred_region
      _
    $region21: #{freqmoe_forward.10} parent=1 // pred_fallthru
      _
    // Predicated region
    $region22: #{freqmoe_forward.10} parent=1 // pred_check
      _
    $region23: #{freqmoe_forward.10} parent=1 // pred_check_branch
      %589 = sbr.rel (0) target = $region25
    $region24: #{freqmoe_forward.10} parent=1 // pred_region
      _
    $region25: #{freqmoe_forward.10} parent=1 // pred_fallthru
      _
    %590 = vsyncpa [#allocation3], 1

// kernel: reverse.8
$region0: #{reverse.8}
  #allocation0 [shape = 's32[1]{0}', space=sflag, size = 0x4, scoped, tag = 'scoped memory for reverse.8']
  %s0 = inlined_call_operand.vmem [shape: f32[2,32,18,8], index: 0, kind: input, shape index: {}]
  %s1 = inlined_call_operand.vmem [shape: f32[2,32,18,8], index: 1, kind: output, shape index: {}]
  %s2 = scalar_lea.vmem %s0, 168
  %v3 = vld [vmem:[%s2] sm:$0xff]
  %4 = vst [vmem:[%s1] sm:$0xff] %v3
  %s5 = scalar_lea.vmem %s0, 360
  %v6 = vld [vmem:[%s5] sm:$0xff]
  %s7 = scalar_lea.vmem %s1, 192
  %8 = vst [vmem:[%s7] sm:$0xff] %v6
  %s9 = scalar_lea.vmem %s0, 144
  %v10 = vld [vmem:[%s9] sm:$0xff]
  %s11 = scalar_lea.vmem %s1, 24
  %12 = vst [vmem:[%s11] sm:$0xff] %v10
  %s13 = scalar_lea.vmem %s0, 336
  %v14 = vld [vmem:[%s13] sm:$0xff]
  %s15 = scalar_lea.vmem %s1, 216
  %16 = vst [vmem:[%s15] sm:$0xff] %v14
  %s17 = scalar_lea.vmem %s0, 120
  %v18 = vld [vmem:[%s17] sm:$0xff]
  %s19 = scalar_lea.vmem %s1, 48
  %20 = vst [vmem:[%s19] sm:$0xff] %v18
  %s21 = scalar_lea.vmem %s0, 312
  %v22 = vld [vmem:[%s21] sm:$0xff]
  %s23 = scalar_lea.vmem %s1, 240
  %24 = vst [vmem:[%s23] sm:$0xff] %v22
  %s25 = scalar_lea.vmem %s0, 96
  %v26 = vld [vmem:[%s25] sm:$0xff]
  %s27 = scalar_lea.vmem %s1, 72
  %28 = vst [vmem:[%s27] sm:$0xff] %v26
  %s29 = scalar_lea.vmem %s0, 288
  %v30 = vld [vmem:[%s29] sm:$0xff]
  %s31 = scalar_lea.vmem %s1, 264
  %32 = vst [vmem:[%s31] sm:$0xff] %v30
  %s33 = scalar_lea.vmem %s0, 72
  %v34 = vld [vmem:[%s33] sm:$0xff]
  %s35 = scalar_lea.vmem %s1, 96
  %36 = vst [vmem:[%s35] sm:$0xff] %v34
  %s37 = scalar_lea.vmem %s0, 264
  %v38 = vld [vmem:[%s37] sm:$0xff]
  %s39 = scalar_lea.vmem %s1, 288
  %40 = vst [vmem:[%s39] sm:$0xff] %v38
  %s41 = scalar_lea.vmem %s0, 48
  %v42 = vld [vmem:[%s41] sm:$0xff]
  %s43 = scalar_lea.vmem %s1, 120
  %44 = vst [vmem:[%s43] sm:$0xff] %v42
  %s45 = scalar_lea.vmem %s0, 240
  %v46 = vld [vmem:[%s45] sm:$0xff]
  %s47 = scalar_lea.vmem %s1, 312
  %48 = vst [vmem:[%s47] sm:$0xff] %v46
  %s49 = scalar_lea.vmem %s0, 24
  %v50 = vld [vmem:[%s49] sm:$0xff]
  %s51 = scalar_lea.vmem %s1, 144
  %52 = vst [vmem:[%s51] sm:$0xff] %v50
  %s53 = scalar_lea.vmem %s0, 216
  %v54 = vld [vmem:[%s53] sm:$0xff]
  %s55 = scalar_lea.vmem %s1, 336
  %56 = vst [vmem:[%s55] sm:$0xff] %v54
  %v57 = vld [vmem:[%s0] sm:$0xff]
  %s58 = scalar_lea.vmem %s1, 168
  %59 = vst [vmem:[%s58] sm:$0xff] %v57
  %s60 = scalar_lea.vmem %s0, 192
  %v61 = vld [vmem:[%s60] sm:$0xff]
  %s62 = scalar_lea.vmem %s1, 360
  %63 = vst [vmem:[%s62] sm:$0xff] %v61
  %s64 = scalar_lea.vmem %s0, 176
  %v65 = vld [vmem:[%s64] sm:$0xff]
  %s66 = scalar_lea.vmem %s1, 8
  %67 = vst [vmem:[%s66] sm:$0xff] %v65
  %s68 = scalar_lea.vmem %s0, 368
  %v69 = vld [vmem:[%s68] sm:$0xff]
  %s70 = scalar_lea.vmem %s1, 200
  %71 = vst [vmem:[%s70] sm:$0xff] %v69
  %s72 = scalar_lea.vmem %s0, 152
  %v73 = vld [vmem:[%s72] sm:$0xff]
  %s74 = scalar_lea.vmem %s1, 32
  %75 = vst [vmem:[%s74] sm:$0xff] %v73
  %s76 = scalar_lea.vmem %s0, 344
  %v77 = vld [vmem:[%s76] sm:$0xff]
  %s78 = scalar_lea.vmem %s1, 224
  %79 = vst [vmem:[%s78] sm:$0xff] %v77
  %s80 = scalar_lea.vmem %s0, 128
  %v81 = vld [vmem:[%s80] sm:$0xff]
  %s82 = scalar_lea.vmem %s1, 56
  %83 = vst [vmem:[%s82] sm:$0xff] %v81
  %s84 = scalar_lea.vmem %s0, 320
  %v85 = vld [vmem:[%s84] sm:$0xff]
  %s86 = scalar_lea.vmem %s1, 248
  %87 = vst [vmem:[%s86] sm:$0xff] %v85
  %s88 = scalar_lea.vmem %s0, 104
  %v89 = vld [vmem:[%s88] sm:$0xff]
  %s90 = scalar_lea.vmem %s1, 80
  %91 = vst [vmem:[%s90] sm:$0xff] %v89
  %s92 = scalar_lea.vmem %s0, 296
  %v93 = vld [vmem:[%s92] sm:$0xff]
  %s94 = scalar_lea.vmem %s1, 272
  %95 = vst [vmem:[%s94] sm:$0xff] %v93
  %s96 = scalar_lea.vmem %s0, 80
  %v97 = vld [vmem:[%s96] sm:$0xff]
  %s98 = scalar_lea.vmem %s1, 104
  %99 = vst [vmem:[%s98] sm:$0xff] %v97
  %s100 = scalar_lea.vmem %s0, 272
  %v101 = vld [vmem:[%s100] sm:$0xff]
  %s102 = scalar_lea.vmem %s1, 296
  %103 = vst [vmem:[%s102] sm:$0xff] %v101
  %s104 = scalar_lea.vmem %s0, 56
  %v105 = vld [vmem:[%s104] sm:$0xff]
  %s106 = scalar_lea.vmem %s1, 128
  %107 = vst [vmem:[%s106] sm:$0xff] %v105
  %s108 = scalar_lea.vmem %s0, 248
  %v109 = vld [vmem:[%s108] sm:$0xff]
  %s110 = scalar_lea.vmem %s1, 320
  %111 = vst [vmem:[%s110] sm:$0xff] %v109
  %s112 = scalar_lea.vmem %s0, 32
  %v113 = vld [vmem:[%s112] sm:$0xff]
  %s114 = scalar_lea.vmem %s1, 152
  %115 = vst [vmem:[%s114] sm:$0xff] %v113
  %s116 = scalar_lea.vmem %s0, 224
  %v117 = vld [vmem:[%s116] sm:$0xff]
  %s118 = scalar_lea.vmem %s1, 344
  %119 = vst [vmem:[%s118] sm:$0xff] %v117
  %s120 = scalar_lea.vmem %s0, 8
  %v121 = vld [vmem:[%s120] sm:$0xff]
  %s122 = scalar_lea.vmem %s1, 176
  %123 = vst [vmem:[%s122] sm:$0xff] %v121
  %s124 = scalar_lea.vmem %s0, 200
  %v125 = vld [vmem:[%s124] sm:$0xff]
  %s126 = scalar_lea.vmem %s1, 368
  %127 = vst [vmem:[%s126] sm:$0xff] %v125
  %s128 = scalar_lea.vmem %s0, 184
  %v129 = vld [vmem:[%s128] sm:$0xff]
  %s130 = scalar_lea.vmem %s1, 16
  %131 = vst [vmem:[%s130] sm:$0xff] %v129
  %s132 = scalar_lea.vmem %s0, 376
  %v133 = vld [vmem:[%s132] sm:$0xff]
  %s134 = scalar_lea.vmem %s1, 208
  %135 = vst [vmem:[%s134] sm:$0xff] %v133
  %s136 = scalar_lea.vmem %s0, 160
  %v137 = vld [vmem:[%s136] sm:$0xff]
  %s138 = scalar_lea.vmem %s1, 40
  %139 = vst [vmem:[%s138] sm:$0xff] %v137
  %s140 = scalar_lea.vmem %s0, 352
  %v141 = vld [vmem:[%s140] sm:$0xff]
  %s142 = scalar_lea.vmem %s1, 232
  %143 = vst [vmem:[%s142] sm:$0xff] %v141
  %s144 = scalar_lea.vmem %s0, 136
  %v145 = vld [vmem:[%s144] sm:$0xff]
  %s146 = scalar_lea.vmem %s1, 64
  %147 = vst [vmem:[%s146] sm:$0xff] %v145
  %s148 = scalar_lea.vmem %s0, 328
  %v149 = vld [vmem:[%s148] sm:$0xff]
  %s150 = scalar_lea.vmem %s1, 256
  %151 = vst [vmem:[%s150] sm:$0xff] %v149
  %s152 = scalar_lea.vmem %s0, 112
  %v153 = vld [vmem:[%s152] sm:$0xff]
  %s154 = scalar_lea.vmem %s1, 88
  %155 = vst [vmem:[%s154] sm:$0xff] %v153
  %s156 = scalar_lea.vmem %s0, 304
  %v157 = vld [vmem:[%s156] sm:$0xff]
  %s158 = scalar_lea.vmem %s1, 280
  %159 = vst [vmem:[%s158] sm:$0xff] %v157
  %s160 = scalar_lea.vmem %s0, 88
  %v161 = vld [vmem:[%s160] sm:$0xff]
  %s162 = scalar_lea.vmem %s1, 112
  %163 = vst [vmem:[%s162] sm:$0xff] %v161
  %s164 = scalar_lea.vmem %s0, 280
  %v165 = vld [vmem:[%s164] sm:$0xff]
  %s166 = scalar_lea.vmem %s1, 304
  %167 = vst [vmem:[%s166] sm:$0xff] %v165
  %s168 = scalar_lea.vmem %s0, 64
  %v169 = vld [vmem:[%s168] sm:$0xff]
  %s170 = scalar_lea.vmem %s1, 136
  %171 = vst [vmem:[%s170] sm:$0xff] %v169
  %s172 = scalar_lea.vmem %s0, 256
  %v173 = vld [vmem:[%s172] sm:$0xff]
  %s174 = scalar_lea.vmem %s1, 328
  %175 = vst [vmem:[%s174] sm:$0xff] %v173
  %s176 = scalar_lea.vmem %s0, 40
  %v177 = vld [vmem:[%s176] sm:$0xff]
  %s178 = scalar_lea.vmem %s1, 160
  %179 = vst [vmem:[%s178] sm:$0xff] %v177
  %s180 = scalar_lea.vmem %s0, 232
  %v181 = vld [vmem:[%s180] sm:$0xff]
  %s182 = scalar_lea.vmem %s1, 352
  %183 = vst [vmem:[%s182] sm:$0xff] %v181
  %s184 = scalar_lea.vmem %s0, 16
  %v185 = vld [vmem:[%s184] sm:$0xff]
  %s186 = scalar_lea.vmem %s1, 184
  %187 = vst [vmem:[%s186] sm:$0xff] %v185
  %s188 = scalar_lea.vmem %s0, 208
  %v189 = vld [vmem:[%s188] sm:$0xff]
  %s190 = scalar_lea.vmem %s1, 376
  %191 = vst [vmem:[%s190] sm:$0xff] %v189

// kernel: freqmoe_forward.11
$region0: #{freqmoe_forward.11}
  #allocation0 [shape = 'u32[]', space=smem, size = 0x4, offset = 0x4, fixed_abs, tag = 'smem constant byte address 0x4 - core index']
  #allocation1 [shape = 'u32[144,128]{1,0:T(1,128)}', space=vmem, size = 0x12000, scoped, tag = 'internal scratch']
  %s0 = inlined_call_operand.vmem [shape: f32[2,64], index: 0, kind: input, shape index: {}]
  %s1 = inlined_call_operand.vmem [shape: f32[72,4,32], index: 1, kind: input, shape index: {}]
  %s2 = inlined_call_operand.vmem [shape: bf16[72,32,192], index: 2, kind: input, shape index: {}]
  %s3 = inlined_call_operand.vmem [shape: bf16[72,64,64], index: 3, kind: input, shape index: {}]
  %s4 = inlined_call_operand.vmem [shape: f32[72,4,32], index: 4, kind: output, shape index: {}]
  %s5 = sld [smem:[#allocation0]]
  $region49: #{freqmoe_forward.11} parent=0
    _
  %s7 = ssub.s32 1, %s5
  %s8 = scalar_select 0, %s7, %s5
  loop: start=0, step=1, limit=4
  $region2: #{freqmoe_forward.11} parent=0 // loop_pre_header
    _
  $region3: #{freqmoe_forward.11} parent=0 // loop_header
    %s10 = sphi 0, %s14
    %p11 = scmp.ge.s32.totalorder %s10, 4
    %s18 = sphi 0, %s18
    %s20 = sphi 0, %s18
    %s21 = sphi 0, %s20
    %s35 = sphi 0, %s21
    %s41 = sphi 0, %s43
    %s44 = sphi 0, %s41
    %s45 = sphi 0, %s44
    %s61 = sphi 0, %s45
    %s67 = sphi 0, %s69
    %s70 = sphi 0, %s67
    %s71 = sphi 0, %s70
    %s87 = sphi 0, %s71
    %s93 = sphi 0, %s95
    %s96 = sphi 0, %s93
    %s97 = sphi 0, %s96
    %s113 = sphi 0, %s97
    %s119 = sphi 0, %s121
    %s122 = sphi 0, %s119
    %s123 = sphi 0, %s122
    %s139 = sphi 0, %s123
  $region4: #{freqmoe_forward.11} parent=0 // loop_header_branch
    %13 = sbr.rel (%p11) target = $region8
  $region5: #{freqmoe_forward.11} parent=0 // loop_body
    %s15 = ssub.s32 %s10, 1
    %s16 = ssub.s32 %s10, 2
    %s17 = sadd.s32 %s10, 1
    %s19 = sadd.s32 %s18, 1
    %p22 = scmp.eq.s32.totalorder %s10, 1
    %p23 = scmp.ne.s32.totalorder %s18, %s20
    %p24 = scmp.eq.s32.totalorder %s10, 0
    %p25 = por %p23, %p24
    %p26 = scmp.ne.s32.totalorder %s18, %s20
    %p27 = scmp.eq.s32.totalorder %s15, 1
    %p28 = por %p26, %p27
    %p29 = scmp.ne.s32.totalorder %s20, %s21
    %p30 = scmp.eq.s32.totalorder %s15, 0
    %p31 = por %p29, %p30
    %p32 = scmp.ne.s32.totalorder %s20, %s21
    %p33 = scmp.eq.s32.totalorder %s16, 1
    %p34 = por %p32, %p33
    %p36 = scmp.ne.s32.totalorder %s21, %s35
    %p37 = scmp.eq.s32.totalorder %s16, 0
    %p38 = por %p36, %p37
    %s39 = ssub.s32 %s10, %s17
    %p40 = scmp.eq.s32.totalorder %s39, 0
    %s42 = sadd.s32 %s41, 1
    %s43 = scalar_select %p40, %s41, %s42
    %p46 = pneg %p40
    %p47 = scmp.eq.s32.totalorder %s10, 1
    %p48 = por %p46, %p47
    %p49 = scmp.ne.s32.totalorder %s41, %s44
    %p50 = scmp.eq.s32.totalorder %s10, 0
    %p51 = por %p49, %p50
    %p52 = scmp.ne.s32.totalorder %s41, %s44
    %p53 = scmp.eq.s32.totalorder %s15, 1
    %p54 = por %p52, %p53
    %p55 = scmp.ne.s32.totalorder %s44, %s45
    %p56 = scmp.eq.s32.totalorder %s15, 0
    %p57 = por %p55, %p56
    %p58 = scmp.ne.s32.totalorder %s44, %s45
    %p59 = scmp.eq.s32.totalorder %s16, 1
    %p60 = por %p58, %p59
    %p62 = scmp.ne.s32.totalorder %s45, %s61
    %p63 = scmp.eq.s32.totalorder %s16, 0
    %p64 = por %p62, %p63
    %s65 = ssub.s32 %s10, %s17
    %p66 = scmp.eq.s32.totalorder %s65, 0
    %s68 = sadd.s32 %s67, 1
    %s69 = scalar_select %p66, %s67, %s68
    %p72 = pneg %p66
    %p73 = scmp.eq.s32.totalorder %s10, 1
    %p74 = por %p72, %p73
    %p75 = scmp.ne.s32.totalorder %s67, %s70
    %p76 = scmp.eq.s32.totalorder %s10, 0
    %p77 = por %p75, %p76
    %p78 = scmp.ne.s32.totalorder %s67, %s70
    %p79 = scmp.eq.s32.totalorder %s15, 1
    %p80 = por %p78, %p79
    %p81 = scmp.ne.s32.totalorder %s70, %s71
    %p82 = scmp.eq.s32.totalorder %s15, 0
    %p83 = por %p81, %p82
    %p84 = scmp.ne.s32.totalorder %s70, %s71
    %p85 = scmp.eq.s32.totalorder %s16, 1
    %p86 = por %p84, %p85
    %p88 = scmp.ne.s32.totalorder %s71, %s87
    %p89 = scmp.eq.s32.totalorder %s16, 0
    %p90 = por %p88, %p89
    %s91 = ssub.s32 %s10, %s17
    %p92 = scmp.eq.s32.totalorder %s91, 0
    %s94 = sadd.s32 %s93, 1
    %s95 = scalar_select %p92, %s93, %s94
    %p98 = pneg %p92
    %p99 = scmp.eq.s32.totalorder %s10, 1
    %p100 = por %p98, %p99
    %p101 = scmp.ne.s32.totalorder %s93, %s96
    %p102 = scmp.eq.s32.totalorder %s10, 0
    %p103 = por %p101, %p102
    %p104 = scmp.ne.s32.totalorder %s93, %s96
    %p105 = scmp.eq.s32.totalorder %s15, 1
    %p106 = por %p104, %p105
    %p107 = scmp.ne.s32.totalorder %s96, %s97
    %p108 = scmp.eq.s32.totalorder %s15, 0
    %p109 = por %p107, %p108
    %p110 = scmp.ne.s32.totalorder %s96, %s97
    %p111 = scmp.eq.s32.totalorder %s16, 1
    %p112 = por %p110, %p111
    %p114 = scmp.ne.s32.totalorder %s97, %s113
    %p115 = scmp.eq.s32.totalorder %s16, 0
    %p116 = por %p114, %p115
    %s117 = ssub.s32 %s10, %s17
    %p118 = scmp.eq.s32.totalorder %s117, 0
    %s120 = sadd.s32 %s119, 1
    %s121 = scalar_select %p118, %s119, %s120
    %p124 = pneg %p118
    %p125 = scmp.eq.s32.totalorder %s10, 1
    %p126 = por %p124, %p125
    %p127 = scmp.ne.s32.totalorder %s119, %s122
    %p128 = scmp.eq.s32.totalorder %s10, 0
    %p129 = por %p127, %p128
    %p130 = scmp.ne.s32.totalorder %s119, %s122
    %p131 = scmp.eq.s32.totalorder %s15, 1
    %p132 = por %p130, %p131
    %p133 = scmp.ne.s32.totalorder %s122, %s123
    %p134 = scmp.eq.s32.totalorder %s15, 0
    %p135 = por %p133, %p134
    %p136 = scmp.ne.s32.totalorder %s122, %s123
    %p137 = scmp.eq.s32.totalorder %s16, 1
    %p138 = por %p136, %p137
    %p140 = scmp.ne.s32.totalorder %s123, %s139
    %p141 = scmp.eq.s32.totalorder %s16, 0
    %p142 = por %p140, %p141
    %p143 = scmp.le.s32.totalorder 1, %s10
    %p144 = scmp.lt.s32.totalorder %s10, 3
    %p145 = pnand %p143, %p144
    %p146 = pneg %p145
    // Predicated region
    $region9: #{freqmoe_forward.11} parent=5 // pred_check
      _
    $region10: #{freqmoe_forward.11} parent=5 // pred_check_branch
      %148 = sbr.rel (%p145) target = $region12
    $region11: #{freqmoe_forward.11} parent=5 // pred_region
      %s149 = ssub.s32 %s10, 1
      // Predicated region
      $region13: #{freqmoe_forward.11} parent=11 // pred_check
        %p150 = pneg %p31
      $region14: #{freqmoe_forward.11} parent=11 // pred_check_branch
        %152 = sbr.rel (%p150) target = $region16
      $region15: #{freqmoe_forward.11} parent=11 // pred_region
        _
      $region16: #{freqmoe_forward.11} parent=11 // pred_fallthru
        _
    $region12: #{freqmoe_forward.11} parent=5 // pred_fallthru
      _
    %p153 = scmp.lt.s32.totalorder %s10, 2
    // Predicated region
    $region17: #{freqmoe_forward.11} parent=5 // pred_check
      %p154 = pneg %p153
    $region18: #{freqmoe_forward.11} parent=5 // pred_check_branch
      %156 = sbr.rel (%p154) target = $region20
    $region19: #{freqmoe_forward.11} parent=5 // pred_region
      // Predicated region
      $region21: #{freqmoe_forward.11} parent=19 // pred_check
        %p157 = pneg %p51
      $region22: #{freqmoe_forward.11} parent=19 // pred_check_branch
        %159 = sbr.rel (%p157) target = $region24
      $region23: #{freqmoe_forward.11} parent=19 // pred_region
        %s160 = smul.u32 36, %s10
        %p161 = scmp.lt.s32.totalorder %s160, 71
        %s162 = scalar_select %p161, %s160, 71
        %s163 = smul.addr %s162, 4
        %s164 = scalar_lea.vmem %s1, %s163
        %s165 = smul.u32 36, %s10
      $region24: #{freqmoe_forward.11} parent=19 // pred_fallthru
        _
      // Predicated region
      $region25: #{freqmoe_forward.11} parent=19 // pred_check
        %p166 = pneg %p77
      $region26: #{freqmoe_forward.11} parent=19 // pred_check_branch
        %168 = sbr.rel (%p166) target = $region28
      $region27: #{freqmoe_forward.11} parent=19 // pred_region
        %s169 = smul.u32 36, %s10
        %p170 = scmp.lt.s32.totalorder %s169, 71
        %s171 = scalar_select %p170, %s169, 71
        %s172 = smul.addr %s171, 8
        %s173 = smul.addr %s172, 4
        %s174 = scalar_lea.vmem %s2, %s173
        %s175 = smul.u32 36, %s10
      $region28: #{freqmoe_forward.11} parent=19 // pred_fallthru
        _
      // Predicated region
      $region29: #{freqmoe_forward.11} parent=19 // pred_check
        %p176 = pneg %p103
      $region30: #{freqmoe_forward.11} parent=19 // pred_check_branch
        %178 = sbr.rel (%p176) target = $region32
      $region31: #{freqmoe_forward.11} parent=19 // pred_region
        %s179 = smul.u32 36, %s10
        %p180 = scmp.lt.s32.totalorder %s179, 71
        %s181 = scalar_select %p180, %s179, 71
        %s182 = smul.addr %s181, 8
        %s183 = smul.addr %s182, 4
        %s184 = scalar_lea.vmem %s3, %s183
        %s185 = smul.u32 36, %s10
      $region32: #{freqmoe_forward.11} parent=19 // pred_fallthru
        _
    $region20: #{freqmoe_forward.11} parent=5 // pred_fallthru
      _
    %p186 = scmp.le.s32.totalorder 1, %s10
    %p187 = scmp.lt.s32.totalorder %s10, 3
    %p188 = pnand %p186, %p187
    %p189 = pneg %p188
    // Predicated region
    $region33: #{freqmoe_forward.11} parent=5 // pred_check
      _
    $region34: #{freqmoe_forward.11} parent=5 // pred_check_branch
      %191 = sbr.rel (%p188) target = $region36
    $region35: #{freqmoe_forward.11} parent=5 // pred_region
      %s192 = ssub.s32 %s10, 1
      %p193 = pneg %p31
      %p194 = pneg %p28
      %s195 = smul.u32 36, %s15
      %p196 = scmp.lt.s32.totalorder %s195, 71
      %s197 = scalar_select %p196, %s195, 71
      %s198 = smul.addr %s197, 4
      %s199 = scalar_lea.vmem %s1, %s198
      %p200 = pneg %p57
      %p201 = pneg %p54
      %s202 = smul.u32 36, %s15
      %p203 = scmp.lt.s32.totalorder %s202, 71
      %s204 = scalar_select %p203, %s202, 71
      %s205 = smul.addr %s204, 8
      %s206 = smul.addr %s205, 4
      %s207 = scalar_lea.vmem %s2, %s206
      %p208 = pneg %p83
      %p209 = pneg %p80
      %s210 = smul.u32 36, %s15
      %p211 = scmp.lt.s32.totalorder %s210, 71
      %s212 = scalar_select %p211, %s210, 71
      %s213 = smul.addr %s212, 8
      %s214 = smul.addr %s213, 4
      %s215 = scalar_lea.vmem %s3, %s214
      %p216 = pneg %p109
      %p217 = pneg %p106
      %p218 = pneg %p135
      %p219 = pneg %p132
      %s220 = smul.u32 36, %s15
      %p221 = scmp.lt.s32.totalorder %s220, 71
      %s222 = scalar_select %p221, %s220, 71
      %s223 = smul.addr %s222, 4
      %s224 = scalar_lea.vmem %s4, %s223
      %s225 = smul.u32 36, %s15
      %p226 = scmp.lt.s32.totalorder %s225, 71
      %s227 = scalar_select %p226, %s225, 71
      %s228 = smul.addr %s227, 4
      %s229 = scalar_lea.vmem %s1, %s228
      %s230 = smul.u32 36, %s15
      %s231 = smul.u32 36, %s15
      %p232 = scmp.lt.s32.totalorder %s231, 71
      %s233 = scalar_select %p232, %s231, 71
      %s234 = smul.addr %s233, 8
      %s235 = smul.addr %s234, 4
      %s236 = scalar_lea.vmem %s2, %s235
      %s237 = smul.u32 36, %s15
      %s238 = smul.u32 36, %s15
      %p239 = scmp.lt.s32.totalorder %s238, 71
      %s240 = scalar_select %p239, %s238, 71
      %s241 = smul.addr %s240, 8
      %s242 = smul.addr %s241, 4
      %s243 = scalar_lea.vmem %s3, %s242
      %s244 = smul.u32 36, %s15
      %s245 = smul.u32 36, %s15
      %p246 = scmp.lt.s32.totalorder %s245, 71
      %s247 = scalar_select %p246, %s245, 71
      %s248 = smul.addr %s247, 4
      %s249 = scalar_lea.vmem %s4, %s248
      %s250 = smul.u32 36, %s15
      %v252 = vld [vmem:[%s229] sm:$0xf]
      %v253 = vld [vmem:[%s229 + $0x4] sm:$0xf]
      %v254 = vld [vmem:[%s229 + $0x8] sm:$0xf]
      %v255 = vld [vmem:[%s229 + $0xc] sm:$0xf]
      %v256 = vld [vmem:[%s229 + $0x10] sm:$0xf]
      %v257 = vld [vmem:[%s229 + $0x14] sm:$0xf]
      %v258 = vld [vmem:[%s229 + $0x18] sm:$0xf]
      %v259 = vld [vmem:[%s229 + $0x1c] sm:$0xf]
      %v260 = vld [vmem:[%s229 + $0x20] sm:$0xf]
      %v261 = vld [vmem:[%s229 + $0x24] sm:$0xf]
      %v262 = vld [vmem:[%s229 + $0x28] sm:$0xf]
      %v263 = vld [vmem:[%s229 + $0x2c] sm:$0xf]
      %v264 = vld [vmem:[%s229 + $0x30] sm:$0xf]
      %v265 = vld [vmem:[%s229 + $0x34] sm:$0xf]
      %v266 = vld [vmem:[%s229 + $0x38] sm:$0xf]
      %v267 = vld [vmem:[%s229 + $0x3c] sm:$0xf]
      %v268 = vld [vmem:[%s229 + $0x40] sm:$0xf]
      %v269 = vld [vmem:[%s229 + $0x44] sm:$0xf]
      %v270 = vld [vmem:[%s229 + $0x48] sm:$0xf]
      %v271 = vld [vmem:[%s229 + $0x4c] sm:$0xf]
      %v272 = vld [vmem:[%s229 + $0x50] sm:$0xf]
      %v273 = vld [vmem:[%s229 + $0x54] sm:$0xf]
      %v274 = vld [vmem:[%s229 + $0x58] sm:$0xf]
      %v275 = vld [vmem:[%s229 + $0x5c] sm:$0xf]
      %v276 = vld [vmem:[%s229 + $0x60] sm:$0xf]
      %v277 = vld [vmem:[%s229 + $0x64] sm:$0xf]
      %v278 = vld [vmem:[%s229 + $0x68] sm:$0xf]
      %v279 = vld [vmem:[%s229 + $0x6c] sm:$0xf]
      %v280 = vld [vmem:[%s229 + $0x70] sm:$0xf]
      %v281 = vld [vmem:[%s229 + $0x74] sm:$0xf]
      %v282 = vld [vmem:[%s229 + $0x78] sm:$0xf]
      %v283 = vld [vmem:[%s229 + $0x7c] sm:$0xf]
      %v284 = vld [vmem:[%s229 + $0x80] sm:$0xf]
      %v285 = vld [vmem:[%s229 + $0x84] sm:$0xf]
      %v286 = vld [vmem:[%s229 + $0x88] sm:$0xf]
      %v287 = vld [vmem:[%s229 + $0x8c] sm:$0xf]
      %v288 = vpack.c.bf16 %v252, %v252
      %v289 = vpack.c.bf16 %v253, %v253
      %v290 = vpack.c.bf16 %v254, %v254
      %v291 = vpack.c.bf16 %v255, %v255
      %v292 = vpack.c.bf16 %v256, %v256
      %v293 = vpack.c.bf16 %v257, %v257
      %v294 = vpack.c.bf16 %v258, %v258
      %v295 = vpack.c.bf16 %v259, %v259
      %v296 = vpack.c.bf16 %v260, %v260
      %v297 = vpack.c.bf16 %v261, %v261
      %v298 = vpack.c.bf16 %v262, %v262
      %v299 = vpack.c.bf16 %v263, %v263
      %v300 = vpack.c.bf16 %v264, %v264
      %v301 = vpack.c.bf16 %v265, %v265
      %v302 = vpack.c.bf16 %v266, %v266
      %v303 = vpack.c.bf16 %v267, %v267
      %v304 = vpack.c.bf16 %v268, %v268
      %v305 = vpack.c.bf16 %v269, %v269
      %v306 = vpack.c.bf16 %v270, %v270
      %v307 = vpack.c.bf16 %v271, %v271
      %v308 = vpack.c.bf16 %v272, %v272
      %v309 = vpack.c.bf16 %v273, %v273
      %v310 = vpack.c.bf16 %v274, %v274
      %v311 = vpack.c.bf16 %v275, %v275
      %v312 = vpack.c.bf16 %v276, %v276
      %v313 = vpack.c.bf16 %v277, %v277
      %v314 = vpack.c.bf16 %v278, %v278
      %v315 = vpack.c.bf16 %v279, %v279
      %v316 = vpack.c.bf16 %v280, %v280
      %v317 = vpack.c.bf16 %v281, %v281
      %v318 = vpack.c.bf16 %v282, %v282
      %v319 = vpack.c.bf16 %v283, %v283
      %v320 = vpack.c.bf16 %v284, %v284
      %v321 = vpack.c.bf16 %v285, %v285
      %v322 = vpack.c.bf16 %v286, %v286
      %v323 = vpack.c.bf16 %v287, %v287
      %v324 = vld [vmem:[%s0] sm:$0x3]
      %v325 = vld [vmem:[%s236] sm:$0xff]
      %v326 = vld [vmem:[%s236 + $0x8] sm:$0xff]
      %v327 = vld [vmem:[%s236 + $0x10] sm:$0xff]
      %v328 = vld [vmem:[%s236 + $0x18] sm:$0xff]
      %v329 = vld [vmem:[%s236 + $0x20] sm:$0xff]
      %v330 = vld [vmem:[%s236 + $0x28] sm:$0xff]
      %v331 = vld [vmem:[%s236 + $0x30] sm:$0xff]
      %v332 = vld [vmem:[%s236 + $0x38] sm:$0xff]
      %v333 = vld [vmem:[%s236 + $0x40] sm:$0xff]
      %v334 = vld [vmem:[%s236 + $0x48] sm:$0xff]
      %v335 = vld [vmem:[%s236 + $0x50] sm:$0xff]
      %v336 = vld [vmem:[%s236 + $0x58] sm:$0xff]
      %v337 = vld [vmem:[%s236 + $0x60] sm:$0xff]
      %v338 = vld [vmem:[%s236 + $0x68] sm:$0xff]
      %v339 = vld [vmem:[%s236 + $0x70] sm:$0xff]
      %v340 = vld [vmem:[%s236 + $0x78] sm:$0xff]
      %v341 = vld [vmem:[%s236 + $0x80] sm:$0xff]
      %v342 = vld [vmem:[%s236 + $0x88] sm:$0xff]
      %v343 = vld [vmem:[%s236 + $0x90] sm:$0xff]
      %v344 = vld [vmem:[%s236 + $0x98] sm:$0xff]
      %v345 = vld [vmem:[%s236 + $0xa0] sm:$0xff]
      %v346 = vld [vmem:[%s236 + $0xa8] sm:$0xff]
      %v347 = vld [vmem:[%s236 + $0xb0] sm:$0xff]
      %v348 = vld [vmem:[%s236 + $0xb8] sm:$0xff]
      %v349 = vld [vmem:[%s236 + $0xc0] sm:$0xff]
      %v350 = vld [vmem:[%s236 + $0xc8] sm:$0xff]
      %v351 = vld [vmem:[%s236 + $0xd0] sm:$0xff]
      %v352 = vld [vmem:[%s236 + $0xd8] sm:$0xff]
      %v353 = vld [vmem:[%s236 + $0xe0] sm:$0xff]
      %v354 = vld [vmem:[%s236 + $0xe8] sm:$0xff]
      %v355 = vld [vmem:[%s236 + $0xf0] sm:$0xff]
      %v356 = vld [vmem:[%s236 + $0xf8] sm:$0xff]
      %v357 = vld [vmem:[%s236 + $0x100] sm:$0xff]
      %v358 = vld [vmem:[%s236 + $0x108] sm:$0xff]
      %v359 = vld [vmem:[%s236 + $0x110] sm:$0xff]
      %v360 = vld [vmem:[%s236 + $0x118] sm:$0xff]
      %v361 = vld [vmem:[%s236 + $0x120] sm:$0xff]
      %v362 = vld [vmem:[%s236 + $0x128] sm:$0xff]
      %v363 = vld [vmem:[%s236 + $0x130] sm:$0xff]
      %v364 = vld [vmem:[%s236 + $0x138] sm:$0xff]
      %v365 = vld [vmem:[%s236 + $0x140] sm:$0xff]
      %v366 = vld [vmem:[%s236 + $0x148] sm:$0xff]
      %v367 = vld [vmem:[%s236 + $0x150] sm:$0xff]
      %v368 = vld [vmem:[%s236 + $0x158] sm:$0xff]
      %v369 = vld [vmem:[%s236 + $0x160] sm:$0xff]
      %v370 = vld [vmem:[%s236 + $0x168] sm:$0xff]
      %v371 = vld [vmem:[%s236 + $0x170] sm:$0xff]
      %v372 = vld [vmem:[%s236 + $0x178] sm:$0xff]
      %v373 = vld [vmem:[%s236 + $0x180] sm:$0xff]
      %v374 = vld [vmem:[%s236 + $0x188] sm:$0xff]
      %v375 = vld [vmem:[%s236 + $0x190] sm:$0xff]
      %v376 = vld [vmem:[%s236 + $0x198] sm:$0xff]
      %v377 = vld [vmem:[%s236 + $0x1a0] sm:$0xff]
      %v378 = vld [vmem:[%s236 + $0x1a8] sm:$0xff]
      %v379 = vld [vmem:[%s236 + $0x1b0] sm:$0xff]
      %v380 = vld [vmem:[%s236 + $0x1b8] sm:$0xff]
      %v381 = vld [vmem:[%s236 + $0x1c0] sm:$0xff]
      %v382 = vld [vmem:[%s236 + $0x1c8] sm:$0xff]
      %v383 = vld [vmem:[%s236 + $0x1d0] sm:$0xff]
      %v384 = vld [vmem:[%s236 + $0x1d8] sm:$0xff]
      %v385 = vld [vmem:[%s236 + $0x1e0] sm:$0xff]
      %v386 = vld [vmem:[%s236 + $0x1e8] sm:$0xff]
      %v387 = vld [vmem:[%s236 + $0x1f0] sm:$0xff]
      %v388 = vld [vmem:[%s236 + $0x1f8] sm:$0xff]
      %v389 = vld [vmem:[%s236 + $0x200] sm:$0xff]
      %v390 = vld [vmem:[%s236 + $0x208] sm:$0xff]
      %v391 = vld [vmem:[%s236 + $0x210] sm:$0xff]
      %v392 = vld [vmem:[%s236 + $0x218] sm:$0xff]
      %v393 = vld [vmem:[%s236 + $0x220] sm:$0xff]
      %v394 = vld [vmem:[%s236 + $0x228] sm:$0xff]
      %v395 = vld [vmem:[%s236 + $0x230] sm:$0xff]
      %v396 = vld [vmem:[%s236 + $0x238] sm:$0xff]
      %v397 = vld [vmem:[%s236 + $0x240] sm:$0xff]
      %v398 = vld [vmem:[%s236 + $0x248] sm:$0xff]
      %v399 = vld [vmem:[%s236 + $0x250] sm:$0xff]
      %v400 = vld [vmem:[%s236 + $0x258] sm:$0xff]
      %v401 = vld [vmem:[%s236 + $0x260] sm:$0xff]
      %v402 = vld [vmem:[%s236 + $0x268] sm:$0xff]
      %v403 = vld [vmem:[%s236 + $0x270] sm:$0xff]
      %v404 = vld [vmem:[%s236 + $0x278] sm:$0xff]
      %v405 = vld [vmem:[%s236 + $0x280] sm:$0xff]
      %v406 = vld [vmem:[%s236 + $0x288] sm:$0xff]
      %v407 = vld [vmem:[%s236 + $0x290] sm:$0xff]
      %v408 = vld [vmem:[%s236 + $0x298] sm:$0xff]
      %v409 = vld [vmem:[%s236 + $0x2a0] sm:$0xff]
      %v410 = vld [vmem:[%s236 + $0x2a8] sm:$0xff]
      %v411 = vld [vmem:[%s236 + $0x2b0] sm:$0xff]
      %v412 = vld [vmem:[%s236 + $0x2b8] sm:$0xff]
      %v413 = vld [vmem:[%s236 + $0x2c0] sm:$0xff]
      %v414 = vld [vmem:[%s236 + $0x2c8] sm:$0xff]
      %v415 = vld [vmem:[%s236 + $0x2d0] sm:$0xff]
      %v416 = vld [vmem:[%s236 + $0x2d8] sm:$0xff]
      %v417 = vld [vmem:[%s236 + $0x2e0] sm:$0xff]
      %v418 = vld [vmem:[%s236 + $0x2e8] sm:$0xff]
      %v419 = vld [vmem:[%s236 + $0x2f0] sm:$0xff]
      %v420 = vld [vmem:[%s236 + $0x2f8] sm:$0xff]
      %v421 = vld [vmem:[%s236 + $0x300] sm:$0xff]
      %v422 = vld [vmem:[%s236 + $0x308] sm:$0xff]
      %v423 = vld [vmem:[%s236 + $0x310] sm:$0xff]
      %v424 = vld [vmem:[%s236 + $0x318] sm:$0xff]
      %v425 = vld [vmem:[%s236 + $0x320] sm:$0xff]
      %v426 = vld [vmem:[%s236 + $0x328] sm:$0xff]
      %v427 = vld [vmem:[%s236 + $0x330] sm:$0xff]
      %v428 = vld [vmem:[%s236 + $0x338] sm:$0xff]
      %v429 = vld [vmem:[%s236 + $0x340] sm:$0xff]
      %v430 = vld [vmem:[%s236 + $0x348] sm:$0xff]
      %v431 = vld [vmem:[%s236 + $0x350] sm:$0xff]
      %v432 = vld [vmem:[%s236 + $0x358] sm:$0xff]
      %v433 = vld [vmem:[%s236 + $0x360] sm:$0xff]
      %v434 = vld [vmem:[%s236 + $0x368] sm:$0xff]
      %v435 = vld [vmem:[%s236 + $0x370] sm:$0xff]
      %v436 = vld [vmem:[%s236 + $0x378] sm:$0xff]
      %v437 = vld [vmem:[%s236 + $0x380] sm:$0xff]
      %v438 = vld [vmem:[%s236 + $0x388] sm:$0xff]
      %v439 = vld [vmem:[%s236 + $0x390] sm:$0xff]
      %v440 = vld [vmem:[%s236 + $0x398] sm:$0xff]
      %v441 = vld [vmem:[%s236 + $0x3a0] sm:$0xff]
      %v442 = vld [vmem:[%s236 + $0x3a8] sm:$0xff]
      %v443 = vld [vmem:[%s236 + $0x3b0] sm:$0xff]
      %v444 = vld [vmem:[%s236 + $0x3b8] sm:$0xff]
      %v445 = vld [vmem:[%s236 + $0x3c0] sm:$0xff]
      %v446 = vld [vmem:[%s236 + $0x3c8] sm:$0xff]
      %v447 = vld [vmem:[%s236 + $0x3d0] sm:$0xff]
      %v448 = vld [vmem:[%s236 + $0x3d8] sm:$0xff]
      %v449 = vld [vmem:[%s236 + $0x3e0] sm:$0xff]
      %v450 = vld [vmem:[%s236 + $0x3e8] sm:$0xff]
      %v451 = vld [vmem:[%s236 + $0x3f0] sm:$0xff]
      %v452 = vld [vmem:[%s236 + $0x3f8] sm:$0xff]
      %v453 = vld [vmem:[%s236 + $0x400] sm:$0xff]
      %v454 = vld [vmem:[%s236 + $0x408] sm:$0xff]
      %v455 = vld [vmem:[%s236 + $0x410] sm:$0xff]
      %v456 = vld [vmem:[%s236 + $0x418] sm:$0xff]
      %v457 = vld [vmem:[%s236 + $0x420] sm:$0xff]
      %v458 = vld [vmem:[%s236 + $0x428] sm:$0xff]
      %v459 = vld [vmem:[%s236 + $0x430] sm:$0xff]
      %v460 = vld [vmem:[%s236 + $0x438] sm:$0xff]
      %v461 = vld [vmem:[%s236 + $0x440] sm:$0xff]
      %v462 = vld [vmem:[%s236 + $0x448] sm:$0xff]
      %v463 = vld [vmem:[%s236 + $0x450] sm:$0xff]
      %v464 = vld [vmem:[%s236 + $0x458] sm:$0xff]
      %v465 = vld [vmem:[%s236 + $0x460] sm:$0xff]
      %v466 = vld [vmem:[%s236 + $0x468] sm:$0xff]
      %v467 = vld [vmem:[%s236 + $0x470] sm:$0xff]
      %v468 = vld [vmem:[%s236 + $0x478] sm:$0xff]
      %v473 = vunpack.c.l.b16 %v325
      %v474 = vunpack.c.h.b16 %v325
      %v475 = vunpack.c.l.b16 %v326
      %v476 = vunpack.c.h.b16 %v326
      %v477 = vunpack.c.l.b16 %v327
      %v478 = vunpack.c.h.b16 %v327
      %v479 = vunpack.c.l.b16 %v328
      %v480 = vunpack.c.h.b16 %v328
      %v481 = vpack.c.b16 %v475, %v473
      %v482 = vpack.c.b16 %v476, %v474
      %v483 = vpack.c.b16 %v479, %v477
      %v484 = vpack.c.b16 %v480, %v478
      %vm489 = vcmask 261120
      %v491 = vsel %vm489, %v288, 0
      %493 = vmatprep.subr.bf16.mxu0 %v482
      %494 = vmatpush1.bf16.msra.mxu0 %v481
      %495 = vmatprep.subr.bf16.mxu0 %v484
      %496 = vmatpush1.bf16.msra.mxu0 %v483
      %497 = vmatprep.subr.bf16.mxu0 0
      %498 = vmatpush1.bf16.msra.mxu0 0
      %499 = vmatprep.subr.bf16.mxu0 0
      %500 = vmatpush1.bf16.msra.mxu0 0
      %501 = vmatprep.subr.bf16.mxu0 0
      %502 = vmatpush1.bf16.msra.mxu0 0
      %503 = vmatprep.subr.bf16.mxu0 0
      %504 = vmatpush1.bf16.msra.mxu0 0
      %505 = vmatprep.subr.bf16.mxu0 0
      %506 = vmatpush1.bf16.msra.mxu0 0
      %507 = vmatprep.subr.bf16.mxu0 0
      %508 = vmatpush1.bf16.msra.mxu0 0
      %509 = vmatprep.subr.bf16.mxu0 0
      %510 = vmatpush1.bf16.msra.mxu0 0
      %511 = vmatprep.subr.bf16.mxu0 0
      %512 = vmatpush1.bf16.msra.mxu0 0
      %513 = vmatprep.subr.bf16.mxu0 0
      %514 = vmatpush1.bf16.msra.mxu0 0
      %515 = vmatprep.subr.bf16.mxu0 0
      %516 = vmatpush1.bf16.msra.mxu0 0
      %517 = vmatprep.subr.bf16.mxu0 0
      %518 = vmatpush1.bf16.msra.mxu0 0
      %519 = vmatprep.subr.bf16.mxu0 0
      %520 = vmatpush1.bf16.msra.mxu0 0
      %521 = vmatprep.subr.bf16.mxu0 0
      %522 = vmatpush1.bf16.msra.mxu0 0
      %523 = vmatprep.subr.bf16.mxu0 0
      %524 = vmatpush1.bf16.msra.mxu0 0
      %525 = vmatprep.mubr.bf16.mxu0 0
      %526 = vmatmul.mubr.bf16.gmra.mrb[0].mxu0 %v491
      %v527 = vpop.f32.mrb[0].mxu0
      %v528 = vadd.f32 0.0, %v527
      %v529 = vpop.f32.mrb[0].mxu0
      %v530 = vadd.f32 0.0, %v529
      %v531 = vpop.f32.mrb[0].mxu0
      %v532 = vpop.f32.mrb[0].mxu0
      %533 = vdwg.mxu0
      %v538 = vunpack.c.l.b16 %v329
      %v539 = vunpack.c.h.b16 %v329
      %v540 = vunpack.c.l.b16 %v330
      %v541 = vunpack.c.h.b16 %v330
      %v542 = vunpack.c.l.b16 %v331
      %v543 = vunpack.c.h.b16 %v331
      %v544 = vunpack.c.l.b16 %v332
      %v545 = vunpack.c.h.b16 %v332
      %v546 = vpack.c.b16 %v540, %v538
      %v547 = vpack.c.b16 %v541, %v539
      %v548 = vpack.c.b16 %v544, %v542
      %v549 = vpack.c.b16 %v545, %v543
      %v555 = vsel %vm489, %v289, 0
      %557 = vmatprep.subr.bf16.mxu0 %v547
      %558 = vmatpush1.bf16.msra.mxu0 %v546
      %559 = vmatprep.subr.bf16.mxu0 %v549
      %560 = vmatpush1.bf16.msra.mxu0 %v548
      %561 = vmatprep.subr.bf16.mxu0 0
      %562 = vmatpush1.bf16.msra.mxu0 0
      %563 = vmatprep.subr.bf16.mxu0 0
      %564 = vmatpush1.bf16.msra.mxu0 0
      %565 = vmatprep.subr.bf16.mxu0 0
      %566 = vmatpush1.bf16.msra.mxu0 0
      %567 = vmatprep.subr.bf16.mxu0 0
      %568 = vmatpush1.bf16.msra.mxu0 0
      %569 = vmatprep.subr.bf16.mxu0 0
      %570 = vmatpush1.bf16.msra.mxu0 0
      %571 = vmatprep.subr.bf16.mxu0 0
      %572 = vmatpush1.bf16.msra.mxu0 0
      %573 = vmatprep.subr.bf16.mxu0 0
      %574 = vmatpush1.bf16.msra.mxu0 0
      %575 = vmatprep.subr.bf16.mxu0 0
      %576 = vmatpush1.bf16.msra.mxu0 0
      %577 = vmatprep.subr.bf16.mxu0 0
      %578 = vmatpush1.bf16.msra.mxu0 0
      %579 = vmatprep.subr.bf16.mxu0 0
      %580 = vmatpush1.bf16.msra.mxu0 0
      %581 = vmatprep.subr.bf16.mxu0 0
      %582 = vmatpush1.bf16.msra.mxu0 0
      %583 = vmatprep.subr.bf16.mxu0 0
      %584 = vmatpush1.bf16.msra.mxu0 0
      %585 = vmatprep.subr.bf16.mxu0 0
      %586 = vmatpush1.bf16.msra.mxu0 0
      %587 = vmatprep.subr.bf16.mxu0 0
      %588 = vmatpush1.bf16.msra.mxu0 0
      %589 = vmatprep.mubr.bf16.mxu0 0
      %590 = vmatmul.mubr.bf16.gmra.mrb[0].mxu0 %v555
      %v591 = vpop.f32.mrb[0].mxu0
      %v592 = vadd.f32 0.0, %v591
      %v593 = vpop.f32.mrb[0].mxu0
      %v594 = vadd.f32 0.0, %v593
      %v595 = vpop.f32.mrb[0].mxu0
      %v596 = vpop.f32.mrb[0].mxu0
      %597 = vdwg.mxu0
      %v602 = vunpack.c.l.b16 %v333
      %v603 = vunpack.c.h.b16 %v333
      %v604 = vunpack.c.l.b16 %v334
      %v605 = vunpack.c.h.b16 %v334
      %v606 = vunpack.c.l.b16 %v335
      %v607 = vunpack.c.h.b16 %v335
      %v608 = vunpack.c.l.b16 %v336
      %v609 = vunpack.c.h.b16 %v336
      %v610 = vpack.c.b16 %v604, %v602
      %v611 = vpack.c.b16 %v605, %v603
      %v612 = vpack.c.b16 %v608, %v606
      %v613 = vpack.c.b16 %v609, %v607
      %v619 = vsel %vm489, %v290, 0
      %621 = vmatprep.subr.bf16.mxu0 %v611
      %622 = vmatpush1.bf16.msra.mxu0 %v610
      %623 = vmatprep.subr.bf16.mxu0 %v613
      %624 = vmatpush1.bf16.msra.mxu0 %v612
      %625 = vmatprep.subr.bf16.mxu0 0
      %626 = vmatpush1.bf16.msra.mxu0 0
      %627 = vmatprep.subr.bf16.mxu0 0
      %628 = vmatpush1.bf16.msra.mxu0 0
      %629 = vmatprep.subr.bf16.mxu0 0
      %630 = vmatpush1.bf16.msra.mxu0 0
      %631 = vmatprep.subr.bf16.mxu0 0
      %632 = vmatpush1.bf16.msra.mxu0 0
      %633 = vmatprep.subr.bf16.mxu0 0
      %634 = vmatpush1.bf16.msra.mxu0 0
      %635 = vmatprep.subr.bf16.mxu0 0
      %636 = vmatpush1.bf16.msra.mxu0 0
      %637 = vmatprep.subr.bf16.mxu0 0
      %638 = vmatpush1.bf16.msra.mxu0 0
      %639 = vmatprep.subr.bf16.mxu0 0
      %640 = vmatpush1.bf16.msra.mxu0 0
      %641 = vmatprep.subr.bf16.mxu0 0
      %642 = vmatpush1.bf16.msra.mxu0 0
      %643 = vmatprep.subr.bf16.mxu0 0
      %644 = vmatpush1.bf16.msra.mxu0 0
      %645 = vmatprep.subr.bf16.mxu0 0
      %646 = vmatpush1.bf16.msra.mxu0 0
      %647 = vmatprep.subr.bf16.mxu0 0
      %648 = vmatpush1.bf16.msra.mxu0 0
      %649 = vmatprep.subr.bf16.mxu0 0
      %650 = vmatpush1.bf16.msra.mxu0 0
      %651 = vmatprep.subr.bf16.mxu0 0
      %652 = vmatpush1.bf16.msra.mxu0 0
      %653 = vmatprep.mubr.bf16.mxu0 0
      %654 = vmatmul.mubr.bf16.gmra.mrb[0].mxu0 %v619
      %v655 = vpop.f32.mrb[0].mxu0
      %v656 = vadd.f32 0.0, %v655
      %v657 = vpop.f32.mrb[0].mxu0
      %v658 = vadd.f32 0.0, %v657
      %v659 = vpop.f32.mrb[0].mxu0
      %v660 = vpop.f32.mrb[0].mxu0
      %661 = vdwg.mxu0
      %v666 = vunpack.c.l.b16 %v337
      %v667 = vunpack.c.h.b16 %v337
      %v668 = vunpack.c.l.b16 %v338
      %v669 = vunpack.c.h.b16 %v338
      %v670 = vunpack.c.l.b16 %v339
      %v671 = vunpack.c.h.b16 %v339
      %v672 = vunpack.c.l.b16 %v340
      %v673 = vunpack.c.h.b16 %v340
      %v674 = vpack.c.b16 %v668, %v666
      %v675 = vpack.c.b16 %v669, %v667
      %v676 = vpack.c.b16 %v672, %v670
      %v677 = vpack.c.b16 %v673, %v671
      %v683 = vsel %vm489, %v291, 0
      %685 = vmatprep.subr.bf16.mxu0 %v675
      %686 = vmatpush1.bf16.msra.mxu0 %v674
      %687 = vmatprep.subr.bf16.mxu0 %v677
      %688 = vmatpush1.bf16.msra.mxu0 %v676
      %689 = vmatprep.subr.bf16.mxu0 0
      %690 = vmatpush1.bf16.msra.mxu0 0
      %691 = vmatprep.subr.bf16.mxu0 0
      %692 = vmatpush1.bf16.msra.mxu0 0
      %693 = vmatprep.subr.bf16.mxu0 0
      %694 = vmatpush1.bf16.msra.mxu0 0
      %695 = vmatprep.subr.bf16.mxu0 0
      %696 = vmatpush1.bf16.msra.mxu0 0
      %697 = vmatprep.subr.bf16.mxu0 0
      %698 = vmatpush1.bf16.msra.mxu0 0
      %699 = vmatprep.subr.bf16.mxu0 0
      %700 = vmatpush1.bf16.msra.mxu0 0
      %701 = vmatprep.subr.bf16.mxu0 0
      %702 = vmatpush1.bf16.msra.mxu0 0
      %703 = vmatprep.subr.bf16.mxu0 0
      %704 = vmatpush1.bf16.msra.mxu0 0
      %705 = vmatprep.subr.bf16.mxu0 0
      %706 = vmatpush1.bf16.msra.mxu0 0
      %707 = vmatprep.subr.bf16.mxu0 0
      %708 = vmatpush1.bf16.msra.mxu0 0
      %709 = vmatprep.subr.bf16.mxu0 0
      %710 = vmatpush1.bf16.msra.mxu0 0
      %711 = vmatprep.subr.bf16.mxu0 0
      %712 = vmatpush1.bf16.msra.mxu0 0
      %713 = vmatprep.subr.bf16.mxu0 0
      %714 = vmatpush1.bf16.msra.mxu0 0
      %715 = vmatprep.subr.bf16.mxu0 0
      %716 = vmatpush1.bf16.msra.mxu0 0
      %717 = vmatprep.mubr.bf16.mxu0 0
      %718 = vmatmul.mubr.bf16.gmra.mrb[0].mxu0 %v683
      %v719 = vpop.f32.mrb[0].mxu0
      %v720 = vadd.f32 0.0, %v719
      %v721 = vpop.f32.mrb[0].mxu0
      %v722 = vadd.f32 0.0, %v721
      %v723 = vpop.f32.mrb[0].mxu0
      %v724 = vpop.f32.mrb[0].mxu0
      %725 = vdwg.mxu0
      %v730 = vunpack.c.l.b16 %v341
      %v731 = vunpack.c.h.b16 %v341
      %v732 = vunpack.c.l.b16 %v342
      %v733 = vunpack.c.h.b16 %v342
      %v734 = vunpack.c.l.b16 %v343
      %v735 = vunpack.c.h.b16 %v343
      %v736 = vunpack.c.l.b16 %v344
      %v737 = vunpack.c.h.b16 %v344
      %v738 = vpack.c.b16 %v732, %v730
      %v739 = vpack.c.b16 %v733, %v731
      %v740 = vpack.c.b16 %v736, %v734
      %v741 = vpack.c.b16 %v737, %v735
      %v747 = vsel %vm489, %v292, 0
      %749 = vmatprep.subr.bf16.mxu0 %v739
      %750 = vmatpush1.bf16.msra.mxu0 %v738
      %751 = vmatprep.subr.bf16.mxu0 %v741
      %752 = vmatpush1.bf16.msra.mxu0 %v740
      %753 = vmatprep.subr.bf16.mxu0 0
      %754 = vmatpush1.bf16.msra.mxu0 0
      %755 = vmatprep.subr.bf16.mxu0 0
      %756 = vmatpush1.bf16.msra.mxu0 0
      %757 = vmatprep.subr.bf16.mxu0 0
      %758 = vmatpush1.bf16.msra.mxu0 0
      %759 = vmatprep.subr.bf16.mxu0 0
      %760 = vmatpush1.bf16.msra.mxu0 0
      %761 = vmatprep.subr.bf16.mxu0 0
      %762 = vmatpush1.bf16.msra.mxu0 0
      %763 = vmatprep.subr.bf16.mxu0 0
      %764 = vmatpush1.bf16.msra.mxu0 0
      %765 = vmatprep.subr.bf16.mxu0 0
      %766 = vmatpush1.bf16.msra.mxu0 0
      %767 = vmatprep.subr.bf16.mxu0 0
      %768 = vmatpush1.bf16.msra.mxu0 0
      %769 = vmatprep.subr.bf16.mxu0 0
      %770 = vmatpush1.bf16.msra.mxu0 0
      %771 = vmatprep.subr.bf16.mxu0 0
      %772 = vmatpush1.bf16.msra.mxu0 0
      %773 = vmatprep.subr.bf16.mxu0 0
      %774 = vmatpush1.bf16.msra.mxu0 0
      %775 = vmatprep.subr.bf16.mxu0 0
      %776 = vmatpush1.bf16.msra.mxu0 0
      %777 = vmatprep.subr.bf16.mxu0 0
      %778 = vmatpush1.bf16.msra.mxu0 0
      %779 = vmatprep.subr.bf16.mxu0 0
      %780 = vmatpush1.bf16.msra.mxu0 0
      %781 = vmatprep.mubr.bf16.mxu0 0
      %782 = vmatmul.mubr.bf16.gmra.mrb[0].mxu0 %v747
      %v783 = vpop.f32.mrb[0].mxu0
      %v784 = vadd.f32 0.0, %v783
      %v785 = vpop.f32.mrb[0].mxu0
      %v786 = vadd.f32 0.0, %v785
      %v787 = vpop.f32.mrb[0].mxu0
      %v788 = vpop.f32.mrb[0].mxu0
      %789 = vdwg.mxu0
      %v794 = vunpack.c.l.b16 %v345
      %v795 = vunpack.c.h.b16 %v345
      %v796 = vunpack.c.l.b16 %v346
      %v797 = vunpack.c.h.b16 %v346
      %v798 = vunpack.c.l.b16 %v347
      %v799 = vunpack.c.h.b16 %v347
      %v800 = vunpack.c.l.b16 %v348
      %v801 = vunpack.c.h.b16 %v348
      %v802 = vpack.c.b16 %v796, %v794
      %v803 = vpack.c.b16 %v797, %v795
      %v804 = vpack.c.b16 %v800, %v798
      %v805 = vpack.c.b16 %v801, %v799
      %v811 = vsel %vm489, %v293, 0
      %813 = vmatprep.subr.bf16.mxu0 %v803
      %814 = vmatpush1.bf16.msra.mxu0 %v802
      %815 = vmatprep.subr.bf16.mxu0 %v805
      %816 = vmatpush1.bf16.msra.mxu0 %v804
      %817 = vmatprep.subr.bf16.mxu0 0
      %818 = vmatpush1.bf16.msra.mxu0 0
      %819 = vmatprep.subr.bf16.mxu0 0
      %820 = vmatpush1.bf16.msra.mxu0 0
      %821 = vmatprep.subr.bf16.mxu0 0
      %822 = vmatpush1.bf16.msra.mxu0 0
      %823 = vmatprep.subr.bf16.mxu0 0
      %824 = vmatpush1.bf16.msra.mxu0 0
      %825 = vmatprep.subr.bf16.mxu0 0
      %826 = vmatpush1.bf16.msra.mxu0 0
      %827 = vmatprep.subr.bf16.mxu0 0
      %828 = vmatpush1.bf16.msra.mxu0 0
      %829 = vmatprep.subr.bf16.mxu0 0
      %830 = vmatpush1.bf16.msra.mxu0 0
      %831 = vmatprep.subr.bf16.mxu0 0
      %832 = vmatpush1.bf16.msra.mxu0 0
      %833 = vmatprep.subr.bf16.mxu0 0
      %834 = vmatpush1.bf16.msra.mxu0 0
      %835 = vmatprep.subr.bf16.mxu0 0
      %836 = vmatpush1.bf16.msra.mxu0 0
      %837 = vmatprep.subr.bf16.mxu0 0
      %838 = vmatpush1.bf16.msra.mxu0 0
      %839 = vmatprep.subr.bf16.mxu0 0
      %840 = vmatpush1.bf16.msra.mxu0 0
      %841 = vmatprep.subr.bf16.mxu0 0
      %842 = vmatpush1.bf16.msra.mxu0 0
      %843 = vmatprep.subr.bf16.mxu0 0
      %844 = vmatpush1.bf16.msra.mxu0 0
      %845 = vmatprep.mubr.bf16.mxu0 0
      %846 = vmatmul.mubr.bf16.gmra.mrb[0].mxu0 %v811
      %v847 = vpop.f32.mrb[0].mxu0
      %v848 = vadd.f32 0.0, %v847
      %v849 = vpop.f32.mrb[0].mxu0
      %v850 = vadd.f32 0.0, %v849
      %v851 = vpop.f32.mrb[0].mxu0
      %v852 = vpop.f32.mrb[0].mxu0
      %853 = vdwg.mxu0
      %v858 = vunpack.c.l.b16 %v349
      %v859 = vunpack.c.h.b16 %v349
      %v860 = vunpack.c.l.b16 %v350
      %v861 = vunpack.c.h.b16 %v350
      %v862 = vunpack.c.l.b16 %v351
      %v863 = vunpack.c.h.b16 %v351
      %v864 = vunpack.c.l.b16 %v352
      %v865 = vunpack.c.h.b16 %v352
      %v866 = vpack.c.b16 %v860, %v858
      %v867 = vpack.c.b16 %v861, %v859
      %v868 = vpack.c.b16 %v864, %v862
      %v869 = vpack.c.b16 %v865, %v863
      %v875 = vsel %vm489, %v294, 0
      %877 = vmatprep.subr.bf16.mxu0 %v867
      %878 = vmatpush1.bf16.msra.mxu0 %v866
      %879 = vmatprep.subr.bf16.mxu0 %v869
      %880 = vmatpush1.bf16.msra.mxu0 %v868
      %881 = vmatprep.subr.bf16.mxu0 0
      %882 = vmatpush1.bf16.msra.mxu0 0
      %883 = vmatprep.subr.bf16.mxu0 0
      %884 = vmatpush1.bf16.msra.mxu0 0
      %885 = vmatprep.subr.bf16.mxu0 0
      %886 = vmatpush1.bf16.msra.mxu0 0
      %887 = vmatprep.subr.bf16.mxu0 0
      %888 = vmatpush1.bf16.msra.mxu0 0
      %889 = vmatprep.subr.bf16.mxu0 0
      %890 = vmatpush1.bf16.msra.mxu0 0
      %891 = vmatprep.subr.bf16.mxu0 0
      %892 = vmatpush1.bf16.msra.mxu0 0
      %893 = vmatprep.subr.bf16.mxu0 0
      %894 = vmatpush1.bf16.msra.mxu0 0
      %895 = vmatprep.subr.bf16.mxu0 0
      %896 = vmatpush1.bf16.msra.mxu0 0
      %897 = vmatprep.subr.bf16.mxu0 0
      %898 = vmatpush1.bf16.msra.mxu0 0
      %899 = vmatprep.subr.bf16.mxu0 0
      %900 = vmatpush1.bf16.msra.mxu0 0
      %901 = vmatprep.subr.bf16.mxu0 0
      %902 = vmatpush1.bf16.msra.mxu0 0
      %903 = vmatprep.subr.bf16.mxu0 0
      %904 = vmatpush1.bf16.msra.mxu0 0
      %905 = vmatprep.subr.bf16.mxu0 0
      %906 = vmatpush1.bf16.msra.mxu0 0
      %907 = vmatprep.subr.bf16.mxu0 0
      %908 = vmatpush1.bf16.msra.mxu0 0
      %909 = vmatprep.mubr.bf16.mxu0 0
      %910 = vmatmul.mubr.bf16.gmra.mrb[0].mxu0 %v875
      %v911 = vpop.f32.mrb[0].mxu0
      %v912 = vadd.f32 0.0, %v911
      %v913 = vpop.f32.mrb[0].mxu0
      %v914 = vadd.f32 0.0, %v913
      %v915 = vpop.f32.mrb[0].mxu0
      %v916 = vpop.f32.mrb[0].mxu0
      %917 = vdwg.mxu0
      %v922 = vunpack.c.l.b16 %v353
      %v923 = vunpack.c.h.b16 %v353
      %v924 = vunpack.c.l.b16 %v354
      %v925 = vunpack.c.h.b16 %v354
      %v926 = vunpack.c.l.b16 %v355
      %v927 = vunpack.c.h.b16 %v355
      %v928 = vunpack.c.l.b16 %v356
      %v929 = vunpack.c.h.b16 %v356
      %v930 = vpack.c.b16 %v924, %v922
      %v931 = vpack.c.b16 %v925, %v923
      %v932 = vpack.c.b16 %v928, %v926
      %v933 = vpack.c.b16 %v929, %v927
      %v939 = vsel %vm489, %v295, 0
      %941 = vmatprep.subr.bf16.mxu0 %v931
      %942 = vmatpush1.bf16.msra.mxu0 %v930
      %943 = vmatprep.subr.bf16.mxu0 %v933
      %944 = vmatpush1.bf16.msra.mxu0 %v932
      %945 = vmatprep.subr.bf16.mxu0 0
      %946 = vmatpush1.bf16.msra.mxu0 0
      %947 = vmatprep.subr.bf16.mxu0 0
      %948 = vmatpush1.bf16.msra.mxu0 0
      %949 = vmatprep.subr.bf16.mxu0 0
      %950 = vmatpush1.bf16.msra.mxu0 0
      %951 = vmatprep.subr.bf16.mxu0 0
      %952 = vmatpush1.bf16.msra.mxu0 0
      %953 = vmatprep.subr.bf16.mxu0 0
      %954 = vmatpush1.bf16.msra.mxu0 0
      %955 = vmatprep.subr.bf16.mxu0 0
      %956 = vmatpush1.bf16.msra.mxu0 0
      %957 = vmatprep.subr.bf16.mxu0 0
      %958 = vmatpush1.bf16.msra.mxu0 0
      %959 = vmatprep.subr.bf16.mxu0 0
      %960 = vmatpush1.bf16.msra.mxu0 0
      %961 = vmatprep.subr.bf16.mxu0 0
      %962 = vmatpush1.bf16.msra.mxu0 0
      %963 = vmatprep.subr.bf16.mxu0 0
      %964 = vmatpush1.bf16.msra.mxu0 0
      %965 = vmatprep.subr.bf16.mxu0 0
      %966 = vmatpush1.bf16.msra.mxu0 0
      %967 = vmatprep.subr.bf16.mxu0 0
      %968 = vmatpush1.bf16.msra.mxu0 0
      %969 = vmatprep.subr.bf16.mxu0 0
      %970 = vmatpush1.bf16.msra.mxu0 0
      %971 = vmatprep.subr.bf16.mxu0 0
      %972 = vmatpush1.bf16.msra.mxu0 0
      %973 = vmatprep.mubr.bf16.mxu0 0
      %974 = vmatmul.mubr.bf16.gmra.mrb[0].mxu0 %v939
      %v975 = vpop.f32.mrb[0].mxu0
      %v976 = vadd.f32 0.0, %v975
      %v977 = vpop.f32.mrb[0].mxu0
      %v978 = vadd.f32 0.0, %v977
      %v979 = vpop.f32.mrb[0].mxu0
      %v980 = vpop.f32.mrb[0].mxu0
      %981 = vdwg.mxu0
      %v986 = vunpack.c.l.b16 %v357
      %v987 = vunpack.c.h.b16 %v357
      %v988 = vunpack.c.l.b16 %v358
      %v989 = vunpack.c.h.b16 %v358
      %v990 = vunpack.c.l.b16 %v359
      %v991 = vunpack.c.h.b16 %v359
      %v992 = vunpack.c.l.b16 %v360
      %v993 = vunpack.c.h.b16 %v360
      %v994 = vpack.c.b16 %v988, %v986
      %v995 = vpack.c.b16 %v989, %v987
      %v996 = vpack.c.b16 %v992, %v990
      %v997 = vpack.c.b16 %v993, %v991
      %v1003 = vsel %vm489, %v296, 0
      %1005 = vmatprep.subr.bf16.mxu0 %v995
      %1006 = vmatpush1.bf16.msra.mxu0 %v994
      %1007 = vmatprep.subr.bf16.mxu0 %v997
      %1008 = vmatpush1.bf16.msra.mxu0 %v996
      %1009 = vmatprep.subr.bf16.mxu0 0
      %1010 = vmatpush1.bf16.msra.mxu0 0
      %1011 = vmatprep.subr.bf16.mxu0 0
      %1012 = vmatpush1.bf16.msra.mxu0 0
      %1013 = vmatprep.subr.bf16.mxu0 0
      %1014 = vmatpush1.bf16.msra.mxu0 0
      %1015 = vmatprep.subr.bf16.mxu0 0
      %1016 = vmatpush1.bf16.msra.mxu0 0
      %1017 = vmatprep.subr.bf16.mxu0 0
      %1018 = vmatpush1.bf16.msra.mxu0 0
      %1019 = vmatprep.subr.bf16.mxu0 0
      %1020 = vmatpush1.bf16.msra.mxu0 0
      %1021 = vmatprep.subr.bf16.mxu0 0
      %1022 = vmatpush1.bf16.msra.mxu0 0
      %1023 = vmatprep.subr.bf16.mxu0 0
      %1024 = vmatpush1.bf16.msra.mxu0 0
      %1025 = vmatprep.subr.bf16.mxu0 0
      %1026 = vmatpush1.bf16.msra.mxu0 0
      %1027 = vmatprep.subr.bf16.mxu0 0
      %1028 = vmatpush1.bf16.msra.mxu0 0
      %1029 = vmatprep.subr.bf16.mxu0 0
      %1030 = vmatpush1.bf16.msra.mxu0 0
      %1031 = vmatprep.subr.bf16.mxu0 0
      %1032 = vmatpush1.bf16.msra.mxu0 0
      %1033 = vmatprep.subr.bf16.mxu0 0
      %1034 = vmatpush1.bf16.msra.mxu0 0
      %1035 = vmatprep.subr.bf16.mxu0 0
      %1036 = vmatpush1.bf16.msra.mxu0 0
      %1037 = vmatprep.mubr.bf16.mxu0 0
      %1038 = vmatmul.mubr.bf16.gmra.mrb[0].mxu0 %v1003
      %v1039 = vpop.f32.mrb[0].mxu0
      %v1040 = vadd.f32 0.0, %v1039
      %v1041 = vpop.f32.mrb[0].mxu0
      %v1042 = vadd.f32 0.0, %v1041
      %v1043 = vpop.f32.mrb[0].mxu0
      %v1044 = vpop.f32.mrb[0].mxu0
      %1045 = vdwg.mxu0
      %v1050 = vunpack.c.l.b16 %v361
      %v1051 = vunpack.c.h.b16 %v361
      %v1052 = vunpack.c.l.b16 %v362
      %v1053 = vunpack.c.h.b16 %v362
      %v1054 = vunpack.c.l.b16 %v363
      %v1055 = vunpack.c.h.b16 %v363
      %v1056 = vunpack.c.l.b16 %v364
      %v1057 = vunpack.c.h.b16 %v364
      %v1058 = vpack.c.b16 %v1052, %v1050
      %v1059 = vpack.c.b16 %v1053, %v1051
      %v1060 = vpack.c.b16 %v1056, %v1054
      %v1061 = vpack.c.b16 %v1057, %v1055
      %v1067 = vsel %vm489, %v297, 0
      %1069 = vmatprep.subr.bf16.mxu0 %v1059
      %1070 = vmatpush1.bf16.msra.mxu0 %v1058
      %1071 = vmatprep.subr.bf16.mxu0 %v1061
      %1072 = vmatpush1.bf16.msra.mxu0 %v1060
      %1073 = vmatprep.subr.bf16.mxu0 0
      %1074 = vmatpush1.bf16.msra.mxu0 0
      %1075 = vmatprep.subr.bf16.mxu0 0
      %1076 = vmatpush1.bf16.msra.mxu0 0
      %1077 = vmatprep.subr.bf16.mxu0 0
      %1078 = vmatpush1.bf16.msra.mxu0 0
      %1079 = vmatprep.subr.bf16.mxu0 0
      %1080 = vmatpush1.bf16.msra.mxu0 0
      %1081 = vmatprep.subr.bf16.mxu0 0
      %1082 = vmatpush1.bf16.msra.mxu0 0
      %1083 = vmatprep.subr.bf16.mxu0 0
      %1084 = vmatpush1.bf16.msra.mxu0 0
      %1085 = vmatprep.subr.bf16.mxu0 0
      %1086 = vmatpush1.bf16.msra.mxu0 0
      %1087 = vmatprep.subr.bf16.mxu0 0
      %1088 = vmatpush1.bf16.msra.mxu0 0
      %1089 = vmatprep.subr.bf16.mxu0 0
      %1090 = vmatpush1.bf16.msra.mxu0 0
      %1091 = vmatprep.subr.bf16.mxu0 0
      %1092 = vmatpush1.bf16.msra.mxu0 0
      %1093 = vmatprep.subr.bf16.mxu0 0
      %1094 = vmatpush1.bf16.msra.mxu0 0
      %1095 = vmatprep.subr.bf16.mxu0 0
      %1096 = vmatpush1.bf16.msra.mxu0 0
      %1097 = vmatprep.subr.bf16.mxu0 0
      %1098 = vmatpush1.bf16.msra.mxu0 0
      %1099 = vmatprep.subr.bf16.mxu0 0
      %1100 = vmatpush1.bf16.msra.mxu0 0
      %1101 = vmatprep.mubr.bf16.mxu0 0
      %1102 = vmatmul.mubr.bf16.gmra.mrb[0].mxu0 %v1067
      %v1103 = vpop.f32.mrb[0].mxu0
      %v1104 = vadd.f32 0.0, %v1103
      %v1105 = vpop.f32.mrb[0].mxu0
      %v1106 = vadd.f32 0.0, %v1105
      %v1107 = vpop.f32.mrb[0].mxu0
      %v1108 = vpop.f32.mrb[0].mxu0
      %1109 = vdwg.mxu0
      %v1114 = vunpack.c.l.b16 %v365
      %v1115 = vunpack.c.h.b16 %v365
      %v1116 = vunpack.c.l.b16 %v366
      %v1117 = vunpack.c.h.b16 %v366
      %v1118 = vunpack.c.l.b16 %v367
      %v1119 = vunpack.c.h.b16 %v367
      %v1120 = vunpack.c.l.b16 %v368
      %v1121 = vunpack.c.h.b16 %v368
      %v1122 = vpack.c.b16 %v1116, %v1114
      %v1123 = vpack.c.b16 %v1117, %v1115
      %v1124 = vpack.c.b16 %v1120, %v1118
      %v1125 = vpack.c.b16 %v1121, %v1119
      %v1131 = vsel %vm489, %v298, 0
      %1133 = vmatprep.subr.bf16.mxu0 %v1123
      %1134 = vmatpush1.bf16.msra.mxu0 %v1122
      %1135 = vmatprep.subr.bf16.mxu0 %v1125
      %1136 = vmatpush1.bf16.msra.mxu0 %v1124
      %1137 = vmatprep.subr.bf16.mxu0 0
      %1138 = vmatpush1.bf16.msra.mxu0 0
      %1139 = vmatprep.subr.bf16.mxu0 0
      %1140 = vmatpush1.bf16.msra.mxu0 0
      %1141 = vmatprep.subr.bf16.mxu0 0
      %1142 = vmatpush1.bf16.msra.mxu0 0
      %1143 = vmatprep.subr.bf16.mxu0 0
      %1144 = vmatpush1.bf16.msra.mxu0 0
      %1145 = vmatprep.subr.bf16.mxu0 0
      %1146 = vmatpush1.bf16.msra.mxu0 0
      %1147 = vmatprep.subr.bf16.mxu0 0
      %1148 = vmatpush1.bf16.msra.mxu0 0
      %1149 = vmatprep.subr.bf16.mxu0 0
      %1150 = vmatpush1.bf16.msra.mxu0 0
      %1151 = vmatprep.subr.bf16.mxu0 0
      %1152 = vmatpush1.bf16.msra.mxu0 0
      %1153 = vmatprep.subr.bf16.mxu0 0
      %1154 = vmatpush1.bf16.msra.mxu0 0
      %1155 = vmatprep.subr.bf16.mxu0 0
      %1156 = vmatpush1.bf16.msra.mxu0 0
      %1157 = vmatprep.subr.bf16.mxu0 0
      %1158 = vmatpush1.bf16.msra.mxu0 0
      %1159 = vmatprep.subr.bf16.mxu0 0
      %1160 = vmatpush1.bf16.msra.mxu0 0
      %1161 = vmatprep.subr.bf16.mxu0 0
      %1162 = vmatpush1.bf16.msra.mxu0 0
      %1163 = vmatprep.subr.bf16.mxu0 0
      %1164 = vmatpush1.bf16.msra.mxu0 0
      %1165 = vmatprep.mubr.bf16.mxu0 0
      %1166 = vmatmul.mubr.bf16.gmra.mrb[0].mxu0 %v1131
      %v1167 = vpop.f32.mrb[0].mxu0
      %v1168 = vadd.f32 0.0, %v1167
      %v1169 = vpop.f32.mrb[0].mxu0
      %v1170 = vadd.f32 0.0, %v1169
      %v1171 = vpop.f32.mrb[0].mxu0
      %v1172 = vpop.f32.mrb[0].mxu0
      %1173 = vdwg.mxu0
      %v1178 = vunpack.c.l.b16 %v369
      %v1179 = vunpack.c.h.b16 %v369
      %v1180 = vunpack.c.l.b16 %v370
      %v1181 = vunpack.c.h.b16 %v370
      %v1182 = vunpack.c.l.b16 %v371
      %v1183 = vunpack.c.h.b16 %v371
      %v1184 = vunpack.c.l.b16 %v372
      %v1185 = vunpack.c.h.b16 %v372
      %v1186 = vpack.c.b16 %v1180, %v1178
      %v1187 = vpack.c.b16 %v1181, %v1179
      %v1188 = vpack.c.b16 %v1184, %v1182
      %v1189 = vpack.c.b16 %v1185, %v1183
      %v1195 = vsel %vm489, %v299, 0
      %1197 = vmatprep.subr.bf16.mxu0 %v1187
      %1198 = vmatpush1.bf16.msra.mxu0 %v1186
      %1199 = vmatprep.subr.bf16.mxu0 %v1189
      %1200 = vmatpush1.bf16.msra.mxu0 %v1188
      %1201 = vmatprep.subr.bf16.mxu0 0
      %1202 = vmatpush1.bf16.msra.mxu0 0
      %1203 = vmatprep.subr.bf16.mxu0 0
      %1204 = vmatpush1.bf16.msra.mxu0 0
      %1205 = vmatprep.subr.bf16.mxu0 0
      %1206 = vmatpush1.bf16.msra.mxu0 0
      %1207 = vmatprep.subr.bf16.mxu0 0
      %1208 = vmatpush1.bf16.msra.mxu0 0
      %1209 = vmatprep.subr.bf16.mxu0 0
      %1210 = vmatpush1.bf16.msra.mxu0 0
      %1211 = vmatprep.subr.bf16.mxu0 0
      %1212 = vmatpush1.bf16.msra.mxu0 0
      %1213 = vmatprep.subr.bf16.mxu0 0
      %1214 = vmatpush1.bf16.msra.mxu0 0
      %1215 = vmatprep.subr.bf16.mxu0 0
      %1216 = vmatpush1.bf16.msra.mxu0 0
      %1217 = vmatprep.subr.bf16.mxu0 0
      %1218 = vmatpush1.bf16.msra.mxu0 0
      %1219 = vmatprep.subr.bf16.mxu0 0
      %1220 = vmatpush1.bf16.msra.mxu0 0
      %1221 = vmatprep.subr.bf16.mxu0 0
      %1222 = vmatpush1.bf16.msra.mxu0 0
      %1223 = vmatprep.subr.bf16.mxu0 0
      %1224 = vmatpush1.bf16.msra.mxu0 0
      %1225 = vmatprep.subr.bf16.mxu0 0
      %1226 = vmatpush1.bf16.msra.mxu0 0
      %1227 = vmatprep.subr.bf16.mxu0 0
      %1228 = vmatpush1.bf16.msra.mxu0 0
      %1229 = vmatprep.mubr.bf16.mxu0 0
      %1230 = vmatmul.mubr.bf16.gmra.mrb[0].mxu0 %v1195
      %v1231 = vpop.f32.mrb[0].mxu0
      %v1232 = vadd.f32 0.0, %v1231
      %v1233 = vpop.f32.mrb[0].mxu0
      %v1234 = vadd.f32 0.0, %v1233
      %v1235 = vpop.f32.mrb[0].mxu0
      %v1236 = vpop.f32.mrb[0].mxu0
      %1237 = vdwg.mxu0
      %v1242 = vunpack.c.l.b16 %v373
      %v1243 = vunpack.c.h.b16 %v373
      %v1244 = vunpack.c.l.b16 %v374
      %v1245 = vunpack.c.h.b16 %v374
      %v1246 = vunpack.c.l.b16 %v375
      %v1247 = vunpack.c.h.b16 %v375
      %v1248 = vunpack.c.l.b16 %v376
      %v1249 = vunpack.c.h.b16 %v376
      %v1250 = vpack.c.b16 %v1244, %v1242
      %v1251 = vpack.c.b16 %v1245, %v1243
      %v1252 = vpack.c.b16 %v1248, %v1246
      %v1253 = vpack.c.b16 %v1249, %v1247
      %v1259 = vsel %vm489, %v300, 0
      %1261 = vmatprep.subr.bf16.mxu0 %v1251
      %1262 = vmatpush1.bf16.msra.mxu0 %v1250
      %1263 = vmatprep.subr.bf16.mxu0 %v1253
      %1264 = vmatpush1.bf16.msra.mxu0 %v1252
      %1265 = vmatprep.subr.bf16.mxu0 0
      %1266 = vmatpush1.bf16.msra.mxu0 0
      %1267 = vmatprep.subr.bf16.mxu0 0
      %1268 = vmatpush1.bf16.msra.mxu0 0
      %1269 = vmatprep.subr.bf16.mxu0 0
      %1270 = vmatpush1.bf16.msra.mxu0 0
      %1271 = vmatprep.subr.bf16.mxu0 0
      %1272 = vmatpush1.bf16.msra.mxu0 0
      %1273 = vmatprep.subr.bf16.mxu0 0
      %1274 = vmatpush1.bf16.msra.mxu0 0
      %1275 = vmatprep.subr.bf16.mxu0 0
      %1276 = vmatpush1.bf16.msra.mxu0 0
      %1277 = vmatprep.subr.bf16.mxu0 0
      %1278 = vmatpush1.bf16.msra.mxu0 0
      %1279 = vmatprep.subr.bf16.mxu0 0
      %1280 = vmatpush1.bf16.msra.mxu0 0
      %1281 = vmatprep.subr.bf16.mxu0 0
      %1282 = vmatpush1.bf16.msra.mxu0 0
      %1283 = vmatprep.subr.bf16.mxu0 0
      %1284 = vmatpush1.bf16.msra.mxu0 0
      %1285 = vmatprep.subr.bf16.mxu0 0
      %1286 = vmatpush1.bf16.msra.mxu0 0
      %1287 = vmatprep.subr.bf16.mxu0 0
      %1288 = vmatpush1.bf16.msra.mxu0 0
      %1289 = vmatprep.subr.bf16.mxu0 0
      %1290 = vmatpush1.bf16.msra.mxu0 0
      %1291 = vmatprep.subr.bf16.mxu0 0
      %1292 = vmatpush1.bf16.msra.mxu0 0
      %1293 = vmatprep.mubr.bf16.mxu0 0
      %1294 = vmatmul.mubr.bf16.gmra.mrb[0].mxu0 %v1259
      %v1295 = vpop.f32.mrb[0].mxu0
      %v1296 = vadd.f32 0.0, %v1295
      %v1297 = vpop.f32.mrb[0].mxu0
      %v1298 = vadd.f32 0.0, %v1297
      %v1299 = vpop.f32.mrb[0].mxu0
      %v1300 = vpop.f32.mrb[0].mxu0
      %1301 = vdwg.mxu0
      %v1306 = vunpack.c.l.b16 %v377
      %v1307 = vunpack.c.h.b16 %v377
      %v1308 = vunpack.c.l.b16 %v378
      %v1309 = vunpack.c.h.b16 %v378
      %v1310 = vunpack.c.l.b16 %v379
      %v1311 = vunpack.c.h.b16 %v379
      %v1312 = vunpack.c.l.b16 %v380
      %v1313 = vunpack.c.h.b16 %v380
      %v1314 = vpack.c.b16 %v1308, %v1306
      %v1315 = vpack.c.b16 %v1309, %v1307
      %v1316 = vpack.c.b16 %v1312, %v1310
      %v1317 = vpack.c.b16 %v1313, %v1311
      %v1323 = vsel %vm489, %v301, 0
      %1325 = vmatprep.subr.bf16.mxu0 %v1315
      %1326 = vmatpush1.bf16.msra.mxu0 %v1314
      %1327 = vmatprep.subr.bf16.mxu0 %v1317
      %1328 = vmatpush1.bf16.msra.mxu0 %v1316
      %1329 = vmatprep.subr.bf16.mxu0 0
      %1330 = vmatpush1.bf16.msra.mxu0 0
      %1331 = vmatprep.subr.bf16.mxu0 0
      %1332 = vmatpush1.bf16.msra.mxu0 0
      %1333 = vmatprep.subr.bf16.mxu0 0
      %1334 = vmatpush1.bf16.msra.mxu0 0
      %1335 = vmatprep.subr.bf16.mxu0 0
      %1336 = vmatpush1.bf16.msra.mxu0 0
      %1337 = vmatprep.subr.bf16.mxu0 0
      %1338 = vmatpush1.bf16.msra.mxu0 0
      %1339 = vmatprep.subr.bf16.mxu0 0
      %1340 = vmatpush1.bf16.msra.mxu0 0
      %1341 = vmatprep.subr.bf16.mxu0 0
      %1342 = vmatpush1.bf16.msra.mxu0 0
      %1343 = vmatprep.subr.bf16.mxu0 0
      %1344 = vmatpush1.bf16.msra.mxu0 0
      %1345 = vmatprep.subr.bf16.mxu0 0
      %1346 = vmatpush1.bf16.msra.mxu0 0
      %1347 = vmatprep.subr.bf16.mxu0 0
      %1348 = vmatpush1.bf16.msra.mxu0 0
      %1349 = vmatprep.subr.bf16.mxu0 0
      %1350 = vmatpush1.bf16.msra.mxu0 0
      %1351 = vmatprep.subr.bf16.mxu0 0
      %1352 = vmatpush1.bf16.msra.mxu0 0
      %1353 = vmatprep.subr.bf16.mxu0 0
      %1354 = vmatpush1.bf16.msra.mxu0 0
      %1355 = vmatprep.subr.bf16.mxu0 0
      %1356 = vmatpush1.bf16.msra.mxu0 0
      %1357 = vmatprep.mubr.bf16.mxu0 0
      %1358 = vmatmul.mubr.bf16.gmra.mrb[0].mxu0 %v1323
      %v1359 = vpop.f32.mrb[0].mxu0
      %v1360 = vadd.f32 0.0, %v1359
      %v1361 = vpop.f32.mrb[0].mxu0
      %v1362 = vadd.f32 0.0, %v1361
      %v1363 = vpop.f32.mrb[0].mxu0
      %v1364 = vpop.f32.mrb[0].mxu0
      %1365 = vdwg.mxu0
      %v1370 = vunpack.c.l.b16 %v381
      %v1371 = vunpack.c.h.b16 %v381
      %v1372 = vunpack.c.l.b16 %v382
      %v1373 = vunpack.c.h.b16 %v382
      %v1374 = vunpack.c.l.b16 %v383
      %v1375 = vunpack.c.h.b16 %v383
      %v1376 = vunpack.c.l.b16 %v384
      %v1377 = vunpack.c.h.b16 %v384
      %v1378 = vpack.c.b16 %v1372, %v1370
      %v1379 = vpack.c.b16 %v1373, %v1371
      %v1380 = vpack.c.b16 %v1376, %v1374
      %v1381 = vpack.c.b16 %v1377, %v1375
      %v1387 = vsel %vm489, %v302, 0
      %1389 = vmatprep.subr.bf16.mxu0 %v1379
      %1390 = vmatpush1.bf16.msra.mxu0 %v1378
      %1391 = vmatprep.subr.bf16.mxu0 %v1381
      %1392 = vmatpush1.bf16.msra.mxu0 %v1380
      %1393 = vmatprep.subr.bf16.mxu0 0
      %1394 = vmatpush1.bf16.msra.mxu0 0
      %1395 = vmatprep.subr.bf16.mxu0 0
      %1396 = vmatpush1.bf16.msra.mxu0 0
      %1397 = vmatprep.subr.bf16.mxu0 0
      %1398 = vmatpush1.bf16.msra.mxu0 0
      %1399 = vmatprep.subr.bf16.mxu0 0
      %1400 = vmatpush1.bf16.msra.mxu0 0
      %1401 = vmatprep.subr.bf16.mxu0 0
      %1402 = vmatpush1.bf16.msra.mxu0 0
      %1403 = vmatprep.subr.bf16.mxu0 0
      %1404 = vmatpush1.bf16.msra.mxu0 0
      %1405 = vmatprep.subr.bf16.mxu0 0
      %1406 = vmatpush1.bf16.msra.mxu0 0
      %1407 = vmatprep.subr.bf16.mxu0 0
      %1408 = vmatpush1.bf16.msra.mxu0 0
      %1409 = vmatprep.subr.bf16.mxu0 0
      %1410 = vmatpush1.bf16.msra.mxu0 0
      %1411 = vmatprep.subr.bf16.mxu0 0
      %1412 = vmatpush1.bf16.msra.mxu0 0
      %1413 = vmatprep.subr.bf16.mxu0 0
      %1414 = vmatpush1.bf16.msra.mxu0 0
      %1415 = vmatprep.subr.bf16.mxu0 0
      %1416 = vmatpush1.bf16.msra.mxu0 0
      %1417 = vmatprep.subr.bf16.mxu0 0
      %1418 = vmatpush1.bf16.msra.mxu0 0
      %1419 = vmatprep.subr.bf16.mxu0 0
      %1420 = vmatpush1.bf16.msra.mxu0 0
      %1421 = vmatprep.mubr.bf16.mxu0 0
      %1422 = vmatmul.mubr.bf16.gmra.mrb[0].mxu0 %v1387
      %v1423 = vpop.f32.mrb[0].mxu0
      %v1424 = vadd.f32 0.0, %v1423
      %v1425 = vpop.f32.mrb[0].mxu0
      %v1426 = vadd.f32 0.0, %v1425
      %v1427 = vpop.f32.mrb[0].mxu0
      %v1428 = vpop.f32.mrb[0].mxu0
      %1429 = vdwg.mxu0
      %v1434 = vunpack.c.l.b16 %v385
      %v1435 = vunpack.c.h.b16 %v385
      %v1436 = vunpack.c.l.b16 %v386
      %v1437 = vunpack.c.h.b16 %v386
      %v1438 = vunpack.c.l.b16 %v387
      %v1439 = vunpack.c.h.b16 %v387
      %v1440 = vunpack.c.l.b16 %v388
      %v1441 = vunpack.c.h.b16 %v388
      %v1442 = vpack.c.b16 %v1436, %v1434
      %v1443 = vpack.c.b16 %v1437, %v1435
      %v1444 = vpack.c.b16 %v1440, %v1438
      %v1445 = vpack.c.b16 %v1441, %v1439
      %v1451 = vsel %vm489, %v303, 0
      %1453 = vmatprep.subr.bf16.mxu0 %v1443
      %1454 = vmatpush1.bf16.msra.mxu0 %v1442
      %1455 = vmatprep.subr.bf16.mxu0 %v1445
      %1456 = vmatpush1.bf16.msra.mxu0 %v1444
      %1457 = vmatprep.subr.bf16.mxu0 0
      %1458 = vmatpush1.bf16.msra.mxu0 0
      %1459 = vmatprep.subr.bf16.mxu0 0
      %1460 = vmatpush1.bf16.msra.mxu0 0
      %1461 = vmatprep.subr.bf16.mxu0 0
      %1462 = vmatpush1.bf16.msra.mxu0 0
      %1463 = vmatprep.subr.bf16.mxu0 0
      %1464 = vmatpush1.bf16.msra.mxu0 0
      %1465 = vmatprep.subr.bf16.mxu0 0
      %1466 = vmatpush1.bf16.msra.mxu0 0
      %1467 = vmatprep.subr.bf16.mxu0 0
      %1468 = vmatpush1.bf16.msra.mxu0 0
      %1469 = vmatprep.subr.bf16.mxu0 0
      %1470 = vmatpush1.bf16.msra.mxu0 0
      %1471 = vmatprep.subr.bf16.mxu0 0
      %1472 = vmatpush1.bf16.msra.mxu0 0
      %1473 = vmatprep.subr.bf16.mxu0 0
      %1474 = vmatpush1.bf16.msra.mxu0 0
      %1475 = vmatprep.subr.bf16.mxu0 0
      %1476 = vmatpush1.bf16.msra.mxu0 0
      %1477 = vmatprep.subr.bf16.mxu0 0
      %1478 = vmatpush1.bf16.msra.mxu0 0
      %1479 = vmatprep.subr.bf16.mxu0 0
      %1480 = vmatpush1.bf16.msra.mxu0 0
      %1481 = vmatprep.subr.bf16.mxu0 0
      %1482 = vmatpush1.bf16.msra.mxu0 0
      %1483 = vmatprep.subr.bf16.mxu0 0
      %1484 = vmatpush1.bf16.msra.mxu0 0
      %1485 = vmatprep.mubr.bf16.mxu0 0
      %1486 = vmatmul.mubr.bf16.gmra.mrb[0].mxu0 %v1451
      %v1487 = vpop.f32.mrb[0].mxu0
      %v1488 = vadd.f32 0.0, %v1487
      %v1489 = vpop.f32.mrb[0].mxu0
      %v1490 = vadd.f32 0.0, %v1489
      %v1491 = vpop.f32.mrb[0].mxu0
      %v1492 = vpop.f32.mrb[0].mxu0
      %1493 = vdwg.mxu0
      %v1498 = vunpack.c.l.b16 %v389
      %v1499 = vunpack.c.h.b16 %v389
      %v1500 = vunpack.c.l.b16 %v390
      %v1501 = vunpack.c.h.b16 %v390
      %v1502 = vunpack.c.l.b16 %v391
      %v1503 = vunpack.c.h.b16 %v391
      %v1504 = vunpack.c.l.b16 %v392
      %v1505 = vunpack.c.h.b16 %v392
      %v1506 = vpack.c.b16 %v1500, %v1498
      %v1507 = vpack.c.b16 %v1501, %v1499
      %v1508 = vpack.c.b16 %v1504, %v1502
      %v1509 = vpack.c.b16 %v1505, %v1503
      %v1515 = vsel %vm489, %v304, 0
      %1517 = vmatprep.subr.bf16.mxu0 %v1507
      %1518 = vmatpush1.bf16.msra.mxu0 %v1506
      %1519 = vmatprep.subr.bf16.mxu0 %v1509
      %1520 = vmatpush1.bf16.msra.mxu0 %v1508
      %1521 = vmatprep.subr.bf16.mxu0 0
      %1522 = vmatpush1.bf16.msra.mxu0 0
      %1523 = vmatprep.subr.bf16.mxu0 0
      %1524 = vmatpush1.bf16.msra.mxu0 0
      %1525 = vmatprep.subr.bf16.mxu0 0
      %1526 = vmatpush1.bf16.msra.mxu0 0
      %1527 = vmatprep.subr.bf16.mxu0 0
      %1528 = vmatpush1.bf16.msra.mxu0 0
      %1529 = vmatprep.subr.bf16.mxu0 0
      %1530 = vmatpush1.bf16.msra.mxu0 0
      %1531 = vmatprep.subr.bf16.mxu0 0
      %1532 = vmatpush1.bf16.msra.mxu0 0
      %1533 = vmatprep.subr.bf16.mxu0 0
      %1534 = vmatpush1.bf16.msra.mxu0 0
      %1535 = vmatprep.subr.bf16.mxu0 0
      %1536 = vmatpush1.bf16.msra.mxu0 0
      %1537 = vmatprep.subr.bf16.mxu0 0
      %1538 = vmatpush1.bf16.msra.mxu0 0
      %1539 = vmatprep.subr.bf16.mxu0 0
      %1540 = vmatpush1.bf16.msra.mxu0 0
      %1541 = vmatprep.subr.bf16.mxu0 0
      %1542 = vmatpush1.bf16.msra.mxu0 0
      %1543 = vmatprep.subr.bf16.mxu0 0
      %1544 = vmatpush1.bf16.msra.mxu0 0
      %1545 = vmatprep.subr.bf16.mxu0 0
      %1546 = vmatpush1.bf16.msra.mxu0 0
      %1547 = vmatprep.subr.bf16.mxu0 0
      %1548 = vmatpush1.bf16.msra.mxu0 0
      %1549 = vmatprep.mubr.bf16.mxu0 0
      %1550 = vmatmul.mubr.bf16.gmra.mrb[0].mxu0 %v1515
      %v1551 = vpop.f32.mrb[0].mxu0
      %v1552 = vadd.f32 0.0, %v1551
      %v1553 = vpop.f32.mrb[0].mxu0
      %v1554 = vadd.f32 0.0, %v1553
      %v1555 = vpop.f32.mrb[0].mxu0
      %v1556 = vpop.f32.mrb[0].mxu0
      %1557 = vdwg.mxu0
      %v1562 = vunpack.c.l.b16 %v393
      %v1563 = vunpack.c.h.b16 %v393
      %v1564 = vunpack.c.l.b16 %v394
      %v1565 = vunpack.c.h.b16 %v394
      %v1566 = vunpack.c.l.b16 %v395
      %v1567 = vunpack.c.h.b16 %v395
      %v1568 = vunpack.c.l.b16 %v396
      %v1569 = vunpack.c.h.b16 %v396
      %v1570 = vpack.c.b16 %v1564, %v1562
      %v1571 = vpack.c.b16 %v1565, %v1563
      %v1572 = vpack.c.b16 %v1568, %v1566
      %v1573 = vpack.c.b16 %v1569, %v1567
      %v1579 = vsel %vm489, %v305, 0
      %1581 = vmatprep.subr.bf16.mxu0 %v1571
      %1582 = vmatpush1.bf16.msra.mxu0 %v1570
      %1583 = vmatprep.subr.bf16.mxu0 %v1573
      %1584 = vmatpush1.bf16.msra.mxu0 %v1572
      %1585 = vmatprep.subr.bf16.mxu0 0
      %1586 = vmatpush1.bf16.msra.mxu0 0
      %1587 = vmatprep.subr.bf16.mxu0 0
      %1588 = vmatpush1.bf16.msra.mxu0 0
      %1589 = vmatprep.subr.bf16.mxu0 0
      %1590 = vmatpush1.bf16.msra.mxu0 0
      %1591 = vmatprep.subr.bf16.mxu0 0
      %1592 = vmatpush1.bf16.msra.mxu0 0
      %1593 = vmatprep.subr.bf16.mxu0 0
      %1594 = vmatpush1.bf16.msra.mxu0 0
      %1595 = vmatprep.subr.bf16.mxu0 0
      %1596 = vmatpush1.bf16.msra.mxu0 0
      %1597 = vmatprep.subr.bf16.mxu0 0
      %1598 = vmatpush1.bf16.msra.mxu0 0
      %1599 = vmatprep.subr.bf16.mxu0 0
      %1600 = vmatpush1.bf16.msra.mxu0 0
      %1601 = vmatprep.subr.bf16.mxu0 0
      %1602 = vmatpush1.bf16.msra.mxu0 0
      %1603 = vmatprep.subr.bf16.mxu0 0
      %1604 = vmatpush1.bf16.msra.mxu0 0
      %1605 = vmatprep.subr.bf16.mxu0 0
      %1606 = vmatpush1.bf16.msra.mxu0 0
      %1607 = vmatprep.subr.bf16.mxu0 0
      %1608 = vmatpush1.bf16.msra.mxu0 0
      %1609 = vmatprep.subr.bf16.mxu0 0
      %1610 = vmatpush1.bf16.msra.mxu0 0
      %1611 = vmatprep.subr.bf16.mxu0 0
      %1612 = vmatpush1.bf16.msra.mxu0 0
      %1613 = vmatprep.mubr.bf16.mxu0 0
      %1614 = vmatmul.mubr.bf16.gmra.mrb[0].mxu0 %v1579
      %v1615 = vpop.f32.mrb[0].mxu0
      %v1616 = vadd.f32 0.0, %v1615
      %v1617 = vpop.f32.mrb[0].mxu0
      %v1618 = vadd.f32 0.0, %v1617
      %v1619 = vpop.f32.mrb[0].mxu0
      %v1620 = vpop.f32.mrb[0].mxu0
      %1621 = vdwg.mxu0
      %v1626 = vunpack.c.l.b16 %v397
      %v1627 = vunpack.c.h.b16 %v397
      %v1628 = vunpack.c.l.b16 %v398
      %v1629 = vunpack.c.h.b16 %v398
      %v1630 = vunpack.c.l.b16 %v399
      %v1631 = vunpack.c.h.b16 %v399
      %v1632 = vunpack.c.l.b16 %v400
      %v1633 = vunpack.c.h.b16 %v400
      %v1634 = vpack.c.b16 %v1628, %v1626
      %v1635 = vpack.c.b16 %v1629, %v1627
      %v1636 = vpack.c.b16 %v1632, %v1630
      %v1637 = vpack.c.b16 %v1633, %v1631
      %v1643 = vsel %vm489, %v306, 0
      %1645 = vmatprep.subr.bf16.mxu0 %v1635
      %1646 = vmatpush1.bf16.msra.mxu0 %v1634
      %1647 = vmatprep.subr.bf16.mxu0 %v1637
      %1648 = vmatpush1.bf16.msra.mxu0 %v1636
      %1649 = vmatprep.subr.bf16.mxu0 0
      %1650 = vmatpush1.bf16.msra.mxu0 0
      %1651 = vmatprep.subr.bf16.mxu0 0
      %1652 = vmatpush1.bf16.msra.mxu0 0
      %1653 = vmatprep.subr.bf16.mxu0 0
      %1654 = vmatpush1.bf16.msra.mxu0 0
      %1655 = vmatprep.subr.bf16.mxu0 0
      %1656 = vmatpush1.bf16.msra.mxu0 0
      %1657 = vmatprep.subr.bf16.mxu0 0
      %1658 = vmatpush1.bf16.msra.mxu0 0
      %1659 = vmatprep.subr.bf16.mxu0 0
      %1660 = vmatpush1.bf16.msra.mxu0 0
      %1661 = vmatprep.subr.bf16.mxu0 0
      %1662 = vmatpush1.bf16.msra.mxu0 0
      %1663 = vmatprep.subr.bf16.mxu0 0
      %1664 = vmatpush1.bf16.msra.mxu0 0
      %1665 = vmatprep.subr.bf16.mxu0 0
      %1666 = vmatpush1.bf16.msra.mxu0 0
      %1667 = vmatprep.subr.bf16.mxu0 0
      %1668 = vmatpush1.bf16.msra.mxu0 0
      %1669 = vmatprep.subr.bf16.mxu0 0
      %1670 = vmatpush1.bf16.msra.mxu0 0
      %1671 = vmatprep.subr.bf16.mxu0 0
      %1672 = vmatpush1.bf16.msra.mxu0 0
      %1673 = vmatprep.subr.bf16.mxu0 0
      %1674 = vmatpush1.bf16.msra.mxu0 0
      %1675 = vmatprep.subr.bf16.mxu0 0
      %1676 = vmatpush1.bf16.msra.mxu0 0
      %1677 = vmatprep.mubr.bf16.mxu0 0
      %1678 = vmatmul.mubr.bf16.gmra.mrb[0].mxu0 %v1643
      %v1679 = vpop.f32.mrb[0].mxu0
      %v1680 = vadd.f32 0.0, %v1679
      %v1681 = vpop.f32.mrb[0].mxu0
      %v1682 = vadd.f32 0.0, %v1681
      %v1683 = vpop.f32.mrb[0].mxu0
      %v1684 = vpop.f32.mrb[0].mxu0
      %1685 = vdwg.mxu0
      %v1690 = vunpack.c.l.b16 %v401
      %v1691 = vunpack.c.h.b16 %v401
      %v1692 = vunpack.c.l.b16 %v402
      %v1693 = vunpack.c.h.b16 %v402
      %v1694 = vunpack.c.l.b16 %v403
      %v1695 = vunpack.c.h.b16 %v403
      %v1696 = vunpack.c.l.b16 %v404
      %v1697 = vunpack.c.h.b16 %v404
      %v1698 = vpack.c.b16 %v1692, %v1690
      %v1699 = vpack.c.b16 %v1693, %v1691
      %v1700 = vpack.c.b16 %v1696, %v1694
      %v1701 = vpack.c.b16 %v1697, %v1695
      %v1707 = vsel %vm489, %v307, 0
      %1709 = vmatprep.subr.bf16.mxu0 %v1699
      %1710 = vmatpush1.bf16.msra.mxu0 %v1698
      %1711 = vmatprep.subr.bf16.mxu0 %v1701
      %1712 = vmatpush1.bf16.msra.mxu0 %v1700
      %1713 = vmatprep.subr.bf16.mxu0 0
      %1714 = vmatpush1.bf16.msra.mxu0 0
      %1715 = vmatprep.subr.bf16.mxu0 0
      %1716 = vmatpush1.bf16.msra.mxu0 0
      %1717 = vmatprep.subr.bf16.mxu0 0
      %1718 = vmatpush1.bf16.msra.mxu0 0
      %1719 = vmatprep.subr.bf16.mxu0 0
      %1720 = vmatpush1.bf16.msra.mxu0 0
      %1721 = vmatprep.subr.bf16.mxu0 0
      %1722 = vmatpush1.bf16.msra.mxu0 0
      %1723 = vmatprep.subr.bf16.mxu0 0
      %1724 = vmatpush1.bf16.msra.mxu0 0
      %1725 = vmatprep.subr.bf16.mxu0 0
      %1726 = vmatpush1.bf16.msra.mxu0 0
      %1727 = vmatprep.subr.bf16.mxu0 0
      %1728 = vmatpush1.bf16.msra.mxu0 0
      %1729 = vmatprep.subr.bf16.mxu0 0
      %1730 = vmatpush1.bf16.msra.mxu0 0
      %1731 = vmatprep.subr.bf16.mxu0 0
      %1732 = vmatpush1.bf16.msra.mxu0 0
      %1733 = vmatprep.subr.bf16.mxu0 0
      %1734 = vmatpush1.bf16.msra.mxu0 0
      %1735 = vmatprep.subr.bf16.mxu0 0
      %1736 = vmatpush1.bf16.msra.mxu0 0
      %1737 = vmatprep.subr.bf16.mxu0 0
      %1738 = vmatpush1.bf16.msra.mxu0 0
      %1739 = vmatprep.subr.bf16.mxu0 0
      %1740 = vmatpush1.bf16.msra.mxu0 0
      %1741 = vmatprep.mubr.bf16.mxu0 0
      %1742 = vmatmul.mubr.bf16.gmra.mrb[0].mxu0 %v1707
      %v1743 = vpop.f32.mrb[0].mxu0
      %v1744 = vadd.f32 0.0, %v1743
      %v1745 = vpop.f32.mrb[0].mxu0
      %v1746 = vadd.f32 0.0, %v1745
      %v1747 = vpop.f32.mrb[0].mxu0
      %v1748 = vpop.f32.mrb[0].mxu0
      %1749 = vdwg.mxu0
      %v1754 = vunpack.c.l.b16 %v405
      %v1755 = vunpack.c.h.b16 %v405
      %v1756 = vunpack.c.l.b16 %v406
      %v1757 = vunpack.c.h.b16 %v406
      %v1758 = vunpack.c.l.b16 %v407
      %v1759 = vunpack.c.h.b16 %v407
      %v1760 = vunpack.c.l.b16 %v408
      %v1761 = vunpack.c.h.b16 %v408
      %v1762 = vpack.c.b16 %v1756, %v1754
      %v1763 = vpack.c.b16 %v1757, %v1755
      %v1764 = vpack.c.b16 %v1760, %v1758
      %v1765 = vpack.c.b16 %v1761, %v1759
      %v1771 = vsel %vm489, %v308, 0
      %1773 = vmatprep.subr.bf16.mxu0 %v1763
      %1774 = vmatpush1.bf16.msra.mxu0 %v1762
      %1775 = vmatprep.subr.bf16.mxu0 %v1765
      %1776 = vmatpush1.bf16.msra.mxu0 %v1764
      %1777 = vmatprep.subr.bf16.mxu0 0
      %1778 = vmatpush1.bf16.msra.mxu0 0
      %1779 = vmatprep.subr.bf16.mxu0 0
      %1780 = vmatpush1.bf16.msra.mxu0 0
      %1781 = vmatprep.subr.bf16.mxu0 0
      %1782 = vmatpush1.bf16.msra.mxu0 0
      %1783 = vmatprep.subr.bf16.mxu0 0
      %1784 = vmatpush1.bf16.msra.mxu0 0
      %1785 = vmatprep.subr.bf16.mxu0 0
      %1786 = vmatpush1.bf16.msra.mxu0 0
      %1787 = vmatprep.subr.bf16.mxu0 0
      %1788 = vmatpush1.bf16.msra.mxu0 0
      %1789 = vmatprep.subr.bf16.mxu0 0
      %1790 = vmatpush1.bf16.msra.mxu0 0
      %1791 = vmatprep.subr.bf16.mxu0 0
      %1792 = vmatpush1.bf16.msra.mxu0 0
      %1793 = vmatprep.subr.bf16.mxu0 0
      %1794 = vmatpush1.bf16.msra.mxu0 0
      %1795 = vmatprep.subr.bf16.mxu0 0
      %1796 = vmatpush1.bf16.msra.mxu0 0
      %1797 = vmatprep.subr.bf16.mxu0 0
      %1798 = vmatpush1.bf16.msra.mxu0 0
      %1799 = vmatprep.subr.bf16.mxu0 0
      %1800 = vmatpush1.bf16.msra.mxu0 0
      %1801 = vmatprep.subr.bf16.mxu0 0
      %1802 = vmatpush1.bf16.msra.mxu0 0
      %1803 = vmatprep.subr.bf16.mxu0 0
      %1804 = vmatpush1.bf16.msra.mxu0 0
      %1805 = vmatprep.mubr.bf16.mxu0 0
      %1806 = vmatmul.mubr.bf16.gmra.mrb[0].mxu0 %v1771
      %v1807 = vpop.f32.mrb[0].mxu0
      %v1808 = vadd.f32 0.0, %v1807
      %v1809 = vpop.f32.mrb[0].mxu0
      %v1810 = vadd.f32 0.0, %v1809
      %v1811 = vpop.f32.mrb[0].mxu0
      %v1812 = vpop.f32.mrb[0].mxu0
      %1813 = vdwg.mxu0
      %v1818 = vunpack.c.l.b16 %v409
      %v1819 = vunpack.c.h.b16 %v409
      %v1820 = vunpack.c.l.b16 %v410
      %v1821 = vunpack.c.h.b16 %v410
      %v1822 = vunpack.c.l.b16 %v411
      %v1823 = vunpack.c.h.b16 %v411
      %v1824 = vunpack.c.l.b16 %v412
      %v1825 = vunpack.c.h.b16 %v412
      %v1826 = vpack.c.b16 %v1820, %v1818
      %v1827 = vpack.c.b16 %v1821, %v1819
      %v1828 = vpack.c.b16 %v1824, %v1822
      %v1829 = vpack.c.b16 %v1825, %v1823
      %v1835 = vsel %vm489, %v309, 0
      %1837 = vmatprep.subr.bf16.mxu0 %v1827
      %1838 = vmatpush1.bf16.msra.mxu0 %v1826
      %1839 = vmatprep.subr.bf16.mxu0 %v1829
      %1840 = vmatpush1.bf16.msra.mxu0 %v1828
      %1841 = vmatprep.subr.bf16.mxu0 0
      %1842 = vmatpush1.bf16.msra.mxu0 0
      %1843 = vmatprep.subr.bf16.mxu0 0
      %1844 = vmatpush1.bf16.msra.mxu0 0
      %1845 = vmatprep.subr.bf16.mxu0 0
      %1846 = vmatpush1.bf16.msra.mxu0 0
      %1847 = vmatprep.subr.bf16.mxu0 0
      %1848 = vmatpush1.bf16.msra.mxu0 0
      %1849 = vmatprep.subr.bf16.mxu0 0
      %1850 = vmatpush1.bf16.msra.mxu0 0
      %1851 = vmatprep.subr.bf16.mxu0 0
      %1852 = vmatpush1.bf16.msra.mxu0 0
      %1853 = vmatprep.subr.bf16.mxu0 0
      %1854 = vmatpush1.bf16.msra.mxu0 0
      %1855 = vmatprep.subr.bf16.mxu0 0
      %1856 = vmatpush1.bf16.msra.mxu0 0
      %1857 = vmatprep.subr.bf16.mxu0 0
      %1858 = vmatpush1.bf16.msra.mxu0 0
      %1859 = vmatprep.subr.bf16.mxu0 0
      %1860 = vmatpush1.bf16.msra.mxu0 0
      %1861 = vmatprep.subr.bf16.mxu0 0
      %1862 = vmatpush1.bf16.msra.mxu0 0
      %1863 = vmatprep.subr.bf16.mxu0 0
      %1864 = vmatpush1.bf16.msra.mxu0 0
      %1865 = vmatprep.subr.bf16.mxu0 0
      %1866 = vmatpush1.bf16.msra.mxu0 0
      %1867 = vmatprep.subr.bf16.mxu0 0
      %1868 = vmatpush1.bf16.msra.mxu0 0
      %1869 = vmatprep.mubr.bf16.mxu0 0
      %1870 = vmatmul.mubr.bf16.gmra.mrb[0].mxu0 %v1835
      %v1871 = vpop.f32.mrb[0].mxu0
      %v1872 = vadd.f32 0.0, %v1871
      %v1873 = vpop.f32.mrb[0].mxu0
      %v1874 = vadd.f32 0.0, %v1873
      %v1875 = vpop.f32.mrb[0].mxu0
      %v1876 = vpop.f32.mrb[0].mxu0
      %1877 = vdwg.mxu0
      %v1882 = vunpack.c.l.b16 %v413
      %v1883 = vunpack.c.h.b16 %v413
      %v1884 = vunpack.c.l.b16 %v414
      %v1885 = vunpack.c.h.b16 %v414
      %v1886 = vunpack.c.l.b16 %v415
      %v1887 = vunpack.c.h.b16 %v415
      %v1888 = vunpack.c.l.b16 %v416
      %v1889 = vunpack.c.h.b16 %v416
      %v1890 = vpack.c.b16 %v1884, %v1882
      %v1891 = vpack.c.b16 %v1885, %v1883
      %v1892 = vpack.c.b16 %v1888, %v1886
      %v1893 = vpack.c.b16 %v1889, %v1887
      %v1899 = vsel %vm489, %v310, 0
      %1901 = vmatprep.subr.bf16.mxu0 %v1891
      %1902 = vmatpush1.bf16.msra.mxu0 %v1890
      %1903 = vmatprep.subr.bf16.mxu0 %v1893
      %1904 = vmatpush1.bf16.msra.mxu0 %v1892
      %1905 = vmatprep.subr.bf16.mxu0 0
      %1906 = vmatpush1.bf16.msra.mxu0 0
      %1907 = vmatprep.subr.bf16.mxu0 0
      %1908 = vmatpush1.bf16.msra.mxu0 0
      %1909 = vmatprep.subr.bf16.mxu0 0
      %1910 = vmatpush1.bf16.msra.mxu0 0
      %1911 = vmatprep.subr.bf16.mxu0 0
      %1912 = vmatpush1.bf16.msra.mxu0 0
      %1913 = vmatprep.subr.bf16.mxu0 0
      %1914 = vmatpush1.bf16.msra.mxu0 0
      %1915 = vmatprep.subr.bf16.mxu0 0
      %1916 = vmatpush1.bf16.msra.mxu0 0
      %1917 = vmatprep.subr.bf16.mxu0 0
      %1918 = vmatpush1.bf16.msra.mxu0 0
      %1919 = vmatprep.subr.bf16.mxu0 0
      %1920 = vmatpush1.bf16.msra.mxu0 0
      %1921 = vmatprep.subr.bf16.mxu0 0
      %1922 = vmatpush1.bf16.msra.mxu0 0
      %1923 = vmatprep.subr.bf16.mxu0 0
      %1924 = vmatpush1.bf16.msra.mxu0 0
      %1925 = vmatprep.subr.bf16.mxu0 0
      %1926 = vmatpush1.bf16.msra.mxu0 0
      %1927 = vmatprep.subr.bf16.mxu0 0
      %1928 = vmatpush1.bf16.msra.mxu0 0
      %1929 = vmatprep.subr.bf16.mxu0 0
      %1930 = vmatpush1.bf16.msra.mxu0 0
      %1931 = vmatprep.subr.bf16.mxu0 0
      %1932 = vmatpush1.bf16.msra.mxu0 0
      %1933 = vmatprep.mubr.bf16.mxu0 0
      %1934 = vmatmul.mubr.bf16.gmra.mrb[0].mxu0 %v1899
      %v1935 = vpop.f32.mrb[0].mxu0
      %v1936 = vadd.f32 0.0, %v1935
      %v1937 = vpop.f32.mrb[0].mxu0
      %v1938 = vadd.f32 0.0, %v1937
      %v1939 = vpop.f32.mrb[0].mxu0
      %v1940 = vpop.f32.mrb[0].mxu0
      %1941 = vdwg.mxu0
      %v1946 = vunpack.c.l.b16 %v417
      %v1947 = vunpack.c.h.b16 %v417
      %v1948 = vunpack.c.l.b16 %v418
      %v1949 = vunpack.c.h.b16 %v418
      %v1950 = vunpack.c.l.b16 %v419
      %v1951 = vunpack.c.h.b16 %v419
      %v1952 = vunpack.c.l.b16 %v420
      %v1953 = vunpack.c.h.b16 %v420
      %v1954 = vpack.c.b16 %v1948, %v1946
      %v1955 = vpack.c.b16 %v1949, %v1947
      %v1956 = vpack.c.b16 %v1952, %v1950
      %v1957 = vpack.c.b16 %v1953, %v1951
      %v1963 = vsel %vm489, %v311, 0
      %1965 = vmatprep.subr.bf16.mxu0 %v1955
      %1966 = vmatpush1.bf16.msra.mxu0 %v1954
      %1967 = vmatprep.subr.bf16.mxu0 %v1957
      %1968 = vmatpush1.bf16.msra.mxu0 %v1956
      %1969 = vmatprep.subr.bf16.mxu0 0
      %1970 = vmatpush1.bf16.msra.mxu0 0
      %1971 = vmatprep.subr.bf16.mxu0 0
      %1972 = vmatpush1.bf16.msra.mxu0 0
      %1973 = vmatprep.subr.bf16.mxu0 0
      %1974 = vmatpush1.bf16.msra.mxu0 0
      %1975 = vmatprep.subr.bf16.mxu0 0
      %1976 = vmatpush1.bf16.msra.mxu0 0
      %1977 = vmatprep.subr.bf16.mxu0 0
      %1978 = vmatpush1.bf16.msra.mxu0 0
      %1979 = vmatprep.subr.bf16.mxu0 0
      %1980 = vmatpush1.bf16.msra.mxu0 0
      %1981 = vmatprep.subr.bf16.mxu0 0
      %1982 = vmatpush1.bf16.msra.mxu0 0
      %1983 = vmatprep.subr.bf16.mxu0 0
      %1984 = vmatpush1.bf16.msra.mxu0 0
      %1985 = vmatprep.subr.bf16.mxu0 0
      %1986 = vmatpush1.bf16.msra.mxu0 0
      %1987 = vmatprep.subr.bf16.mxu0 0
      %1988 = vmatpush1.bf16.msra.mxu0 0
      %1989 = vmatprep.subr.bf16.mxu0 0
      %1990 = vmatpush1.bf16.msra.mxu0 0
      %1991 = vmatprep.subr.bf16.mxu0 0
      %1992 = vmatpush1.bf16.msra.mxu0 0
      %1993 = vmatprep.subr.bf16.mxu0 0
      %1994 = vmatpush1.bf16.msra.mxu0 0
      %1995 = vmatprep.subr.bf16.mxu0 0
      %1996 = vmatpush1.bf16.msra.mxu0 0
      %1997 = vmatprep.mubr.bf16.mxu0 0
      %1998 = vmatmul.mubr.bf16.gmra.mrb[0].mxu0 %v1963
      %v1999 = vpop.f32.mrb[0].mxu0
      %v2000 = vadd.f32 0.0, %v1999
      %v2001 = vpop.f32.mrb[0].mxu0
      %v2002 = vadd.f32 0.0, %v2001
      %v2003 = vpop.f32.mrb[0].mxu0
      %v2004 = vpop.f32.mrb[0].mxu0
      %2005 = vdwg.mxu0
      %v2010 = vunpack.c.l.b16 %v421
      %v2011 = vunpack.c.h.b16 %v421
      %v2012 = vunpack.c.l.b16 %v422
      %v2013 = vunpack.c.h.b16 %v422
      %v2014 = vunpack.c.l.b16 %v423
      %v2015 = vunpack.c.h.b16 %v423
      %v2016 = vunpack.c.l.b16 %v424
      %v2017 = vunpack.c.h.b16 %v424
      %v2018 = vpack.c.b16 %v2012, %v2010
      %v2019 = vpack.c.b16 %v2013, %v2011
      %v2020 = vpack.c.b16 %v2016, %v2014
      %v2021 = vpack.c.b16 %v2017, %v2015
      %v2027 = vsel %vm489, %v312, 0
      %2029 = vmatprep.subr.bf16.mxu0 %v2019
      %2030 = vmatpush1.bf16.msra.mxu0 %v2018
      %2031 = vmatprep.subr.bf16.mxu0 %v2021
      %2032 = vmatpush1.bf16.msra.mxu0 %v2020
      %2033 = vmatprep.subr.bf16.mxu0 0
      %2034 = vmatpush1.bf16.msra.mxu0 0
      %2035 = vmatprep.subr.bf16.mxu0 0
      %2036 = vmatpush1.bf16.msra.mxu0 0
      %2037 = vmatprep.subr.bf16.mxu0 0
      %2038 = vmatpush1.bf16.msra.mxu0 0
      %2039 = vmatprep.subr.bf16.mxu0 0
      %2040 = vmatpush1.bf16.msra.mxu0 0
      %2041 = vmatprep.subr.bf16.mxu0 0
      %2042 = vmatpush1.bf16.msra.mxu0 0
      %2043 = vmatprep.subr.bf16.mxu0 0
      %2044 = vmatpush1.bf16.msra.mxu0 0
      %2045 = vmatprep.subr.bf16.mxu0 0
      %2046 = vmatpush1.bf16.msra.mxu0 0
      %2047 = vmatprep.subr.bf16.mxu0 0
      %2048 = vmatpush1.bf16.msra.mxu0 0
      %2049 = vmatprep.subr.bf16.mxu0 0
      %2050 = vmatpush1.bf16.msra.mxu0 0
      %2051 = vmatprep.subr.bf16.mxu0 0
      %2052 = vmatpush1.bf16.msra.mxu0 0
      %2053 = vmatprep.subr.bf16.mxu0 0
      %2054 = vmatpush1.bf16.msra.mxu0 0
      %2055 = vmatprep.subr.bf16.mxu0 0
      %2056 = vmatpush1.bf16.msra.mxu0 0
      %2057 = vmatprep.subr.bf16.mxu0 0
      %2058 = vmatpush1.bf16.msra.mxu0 0
      %2059 = vmatprep.subr.bf16.mxu0 0
      %2060 = vmatpush1.bf16.msra.mxu0 0
      %2061 = vmatprep.mubr.bf16.mxu0 0
      %2062 = vmatmul.mubr.bf16.gmra.mrb[0].mxu0 %v2027
      %v2063 = vpop.f32.mrb[0].mxu0
      %v2064 = vadd.f32 0.0, %v2063
      %v2065 = vpop.f32.mrb[0].mxu0
      %v2066 = vadd.f32 0.0, %v2065
      %v2067 = vpop.f32.mrb[0].mxu0
      %v2068 = vpop.f32.mrb[0].mxu0
      %2069 = vdwg.mxu0
      %v2074 = vunpack.c.l.b16 %v425
      %v2075 = vunpack.c.h.b16 %v425
      %v2076 = vunpack.c.l.b16 %v426
      %v2077 = vunpack.c.h.b16 %v426
      %v2078 = vunpack.c.l.b16 %v427
      %v2079 = vunpack.c.h.b16 %v427
      %v2080 = vunpack.c.l.b16 %v428
      %v2081 = vunpack.c.h.b16 %v428
      %v2082 = vpack.c.b16 %v2076, %v2074
      %v2083 = vpack.c.b16 %v2077, %v2075
      %v2084 = vpack.c.b16 %v2080, %v2078
      %v2085 = vpack.c.b16 %v2081, %v2079
      %v2091 = vsel %vm489, %v313, 0
      %2093 = vmatprep.subr.bf16.mxu0 %v2083
      %2094 = vmatpush1.bf16.msra.mxu0 %v2082
      %2095 = vmatprep.subr.bf16.mxu0 %v2085
      %2096 = vmatpush1.bf16.msra.mxu0 %v2084
      %2097 = vmatprep.subr.bf16.mxu0 0
      %2098 = vmatpush1.bf16.msra.mxu0 0
      %2099 = vmatprep.subr.bf16.mxu0 0
      %2100 = vmatpush1.bf16.msra.mxu0 0
      %2101 = vmatprep.subr.bf16.mxu0 0
      %2102 = vmatpush1.bf16.msra.mxu0 0
      %2103 = vmatprep.subr.bf16.mxu0 0
      %2104 = vmatpush1.bf16.msra.mxu0 0
      %2105 = vmatprep.subr.bf16.mxu0 0
      %2106 = vmatpush1.bf16.msra.mxu0 0
      %2107 = vmatprep.subr.bf16.mxu0 0
      %2108 = vmatpush1.bf16.msra.mxu0 0
      %2109 = vmatprep.subr.bf16.mxu0 0
      %2110 = vmatpush1.bf16.msra.mxu0 0
      %2111 = vmatprep.subr.bf16.mxu0 0
      %2112 = vmatpush1.bf16.msra.mxu0 0
      %2113 = vmatprep.subr.bf16.mxu0 0
      %2114 = vmatpush1.bf16.msra.mxu0 0
      %2115 = vmatprep.subr.bf16.mxu0 0
      %2116 = vmatpush1.bf16.msra.mxu0 0
      %2117 = vmatprep.subr.bf16.mxu0 0
      %2118 = vmatpush1.bf16.msra.mxu0 0
      %2119 = vmatprep.subr.bf16.mxu0 0
      %2120 = vmatpush1.bf16.msra.mxu0 0
      %2121 = vmatprep.subr.bf16.mxu0 0
      %2122 = vmatpush1.bf16.msra.mxu0 0
      %2123 = vmatprep.subr.bf16.mxu0 0
      %2124 = vmatpush1.bf16.msra.mxu0 0
      %2125 = vmatprep.mubr.bf16.mxu0 0
      %2126 = vmatmul.mubr.bf16.gmra.mrb[0].mxu0 %v2091
      %v2127 = vpop.f32.mrb[0].mxu0
      %v2128 = vadd.f32 0.0, %v2127
      %v2129 = vpop.f32.mrb[0].mxu0
      %v2130 = vadd.f32 0.0, %v2129
      %v2131 = vpop.f32.mrb[0].mxu0
      %v2132 = vpop.f32.mrb[0].mxu0
      %2133 = vdwg.mxu0
      %v2138 = vunpack.c.l.b16 %v429
      %v2139 = vunpack.c.h.b16 %v429
      %v2140 = vunpack.c.l.b16 %v430
      %v2141 = vunpack.c.h.b16 %v430
      %v2142 = vunpack.c.l.b16 %v431
      %v2143 = vunpack.c.h.b16 %v431
      %v2144 = vunpack.c.l.b16 %v432
      %v2145 = vunpack.c.h.b16 %v432
      %v2146 = vpack.c.b16 %v2140, %v2138
      %v2147 = vpack.c.b16 %v2141, %v2139
      %v2148 = vpack.c.b16 %v2144, %v2142
      %v2149 = vpack.c.b16 %v2145, %v2143
      %v2155 = vsel %vm489, %v314, 0
      %2157 = vmatprep.subr.bf16.mxu0 %v2147
      %2158 = vmatpush1.bf16.msra.mxu0 %v2146
      %2159 = vmatprep.subr.bf16.mxu0 %v2149
      %2160 = vmatpush1.bf16.msra.mxu0 %v2148
      %2161 = vmatprep.subr.bf16.mxu0 0
      %2162 = vmatpush1.bf16.msra.mxu0 0
      %2163 = vmatprep.subr.bf16.mxu0 0
      %2164 = vmatpush1.bf16.msra.mxu0 0
      %2165 = vmatprep.subr.bf16.mxu0 0
      %2166 = vmatpush1.bf16.msra.mxu0 0
      %2167 = vmatprep.subr.bf16.mxu0 0
      %2168 = vmatpush1.bf16.msra.mxu0 0
      %2169 = vmatprep.subr.bf16.mxu0 0
      %2170 = vmatpush1.bf16.msra.mxu0 0
      %2171 = vmatprep.subr.bf16.mxu0 0
      %2172 = vmatpush1.bf16.msra.mxu0 0
      %2173 = vmatprep.subr.bf16.mxu0 0
      %2174 = vmatpush1.bf16.msra.mxu0 0
      %2175 = vmatprep.subr.bf16.mxu0 0
      %2176 = vmatpush1.bf16.msra.mxu0 0
      %2177 = vmatprep.subr.bf16.mxu0 0
      %2178 = vmatpush1.bf16.msra.mxu0 0
      %2179 = vmatprep.subr.bf16.mxu0 0
      %2180 = vmatpush1.bf16.msra.mxu0 0
      %2181 = vmatprep.subr.bf16.mxu0 0
      %2182 = vmatpush1.bf16.msra.mxu0 0
      %2183 = vmatprep.subr.bf16.mxu0 0
      %2184 = vmatpush1.bf16.msra.mxu0 0
      %2185 = vmatprep.subr.bf16.mxu0 0
      %2186 = vmatpush1.bf16.msra.mxu0 0
      %2187 = vmatprep.subr.bf16.mxu0 0
      %2188 = vmatpush1.bf16.msra.mxu0 0
      %2189 = vmatprep.mubr.bf16.mxu0 0
      %2190 = vmatmul.mubr.bf16.gmra.mrb[0].mxu0 %v2155
      %v2191 = vpop.f32.mrb[0].mxu0
      %v2192 = vadd.f32 0.0, %v2191
      %v2193 = vpop.f32.mrb[0].mxu0
      %v2194 = vadd.f32 0.0, %v2193
      %v2195 = vpop.f32.mrb[0].mxu0
      %v2196 = vpop.f32.mrb[0].mxu0
      %2197 = vdwg.mxu0
      %v2202 = vunpack.c.l.b16 %v433
      %v2203 = vunpack.c.h.b16 %v433
      %v2204 = vunpack.c.l.b16 %v434
      %v2205 = vunpack.c.h.b16 %v434
      %v2206 = vunpack.c.l.b16 %v435
      %v2207 = vunpack.c.h.b16 %v435
      %v2208 = vunpack.c.l.b16 %v436
      %v2209 = vunpack.c.h.b16 %v436
      %v2210 = vpack.c.b16 %v2204, %v2202
      %v2211 = vpack.c.b16 %v2205, %v2203
      %v2212 = vpack.c.b16 %v2208, %v2206
      %v2213 = vpack.c.b16 %v2209, %v2207
      %v2219 = vsel %vm489, %v315, 0
      %2221 = vmatprep.subr.bf16.mxu0 %v2211
      %2222 = vmatpush1.bf16.msra.mxu0 %v2210
      %2223 = vmatprep.subr.bf16.mxu0 %v2213
      %2224 = vmatpush1.bf16.msra.mxu0 %v2212
      %2225 = vmatprep.subr.bf16.mxu0 0
      %2226 = vmatpush1.bf16.msra.mxu0 0
      %2227 = vmatprep.subr.bf16.mxu0 0
      %2228 = vmatpush1.bf16.msra.mxu0 0
      %2229 = vmatprep.subr.bf16.mxu0 0
      %2230 = vmatpush1.bf16.msra.mxu0 0
      %2231 = vmatprep.subr.bf16.mxu0 0
      %2232 = vmatpush1.bf16.msra.mxu0 0
      %2233 = vmatprep.subr.bf16.mxu0 0
      %2234 = vmatpush1.bf16.msra.mxu0 0
      %2235 = vmatprep.subr.bf16.mxu0 0
      %2236 = vmatpush1.bf16.msra.mxu0 0
      %2237 = vmatprep.subr.bf16.mxu0 0
      %2238 = vmatpush1.bf16.msra.mxu0 0
      %2239 = vmatprep.subr.bf16.mxu0 0
      %2240 = vmatpush1.bf16.msra.mxu0 0
      %2241 = vmatprep.subr.bf16.mxu0 0
      %2242 = vmatpush1.bf16.msra.mxu0 0
      %2243 = vmatprep.subr.bf16.mxu0 0
      %2244 = vmatpush1.bf16.msra.mxu0 0
      %2245 = vmatprep.subr.bf16.mxu0 0
      %2246 = vmatpush1.bf16.msra.mxu0 0
      %2247 = vmatprep.subr.bf16.mxu0 0
      %2248 = vmatpush1.bf16.msra.mxu0 0
      %2249 = vmatprep.subr.bf16.mxu0 0
      %2250 = vmatpush1.bf16.msra.mxu0 0
      %2251 = vmatprep.subr.bf16.mxu0 0
      %2252 = vmatpush1.bf16.msra.mxu0 0
      %2253 = vmatprep.mubr.bf16.mxu0 0
      %2254 = vmatmul.mubr.bf16.gmra.mrb[0].mxu0 %v2219
      %v2255 = vpop.f32.mrb[0].mxu0
      %v2256 = vadd.f32 0.0, %v2255
      %v2257 = vpop.f32.mrb[0].mxu0
      %v2258 = vadd.f32 0.0, %v2257
      %v2259 = vpop.f32.mrb[0].mxu0
      %v2260 = vpop.f32.mrb[0].mxu0
      %2261 = vdwg.mxu0
      %v2266 = vunpack.c.l.b16 %v437
      %v2267 = vunpack.c.h.b16 %v437
      %v2268 = vunpack.c.l.b16 %v438
      %v2269 = vunpack.c.h.b16 %v438
      %v2270 = vunpack.c.l.b16 %v439
      %v2271 = vunpack.c.h.b16 %v439
      %v2272 = vunpack.c.l.b16 %v440
      %v2273 = vunpack.c.h.b16 %v440
      %v2274 = vpack.c.b16 %v2268, %v2266
      %v2275 = vpack.c.b16 %v2269, %v2267
      %v2276 = vpack.c.b16 %v2272, %v2270
      %v2277 = vpack.c.b16 %v2273, %v2271
      %v2283 = vsel %vm489, %v316, 0
      %2285 = vmatprep.subr.bf16.mxu0 %v2275
      %2286 = vmatpush1.bf16.msra.mxu0 %v2274
      %2287 = vmatprep.subr.bf16.mxu0 %v2277
      %2288 = vmatpush1.bf16.msra.mxu0 %v2276
      %2289 = vmatprep.subr.bf16.mxu0 0
      %2290 = vmatpush1.bf16.msra.mxu0 0
      %2291 = vmatprep.subr.bf16.mxu0 0
      %2292 = vmatpush1.bf16.msra.mxu0 0
      %2293 = vmatprep.subr.bf16.mxu0 0
      %2294 = vmatpush1.bf16.msra.mxu0 0
      %2295 = vmatprep.subr.bf16.mxu0 0
      %2296 = vmatpush1.bf16.msra.mxu0 0
      %2297 = vmatprep.subr.bf16.mxu0 0
      %2298 = vmatpush1.bf16.msra.mxu0 0
      %2299 = vmatprep.subr.bf16.mxu0 0
      %2300 = vmatpush1.bf16.msra.mxu0 0
      %2301 = vmatprep.subr.bf16.mxu0 0
      %2302 = vmatpush1.bf16.msra.mxu0 0
      %2303 = vmatprep.subr.bf16.mxu0 0
      %2304 = vmatpush1.bf16.msra.mxu0 0
      %2305 = vmatprep.subr.bf16.mxu0 0
      %2306 = vmatpush1.bf16.msra.mxu0 0
      %2307 = vmatprep.subr.bf16.mxu0 0
      %2308 = vmatpush1.bf16.msra.mxu0 0
      %2309 = vmatprep.subr.bf16.mxu0 0
      %2310 = vmatpush1.bf16.msra.mxu0 0
      %2311 = vmatprep.subr.bf16.mxu0 0
      %2312 = vmatpush1.bf16.msra.mxu0 0
      %2313 = vmatprep.subr.bf16.mxu0 0
      %2314 = vmatpush1.bf16.msra.mxu0 0
      %2315 = vmatprep.subr.bf16.mxu0 0
      %2316 = vmatpush1.bf16.msra.mxu0 0
      %2317 = vmatprep.mubr.bf16.mxu0 0
      %2318 = vmatmul.mubr.bf16.gmra.mrb[0].mxu0 %v2283
      %v2319 = vpop.f32.mrb[0].mxu0
      %v2320 = vadd.f32 0.0, %v2319
      %v2321 = vpop.f32.mrb[0].mxu0
      %v2322 = vadd.f32 0.0, %v2321
      %v2323 = vpop.f32.mrb[0].mxu0
      %v2324 = vpop.f32.mrb[0].mxu0
      %2325 = vdwg.mxu0
      %v2330 = vunpack.c.l.b16 %v441
      %v2331 = vunpack.c.h.b16 %v441
      %v2332 = vunpack.c.l.b16 %v442
      %v2333 = vunpack.c.h.b16 %v442
      %v2334 = vunpack.c.l.b16 %v443
      %v2335 = vunpack.c.h.b16 %v443
      %v2336 = vunpack.c.l.b16 %v444
      %v2337 = vunpack.c.h.b16 %v444
      %v2338 = vpack.c.b16 %v2332, %v2330
      %v2339 = vpack.c.b16 %v2333, %v2331
      %v2340 = vpack.c.b16 %v2336, %v2334
      %v2341 = vpack.c.b16 %v2337, %v2335
      %v2347 = vsel %vm489, %v317, 0
      %2349 = vmatprep.subr.bf16.mxu0 %v2339
      %2350 = vmatpush1.bf16.msra.mxu0 %v2338
      %2351 = vmatprep.subr.bf16.mxu0 %v2341
      %2352 = vmatpush1.bf16.msra.mxu0 %v2340
      %2353 = vmatprep.subr.bf16.mxu0 0
      %2354 = vmatpush1.bf16.msra.mxu0 0
      %2355 = vmatprep.subr.bf16.mxu0 0
      %2356 = vmatpush1.bf16.msra.mxu0 0
      %2357 = vmatprep.subr.bf16.mxu0 0
      %2358 = vmatpush1.bf16.msra.mxu0 0
      %2359 = vmatprep.subr.bf16.mxu0 0
      %2360 = vmatpush1.bf16.msra.mxu0 0
      %2361 = vmatprep.subr.bf16.mxu0 0
      %2362 = vmatpush1.bf16.msra.mxu0 0
      %2363 = vmatprep.subr.bf16.mxu0 0
      %2364 = vmatpush1.bf16.msra.mxu0 0
      %2365 = vmatprep.subr.bf16.mxu0 0
      %2366 = vmatpush1.bf16.msra.mxu0 0
      %2367 = vmatprep.subr.bf16.mxu0 0
      %2368 = vmatpush1.bf16.msra.mxu0 0
      %2369 = vmatprep.subr.bf16.mxu0 0
      %2370 = vmatpush1.bf16.msra.mxu0 0
      %2371 = vmatprep.subr.bf16.mxu0 0
      %2372 = vmatpush1.bf16.msra.mxu0 0
      %2373 = vmatprep.subr.bf16.mxu0 0
      %2374 = vmatpush1.bf16.msra.mxu0 0
      %2375 = vmatprep.subr.bf16.mxu0 0
      %2376 = vmatpush1.bf16.msra.mxu0 0
      %2377 = vmatprep.subr.bf16.mxu0 0
      %2378 = vmatpush1.bf16.msra.mxu0 0
      %2379 = vmatprep.subr.bf16.mxu0 0
      %2380 = vmatpush1.bf16.msra.mxu0 0
      %2381 = vmatprep.mubr.bf16.mxu0 0
      %2382 = vmatmul.mubr.bf16.gmra.mrb[0].mxu0 %v2347
      %v2383 = vpop.f32.mrb[0].mxu0
      %v2384 = vadd.f32 0.0, %v2383
      %v2385 = vpop.f32.mrb[0].mxu0
      %v2386 = vadd.f32 0.0, %v2385
      %v2387 = vpop.f32.mrb[0].mxu0
      %v2388 = vpop.f32.mrb[0].mxu0
      %2389 = vdwg.mxu0
      %v2394 = vunpack.c.l.b16 %v445
      %v2395 = vunpack.c.h.b16 %v445
      %v2396 = vunpack.c.l.b16 %v446
      %v2397 = vunpack.c.h.b16 %v446
      %v2398 = vunpack.c.l.b16 %v447
      %v2399 = vunpack.c.h.b16 %v447
      %v2400 = vunpack.c.l.b16 %v448
      %v2401 = vunpack.c.h.b16 %v448
      %v2402 = vpack.c.b16 %v2396, %v2394
      %v2403 = vpack.c.b16 %v2397, %v2395
      %v2404 = vpack.c.b16 %v2400, %v2398
      %v2405 = vpack.c.b16 %v2401, %v2399
      %v2411 = vsel %vm489, %v318, 0
      %2413 = vmatprep.subr.bf16.mxu0 %v2403
      %2414 = vmatpush1.bf16.msra.mxu0 %v2402
      %2415 = vmatprep.subr.bf16.mxu0 %v2405
      %2416 = vmatpush1.bf16.msra.mxu0 %v2404
      %2417 = vmatprep.subr.bf16.mxu0 0
      %2418 = vmatpush1.bf16.msra.mxu0 0
      %2419 = vmatprep.subr.bf16.mxu0 0
      %2420 = vmatpush1.bf16.msra.mxu0 0
      %2421 = vmatprep.subr.bf16.mxu0 0
      %2422 = vmatpush1.bf16.msra.mxu0 0
      %2423 = vmatprep.subr.bf16.mxu0 0
      %2424 = vmatpush1.bf16.msra.mxu0 0
      %2425 = vmatprep.subr.bf16.mxu0 0
      %2426 = vmatpush1.bf16.msra.mxu0 0
      %2427 = vmatprep.subr.bf16.mxu0 0
      %2428 = vmatpush1.bf16.msra.mxu0 0
      %2429 = vmatprep.subr.bf16.mxu0 0
      %2430 = vmatpush1.bf16.msra.mxu0 0
      %2431 = vmatprep.subr.bf16.mxu0 0
      %2432 = vmatpush1.bf16.msra.mxu0 0
      %2433 = vmatprep.subr.bf16.mxu0 0
      %2434 = vmatpush1.bf16.msra.mxu0 0
      %2435 = vmatprep.subr.bf16.mxu0 0
      %2436 = vmatpush1.bf16.msra.mxu0 0
      %2437 = vmatprep.subr.bf16.mxu0 0
      %2438 = vmatpush1.bf16.msra.mxu0 0
      %2439 = vmatprep.subr.bf16.mxu0 0
      %2440 = vmatpush1.bf16.msra.mxu0 0
      %2441 = vmatprep.subr.bf16.mxu0 0
      %2442 = vmatpush1.bf16.msra.mxu0 0
      %2443 = vmatprep.subr.bf16.mxu0 0
      %2444 = vmatpush1.bf16.msra.mxu0 0
      %2445 = vmatprep.mubr.bf16.mxu0 0
      %2446 = vmatmul.mubr.bf16.gmra.mrb[0].mxu0 %v2411
      %v2447 = vpop.f32.mrb[0].mxu0
      %v2448 = vadd.f32 0.0, %v2447
      %v2449 = vpop.f32.mrb[0].mxu0
      %v2450 = vadd.f32 0.0, %v2449
      %v2451 = vpop.f32.mrb[0].mxu0
      %v2452 = vpop.f32.mrb[0].mxu0
      %2453 = vdwg.mxu0
      %v2458 = vunpack.c.l.b16 %v449
      %v2459 = vunpack.c.h.b16 %v449
      %v2460 = vunpack.c.l.b16 %v450
      %v2461 = vunpack.c.h.b16 %v450
      %v2462 = vunpack.c.l.b16 %v451
      %v2463 = vunpack.c.h.b16 %v451
      %v2464 = vunpack.c.l.b16 %v452
      %v2465 = vunpack.c.h.b16 %v452
      %v2466 = vpack.c.b16 %v2460, %v2458
      %v2467 = vpack.c.b16 %v2461, %v2459
      %v2468 = vpack.c.b16 %v2464, %v2462
      %v2469 = vpack.c.b16 %v2465, %v2463
      %v2475 = vsel %vm489, %v319, 0
      %2477 = vmatprep.subr.bf16.mxu0 %v2467
      %2478 = vmatpush1.bf16.msra.mxu0 %v2466
      %2479 = vmatprep.subr.bf16.mxu0 %v2469
      %2480 = vmatpush1.bf16.msra.mxu0 %v2468
      %2481 = vmatprep.subr.bf16.mxu0 0
      %2482 = vmatpush1.bf16.msra.mxu0 0
      %2483 = vmatprep.subr.bf16.mxu0 0
      %2484 = vmatpush1.bf16.msra.mxu0 0
      %2485 = vmatprep.subr.bf16.mxu0 0
      %2486 = vmatpush1.bf16.msra.mxu0 0
      %2487 = vmatprep.subr.bf16.mxu0 0
      %2488 = vmatpush1.bf16.msra.mxu0 0
      %2489 = vmatprep.subr.bf16.mxu0 0
      %2490 = vmatpush1.bf16.msra.mxu0 0
      %2491 = vmatprep.subr.bf16.mxu0 0
      %2492 = vmatpush1.bf16.msra.mxu0 0
      %2493 = vmatprep.subr.bf16.mxu0 0
      %2494 = vmatpush1.bf16.msra.mxu0 0
      %2495 = vmatprep.subr.bf16.mxu0 0
      %2496 = vmatpush1.bf16.msra.mxu0 0
      %2497 = vmatprep.subr.bf16.mxu0 0
      %2498 = vmatpush1.bf16.msra.mxu0 0
      %2499 = vmatprep.subr.bf16.mxu0 0
      %2500 = vmatpush1.bf16.msra.mxu0 0
      %2501 = vmatprep.subr.bf16.mxu0 0
      %2502 = vmatpush1.bf16.msra.mxu0 0
      %2503 = vmatprep.subr.bf16.mxu0 0
      %2504 = vmatpush1.bf16.msra.mxu0 0
      %2505 = vmatprep.subr.bf16.mxu0 0
      %2506 = vmatpush1.bf16.msra.mxu0 0
      %2507 = vmatprep.subr.bf16.mxu0 0
      %2508 = vmatpush1.bf16.msra.mxu0 0
      %2509 = vmatprep.mubr.bf16.mxu0 0
      %2510 = vmatmul.mubr.bf16.gmra.mrb[0].mxu0 %v2475
      %v2511 = vpop.f32.mrb[0].mxu0
      %v2512 = vadd.f32 0.0, %v2511
      %v2513 = vpop.f32.mrb[0].mxu0
      %v2514 = vadd.f32 0.0, %v2513
      %v2515 = vpop.f32.mrb[0].mxu0
      %v2516 = vpop.f32.mrb[0].mxu0
      %2517 = vdwg.mxu0
      %v2522 = vunpack.c.l.b16 %v453
      %v2523 = vunpack.c.h.b16 %v453
      %v2524 = vunpack.c.l.b16 %v454
      %v2525 = vunpack.c.h.b16 %v454
      %v2526 = vunpack.c.l.b16 %v455
      %v2527 = vunpack.c.h.b16 %v455
      %v2528 = vunpack.c.l.b16 %v456
      %v2529 = vunpack.c.h.b16 %v456
      %v2530 = vpack.c.b16 %v2524, %v2522
      %v2531 = vpack.c.b16 %v2525, %v2523
      %v2532 = vpack.c.b16 %v2528, %v2526
      %v2533 = vpack.c.b16 %v2529, %v2527
      %v2539 = vsel %vm489, %v320, 0
      %2541 = vmatprep.subr.bf16.mxu0 %v2531
      %2542 = vmatpush1.bf16.msra.mxu0 %v2530
      %2543 = vmatprep.subr.bf16.mxu0 %v2533
      %2544 = vmatpush1.bf16.msra.mxu0 %v2532
      %2545 = vmatprep.subr.bf16.mxu0 0
      %2546 = vmatpush1.bf16.msra.mxu0 0
      %2547 = vmatprep.subr.bf16.mxu0 0
      %2548 = vmatpush1.bf16.msra.mxu0 0
      %2549 = vmatprep.subr.bf16.mxu0 0
      %2550 = vmatpush1.bf16.msra.mxu0 0
      %2551 = vmatprep.subr.bf16.mxu0 0
      %2552 = vmatpush1.bf16.msra.mxu0 0
      %2553 = vmatprep.subr.bf16.mxu0 0
      %2554 = vmatpush1.bf16.msra.mxu0 0
      %2555 = vmatprep.subr.bf16.mxu0 0
      %2556 = vmatpush1.bf16.msra.mxu0 0
      %2557 = vmatprep.subr.bf16.mxu0 0
      %2558 = vmatpush1.bf16.msra.mxu0 0
      %2559 = vmatprep.subr.bf16.mxu0 0
      %2560 = vmatpush1.bf16.msra.mxu0 0
      %2561 = vmatprep.subr.bf16.mxu0 0
      %2562 = vmatpush1.bf16.msra.mxu0 0
      %2563 = vmatprep.subr.bf16.mxu0 0
      %2564 = vmatpush1.bf16.msra.mxu0 0
      %2565 = vmatprep.subr.bf16.mxu0 0
      %2566 = vmatpush1.bf16.msra.mxu0 0
      %2567 = vmatprep.subr.bf16.mxu0 0
      %2568 = vmatpush1.bf16.msra.mxu0 0
      %2569 = vmatprep.subr.bf16.mxu0 0
      %2570 = vmatpush1.bf16.msra.mxu0 0
      %2571 = vmatprep.subr.bf16.mxu0 0
      %2572 = vmatpush1.bf16.msra.mxu0 0
      %2573 = vmatprep.mubr.bf16.mxu0 0
      %2574 = vmatmul.mubr.bf16.gmra.mrb[0].mxu0 %v2539
      %v2575 = vpop.f32.mrb[0].mxu0
      %v2576 = vadd.f32 0.0, %v2575
      %v2577 = vpop.f32.mrb[0].mxu0
      %v2578 = vadd.f32 0.0, %v2577
      %v2579 = vpop.f32.mrb[0].mxu0
      %v2580 = vpop.f32.mrb[0].mxu0
      %2581 = vdwg.mxu0
      %v2586 = vunpack.c.l.b16 %v457
      %v2587 = vunpack.c.h.b16 %v457
      %v2588 = vunpack.c.l.b16 %v458
      %v2589 = vunpack.c.h.b16 %v458
      %v2590 = vunpack.c.l.b16 %v459
      %v2591 = vunpack.c.h.b16 %v459
      %v2592 = vunpack.c.l.b16 %v460
      %v2593 = vunpack.c.h.b16 %v460
      %v2594 = vpack.c.b16 %v2588, %v2586
      %v2595 = vpack.c.b16 %v2589, %v2587
      %v2596 = vpack.c.b16 %v2592, %v2590
      %v2597 = vpack.c.b16 %v2593, %v2591
      %v2603 = vsel %vm489, %v321, 0
      %2605 = vmatprep.subr.bf16.mxu0 %v2595
      %2606 = vmatpush1.bf16.msra.mxu0 %v2594
      %2607 = vmatprep.subr.bf16.mxu0 %v2597
      %2608 = vmatpush1.bf16.msra.mxu0 %v2596
      %2609 = vmatprep.subr.bf16.mxu0 0
      %2610 = vmatpush1.bf16.msra.mxu0 0
      %2611 = vmatprep.subr.bf16.mxu0 0
      %2612 = vmatpush1.bf16.msra.mxu0 0
      %2613 = vmatprep.subr.bf16.mxu0 0
      %2614 = vmatpush1.bf16.msra.mxu0 0
      %2615 = vmatprep.subr.bf16.mxu0 0
      %2616 = vmatpush1.bf16.msra.mxu0 0
      %2617 = vmatprep.subr.bf16.mxu0 0
      %2618 = vmatpush1.bf16.msra.mxu0 0
      %2619 = vmatprep.subr.bf16.mxu0 0
      %2620 = vmatpush1.bf16.msra.mxu0 0
      %2621 = vmatprep.subr.bf16.mxu0 0
      %2622 = vmatpush1.bf16.msra.mxu0 0
      %2623 = vmatprep.subr.bf16.mxu0 0
      %2624 = vmatpush1.bf16.msra.mxu0 0
      %2625 = vmatprep.subr.bf16.mxu0 0
      %2626 = vmatpush1.bf16.msra.mxu0 0
      %2627 = vmatprep.subr.bf16.mxu0 0
      %2628 = vmatpush1.bf16.msra.mxu0 0
      %2629 = vmatprep.subr.bf16.mxu0 0
      %2630 = vmatpush1.bf16.msra.mxu0 0
      %2631 = vmatprep.subr.bf16.mxu0 0
      %2632 = vmatpush1.bf16.msra.mxu0 0
      %2633 = vmatprep.subr.bf16.mxu0 0
      %2634 = vmatpush1.bf16.msra.mxu0 0
      %2635 = vmatprep.subr.bf16.mxu0 0
      %2636 = vmatpush1.bf16.msra.mxu0 0
      %2637 = vmatprep.mubr.bf16.mxu0 0
      %2638 = vmatmul.mubr.bf16.gmra.mrb[0].mxu0 %v2603
      %v2639 = vpop.f32.mrb[0].mxu0
      %v2640 = vadd.f32 0.0, %v2639
      %v2641 = vpop.f32.mrb[0].mxu0
      %v2642 = vadd.f32 0.0, %v2641
      %v2643 = vpop.f32.mrb[0].mxu0
      %v2644 = vpop.f32.mrb[0].mxu0
      %2645 = vdwg.mxu0
      %v2650 = vunpack.c.l.b16 %v461
      %v2651 = vunpack.c.h.b16 %v461
      %v2652 = vunpack.c.l.b16 %v462
      %v2653 = vunpack.c.h.b16 %v462
      %v2654 = vunpack.c.l.b16 %v463
      %v2655 = vunpack.c.h.b16 %v463
      %v2656 = vunpack.c.l.b16 %v464
      %v2657 = vunpack.c.h.b16 %v464
      %v2658 = vpack.c.b16 %v2652, %v2650
      %v2659 = vpack.c.b16 %v2653, %v2651
      %v2660 = vpack.c.b16 %v2656, %v2654
      %v2661 = vpack.c.b16 %v2657, %v2655
      %v2667 = vsel %vm489, %v322, 0
      %2669 = vmatprep.subr.bf16.mxu0 %v2659
      %2670 = vmatpush1.bf16.msra.mxu0 %v2658
      %2671 = vmatprep.subr.bf16.mxu0 %v2661
      %2672 = vmatpush1.bf16.msra.mxu0 %v2660
      %2673 = vmatprep.subr.bf16.mxu0 0
      %2674 = vmatpush1.bf16.msra.mxu0 0
      %2675 = vmatprep.subr.bf16.mxu0 0
      %2676 = vmatpush1.bf16.msra.mxu0 0
      %2677 = vmatprep.subr.bf16.mxu0 0
      %2678 = vmatpush1.bf16.msra.mxu0 0
      %2679 = vmatprep.subr.bf16.mxu0 0
      %2680 = vmatpush1.bf16.msra.mxu0 0
      %2681 = vmatprep.subr.bf16.mxu0 0
      %2682 = vmatpush1.bf16.msra.mxu0 0
      %2683 = vmatprep.subr.bf16.mxu0 0
      %2684 = vmatpush1.bf16.msra.mxu0 0
      %2685 = vmatprep.subr.bf16.mxu0 0
      %2686 = vmatpush1.bf16.msra.mxu0 0
      %2687 = vmatprep.subr.bf16.mxu0 0
      %2688 = vmatpush1.bf16.msra.mxu0 0
      %2689 = vmatprep.subr.bf16.mxu0 0
      %2690 = vmatpush1.bf16.msra.mxu0 0
      %2691 = vmatprep.subr.bf16.mxu0 0
      %2692 = vmatpush1.bf16.msra.mxu0 0
      %2693 = vmatprep.subr.bf16.mxu0 0
      %2694 = vmatpush1.bf16.msra.mxu0 0
      %2695 = vmatprep.subr.bf16.mxu0 0
      %2696 = vmatpush1.bf16.msra.mxu0 0
      %2697 = vmatprep.subr.bf16.mxu0 0
      %2698 = vmatpush1.bf16.msra.mxu0 0
      %2699 = vmatprep.subr.bf16.mxu0 0
      %2700 = vmatpush1.bf16.msra.mxu0 0
      %2701 = vmatprep.mubr.bf16.mxu0 0
      %2702 = vmatmul.mubr.bf16.gmra.mrb[0].mxu0 %v2667
      %v2703 = vpop.f32.mrb[0].mxu0
      %v2704 = vadd.f32 0.0, %v2703
      %v2705 = vpop.f32.mrb[0].mxu0
      %v2706 = vadd.f32 0.0, %v2705
      %v2707 = vpop.f32.mrb[0].mxu0
      %v2708 = vpop.f32.mrb[0].mxu0
      %2709 = vdwg.mxu0
      %v2714 = vunpack.c.l.b16 %v465
      %v2715 = vunpack.c.h.b16 %v465
      %v2716 = vunpack.c.l.b16 %v466
      %v2717 = vunpack.c.h.b16 %v466
      %v2718 = vunpack.c.l.b16 %v467
      %v2719 = vunpack.c.h.b16 %v467
      %v2720 = vunpack.c.l.b16 %v468
      %v2721 = vunpack.c.h.b16 %v468
      %v2722 = vpack.c.b16 %v2716, %v2714
      %v2723 = vpack.c.b16 %v2717, %v2715
      %v2724 = vpack.c.b16 %v2720, %v2718
      %v2725 = vpack.c.b16 %v2721, %v2719
      %v2731 = vsel %vm489, %v323, 0
      %2733 = vmatprep.subr.bf16.mxu0 %v2723
      %2734 = vmatpush1.bf16.msra.mxu0 %v2722
      %2735 = vmatprep.subr.bf16.mxu0 %v2725
      %2736 = vmatpush1.bf16.msra.mxu0 %v2724
      %2737 = vmatprep.subr.bf16.mxu0 0
      %2738 = vmatpush1.bf16.msra.mxu0 0
      %2739 = vmatprep.subr.bf16.mxu0 0
      %2740 = vmatpush1.bf16.msra.mxu0 0
      %2741 = vmatprep.subr.bf16.mxu0 0
      %2742 = vmatpush1.bf16.msra.mxu0 0
      %2743 = vmatprep.subr.bf16.mxu0 0
      %2744 = vmatpush1.bf16.msra.mxu0 0
      %2745 = vmatprep.subr.bf16.mxu0 0
      %2746 = vmatpush1.bf16.msra.mxu0 0
      %2747 = vmatprep.subr.bf16.mxu0 0
      %2748 = vmatpush1.bf16.msra.mxu0 0
      %2749 = vmatprep.subr.bf16.mxu0 0
      %2750 = vmatpush1.bf16.msra.mxu0 0
      %2751 = vmatprep.subr.bf16.mxu0 0
      %2752 = vmatpush1.bf16.msra.mxu0 0
      %2753 = vmatprep.subr.bf16.mxu0 0
      %2754 = vmatpush1.bf16.msra.mxu0 0
      %2755 = vmatprep.subr.bf16.mxu0 0
      %2756 = vmatpush1.bf16.msra.mxu0 0
      %2757 = vmatprep.subr.bf16.mxu0 0
      %2758 = vmatpush1.bf16.msra.mxu0 0
      %2759 = vmatprep.subr.bf16.mxu0 0
      %2760 = vmatpush1.bf16.msra.mxu0 0
      %2761 = vmatprep.subr.bf16.mxu0 0
      %2762 = vmatpush1.bf16.msra.mxu0 0
      %2763 = vmatprep.subr.bf16.mxu0 0
      %2764 = vmatpush1.bf16.msra.mxu0 0
      %2765 = vmatprep.mubr.bf16.mxu0 0
      %2766 = vmatmul.mubr.bf16.gmra.mrb[0].mxu0 %v2731
      %v2767 = vpop.f32.mrb[0].mxu0
      %v2768 = vadd.f32 0.0, %v2767
      %v2769 = vpop.f32.mrb[0].mxu0
      %v2770 = vadd.f32 0.0, %v2769
      %v2771 = vpop.f32.mrb[0].mxu0
      %v2772 = vpop.f32.mrb[0].mxu0
      %2773 = vdwg.mxu0
      %v2810 = vrot.slane %v528, 2
      %v2811 = vrot.slane %v592, 2
      %v2812 = vrot.slane %v656, 2
      %v2813 = vrot.slane %v720, 2
      %v2814 = vrot.slane %v784, 2
      %v2815 = vrot.slane %v848, 2
      %v2816 = vrot.slane %v912, 2
      %v2817 = vrot.slane %v976, 2
      %v2818 = vrot.slane %v1040, 2
      %v2819 = vrot.slane %v1104, 2
      %v2820 = vrot.slane %v1168, 2
      %v2821 = vrot.slane %v1232, 2
      %v2822 = vrot.slane %v1296, 2
      %v2823 = vrot.slane %v1360, 2
      %v2824 = vrot.slane %v1424, 2
      %v2825 = vrot.slane %v1488, 2
      %v2826 = vrot.slane %v1552, 2
      %v2827 = vrot.slane %v1616, 2
      %v2828 = vrot.slane %v1680, 2
      %v2829 = vrot.slane %v1744, 2
      %v2830 = vrot.slane %v1808, 2
      %v2831 = vrot.slane %v1872, 2
      %v2832 = vrot.slane %v1936, 2
      %v2833 = vrot.slane %v2000, 2
      %v2834 = vrot.slane %v2064, 2
      %v2835 = vrot.slane %v2128, 2
      %v2836 = vrot.slane %v2192, 2
      %v2837 = vrot.slane %v2256, 2
      %v2838 = vrot.slane %v2320, 2
      %v2839 = vrot.slane %v2384, 2
      %v2840 = vrot.slane %v2448, 2
      %v2841 = vrot.slane %v2512, 2
      %v2842 = vrot.slane %v2576, 2
      %v2843 = vrot.slane %v2640, 2
      %v2844 = vrot.slane %v2704, 2
      %v2845 = vrot.slane %v2768, 2
      %2846 = vrot.lane.b32.xlu0 %v2810, 96
      %v2847 = vpop.permute.xlu0 %2846
      %2848 = vrot.lane.b32.xlu0 %v2811, 96
      %v2849 = vpop.permute.xlu0 %2848
      %2850 = vrot.lane.b32.xlu0 %v2812, 96
      %v2851 = vpop.permute.xlu0 %2850
      %2852 = vrot.lane.b32.xlu0 %v2813, 96
      %v2853 = vpop.permute.xlu0 %2852
      %2854 = vrot.lane.b32.xlu0 %v2814, 96
      %v2855 = vpop.permute.xlu0 %2854
      %2856 = vrot.lane.b32.xlu0 %v2815, 96
      %v2857 = vpop.permute.xlu0 %2856
      %2858 = vrot.lane.b32.xlu0 %v2816, 96
      %v2859 = vpop.permute.xlu0 %2858
      %2860 = vrot.lane.b32.xlu0 %v2817, 96
      %v2861 = vpop.permute.xlu0 %2860
      %2862 = vrot.lane.b32.xlu0 %v2818, 96
      %v2863 = vpop.permute.xlu0 %2862
      %2864 = vrot.lane.b32.xlu0 %v2819, 96
      %v2865 = vpop.permute.xlu0 %2864
      %2866 = vrot.lane.b32.xlu0 %v2820, 96
      %v2867 = vpop.permute.xlu0 %2866
      %2868 = vrot.lane.b32.xlu0 %v2821, 96
      %v2869 = vpop.permute.xlu0 %2868
      %2870 = vrot.lane.b32.xlu0 %v2822, 96
      %v2871 = vpop.permute.xlu0 %2870
      %2872 = vrot.lane.b32.xlu0 %v2823, 96
      %v2873 = vpop.permute.xlu0 %2872
      %2874 = vrot.lane.b32.xlu0 %v2824, 96
      %v2875 = vpop.permute.xlu0 %2874
      %2876 = vrot.lane.b32.xlu0 %v2825, 96
      %v2877 = vpop.permute.xlu0 %2876
      %2878 = vrot.lane.b32.xlu0 %v2826, 96
      %v2879 = vpop.permute.xlu0 %2878
      %2880 = vrot.lane.b32.xlu0 %v2827, 96
      %v2881 = vpop.permute.xlu0 %2880
      %2882 = vrot.lane.b32.xlu0 %v2828, 96
      %v2883 = vpop.permute.xlu0 %2882
      %2884 = vrot.lane.b32.xlu0 %v2829, 96
      %v2885 = vpop.permute.xlu0 %2884
      %2886 = vrot.lane.b32.xlu0 %v2830, 96
      %v2887 = vpop.permute.xlu0 %2886
      %2888 = vrot.lane.b32.xlu0 %v2831, 96
      %v2889 = vpop.permute.xlu0 %2888
      %2890 = vrot.lane.b32.xlu0 %v2832, 96
      %v2891 = vpop.permute.xlu0 %2890
      %2892 = vrot.lane.b32.xlu0 %v2833, 96
      %v2893 = vpop.permute.xlu0 %2892
      %2894 = vrot.lane.b32.xlu0 %v2834, 96
      %v2895 = vpop.permute.xlu0 %2894
      %2896 = vrot.lane.b32.xlu0 %v2835, 96
      %v2897 = vpop.permute.xlu0 %2896
      %2898 = vrot.lane.b32.xlu0 %v2836, 96
      %v2899 = vpop.permute.xlu0 %2898
      %2900 = vrot.lane.b32.xlu0 %v2837, 96
      %v2901 = vpop.permute.xlu0 %2900
      %2902 = vrot.lane.b32.xlu0 %v2838, 96
      %v2903 = vpop.permute.xlu0 %2902
      %2904 = vrot.lane.b32.xlu0 %v2839, 96
      %v2905 = vpop.permute.xlu0 %2904
      %2906 = vrot.lane.b32.xlu0 %v2840, 96
      %v2907 = vpop.permute.xlu0 %2906
      %2908 = vrot.lane.b32.xlu0 %v2841, 96
      %v2909 = vpop.permute.xlu0 %2908
      %2910 = vrot.lane.b32.xlu0 %v2842, 96
      %v2911 = vpop.permute.xlu0 %2910
      %2912 = vrot.lane.b32.xlu0 %v2843, 96
      %v2913 = vpop.permute.xlu0 %2912
      %2914 = vrot.lane.b32.xlu0 %v2844, 96
      %v2915 = vpop.permute.xlu0 %2914
      %2916 = vrot.lane.b32.xlu0 %v2845, 96
      %v2917 = vpop.permute.xlu0 %2916
      %v2954 = vsub.f32 %v528, %v2847
      %v2955 = vsub.f32 %v592, %v2849
      %v2956 = vsub.f32 %v656, %v2851
      %v2957 = vsub.f32 %v720, %v2853
      %v2958 = vsub.f32 %v784, %v2855
      %v2959 = vsub.f32 %v848, %v2857
      %v2960 = vsub.f32 %v912, %v2859
      %v2961 = vsub.f32 %v976, %v2861
      %v2962 = vsub.f32 %v1040, %v2863
      %v2963 = vsub.f32 %v1104, %v2865
      %v2964 = vsub.f32 %v1168, %v2867
      %v2965 = vsub.f32 %v1232, %v2869
      %v2966 = vsub.f32 %v1296, %v2871
      %v2967 = vsub.f32 %v1360, %v2873
      %v2968 = vsub.f32 %v1424, %v2875
      %v2969 = vsub.f32 %v1488, %v2877
      %v2970 = vsub.f32 %v1552, %v2879
      %v2971 = vsub.f32 %v1616, %v2881
      %v2972 = vsub.f32 %v1680, %v2883
      %v2973 = vsub.f32 %v1744, %v2885
      %v2974 = vsub.f32 %v1808, %v2887
      %v2975 = vsub.f32 %v1872, %v2889
      %v2976 = vsub.f32 %v1936, %v2891
      %v2977 = vsub.f32 %v2000, %v2893
      %v2978 = vsub.f32 %v2064, %v2895
      %v2979 = vsub.f32 %v2128, %v2897
      %v2980 = vsub.f32 %v2192, %v2899
      %v2981 = vsub.f32 %v2256, %v2901
      %v2982 = vsub.f32 %v2320, %v2903
      %v2983 = vsub.f32 %v2384, %v2905
      %v2984 = vsub.f32 %v2448, %v2907
      %v2985 = vsub.f32 %v2512, %v2909
      %v2986 = vsub.f32 %v2576, %v2911
      %v2987 = vsub.f32 %v2640, %v2913
      %v2988 = vsub.f32 %v2704, %v2915
      %v2989 = vsub.f32 %v2768, %v2917
      %2990 = vrot.lane.b32.xlu0 %v2810, 32
      %v2991 = vpop.permute.xlu0 %2990
      %2992 = vrot.lane.b32.xlu0 %v2811, 32
      %v2993 = vpop.permute.xlu0 %2992
      %2994 = vrot.lane.b32.xlu0 %v2812, 32
      %v2995 = vpop.permute.xlu0 %2994
      %2996 = vrot.lane.b32.xlu0 %v2813, 32
      %v2997 = vpop.permute.xlu0 %2996
      %2998 = vrot.lane.b32.xlu0 %v2814, 32
      %v2999 = vpop.permute.xlu0 %2998
      %3000 = vrot.lane.b32.xlu0 %v2815, 32
      %v3001 = vpop.permute.xlu0 %3000
      %3002 = vrot.lane.b32.xlu0 %v2816, 32
      %v3003 = vpop.permute.xlu0 %3002
      %3004 = vrot.lane.b32.xlu0 %v2817, 32
      %v3005 = vpop.permute.xlu0 %3004
      %3006 = vrot.lane.b32.xlu0 %v2818, 32
      %v3007 = vpop.permute.xlu0 %3006
      %3008 = vrot.lane.b32.xlu0 %v2819, 32
      %v3009 = vpop.permute.xlu0 %3008
      %3010 = vrot.lane.b32.xlu0 %v2820, 32
      %v3011 = vpop.permute.xlu0 %3010
      %3012 = vrot.lane.b32.xlu0 %v2821, 32
      %v3013 = vpop.permute.xlu0 %3012
      %3014 = vrot.lane.b32.xlu0 %v2822, 32
      %v3015 = vpop.permute.xlu0 %3014
      %3016 = vrot.lane.b32.xlu0 %v2823, 32
      %v3017 = vpop.permute.xlu0 %3016
      %3018 = vrot.lane.b32.xlu0 %v2824, 32
      %v3019 = vpop.permute.xlu0 %3018
      %3020 = vrot.lane.b32.xlu0 %v2825, 32
      %v3021 = vpop.permute.xlu0 %3020
      %3022 = vrot.lane.b32.xlu0 %v2826, 32
      %v3023 = vpop.permute.xlu0 %3022
      %3024 = vrot.lane.b32.xlu0 %v2827, 32
      %v3025 = vpop.permute.xlu0 %3024
      %3026 = vrot.lane.b32.xlu0 %v2828, 32
      %v3027 = vpop.permute.xlu0 %3026
      %3028 = vrot.lane.b32.xlu0 %v2829, 32
      %v3029 = vpop.permute.xlu0 %3028
      %3030 = vrot.lane.b32.xlu0 %v2830, 32
      %v3031 = vpop.permute.xlu0 %3030
      %3032 = vrot.lane.b32.xlu0 %v2831, 32
      %v3033 = vpop.permute.xlu0 %3032
      %3034 = vrot.lane.b32.xlu0 %v2832, 32
      %v3035 = vpop.permute.xlu0 %3034
      %3036 = vrot.lane.b32.xlu0 %v2833, 32
      %v3037 = vpop.permute.xlu0 %3036
      %3038 = vrot.lane.b32.xlu0 %v2834, 32
      %v3039 = vpop.permute.xlu0 %3038
      %3040 = vrot.lane.b32.xlu0 %v2835, 32
      %v3041 = vpop.permute.xlu0 %3040
      %3042 = vrot.lane.b32.xlu0 %v2836, 32
      %v3043 = vpop.permute.xlu0 %3042
      %3044 = vrot.lane.b32.xlu0 %v2837, 32
      %v3045 = vpop.permute.xlu0 %3044
      %3046 = vrot.lane.b32.xlu0 %v2838, 32
      %v3047 = vpop.permute.xlu0 %3046
      %3048 = vrot.lane.b32.xlu0 %v2839, 32
      %v3049 = vpop.permute.xlu0 %3048
      %3050 = vrot.lane.b32.xlu0 %v2840, 32
      %v3051 = vpop.permute.xlu0 %3050
      %3052 = vrot.lane.b32.xlu0 %v2841, 32
      %v3053 = vpop.permute.xlu0 %3052
      %3054 = vrot.lane.b32.xlu0 %v2842, 32
      %v3055 = vpop.permute.xlu0 %3054
      %3056 = vrot.lane.b32.xlu0 %v2843, 32
      %v3057 = vpop.permute.xlu0 %3056
      %3058 = vrot.lane.b32.xlu0 %v2844, 32
      %v3059 = vpop.permute.xlu0 %3058
      %3060 = vrot.lane.b32.xlu0 %v2845, 32
      %v3061 = vpop.permute.xlu0 %3060
      %v3098 = vadd.f32 %v528, %v2991
      %v3099 = vadd.f32 %v592, %v2993
      %v3100 = vadd.f32 %v656, %v2995
      %v3101 = vadd.f32 %v720, %v2997
      %v3102 = vadd.f32 %v784, %v2999
      %v3103 = vadd.f32 %v848, %v3001
      %v3104 = vadd.f32 %v912, %v3003
      %v3105 = vadd.f32 %v976, %v3005
      %v3106 = vadd.f32 %v1040, %v3007
      %v3107 = vadd.f32 %v1104, %v3009
      %v3108 = vadd.f32 %v1168, %v3011
      %v3109 = vadd.f32 %v1232, %v3013
      %v3110 = vadd.f32 %v1296, %v3015
      %v3111 = vadd.f32 %v1360, %v3017
      %v3112 = vadd.f32 %v1424, %v3019
      %v3113 = vadd.f32 %v1488, %v3021
      %v3114 = vadd.f32 %v1552, %v3023
      %v3115 = vadd.f32 %v1616, %v3025
      %v3116 = vadd.f32 %v1680, %v3027
      %v3117 = vadd.f32 %v1744, %v3029
      %v3118 = vadd.f32 %v1808, %v3031
      %v3119 = vadd.f32 %v1872, %v3033
      %v3120 = vadd.f32 %v1936, %v3035
      %v3121 = vadd.f32 %v2000, %v3037
      %v3122 = vadd.f32 %v2064, %v3039
      %v3123 = vadd.f32 %v2128, %v3041
      %v3124 = vadd.f32 %v2192, %v3043
      %v3125 = vadd.f32 %v2256, %v3045
      %v3126 = vadd.f32 %v2320, %v3047
      %v3127 = vadd.f32 %v2384, %v3049
      %v3128 = vadd.f32 %v2448, %v3051
      %v3129 = vadd.f32 %v2512, %v3053
      %v3130 = vadd.f32 %v2576, %v3055
      %v3131 = vadd.f32 %v2640, %v3057
      %v3132 = vadd.f32 %v2704, %v3059
      %v3133 = vadd.f32 %v2768, %v3061
      %v3170 = vrot.slane %v530, 2
      %v3171 = vrot.slane %v594, 2
      %v3172 = vrot.slane %v658, 2
      %v3173 = vrot.slane %v722, 2
      %v3174 = vrot.slane %v786, 2
      %v3175 = vrot.slane %v850, 2
      %v3176 = vrot.slane %v914, 2
      %v3177 = vrot.slane %v978, 2
      %v3178 = vrot.slane %v1042, 2
      %v3179 = vrot.slane %v1106, 2
      %v3180 = vrot.slane %v1170, 2
      %v3181 = vrot.slane %v1234, 2
      %v3182 = vrot.slane %v1298, 2
      %v3183 = vrot.slane %v1362, 2
      %v3184 = vrot.slane %v1426, 2
      %v3185 = vrot.slane %v1490, 2
      %v3186 = vrot.slane %v1554, 2
      %v3187 = vrot.slane %v1618, 2
      %v3188 = vrot.slane %v1682, 2
      %v3189 = vrot.slane %v1746, 2
      %v3190 = vrot.slane %v1810, 2
      %v3191 = vrot.slane %v1874, 2
      %v3192 = vrot.slane %v1938, 2
      %v3193 = vrot.slane %v2002, 2
      %v3194 = vrot.slane %v2066, 2
      %v3195 = vrot.slane %v2130, 2
      %v3196 = vrot.slane %v2194, 2
      %v3197 = vrot.slane %v2258, 2
      %v3198 = vrot.slane %v2322, 2
      %v3199 = vrot.slane %v2386, 2
      %v3200 = vrot.slane %v2450, 2
      %v3201 = vrot.slane %v2514, 2
      %v3202 = vrot.slane %v2578, 2
      %v3203 = vrot.slane %v2642, 2
      %v3204 = vrot.slane %v2706, 2
      %v3205 = vrot.slane %v2770, 2
      %3206 = vrot.lane.b32.xlu0 %v3170, 64
      %v3207 = vpop.permute.xlu0 %3206
      %3208 = vrot.lane.b32.xlu0 %v3171, 64
      %v3209 = vpop.permute.xlu0 %3208
      %3210 = vrot.lane.b32.xlu0 %v3172, 64
      %v3211 = vpop.permute.xlu0 %3210
      %3212 = vrot.lane.b32.xlu0 %v3173, 64
      %v3213 = vpop.permute.xlu0 %3212
      %3214 = vrot.lane.b32.xlu0 %v3174, 64
      %v3215 = vpop.permute.xlu0 %3214
      %3216 = vrot.lane.b32.xlu0 %v3175, 64
      %v3217 = vpop.permute.xlu0 %3216
      %3218 = vrot.lane.b32.xlu0 %v3176, 64
      %v3219 = vpop.permute.xlu0 %3218
      %3220 = vrot.lane.b32.xlu0 %v3177, 64
      %v3221 = vpop.permute.xlu0 %3220
      %3222 = vrot.lane.b32.xlu0 %v3178, 64
      %v3223 = vpop.permute.xlu0 %3222
      %3224 = vrot.lane.b32.xlu0 %v3179, 64
      %v3225 = vpop.permute.xlu0 %3224
      %3226 = vrot.lane.b32.xlu0 %v3180, 64
      %v3227 = vpop.permute.xlu0 %3226
      %3228 = vrot.lane.b32.xlu0 %v3181, 64
      %v3229 = vpop.permute.xlu0 %3228
      %3230 = vrot.lane.b32.xlu0 %v3182, 64
      %v3231 = vpop.permute.xlu0 %3230
      %3232 = vrot.lane.b32.xlu0 %v3183, 64
      %v3233 = vpop.permute.xlu0 %3232
      %3234 = vrot.lane.b32.xlu0 %v3184, 64
      %v3235 = vpop.permute.xlu0 %3234
      %3236 = vrot.lane.b32.xlu0 %v3185, 64
      %v3237 = vpop.permute.xlu0 %3236
      %3238 = vrot.lane.b32.xlu0 %v3186, 64
      %v3239 = vpop.permute.xlu0 %3238
      %3240 = vrot.lane.b32.xlu0 %v3187, 64
      %v3241 = vpop.permute.xlu0 %3240
      %3242 = vrot.lane.b32.xlu0 %v3188, 64
      %v3243 = vpop.permute.xlu0 %3242
      %3244 = vrot.lane.b32.xlu0 %v3189, 64
      %v3245 = vpop.permute.xlu0 %3244
      %3246 = vrot.lane.b32.xlu0 %v3190, 64
      %v3247 = vpop.permute.xlu0 %3246
      %3248 = vrot.lane.b32.xlu0 %v3191, 64
      %v3249 = vpop.permute.xlu0 %3248
      %3250 = vrot.lane.b32.xlu0 %v3192, 64
      %v3251 = vpop.permute.xlu0 %3250
      %3252 = vrot.lane.b32.xlu0 %v3193, 64
      %v3253 = vpop.permute.xlu0 %3252
      %3254 = vrot.lane.b32.xlu0 %v3194, 64
      %v3255 = vpop.permute.xlu0 %3254
      %3256 = vrot.lane.b32.xlu0 %v3195, 64
      %v3257 = vpop.permute.xlu0 %3256
      %3258 = vrot.lane.b32.xlu0 %v3196, 64
      %v3259 = vpop.permute.xlu0 %3258
      %3260 = vrot.lane.b32.xlu0 %v3197, 64
      %v3261 = vpop.permute.xlu0 %3260
      %3262 = vrot.lane.b32.xlu0 %v3198, 64
      %v3263 = vpop.permute.xlu0 %3262
      %3264 = vrot.lane.b32.xlu0 %v3199, 64
      %v3265 = vpop.permute.xlu0 %3264
      %3266 = vrot.lane.b32.xlu0 %v3200, 64
      %v3267 = vpop.permute.xlu0 %3266
      %3268 = vrot.lane.b32.xlu0 %v3201, 64
      %v3269 = vpop.permute.xlu0 %3268
      %3270 = vrot.lane.b32.xlu0 %v3202, 64
      %v3271 = vpop.permute.xlu0 %3270
      %3272 = vrot.lane.b32.xlu0 %v3203, 64
      %v3273 = vpop.permute.xlu0 %3272
      %3274 = vrot.lane.b32.xlu0 %v3204, 64
      %v3275 = vpop.permute.xlu0 %3274
      %3276 = vrot.lane.b32.xlu0 %v3205, 64
      %v3277 = vpop.permute.xlu0 %3276
      %v3314 = vsub.f32 %v528, %v3207
      %v3315 = vsub.f32 %v592, %v3209
      %v3316 = vsub.f32 %v656, %v3211
      %v3317 = vsub.f32 %v720, %v3213
      %v3318 = vsub.f32 %v784, %v3215
      %v3319 = vsub.f32 %v848, %v3217
      %v3320 = vsub.f32 %v912, %v3219
      %v3321 = vsub.f32 %v976, %v3221
      %v3322 = vsub.f32 %v1040, %v3223
      %v3323 = vsub.f32 %v1104, %v3225
      %v3324 = vsub.f32 %v1168, %v3227
      %v3325 = vsub.f32 %v1232, %v3229
      %v3326 = vsub.f32 %v1296, %v3231
      %v3327 = vsub.f32 %v1360, %v3233
      %v3328 = vsub.f32 %v1424, %v3235
      %v3329 = vsub.f32 %v1488, %v3237
      %v3330 = vsub.f32 %v1552, %v3239
      %v3331 = vsub.f32 %v1616, %v3241
      %v3332 = vsub.f32 %v1680, %v3243
      %v3333 = vsub.f32 %v1744, %v3245
      %v3334 = vsub.f32 %v1808, %v3247
      %v3335 = vsub.f32 %v1872, %v3249
      %v3336 = vsub.f32 %v1936, %v3251
      %v3337 = vsub.f32 %v2000, %v3253
      %v3338 = vsub.f32 %v2064, %v3255
      %v3339 = vsub.f32 %v2128, %v3257
      %v3340 = vsub.f32 %v2192, %v3259
      %v3341 = vsub.f32 %v2256, %v3261
      %v3342 = vsub.f32 %v2320, %v3263
      %v3343 = vsub.f32 %v2384, %v3265
      %v3344 = vsub.f32 %v2448, %v3267
      %v3345 = vsub.f32 %v2512, %v3269
      %v3346 = vsub.f32 %v2576, %v3271
      %v3347 = vsub.f32 %v2640, %v3273
      %v3348 = vsub.f32 %v2704, %v3275
      %v3349 = vsub.f32 %v2768, %v3277
      %3351 = vrot.lane.b32.xlu0 %v324, 64
      %v3352 = vpop.permute.xlu0 %3351
      %v3354 = vmul.f32 %v3314, %v3352
      %v3355 = vmul.f32 %v3315, %v3352
      %v3356 = vmul.f32 %v3316, %v3352
      %v3357 = vmul.f32 %v3317, %v3352
      %v3358 = vmul.f32 %v3318, %v3352
      %v3359 = vmul.f32 %v3319, %v3352
      %v3360 = vmul.f32 %v3320, %v3352
      %v3361 = vmul.f32 %v3321, %v3352
      %v3362 = vmul.f32 %v3322, %v3352
      %v3363 = vmul.f32 %v3323, %v3352
      %v3364 = vmul.f32 %v3324, %v3352
      %v3365 = vmul.f32 %v3325, %v3352
      %v3366 = vmul.f32 %v3326, %v3352
      %v3367 = vmul.f32 %v3327, %v3352
      %v3368 = vmul.f32 %v3328, %v3352
      %v3369 = vmul.f32 %v3329, %v3352
      %v3370 = vmul.f32 %v3330, %v3352
      %v3371 = vmul.f32 %v3331, %v3352
      %v3372 = vmul.f32 %v3332, %v3352
      %v3373 = vmul.f32 %v3333, %v3352
      %v3374 = vmul.f32 %v3334, %v3352
      %v3375 = vmul.f32 %v3335, %v3352
      %v3376 = vmul.f32 %v3336, %v3352
      %v3377 = vmul.f32 %v3337, %v3352
      %v3378 = vmul.f32 %v3338, %v3352
      %v3379 = vmul.f32 %v3339, %v3352
      %v3380 = vmul.f32 %v3340, %v3352
      %v3381 = vmul.f32 %v3341, %v3352
      %v3382 = vmul.f32 %v3342, %v3352
      %v3383 = vmul.f32 %v3343, %v3352
      %v3384 = vmul.f32 %v3344, %v3352
      %v3385 = vmul.f32 %v3345, %v3352
      %v3386 = vmul.f32 %v3346, %v3352
      %v3387 = vmul.f32 %v3347, %v3352
      %v3388 = vmul.f32 %v3348, %v3352
      %v3389 = vmul.f32 %v3349, %v3352
      %3390 = vrot.lane.b32.xlu0 %v2810, 64
      %v3391 = vpop.permute.xlu0 %3390
      %3392 = vrot.lane.b32.xlu0 %v2811, 64
      %v3393 = vpop.permute.xlu0 %3392
      %3394 = vrot.lane.b32.xlu0 %v2812, 64
      %v3395 = vpop.permute.xlu0 %3394
      %3396 = vrot.lane.b32.xlu0 %v2813, 64
      %v3397 = vpop.permute.xlu0 %3396
      %3398 = vrot.lane.b32.xlu0 %v2814, 64
      %v3399 = vpop.permute.xlu0 %3398
      %3400 = vrot.lane.b32.xlu0 %v2815, 64
      %v3401 = vpop.permute.xlu0 %3400
      %3402 = vrot.lane.b32.xlu0 %v2816, 64
      %v3403 = vpop.permute.xlu0 %3402
      %3404 = vrot.lane.b32.xlu0 %v2817, 64
      %v3405 = vpop.permute.xlu0 %3404
      %3406 = vrot.lane.b32.xlu0 %v2818, 64
      %v3407 = vpop.permute.xlu0 %3406
      %3408 = vrot.lane.b32.xlu0 %v2819, 64
      %v3409 = vpop.permute.xlu0 %3408
      %3410 = vrot.lane.b32.xlu0 %v2820, 64
      %v3411 = vpop.permute.xlu0 %3410
      %3412 = vrot.lane.b32.xlu0 %v2821, 64
      %v3413 = vpop.permute.xlu0 %3412
      %3414 = vrot.lane.b32.xlu0 %v2822, 64
      %v3415 = vpop.permute.xlu0 %3414
      %3416 = vrot.lane.b32.xlu0 %v2823, 64
      %v3417 = vpop.permute.xlu0 %3416
      %3418 = vrot.lane.b32.xlu0 %v2824, 64
      %v3419 = vpop.permute.xlu0 %3418
      %3420 = vrot.lane.b32.xlu0 %v2825, 64
      %v3421 = vpop.permute.xlu0 %3420
      %3422 = vrot.lane.b32.xlu0 %v2826, 64
      %v3423 = vpop.permute.xlu0 %3422
      %3424 = vrot.lane.b32.xlu0 %v2827, 64
      %v3425 = vpop.permute.xlu0 %3424
      %3426 = vrot.lane.b32.xlu0 %v2828, 64
      %v3427 = vpop.permute.xlu0 %3426
      %3428 = vrot.lane.b32.xlu0 %v2829, 64
      %v3429 = vpop.permute.xlu0 %3428
      %3430 = vrot.lane.b32.xlu0 %v2830, 64
      %v3431 = vpop.permute.xlu0 %3430
      %3432 = vrot.lane.b32.xlu0 %v2831, 64
      %v3433 = vpop.permute.xlu0 %3432
      %3434 = vrot.lane.b32.xlu0 %v2832, 64
      %v3435 = vpop.permute.xlu0 %3434
      %3436 = vrot.lane.b32.xlu0 %v2833, 64
      %v3437 = vpop.permute.xlu0 %3436
      %3438 = vrot.lane.b32.xlu0 %v2834, 64
      %v3439 = vpop.permute.xlu0 %3438
      %3440 = vrot.lane.b32.xlu0 %v2835, 64
      %v3441 = vpop.permute.xlu0 %3440
      %3442 = vrot.lane.b32.xlu0 %v2836, 64
      %v3443 = vpop.permute.xlu0 %3442
      %3444 = vrot.lane.b32.xlu0 %v2837, 64
      %v3445 = vpop.permute.xlu0 %3444
      %3446 = vrot.lane.b32.xlu0 %v2838, 64
      %v3447 = vpop.permute.xlu0 %3446
      %3448 = vrot.lane.b32.xlu0 %v2839, 64
      %v3449 = vpop.permute.xlu0 %3448
      %3450 = vrot.lane.b32.xlu0 %v2840, 64
      %v3451 = vpop.permute.xlu0 %3450
      %3452 = vrot.lane.b32.xlu0 %v2841, 64
      %v3453 = vpop.permute.xlu0 %3452
      %3454 = vrot.lane.b32.xlu0 %v2842, 64
      %v3455 = vpop.permute.xlu0 %3454
      %3456 = vrot.lane.b32.xlu0 %v2843, 64
      %v3457 = vpop.permute.xlu0 %3456
      %3458 = vrot.lane.b32.xlu0 %v2844, 64
      %v3459 = vpop.permute.xlu0 %3458
      %3460 = vrot.lane.b32.xlu0 %v2845, 64
      %v3461 = vpop.permute.xlu0 %3460
      %v3498 = vadd.f32 %v530, %v3391
      %v3499 = vadd.f32 %v594, %v3393
      %v3500 = vadd.f32 %v658, %v3395
      %v3501 = vadd.f32 %v722, %v3397
      %v3502 = vadd.f32 %v786, %v3399
      %v3503 = vadd.f32 %v850, %v3401
      %v3504 = vadd.f32 %v914, %v3403
      %v3505 = vadd.f32 %v978, %v3405
      %v3506 = vadd.f32 %v1042, %v3407
      %v3507 = vadd.f32 %v1106, %v3409
      %v3508 = vadd.f32 %v1170, %v3411
      %v3509 = vadd.f32 %v1234, %v3413
      %v3510 = vadd.f32 %v1298, %v3415
      %v3511 = vadd.f32 %v1362, %v3417
      %v3512 = vadd.f32 %v1426, %v3419
      %v3513 = vadd.f32 %v1490, %v3421
      %v3514 = vadd.f32 %v1554, %v3423
      %v3515 = vadd.f32 %v1618, %v3425
      %v3516 = vadd.f32 %v1682, %v3427
      %v3517 = vadd.f32 %v1746, %v3429
      %v3518 = vadd.f32 %v1810, %v3431
      %v3519 = vadd.f32 %v1874, %v3433
      %v3520 = vadd.f32 %v1938, %v3435
      %v3521 = vadd.f32 %v2002, %v3437
      %v3522 = vadd.f32 %v2066, %v3439
      %v3523 = vadd.f32 %v2130, %v3441
      %v3524 = vadd.f32 %v2194, %v3443
      %v3525 = vadd.f32 %v2258, %v3445
      %v3526 = vadd.f32 %v2322, %v3447
      %v3527 = vadd.f32 %v2386, %v3449
      %v3528 = vadd.f32 %v2450, %v3451
      %v3529 = vadd.f32 %v2514, %v3453
      %v3530 = vadd.f32 %v2578, %v3455
      %v3531 = vadd.f32 %v2642, %v3457
      %v3532 = vadd.f32 %v2706, %v3459
      %v3533 = vadd.f32 %v2770, %v3461
      %v3534 = vmul.f32 %v3498, %v324
      %v3535 = vmul.f32 %v3499, %v324
      %v3536 = vmul.f32 %v3500, %v324
      %v3537 = vmul.f32 %v3501, %v324
      %v3538 = vmul.f32 %v3502, %v324
      %v3539 = vmul.f32 %v3503, %v324
      %v3540 = vmul.f32 %v3504, %v324
      %v3541 = vmul.f32 %v3505, %v324
      %v3542 = vmul.f32 %v3506, %v324
      %v3543 = vmul.f32 %v3507, %v324
      %v3544 = vmul.f32 %v3508, %v324
      %v3545 = vmul.f32 %v3509, %v324
      %v3546 = vmul.f32 %v3510, %v324
      %v3547 = vmul.f32 %v3511, %v324
      %v3548 = vmul.f32 %v3512, %v324
      %v3549 = vmul.f32 %v3513, %v324
      %v3550 = vmul.f32 %v3514, %v324
      %v3551 = vmul.f32 %v3515, %v324
      %v3552 = vmul.f32 %v3516, %v324
      %v3553 = vmul.f32 %v3517, %v324
      %v3554 = vmul.f32 %v3518, %v324
      %v3555 = vmul.f32 %v3519, %v324
      %v3556 = vmul.f32 %v3520, %v324
      %v3557 = vmul.f32 %v3521, %v324
      %v3558 = vmul.f32 %v3522, %v324
      %v3559 = vmul.f32 %v3523, %v324
      %v3560 = vmul.f32 %v3524, %v324
      %v3561 = vmul.f32 %v3525, %v324
      %v3562 = vmul.f32 %v3526, %v324
      %v3563 = vmul.f32 %v3527, %v324
      %v3564 = vmul.f32 %v3528, %v324
      %v3565 = vmul.f32 %v3529, %v324
      %v3566 = vmul.f32 %v3530, %v324
      %v3567 = vmul.f32 %v3531, %v324
      %v3568 = vmul.f32 %v3532, %v324
      %v3569 = vmul.f32 %v3533, %v324
      %v3606 = vrot.slane %v3534, 6
      %v3607 = vrot.slane %v3535, 6
      %v3608 = vrot.slane %v3536, 6
      %v3609 = vrot.slane %v3537, 6
      %v3610 = vrot.slane %v3538, 6
      %v3611 = vrot.slane %v3539, 6
      %v3612 = vrot.slane %v3540, 6
      %v3613 = vrot.slane %v3541, 6
      %v3614 = vrot.slane %v3542, 6
      %v3615 = vrot.slane %v3543, 6
      %v3616 = vrot.slane %v3544, 6
      %v3617 = vrot.slane %v3545, 6
      %v3618 = vrot.slane %v3546, 6
      %v3619 = vrot.slane %v3547, 6
      %v3620 = vrot.slane %v3548, 6
      %v3621 = vrot.slane %v3549, 6
      %v3622 = vrot.slane %v3550, 6
      %v3623 = vrot.slane %v3551, 6
      %v3624 = vrot.slane %v3552, 6
      %v3625 = vrot.slane %v3553, 6
      %v3626 = vrot.slane %v3554, 6
      %v3627 = vrot.slane %v3555, 6
      %v3628 = vrot.slane %v3556, 6
      %v3629 = vrot.slane %v3557, 6
      %v3630 = vrot.slane %v3558, 6
      %v3631 = vrot.slane %v3559, 6
      %v3632 = vrot.slane %v3560, 6
      %v3633 = vrot.slane %v3561, 6
      %v3634 = vrot.slane %v3562, 6
      %v3635 = vrot.slane %v3563, 6
      %v3636 = vrot.slane %v3564, 6
      %v3637 = vrot.slane %v3565, 6
      %v3638 = vrot.slane %v3566, 6
      %v3639 = vrot.slane %v3567, 6
      %v3640 = vrot.slane %v3568, 6
      %v3641 = vrot.slane %v3569, 6
      %3642 = vrot.lane.b32.xlu0 %v3606, 64
      %v3643 = vpop.permute.xlu0 %3642
      %3644 = vrot.lane.b32.xlu0 %v3607, 64
      %v3645 = vpop.permute.xlu0 %3644
      %3646 = vrot.lane.b32.xlu0 %v3608, 64
      %v3647 = vpop.permute.xlu0 %3646
      %3648 = vrot.lane.b32.xlu0 %v3609, 64
      %v3649 = vpop.permute.xlu0 %3648
      %3650 = vrot.lane.b32.xlu0 %v3610, 64
      %v3651 = vpop.permute.xlu0 %3650
      %3652 = vrot.lane.b32.xlu0 %v3611, 64
      %v3653 = vpop.permute.xlu0 %3652
      %3654 = vrot.lane.b32.xlu0 %v3612, 64
      %v3655 = vpop.permute.xlu0 %3654
      %3656 = vrot.lane.b32.xlu0 %v3613, 64
      %v3657 = vpop.permute.xlu0 %3656
      %3658 = vrot.lane.b32.xlu0 %v3614, 64
      %v3659 = vpop.permute.xlu0 %3658
      %3660 = vrot.lane.b32.xlu0 %v3615, 64
      %v3661 = vpop.permute.xlu0 %3660
      %3662 = vrot.lane.b32.xlu0 %v3616, 64
      %v3663 = vpop.permute.xlu0 %3662
      %3664 = vrot.lane.b32.xlu0 %v3617, 64
      %v3665 = vpop.permute.xlu0 %3664
      %3666 = vrot.lane.b32.xlu0 %v3618, 64
      %v3667 = vpop.permute.xlu0 %3666
      %3668 = vrot.lane.b32.xlu0 %v3619, 64
      %v3669 = vpop.permute.xlu0 %3668
      %3670 = vrot.lane.b32.xlu0 %v3620, 64
      %v3671 = vpop.permute.xlu0 %3670
      %3672 = vrot.lane.b32.xlu0 %v3621, 64
      %v3673 = vpop.permute.xlu0 %3672
      %3674 = vrot.lane.b32.xlu0 %v3622, 64
      %v3675 = vpop.permute.xlu0 %3674
      %3676 = vrot.lane.b32.xlu0 %v3623, 64
      %v3677 = vpop.permute.xlu0 %3676
      %3678 = vrot.lane.b32.xlu0 %v3624, 64
      %v3679 = vpop.permute.xlu0 %3678
      %3680 = vrot.lane.b32.xlu0 %v3625, 64
      %v3681 = vpop.permute.xlu0 %3680
      %3682 = vrot.lane.b32.xlu0 %v3626, 64
      %v3683 = vpop.permute.xlu0 %3682
      %3684 = vrot.lane.b32.xlu0 %v3627, 64
      %v3685 = vpop.permute.xlu0 %3684
      %3686 = vrot.lane.b32.xlu0 %v3628, 64
      %v3687 = vpop.permute.xlu0 %3686
      %3688 = vrot.lane.b32.xlu0 %v3629, 64
      %v3689 = vpop.permute.xlu0 %3688
      %3690 = vrot.lane.b32.xlu0 %v3630, 64
      %v3691 = vpop.permute.xlu0 %3690
      %3692 = vrot.lane.b32.xlu0 %v3631, 64
      %v3693 = vpop.permute.xlu0 %3692
      %3694 = vrot.lane.b32.xlu0 %v3632, 64
      %v3695 = vpop.permute.xlu0 %3694
      %3696 = vrot.lane.b32.xlu0 %v3633, 64
      %v3697 = vpop.permute.xlu0 %3696
      %3698 = vrot.lane.b32.xlu0 %v3634, 64
      %v3699 = vpop.permute.xlu0 %3698
      %3700 = vrot.lane.b32.xlu0 %v3635, 64
      %v3701 = vpop.permute.xlu0 %3700
      %3702 = vrot.lane.b32.xlu0 %v3636, 64
      %v3703 = vpop.permute.xlu0 %3702
      %3704 = vrot.lane.b32.xlu0 %v3637, 64
      %v3705 = vpop.permute.xlu0 %3704
      %3706 = vrot.lane.b32.xlu0 %v3638, 64
      %v3707 = vpop.permute.xlu0 %3706
      %3708 = vrot.lane.b32.xlu0 %v3639, 64
      %v3709 = vpop.permute.xlu0 %3708
      %3710 = vrot.lane.b32.xlu0 %v3640, 64
      %v3711 = vpop.permute.xlu0 %3710
      %3712 = vrot.lane.b32.xlu0 %v3641, 64
      %v3713 = vpop.permute.xlu0 %3712
      %vm3750 = vcmask 1041408
      %v3751 = vsel %vm3750, %v3354, %v3643
      %v3752 = vsel %vm3750, %v3355, %v3645
      %v3753 = vsel %vm3750, %v3356, %v3647
      %v3754 = vsel %vm3750, %v3357, %v3649
      %v3755 = vsel %vm3750, %v3358, %v3651
      %v3756 = vsel %vm3750, %v3359, %v3653
      %v3757 = vsel %vm3750, %v3360, %v3655
      %v3758 = vsel %vm3750, %v3361, %v3657
      %v3759 = vsel %vm3750, %v3362, %v3659
      %v3760 = vsel %vm3750, %v3363, %v3661
      %v3761 = vsel %vm3750, %v3364, %v3663
      %v3762 = vsel %vm3750, %v3365, %v3665
      %v3763 = vsel %vm3750, %v3366, %v3667
      %v3764 = vsel %vm3750, %v3367, %v3669
      %v3765 = vsel %vm3750, %v3368, %v3671
      %v3766 = vsel %vm3750, %v3369, %v3673
      %v3767 = vsel %vm3750, %v3370, %v3675
      %v3768 = vsel %vm3750, %v3371, %v3677
      %v3769 = vsel %vm3750, %v3372, %v3679
      %v3770 = vsel %vm3750, %v3373, %v3681
      %v3771 = vsel %vm3750, %v3374, %v3683
      %v3772 = vsel %vm3750, %v3375, %v3685
      %v3773 = vsel %vm3750, %v3376, %v3687
      %v3774 = vsel %vm3750, %v3377, %v3689
      %v3775 = vsel %vm3750, %v3378, %v3691
      %v3776 = vsel %vm3750, %v3379, %v3693
      %v3777 = vsel %vm3750, %v3380, %v3695
      %v3778 = vsel %vm3750, %v3381, %v3697
      %v3779 = vsel %vm3750, %v3382, %v3699
      %v3780 = vsel %vm3750, %v3383, %v3701
      %v3781 = vsel %vm3750, %v3384, %v3703
      %v3782 = vsel %vm3750, %v3385, %v3705
      %v3783 = vsel %vm3750, %v3386, %v3707
      %v3784 = vsel %vm3750, %v3387, %v3709
      %v3785 = vsel %vm3750, %v3388, %v3711
      %v3786 = vsel %vm3750, %v3389, %v3713
      %v3787 = vpack.c.bf16 %v3751, %v3751
      %v3788 = vpack.c.bf16 %v3752, %v3752
      %v3789 = vpack.c.bf16 %v3753, %v3753
      %v3790 = vpack.c.bf16 %v3754, %v3754
      %v3791 = vpack.c.bf16 %v3755, %v3755
      %v3792 = vpack.c.bf16 %v3756, %v3756
      %v3793 = vpack.c.bf16 %v3757, %v3757
      %v3794 = vpack.c.bf16 %v3758, %v3758
      %v3795 = vpack.c.bf16 %v3759, %v3759
      %v3796 = vpack.c.bf16 %v3760, %v3760
      %v3797 = vpack.c.bf16 %v3761, %v3761
      %v3798 = vpack.c.bf16 %v3762, %v3762
      %v3799 = vpack.c.bf16 %v3763, %v3763
      %v3800 = vpack.c.bf16 %v3764, %v3764
      %v3801 = vpack.c.bf16 %v3765, %v3765
      %v3802 = vpack.c.bf16 %v3766, %v3766
      %v3803 = vpack.c.bf16 %v3767, %v3767
      %v3804 = vpack.c.bf16 %v3768, %v3768
      %v3805 = vpack.c.bf16 %v3769, %v3769
      %v3806 = vpack.c.bf16 %v3770, %v3770
      %v3807 = vpack.c.bf16 %v3771, %v3771
      %v3808 = vpack.c.bf16 %v3772, %v3772
      %v3809 = vpack.c.bf16 %v3773, %v3773
      %v3810 = vpack.c.bf16 %v3774, %v3774
      %v3811 = vpack.c.bf16 %v3775, %v3775
      %v3812 = vpack.c.bf16 %v3776, %v3776
      %v3813 = vpack.c.bf16 %v3777, %v3777
      %v3814 = vpack.c.bf16 %v3778, %v3778
      %v3815 = vpack.c.bf16 %v3779, %v3779
      %v3816 = vpack.c.bf16 %v3780, %v3780
      %v3817 = vpack.c.bf16 %v3781, %v3781
      %v3818 = vpack.c.bf16 %v3782, %v3782
      %v3819 = vpack.c.bf16 %v3783, %v3783
      %v3820 = vpack.c.bf16 %v3784, %v3784
      %v3821 = vpack.c.bf16 %v3785, %v3785
      %v3822 = vpack.c.bf16 %v3786, %v3786
      %v3823 = vld [vmem:[%s243] sm:$0xf]
      %v3824 = vld [vmem:[%s243 + $0x4] sm:$0xf]
      %v3825 = vld [vmem:[%s243 + $0x8] sm:$0xf]
      %v3826 = vld [vmem:[%s243 + $0xc] sm:$0xf]
      %v3827 = vld [vmem:[%s243 + $0x10] sm:$0xf]
      %v3828 = vld [vmem:[%s243 + $0x14] sm:$0xf]
      %v3829 = vld [vmem:[%s243 + $0x18] sm:$0xf]
      %v3830 = vld [vmem:[%s243 + $0x1c] sm:$0xf]
      %v3831 = vld [vmem:[%s243 + $0x20] sm:$0xf]
      %v3832 = vld [vmem:[%s243 + $0x24] sm:$0xf]
      %v3833 = vld [vmem:[%s243 + $0x28] sm:$0xf]
      %v3834 = vld [vmem:[%s243 + $0x2c] sm:$0xf]
      %v3835 = vld [vmem:[%s243 + $0x30] sm:$0xf]
      %v3836 = vld [vmem:[%s243 + $0x34] sm:$0xf]
      %v3837 = vld [vmem:[%s243 + $0x38] sm:$0xf]
      %v3838 = vld [vmem:[%s243 + $0x3c] sm:$0xf]
      %v3839 = vld [vmem:[%s243 + $0x40] sm:$0xf]
      %v3840 = vld [vmem:[%s243 + $0x44] sm:$0xf]
      %v3841 = vld [vmem:[%s243 + $0x48] sm:$0xf]
      %v3842 = vld [vmem:[%s243 + $0x4c] sm:$0xf]
      %v3843 = vld [vmem:[%s243 + $0x50] sm:$0xf]
      %v3844 = vld [vmem:[%s243 + $0x54] sm:$0xf]
      %v3845 = vld [vmem:[%s243 + $0x58] sm:$0xf]
      %v3846 = vld [vmem:[%s243 + $0x5c] sm:$0xf]
      %v3847 = vld [vmem:[%s243 + $0x60] sm:$0xf]
      %v3848 = vld [vmem:[%s243 + $0x64] sm:$0xf]
      %v3849 = vld [vmem:[%s243 + $0x68] sm:$0xf]
      %v3850 = vld [vmem:[%s243 + $0x6c] sm:$0xf]
      %v3851 = vld [vmem:[%s243 + $0x70] sm:$0xf]
      %v3852 = vld [vmem:[%s243 + $0x74] sm:$0xf]
      %v3853 = vld [vmem:[%s243 + $0x78] sm:$0xf]
      %v3854 = vld [vmem:[%s243 + $0x7c] sm:$0xf]
      %v3855 = vld [vmem:[%s243 + $0x80] sm:$0xf]
      %v3856 = vld [vmem:[%s243 + $0x84] sm:$0xf]
      %v3857 = vld [vmem:[%s243 + $0x88] sm:$0xf]
      %v3858 = vld [vmem:[%s243 + $0x8c] sm:$0xf]
      %v3859 = vld [vmem:[%s243 + $0x90] sm:$0xf]
      %v3860 = vld [vmem:[%s243 + $0x94] sm:$0xf]
      %v3861 = vld [vmem:[%s243 + $0x98] sm:$0xf]
      %v3862 = vld [vmem:[%s243 + $0x9c] sm:$0xf]
      %v3863 = vld [vmem:[%s243 + $0xa0] sm:$0xf]
      %v3864 = vld [vmem:[%s243 + $0xa4] sm:$0xf]
      %v3865 = vld [vmem:[%s243 + $0xa8] sm:$0xf]
      %v3866 = vld [vmem:[%s243 + $0xac] sm:$0xf]
      %v3867 = vld [vmem:[%s243 + $0xb0] sm:$0xf]
      %v3868 = vld [vmem:[%s243 + $0xb4] sm:$0xf]
      %v3869 = vld [vmem:[%s243 + $0xb8] sm:$0xf]
      %v3870 = vld [vmem:[%s243 + $0xbc] sm:$0xf]
      %v3871 = vld [vmem:[%s243 + $0xc0] sm:$0xf]
      %v3872 = vld [vmem:[%s243 + $0xc4] sm:$0xf]
      %v3873 = vld [vmem:[%s243 + $0xc8] sm:$0xf]
      %v3874 = vld [vmem:[%s243 + $0xcc] sm:$0xf]
      %v3875 = vld [vmem:[%s243 + $0xd0] sm:$0xf]
      %v3876 = vld [vmem:[%s243 + $0xd4] sm:$0xf]
      %v3877 = vld [vmem:[%s243 + $0xd8] sm:$0xf]
      %v3878 = vld [vmem:[%s243 + $0xdc] sm:$0xf]
      %v3879 = vld [vmem:[%s243 + $0xe0] sm:$0xf]
      %v3880 = vld [vmem:[%s243 + $0xe4] sm:$0xf]
      %v3881 = vld [vmem:[%s243 + $0xe8] sm:$0xf]
      %v3882 = vld [vmem:[%s243 + $0xec] sm:$0xf]
      %v3883 = vld [vmem:[%s243 + $0xf0] sm:$0xf]
      %v3884 = vld [vmem:[%s243 + $0xf4] sm:$0xf]
      %v3885 = vld [vmem:[%s243 + $0xf8] sm:$0xf]
      %v3886 = vld [vmem:[%s243 + $0xfc] sm:$0xf]
      %v3887 = vld [vmem:[%s243 + $0x100] sm:$0xf]
      %v3888 = vld [vmem:[%s243 + $0x104] sm:$0xf]
      %v3889 = vld [vmem:[%s243 + $0x108] sm:$0xf]
      %v3890 = vld [vmem:[%s243 + $0x10c] sm:$0xf]
      %v3891 = vld [vmem:[%s243 + $0x110] sm:$0xf]
      %v3892 = vld [vmem:[%s243 + $0x114] sm:$0xf]
      %v3893 = vld [vmem:[%s243 + $0x118] sm:$0xf]
      %v3894 = vld [vmem:[%s243 + $0x11c] sm:$0xf]
      %v3895 = vld [vmem:[%s243 + $0x120] sm:$0xf]
      %v3896 = vld [vmem:[%s243 + $0x124] sm:$0xf]
      %v3897 = vld [vmem:[%s243 + $0x128] sm:$0xf]
      %v3898 = vld [vmem:[%s243 + $0x12c] sm:$0xf]
      %v3899 = vld [vmem:[%s243 + $0x130] sm:$0xf]
      %v3900 = vld [vmem:[%s243 + $0x134] sm:$0xf]
      %v3901 = vld [vmem:[%s243 + $0x138] sm:$0xf]
      %v3902 = vld [vmem:[%s243 + $0x13c] sm:$0xf]
      %v3903 = vld [vmem:[%s243 + $0x140] sm:$0xf]
      %v3904 = vld [vmem:[%s243 + $0x144] sm:$0xf]
      %v3905 = vld [vmem:[%s243 + $0x148] sm:$0xf]
      %v3906 = vld [vmem:[%s243 + $0x14c] sm:$0xf]
      %v3907 = vld [vmem:[%s243 + $0x150] sm:$0xf]
      %v3908 = vld [vmem:[%s243 + $0x154] sm:$0xf]
      %v3909 = vld [vmem:[%s243 + $0x158] sm:$0xf]
      %v3910 = vld [vmem:[%s243 + $0x15c] sm:$0xf]
      %v3911 = vld [vmem:[%s243 + $0x160] sm:$0xf]
      %v3912 = vld [vmem:[%s243 + $0x164] sm:$0xf]
      %v3913 = vld [vmem:[%s243 + $0x168] sm:$0xf]
      %v3914 = vld [vmem:[%s243 + $0x16c] sm:$0xf]
      %v3915 = vld [vmem:[%s243 + $0x170] sm:$0xf]
      %v3916 = vld [vmem:[%s243 + $0x174] sm:$0xf]
      %v3917 = vld [vmem:[%s243 + $0x178] sm:$0xf]
      %v3918 = vld [vmem:[%s243 + $0x17c] sm:$0xf]
      %v3919 = vld [vmem:[%s243 + $0x180] sm:$0xf]
      %v3920 = vld [vmem:[%s243 + $0x184] sm:$0xf]
      %v3921 = vld [vmem:[%s243 + $0x188] sm:$0xf]
      %v3922 = vld [vmem:[%s243 + $0x18c] sm:$0xf]
      %v3923 = vld [vmem:[%s243 + $0x190] sm:$0xf]
      %v3924 = vld [vmem:[%s243 + $0x194] sm:$0xf]
      %v3925 = vld [vmem:[%s243 + $0x198] sm:$0xf]
      %v3926 = vld [vmem:[%s243 + $0x19c] sm:$0xf]
      %v3927 = vld [vmem:[%s243 + $0x1a0] sm:$0xf]
      %v3928 = vld [vmem:[%s243 + $0x1a4] sm:$0xf]
      %v3929 = vld [vmem:[%s243 + $0x1a8] sm:$0xf]
      %v3930 = vld [vmem:[%s243 + $0x1ac] sm:$0xf]
      %v3931 = vld [vmem:[%s243 + $0x1b0] sm:$0xf]
      %v3932 = vld [vmem:[%s243 + $0x1b4] sm:$0xf]
      %v3933 = vld [vmem:[%s243 + $0x1b8] sm:$0xf]
      %v3934 = vld [vmem:[%s243 + $0x1bc] sm:$0xf]
      %v3935 = vld [vmem:[%s243 + $0x1c0] sm:$0xf]
      %v3936 = vld [vmem:[%s243 + $0x1c4] sm:$0xf]
      %v3937 = vld [vmem:[%s243 + $0x1c8] sm:$0xf]
      %v3938 = vld [vmem:[%s243 + $0x1cc] sm:$0xf]
      %v3939 = vld [vmem:[%s243 + $0x1d0] sm:$0xf]
      %v3940 = vld [vmem:[%s243 + $0x1d4] sm:$0xf]
      %v3941 = vld [vmem:[%s243 + $0x1d8] sm:$0xf]
      %v3942 = vld [vmem:[%s243 + $0x1dc] sm:$0xf]
      %v3943 = vld [vmem:[%s243 + $0x1e0] sm:$0xf]
      %v3944 = vld [vmem:[%s243 + $0x1e4] sm:$0xf]
      %v3945 = vld [vmem:[%s243 + $0x1e8] sm:$0xf]
      %v3946 = vld [vmem:[%s243 + $0x1ec] sm:$0xf]
      %v3947 = vld [vmem:[%s243 + $0x1f0] sm:$0xf]
      %v3948 = vld [vmem:[%s243 + $0x1f4] sm:$0xf]
      %v3949 = vld [vmem:[%s243 + $0x1f8] sm:$0xf]
      %v3950 = vld [vmem:[%s243 + $0x1fc] sm:$0xf]
      %v3951 = vld [vmem:[%s243 + $0x200] sm:$0xf]
      %v3952 = vld [vmem:[%s243 + $0x204] sm:$0xf]
      %v3953 = vld [vmem:[%s243 + $0x208] sm:$0xf]
      %v3954 = vld [vmem:[%s243 + $0x20c] sm:$0xf]
      %v3955 = vld [vmem:[%s243 + $0x210] sm:$0xf]
      %v3956 = vld [vmem:[%s243 + $0x214] sm:$0xf]
      %v3957 = vld [vmem:[%s243 + $0x218] sm:$0xf]
      %v3958 = vld [vmem:[%s243 + $0x21c] sm:$0xf]
      %v3959 = vld [vmem:[%s243 + $0x220] sm:$0xf]
      %v3960 = vld [vmem:[%s243 + $0x224] sm:$0xf]
      %v3961 = vld [vmem:[%s243 + $0x228] sm:$0xf]
      %v3962 = vld [vmem:[%s243 + $0x22c] sm:$0xf]
      %v3963 = vld [vmem:[%s243 + $0x230] sm:$0xf]
      %v3964 = vld [vmem:[%s243 + $0x234] sm:$0xf]
      %v3965 = vld [vmem:[%s243 + $0x238] sm:$0xf]
      %v3966 = vld [vmem:[%s243 + $0x23c] sm:$0xf]
      %v3967 = vld [vmem:[%s243 + $0x240] sm:$0xf]
      %v3968 = vld [vmem:[%s243 + $0x244] sm:$0xf]
      %v3969 = vld [vmem:[%s243 + $0x248] sm:$0xf]
      %v3970 = vld [vmem:[%s243 + $0x24c] sm:$0xf]
      %v3971 = vld [vmem:[%s243 + $0x250] sm:$0xf]
      %v3972 = vld [vmem:[%s243 + $0x254] sm:$0xf]
      %v3973 = vld [vmem:[%s243 + $0x258] sm:$0xf]
      %v3974 = vld [vmem:[%s243 + $0x25c] sm:$0xf]
      %v3975 = vld [vmem:[%s243 + $0x260] sm:$0xf]
      %v3976 = vld [vmem:[%s243 + $0x264] sm:$0xf]
      %v3977 = vld [vmem:[%s243 + $0x268] sm:$0xf]
      %v3978 = vld [vmem:[%s243 + $0x26c] sm:$0xf]
      %v3979 = vld [vmem:[%s243 + $0x270] sm:$0xf]
      %v3980 = vld [vmem:[%s243 + $0x274] sm:$0xf]
      %v3981 = vld [vmem:[%s243 + $0x278] sm:$0xf]
      %v3982 = vld [vmem:[%s243 + $0x27c] sm:$0xf]
      %v3983 = vld [vmem:[%s243 + $0x280] sm:$0xf]
      %v3984 = vld [vmem:[%s243 + $0x284] sm:$0xf]
      %v3985 = vld [vmem:[%s243 + $0x288] sm:$0xf]
      %v3986 = vld [vmem:[%s243 + $0x28c] sm:$0xf]
      %v3987 = vld [vmem:[%s243 + $0x290] sm:$0xf]
      %v3988 = vld [vmem:[%s243 + $0x294] sm:$0xf]
      %v3989 = vld [vmem:[%s243 + $0x298] sm:$0xf]
      %v3990 = vld [vmem:[%s243 + $0x29c] sm:$0xf]
      %v3991 = vld [vmem:[%s243 + $0x2a0] sm:$0xf]
      %v3992 = vld [vmem:[%s243 + $0x2a4] sm:$0xf]
      %v3993 = vld [vmem:[%s243 + $0x2a8] sm:$0xf]
      %v3994 = vld [vmem:[%s243 + $0x2ac] sm:$0xf]
      %v3995 = vld [vmem:[%s243 + $0x2b0] sm:$0xf]
      %v3996 = vld [vmem:[%s243 + $0x2b4] sm:$0xf]
      %v3997 = vld [vmem:[%s243 + $0x2b8] sm:$0xf]
      %v3998 = vld [vmem:[%s243 + $0x2bc] sm:$0xf]
      %v3999 = vld [vmem:[%s243 + $0x2c0] sm:$0xf]
      %v4000 = vld [vmem:[%s243 + $0x2c4] sm:$0xf]
      %v4001 = vld [vmem:[%s243 + $0x2c8] sm:$0xf]
      %v4002 = vld [vmem:[%s243 + $0x2cc] sm:$0xf]
      %v4003 = vld [vmem:[%s243 + $0x2d0] sm:$0xf]
      %v4004 = vld [vmem:[%s243 + $0x2d4] sm:$0xf]
      %v4005 = vld [vmem:[%s243 + $0x2d8] sm:$0xf]
      %v4006 = vld [vmem:[%s243 + $0x2dc] sm:$0xf]
      %v4007 = vld [vmem:[%s243 + $0x2e0] sm:$0xf]
      %v4008 = vld [vmem:[%s243 + $0x2e4] sm:$0xf]
      %v4009 = vld [vmem:[%s243 + $0x2e8] sm:$0xf]
      %v4010 = vld [vmem:[%s243 + $0x2ec] sm:$0xf]
      %v4011 = vld [vmem:[%s243 + $0x2f0] sm:$0xf]
      %v4012 = vld [vmem:[%s243 + $0x2f4] sm:$0xf]
      %v4013 = vld [vmem:[%s243 + $0x2f8] sm:$0xf]
      %v4014 = vld [vmem:[%s243 + $0x2fc] sm:$0xf]
      %v4015 = vld [vmem:[%s243 + $0x300] sm:$0xf]
      %v4016 = vld [vmem:[%s243 + $0x304] sm:$0xf]
      %v4017 = vld [vmem:[%s243 + $0x308] sm:$0xf]
      %v4018 = vld [vmem:[%s243 + $0x30c] sm:$0xf]
      %v4019 = vld [vmem:[%s243 + $0x310] sm:$0xf]
      %v4020 = vld [vmem:[%s243 + $0x314] sm:$0xf]
      %v4021 = vld [vmem:[%s243 + $0x318] sm:$0xf]
      %v4022 = vld [vmem:[%s243 + $0x31c] sm:$0xf]
      %v4023 = vld [vmem:[%s243 + $0x320] sm:$0xf]
      %v4024 = vld [vmem:[%s243 + $0x324] sm:$0xf]
      %v4025 = vld [vmem:[%s243 + $0x328] sm:$0xf]
      %v4026 = vld [vmem:[%s243 + $0x32c] sm:$0xf]
      %v4027 = vld [vmem:[%s243 + $0x330] sm:$0xf]
      %v4028 = vld [vmem:[%s243 + $0x334] sm:$0xf]
      %v4029 = vld [vmem:[%s243 + $0x338] sm:$0xf]
      %v4030 = vld [vmem:[%s243 + $0x33c] sm:$0xf]
      %v4031 = vld [vmem:[%s243 + $0x340] sm:$0xf]
      %v4032 = vld [vmem:[%s243 + $0x344] sm:$0xf]
      %v4033 = vld [vmem:[%s243 + $0x348] sm:$0xf]
      %v4034 = vld [vmem:[%s243 + $0x34c] sm:$0xf]
      %v4035 = vld [vmem:[%s243 + $0x350] sm:$0xf]
      %v4036 = vld [vmem:[%s243 + $0x354] sm:$0xf]
      %v4037 = vld [vmem:[%s243 + $0x358] sm:$0xf]
      %v4038 = vld [vmem:[%s243 + $0x35c] sm:$0xf]
      %v4039 = vld [vmem:[%s243 + $0x360] sm:$0xf]
      %v4040 = vld [vmem:[%s243 + $0x364] sm:$0xf]
      %v4041 = vld [vmem:[%s243 + $0x368] sm:$0xf]
      %v4042 = vld [vmem:[%s243 + $0x36c] sm:$0xf]
      %v4043 = vld [vmem:[%s243 + $0x370] sm:$0xf]
      %v4044 = vld [vmem:[%s243 + $0x374] sm:$0xf]
      %v4045 = vld [vmem:[%s243 + $0x378] sm:$0xf]
      %v4046 = vld [vmem:[%s243 + $0x37c] sm:$0xf]
      %v4047 = vld [vmem:[%s243 + $0x380] sm:$0xf]
      %v4048 = vld [vmem:[%s243 + $0x384] sm:$0xf]
      %v4049 = vld [vmem:[%s243 + $0x388] sm:$0xf]
      %v4050 = vld [vmem:[%s243 + $0x38c] sm:$0xf]
      %v4051 = vld [vmem:[%s243 + $0x390] sm:$0xf]
      %v4052 = vld [vmem:[%s243 + $0x394] sm:$0xf]
      %v4053 = vld [vmem:[%s243 + $0x398] sm:$0xf]
      %v4054 = vld [vmem:[%s243 + $0x39c] sm:$0xf]
      %v4055 = vld [vmem:[%s243 + $0x3a0] sm:$0xf]
      %v4056 = vld [vmem:[%s243 + $0x3a4] sm:$0xf]
      %v4057 = vld [vmem:[%s243 + $0x3a8] sm:$0xf]
      %v4058 = vld [vmem:[%s243 + $0x3ac] sm:$0xf]
      %v4059 = vld [vmem:[%s243 + $0x3b0] sm:$0xf]
      %v4060 = vld [vmem:[%s243 + $0x3b4] sm:$0xf]
      %v4061 = vld [vmem:[%s243 + $0x3b8] sm:$0xf]
      %v4062 = vld [vmem:[%s243 + $0x3bc] sm:$0xf]
      %v4063 = vld [vmem:[%s243 + $0x3c0] sm:$0xf]
      %v4064 = vld [vmem:[%s243 + $0x3c4] sm:$0xf]
      %v4065 = vld [vmem:[%s243 + $0x3c8] sm:$0xf]
      %v4066 = vld [vmem:[%s243 + $0x3cc] sm:$0xf]
      %v4067 = vld [vmem:[%s243 + $0x3d0] sm:$0xf]
      %v4068 = vld [vmem:[%s243 + $0x3d4] sm:$0xf]
      %v4069 = vld [vmem:[%s243 + $0x3d8] sm:$0xf]
      %v4070 = vld [vmem:[%s243 + $0x3dc] sm:$0xf]
      %v4071 = vld [vmem:[%s243 + $0x3e0] sm:$0xf]
      %v4072 = vld [vmem:[%s243 + $0x3e4] sm:$0xf]
      %v4073 = vld [vmem:[%s243 + $0x3e8] sm:$0xf]
      %v4074 = vld [vmem:[%s243 + $0x3ec] sm:$0xf]
      %v4075 = vld [vmem:[%s243 + $0x3f0] sm:$0xf]
      %v4076 = vld [vmem:[%s243 + $0x3f4] sm:$0xf]
      %v4077 = vld [vmem:[%s243 + $0x3f8] sm:$0xf]
      %v4078 = vld [vmem:[%s243 + $0x3fc] sm:$0xf]
      %v4079 = vld [vmem:[%s243 + $0x400] sm:$0xf]
      %v4080 = vld [vmem:[%s243 + $0x404] sm:$0xf]
      %v4081 = vld [vmem:[%s243 + $0x408] sm:$0xf]
      %v4082 = vld [vmem:[%s243 + $0x40c] sm:$0xf]
      %v4083 = vld [vmem:[%s243 + $0x410] sm:$0xf]
      %v4084 = vld [vmem:[%s243 + $0x414] sm:$0xf]
      %v4085 = vld [vmem:[%s243 + $0x418] sm:$0xf]
      %v4086 = vld [vmem:[%s243 + $0x41c] sm:$0xf]
      %v4087 = vld [vmem:[%s243 + $0x420] sm:$0xf]
      %v4088 = vld [vmem:[%s243 + $0x424] sm:$0xf]
      %v4089 = vld [vmem:[%s243 + $0x428] sm:$0xf]
      %v4090 = vld [vmem:[%s243 + $0x42c] sm:$0xf]
      %v4091 = vld [vmem:[%s243 + $0x430] sm:$0xf]
      %v4092 = vld [vmem:[%s243 + $0x434] sm:$0xf]
      %v4093 = vld [vmem:[%s243 + $0x438] sm:$0xf]
      %v4094 = vld [vmem:[%s243 + $0x43c] sm:$0xf]
      %v4095 = vld [vmem:[%s243 + $0x440] sm:$0xf]
      %v4096 = vld [vmem:[%s243 + $0x444] sm:$0xf]
      %v4097 = vld [vmem:[%s243 + $0x448] sm:$0xf]
      %v4098 = vld [vmem:[%s243 + $0x44c] sm:$0xf]
      %v4099 = vld [vmem:[%s243 + $0x450] sm:$0xf]
      %v4100 = vld [vmem:[%s243 + $0x454] sm:$0xf]
      %v4101 = vld [vmem:[%s243 + $0x458] sm:$0xf]
      %v4102 = vld [vmem:[%s243 + $0x45c] sm:$0xf]
      %v4103 = vld [vmem:[%s243 + $0x460] sm:$0xf]
      %v4104 = vld [vmem:[%s243 + $0x464] sm:$0xf]
      %v4105 = vld [vmem:[%s243 + $0x468] sm:$0xf]
      %v4106 = vld [vmem:[%s243 + $0x46c] sm:$0xf]
      %v4107 = vld [vmem:[%s243 + $0x470] sm:$0xf]
      %v4108 = vld [vmem:[%s243 + $0x474] sm:$0xf]
      %v4109 = vld [vmem:[%s243 + $0x478] sm:$0xf]
      %v4110 = vld [vmem:[%s243 + $0x47c] sm:$0xf]
      %4112 = vrot.lane.b32.xlu0 %v3787, 64
      %v4113 = vpop.permute.xlu0 %4112
      %v4122 = vunpack.c.l.b16 %v3823
      %v4123 = vunpack.c.l.b16 %v3824
      %v4124 = vunpack.c.l.b16 %v3825
      %v4125 = vunpack.c.l.b16 %v3826
      %v4126 = vunpack.c.l.b16 %v3827
      %v4127 = vunpack.c.l.b16 %v3828
      %v4128 = vunpack.c.l.b16 %v3829
      %v4129 = vunpack.c.l.b16 %v3830
      %v4130 = vpack.c.b16 %v4123, %v4122
      %v4131 = vpack.c.b16 %v4125, %v4124
      %v4132 = vpack.c.b16 %v4127, %v4126
      %v4133 = vpack.c.b16 %v4129, %v4128
      %vm4138 = vcmask 523264
      %v4140 = vsel %vm4138, %v4113, 0
      %4142 = vmatprep.subr.bf16.mxu0 0
      %4143 = vmatpush1.bf16.msra.mxu0 %v4130
      %4144 = vmatprep.subr.bf16.mxu0 0
      %4145 = vmatpush1.bf16.msra.mxu0 %v4131
      %4146 = vmatprep.subr.bf16.mxu0 0
      %4147 = vmatpush1.bf16.msra.mxu0 %v4132
      %4148 = vmatprep.subr.bf16.mxu0 0
      %4149 = vmatpush1.bf16.msra.mxu0 %v4133
      %4150 = vmatprep.subr.bf16.mxu0 0
      %4151 = vmatpush1.bf16.msra.mxu0 0
      %4152 = vmatprep.subr.bf16.mxu0 0
      %4153 = vmatpush1.bf16.msra.mxu0 0
      %4154 = vmatprep.subr.bf16.mxu0 0
      %4155 = vmatpush1.bf16.msra.mxu0 0
      %4156 = vmatprep.subr.bf16.mxu0 0
      %4157 = vmatpush1.bf16.msra.mxu0 0
      %4158 = vmatprep.subr.bf16.mxu0 0
      %4159 = vmatpush1.bf16.msra.mxu0 0
      %4160 = vmatprep.subr.bf16.mxu0 0
      %4161 = vmatpush1.bf16.msra.mxu0 0
      %4162 = vmatprep.subr.bf16.mxu0 0
      %4163 = vmatpush1.bf16.msra.mxu0 0
      %4164 = vmatprep.subr.bf16.mxu0 0
      %4165 = vmatpush1.bf16.msra.mxu0 0
      %4166 = vmatprep.subr.bf16.mxu0 0
      %4167 = vmatpush1.bf16.msra.mxu0 0
      %4168 = vmatprep.subr.bf16.mxu0 0
      %4169 = vmatpush1.bf16.msra.mxu0 0
      %4170 = vmatprep.subr.bf16.mxu0 0
      %4171 = vmatpush1.bf16.msra.mxu0 0
      %4172 = vmatprep.subr.bf16.mxu0 0
      %4173 = vmatpush1.bf16.msra.mxu0 0
      %4174 = vmatprep.mubr.bf16.mxu0 0
      %4175 = vmatmul.mubr.bf16.gmra.mrb[0].mxu0 %v4140
      %v4176 = vpop.f32.mrb[0].mxu0
      %v4177 = vadd.f32 0.0, %v4176
      %v4178 = vpop.f32.mrb[0].mxu0
      %v4179 = vpop.f32.mrb[0].mxu0
      %v4180 = vpop.f32.mrb[0].mxu0
      %4181 = vdwg.mxu0
      %4183 = vrot.lane.b32.xlu0 %v3788, 64
      %v4184 = vpop.permute.xlu0 %4183
      %v4193 = vunpack.c.l.b16 %v3831
      %v4194 = vunpack.c.l.b16 %v3832
      %v4195 = vunpack.c.l.b16 %v3833
      %v4196 = vunpack.c.l.b16 %v3834
      %v4197 = vunpack.c.l.b16 %v3835
      %v4198 = vunpack.c.l.b16 %v3836
      %v4199 = vunpack.c.l.b16 %v3837
      %v4200 = vunpack.c.l.b16 %v3838
      %v4201 = vpack.c.b16 %v4194, %v4193
      %v4202 = vpack.c.b16 %v4196, %v4195
      %v4203 = vpack.c.b16 %v4198, %v4197
      %v4204 = vpack.c.b16 %v4200, %v4199
      %v4210 = vsel %vm4138, %v4184, 0
      %4212 = vmatprep.subr.bf16.mxu0 0
      %4213 = vmatpush1.bf16.msra.mxu0 %v4201
      %4214 = vmatprep.subr.bf16.mxu0 0
      %4215 = vmatpush1.bf16.msra.mxu0 %v4202
      %4216 = vmatprep.subr.bf16.mxu0 0
      %4217 = vmatpush1.bf16.msra.mxu0 %v4203
      %4218 = vmatprep.subr.bf16.mxu0 0
      %4219 = vmatpush1.bf16.msra.mxu0 %v4204
      %4220 = vmatprep.subr.bf16.mxu0 0
      %4221 = vmatpush1.bf16.msra.mxu0 0
      %4222 = vmatprep.subr.bf16.mxu0 0
      %4223 = vmatpush1.bf16.msra.mxu0 0
      %4224 = vmatprep.subr.bf16.mxu0 0
      %4225 = vmatpush1.bf16.msra.mxu0 0
      %4226 = vmatprep.subr.bf16.mxu0 0
      %4227 = vmatpush1.bf16.msra.mxu0 0
      %4228 = vmatprep.subr.bf16.mxu0 0
      %4229 = vmatpush1.bf16.msra.mxu0 0
      %4230 = vmatprep.subr.bf16.mxu0 0
      %4231 = vmatpush1.bf16.msra.mxu0 0
      %4232 = vmatprep.subr.bf16.mxu0 0
      %4233 = vmatpush1.bf16.msra.mxu0 0
      %4234 = vmatprep.subr.bf16.mxu0 0
      %4235 = vmatpush1.bf16.msra.mxu0 0
      %4236 = vmatprep.subr.bf16.mxu0 0
      %4237 = vmatpush1.bf16.msra.mxu0 0
      %4238 = vmatprep.subr.bf16.mxu0 0
      %4239 = vmatpush1.bf16.msra.mxu0 0
      %4240 = vmatprep.subr.bf16.mxu0 0
      %4241 = vmatpush1.bf16.msra.mxu0 0
      %4242 = vmatprep.subr.bf16.mxu0 0
      %4243 = vmatpush1.bf16.msra.mxu0 0
      %4244 = vmatprep.mubr.bf16.mxu0 0
      %4245 = vmatmul.mubr.bf16.gmra.mrb[0].mxu0 %v4210
      %v4246 = vpop.f32.mrb[0].mxu0
      %v4247 = vadd.f32 0.0, %v4246
      %v4248 = vpop.f32.mrb[0].mxu0
      %v4249 = vpop.f32.mrb[0].mxu0
      %v4250 = vpop.f32.mrb[0].mxu0
      %4251 = vdwg.mxu0
      %4253 = vrot.lane.b32.xlu0 %v3789, 64
      %v4254 = vpop.permute.xlu0 %4253
      %v4263 = vunpack.c.l.b16 %v3839
      %v4264 = vunpack.c.l.b16 %v3840
      %v4265 = vunpack.c.l.b16 %v3841
      %v4266 = vunpack.c.l.b16 %v3842
      %v4267 = vunpack.c.l.b16 %v3843
      %v4268 = vunpack.c.l.b16 %v3844
      %v4269 = vunpack.c.l.b16 %v3845
      %v4270 = vunpack.c.l.b16 %v3846
      %v4271 = vpack.c.b16 %v4264, %v4263
      %v4272 = vpack.c.b16 %v4266, %v4265
      %v4273 = vpack.c.b16 %v4268, %v4267
      %v4274 = vpack.c.b16 %v4270, %v4269
      %v4280 = vsel %vm4138, %v4254, 0
      %4282 = vmatprep.subr.bf16.mxu0 0
      %4283 = vmatpush1.bf16.msra.mxu0 %v4271
      %4284 = vmatprep.subr.bf16.mxu0 0
      %4285 = vmatpush1.bf16.msra.mxu0 %v4272
      %4286 = vmatprep.subr.bf16.mxu0 0
      %4287 = vmatpush1.bf16.msra.mxu0 %v4273
      %4288 = vmatprep.subr.bf16.mxu0 0
      %4289 = vmatpush1.bf16.msra.mxu0 %v4274
      %4290 = vmatprep.subr.bf16.mxu0 0
      %4291 = vmatpush1.bf16.msra.mxu0 0
      %4292 = vmatprep.subr.bf16.mxu0 0
      %4293 = vmatpush1.bf16.msra.mxu0 0
      %4294 = vmatprep.subr.bf16.mxu0 0
      %4295 = vmatpush1.bf16.msra.mxu0 0
      %4296 = vmatprep.subr.bf16.mxu0 0
      %4297 = vmatpush1.bf16.msra.mxu0 0
      %4298 = vmatprep.subr.bf16.mxu0 0
      %4299 = vmatpush1.bf16.msra.mxu0 0
      %4300 = vmatprep.subr.bf16.mxu0 0
      %4301 = vmatpush1.bf16.msra.mxu0 0
      %4302 = vmatprep.subr.bf16.mxu0 0
      %4303 = vmatpush1.bf16.msra.mxu0 0
      %4304 = vmatprep.subr.bf16.mxu0 0
      %4305 = vmatpush1.bf16.msra.mxu0 0
      %4306 = vmatprep.subr.bf16.mxu0 0
      %4307 = vmatpush1.bf16.msra.mxu0 0
      %4308 = vmatprep.subr.bf16.mxu0 0
      %4309 = vmatpush1.bf16.msra.mxu0 0
      %4310 = vmatprep.subr.bf16.mxu0 0
      %4311 = vmatpush1.bf16.msra.mxu0 0
      %4312 = vmatprep.subr.bf16.mxu0 0
      %4313 = vmatpush1.bf16.msra.mxu0 0
      %4314 = vmatprep.mubr.bf16.mxu0 0
      %4315 = vmatmul.mubr.bf16.gmra.mrb[0].mxu0 %v4280
      %v4316 = vpop.f32.mrb[0].mxu0
      %v4317 = vadd.f32 0.0, %v4316
      %v4318 = vpop.f32.mrb[0].mxu0
      %v4319 = vpop.f32.mrb[0].mxu0
      %v4320 = vpop.f32.mrb[0].mxu0
      %4321 = vdwg.mxu0
      %4323 = vrot.lane.b32.xlu0 %v3790, 64
      %v4324 = vpop.permute.xlu0 %4323
      %v4333 = vunpack.c.l.b16 %v3847
      %v4334 = vunpack.c.l.b16 %v3848
      %v4335 = vunpack.c.l.b16 %v3849
      %v4336 = vunpack.c.l.b16 %v3850
      %v4337 = vunpack.c.l.b16 %v3851
      %v4338 = vunpack.c.l.b16 %v3852
      %v4339 = vunpack.c.l.b16 %v3853
      %v4340 = vunpack.c.l.b16 %v3854
      %v4341 = vpack.c.b16 %v4334, %v4333
      %v4342 = vpack.c.b16 %v4336, %v4335
      %v4343 = vpack.c.b16 %v4338, %v4337
      %v4344 = vpack.c.b16 %v4340, %v4339
      %v4350 = vsel %vm4138, %v4324, 0
      %4352 = vmatprep.subr.bf16.mxu0 0
      %4353 = vmatpush1.bf16.msra.mxu0 %v4341
      %4354 = vmatprep.subr.bf16.mxu0 0
      %4355 = vmatpush1.bf16.msra.mxu0 %v4342
      %4356 = vmatprep.subr.bf16.mxu0 0
      %4357 = vmatpush1.bf16.msra.mxu0 %v4343
      %4358 = vmatprep.subr.bf16.mxu0 0
      %4359 = vmatpush1.bf16.msra.mxu0 %v4344
      %4360 = vmatprep.subr.bf16.mxu0 0
      %4361 = vmatpush1.bf16.msra.mxu0 0
      %4362 = vmatprep.subr.bf16.mxu0 0
      %4363 = vmatpush1.bf16.msra.mxu0 0
      %4364 = vmatprep.subr.bf16.mxu0 0
      %4365 = vmatpush1.bf16.msra.mxu0 0
      %4366 = vmatprep.subr.bf16.mxu0 0
      %4367 = vmatpush1.bf16.msra.mxu0 0
      %4368 = vmatprep.subr.bf16.mxu0 0
      %4369 = vmatpush1.bf16.msra.mxu0 0
      %4370 = vmatprep.subr.bf16.mxu0 0
      %4371 = vmatpush1.bf16.msra.mxu0 0
      %4372 = vmatprep.subr.bf16.mxu0 0
      %4373 = vmatpush1.bf16.msra.mxu0 0
      %4374 = vmatprep.subr.bf16.mxu0 0
      %4375 = vmatpush1.bf16.msra.mxu0 0
      %4376 = vmatprep.subr.bf16.mxu0 0
      %4377 = vmatpush1.bf16.msra.mxu0 0
      %4378 = vmatprep.subr.bf16.mxu0 0
      %4379 = vmatpush1.bf16.msra.mxu0 0
      %4380 = vmatprep.subr.bf16.mxu0 0
      %4381 = vmatpush1.bf16.msra.mxu0 0
      %4382 = vmatprep.subr.bf16.mxu0 0
      %4383 = vmatpush1.bf16.msra.mxu0 0
      %4384 = vmatprep.mubr.bf16.mxu0 0
      %4385 = vmatmul.mubr.bf16.gmra.mrb[0].mxu0 %v4350
      %v4386 = vpop.f32.mrb[0].mxu0
      %v4387 = vadd.f32 0.0, %v4386
      %v4388 = vpop.f32.mrb[0].mxu0
      %v4389 = vpop.f32.mrb[0].mxu0
      %v4390 = vpop.f32.mrb[0].mxu0
      %4391 = vdwg.mxu0
      %4393 = vrot.lane.b32.xlu0 %v3791, 64
      %v4394 = vpop.permute.xlu0 %4393
      %v4403 = vunpack.c.l.b16 %v3855
      %v4404 = vunpack.c.l.b16 %v3856
      %v4405 = vunpack.c.l.b16 %v3857
      %v4406 = vunpack.c.l.b16 %v3858
      %v4407 = vunpack.c.l.b16 %v3859
      %v4408 = vunpack.c.l.b16 %v3860
      %v4409 = vunpack.c.l.b16 %v3861
      %v4410 = vunpack.c.l.b16 %v3862
      %v4411 = vpack.c.b16 %v4404, %v4403
      %v4412 = vpack.c.b16 %v4406, %v4405
      %v4413 = vpack.c.b16 %v4408, %v4407
      %v4414 = vpack.c.b16 %v4410, %v4409
      %v4420 = vsel %vm4138, %v4394, 0
      %4422 = vmatprep.subr.bf16.mxu0 0
      %4423 = vmatpush1.bf16.msra.mxu0 %v4411
      %4424 = vmatprep.subr.bf16.mxu0 0
      %4425 = vmatpush1.bf16.msra.mxu0 %v4412
      %4426 = vmatprep.subr.bf16.mxu0 0
      %4427 = vmatpush1.bf16.msra.mxu0 %v4413
      %4428 = vmatprep.subr.bf16.mxu0 0
      %4429 = vmatpush1.bf16.msra.mxu0 %v4414
      %4430 = vmatprep.subr.bf16.mxu0 0
      %4431 = vmatpush1.bf16.msra.mxu0 0
      %4432 = vmatprep.subr.bf16.mxu0 0
      %4433 = vmatpush1.bf16.msra.mxu0 0
      %4434 = vmatprep.subr.bf16.mxu0 0
      %4435 = vmatpush1.bf16.msra.mxu0 0
      %4436 = vmatprep.subr.bf16.mxu0 0
      %4437 = vmatpush1.bf16.msra.mxu0 0
      %4438 = vmatprep.subr.bf16.mxu0 0
      %4439 = vmatpush1.bf16.msra.mxu0 0
      %4440 = vmatprep.subr.bf16.mxu0 0
      %4441 = vmatpush1.bf16.msra.mxu0 0
      %4442 = vmatprep.subr.bf16.mxu0 0
      %4443 = vmatpush1.bf16.msra.mxu0 0
      %4444 = vmatprep.subr.bf16.mxu0 0
      %4445 = vmatpush1.bf16.msra.mxu0 0
      %4446 = vmatprep.subr.bf16.mxu0 0
      %4447 = vmatpush1.bf16.msra.mxu0 0
      %4448 = vmatprep.subr.bf16.mxu0 0
      %4449 = vmatpush1.bf16.msra.mxu0 0
      %4450 = vmatprep.subr.bf16.mxu0 0
      %4451 = vmatpush1.bf16.msra.mxu0 0
      %4452 = vmatprep.subr.bf16.mxu0 0
      %4453 = vmatpush1.bf16.msra.mxu0 0
      %4454 = vmatprep.mubr.bf16.mxu0 0
      %4455 = vmatmul.mubr.bf16.gmra.mrb[0].mxu0 %v4420
      %v4456 = vpop.f32.mrb[0].mxu0
      %v4457 = vadd.f32 0.0, %v4456
      %v4458 = vpop.f32.mrb[0].mxu0
      %v4459 = vpop.f32.mrb[0].mxu0
      %v4460 = vpop.f32.mrb[0].mxu0
      %4461 = vdwg.mxu0
      %4463 = vrot.lane.b32.xlu0 %v3792, 64
      %v4464 = vpop.permute.xlu0 %4463
      %v4473 = vunpack.c.l.b16 %v3863
      %v4474 = vunpack.c.l.b16 %v3864
      %v4475 = vunpack.c.l.b16 %v3865
      %v4476 = vunpack.c.l.b16 %v3866
      %v4477 = vunpack.c.l.b16 %v3867
      %v4478 = vunpack.c.l.b16 %v3868
      %v4479 = vunpack.c.l.b16 %v3869
      %v4480 = vunpack.c.l.b16 %v3870
      %v4481 = vpack.c.b16 %v4474, %v4473
      %v4482 = vpack.c.b16 %v4476, %v4475
      %v4483 = vpack.c.b16 %v4478, %v4477
      %v4484 = vpack.c.b16 %v4480, %v4479
      %v4490 = vsel %vm4138, %v4464, 0
      %4492 = vmatprep.subr.bf16.mxu0 0
      %4493 = vmatpush1.bf16.msra.mxu0 %v4481
      %4494 = vmatprep.subr.bf16.mxu0 0
      %4495 = vmatpush1.bf16.msra.mxu0 %v4482
      %4496 = vmatprep.subr.bf16.mxu0 0
      %4497 = vmatpush1.bf16.msra.mxu0 %v4483
      %4498 = vmatprep.subr.bf16.mxu0 0
      %4499 = vmatpush1.bf16.msra.mxu0 %v4484
      %4500 = vmatprep.subr.bf16.mxu0 0
      %4501 = vmatpush1.bf16.msra.mxu0 0
      %4502 = vmatprep.subr.bf16.mxu0 0
      %4503 = vmatpush1.bf16.msra.mxu0 0
      %4504 = vmatprep.subr.bf16.mxu0 0
      %4505 = vmatpush1.bf16.msra.mxu0 0
      %4506 = vmatprep.subr.bf16.mxu0 0
      %4507 = vmatpush1.bf16.msra.mxu0 0
      %4508 = vmatprep.subr.bf16.mxu0 0
      %4509 = vmatpush1.bf16.msra.mxu0 0
      %4510 = vmatprep.subr.bf16.mxu0 0
      %4511 = vmatpush1.bf16.msra.mxu0 0
      %4512 = vmatprep.subr.bf16.mxu0 0
      %4513 = vmatpush1.bf16.msra.mxu0 0
      %4514 = vmatprep.subr.bf16.mxu0 0
      %4515 = vmatpush1.bf16.msra.mxu0 0
      %4516 = vmatprep.subr.bf16.mxu0 0
      %4517 = vmatpush1.bf16.msra.mxu0 0
      %4518 = vmatprep.subr.bf16.mxu0 0
      %4519 = vmatpush1.bf16.msra.mxu0 0
      %4520 = vmatprep.subr.bf16.mxu0 0
      %4521 = vmatpush1.bf16.msra.mxu0 0
      %4522 = vmatprep.subr.bf16.mxu0 0
      %4523 = vmatpush1.bf16.msra.mxu0 0
      %4524 = vmatprep.mubr.bf16.mxu0 0
      %4525 = vmatmul.mubr.bf16.gmra.mrb[0].mxu0 %v4490
      %v4526 = vpop.f32.mrb[0].mxu0
      %v4527 = vadd.f32 0.0, %v4526
      %v4528 = vpop.f32.mrb[0].mxu0
      %v4529 = vpop.f32.mrb[0].mxu0
      %v4530 = vpop.f32.mrb[0].mxu0
      %4531 = vdwg.mxu0
      %4533 = vrot.lane.b32.xlu0 %v3793, 64
      %v4534 = vpop.permute.xlu0 %4533
      %v4543 = vunpack.c.l.b16 %v3871
      %v4544 = vunpack.c.l.b16 %v3872
      %v4545 = vunpack.c.l.b16 %v3873
      %v4546 = vunpack.c.l.b16 %v3874
      %v4547 = vunpack.c.l.b16 %v3875
      %v4548 = vunpack.c.l.b16 %v3876
      %v4549 = vunpack.c.l.b16 %v3877
      %v4550 = vunpack.c.l.b16 %v3878
      %v4551 = vpack.c.b16 %v4544, %v4543
      %v4552 = vpack.c.b16 %v4546, %v4545
      %v4553 = vpack.c.b16 %v4548, %v4547
      %v4554 = vpack.c.b16 %v4550, %v4549
      %v4560 = vsel %vm4138, %v4534, 0
      %4562 = vmatprep.subr.bf16.mxu0 0
      %4563 = vmatpush1.bf16.msra.mxu0 %v4551
      %4564 = vmatprep.subr.bf16.mxu0 0
      %4565 = vmatpush1.bf16.msra.mxu0 %v4552
      %4566 = vmatprep.subr.bf16.mxu0 0
      %4567 = vmatpush1.bf16.msra.mxu0 %v4553
      %4568 = vmatprep.subr.bf16.mxu0 0
      %4569 = vmatpush1.bf16.msra.mxu0 %v4554
      %4570 = vmatprep.subr.bf16.mxu0 0
      %4571 = vmatpush1.bf16.msra.mxu0 0
      %4572 = vmatprep.subr.bf16.mxu0 0
      %4573 = vmatpush1.bf16.msra.mxu0 0
      %4574 = vmatprep.subr.bf16.mxu0 0
      %4575 = vmatpush1.bf16.msra.mxu0 0
      %4576 = vmatprep.subr.bf16.mxu0 0
      %4577 = vmatpush1.bf16.msra.mxu0 0
      %4578 = vmatprep.subr.bf16.mxu0 0
      %4579 = vmatpush1.bf16.msra.mxu0 0
      %4580 = vmatprep.subr.bf16.mxu0 0
      %4581 = vmatpush1.bf16.msra.mxu0 0
      %4582 = vmatprep.subr.bf16.mxu0 0
      %4583 = vmatpush1.bf16.msra.mxu0 0
      %4584 = vmatprep.subr.bf16.mxu0 0
      %4585 = vmatpush1.bf16.msra.mxu0 0
      %4586 = vmatprep.subr.bf16.mxu0 0
      %4587 = vmatpush1.bf16.msra.mxu0 0
      %4588 = vmatprep.subr.bf16.mxu0 0
      %4589 = vmatpush1.bf16.msra.mxu0 0
      %4590 = vmatprep.subr.bf16.mxu0 0
      %4591 = vmatpush1.bf16.msra.mxu0 0
      %4592 = vmatprep.subr.bf16.mxu0 0
      %4593 = vmatpush1.bf16.msra.mxu0 0
      %4594 = vmatprep.mubr.bf16.mxu0 0
      %4595 = vmatmul.mubr.bf16.gmra.mrb[0].mxu0 %v4560
      %v4596 = vpop.f32.mrb[0].mxu0
      %v4597 = vadd.f32 0.0, %v4596
      %v4598 = vpop.f32.mrb[0].mxu0
      %v4599 = vpop.f32.mrb[0].mxu0
      %v4600 = vpop.f32.mrb[0].mxu0
      %4601 = vdwg.mxu0
      %4603 = vrot.lane.b32.xlu0 %v3794, 64
      %v4604 = vpop.permute.xlu0 %4603
      %v4613 = vunpack.c.l.b16 %v3879
      %v4614 = vunpack.c.l.b16 %v3880
      %v4615 = vunpack.c.l.b16 %v3881
      %v4616 = vunpack.c.l.b16 %v3882
      %v4617 = vunpack.c.l.b16 %v3883
      %v4618 = vunpack.c.l.b16 %v3884
      %v4619 = vunpack.c.l.b16 %v3885
      %v4620 = vunpack.c.l.b16 %v3886
      %v4621 = vpack.c.b16 %v4614, %v4613
      %v4622 = vpack.c.b16 %v4616, %v4615
      %v4623 = vpack.c.b16 %v4618, %v4617
      %v4624 = vpack.c.b16 %v4620, %v4619
      %v4630 = vsel %vm4138, %v4604, 0
      %4632 = vmatprep.subr.bf16.mxu0 0
      %4633 = vmatpush1.bf16.msra.mxu0 %v4621
      %4634 = vmatprep.subr.bf16.mxu0 0
      %4635 = vmatpush1.bf16.msra.mxu0 %v4622
      %4636 = vmatprep.subr.bf16.mxu0 0
      %4637 = vmatpush1.bf16.msra.mxu0 %v4623
      %4638 = vmatprep.subr.bf16.mxu0 0
      %4639 = vmatpush1.bf16.msra.mxu0 %v4624
      %4640 = vmatprep.subr.bf16.mxu0 0
      %4641 = vmatpush1.bf16.msra.mxu0 0
      %4642 = vmatprep.subr.bf16.mxu0 0
      %4643 = vmatpush1.bf16.msra.mxu0 0
      %4644 = vmatprep.subr.bf16.mxu0 0
      %4645 = vmatpush1.bf16.msra.mxu0 0
      %4646 = vmatprep.subr.bf16.mxu0 0
      %4647 = vmatpush1.bf16.msra.mxu0 0
      %4648 = vmatprep.subr.bf16.mxu0 0
      %4649 = vmatpush1.bf16.msra.mxu0 0
      %4650 = vmatprep.subr.bf16.mxu0 0
      %4651 = vmatpush1.bf16.msra.mxu0 0
      %4652 = vmatprep.subr.bf16.mxu0 0
      %4653 = vmatpush1.bf16.msra.mxu0 0
      %4654 = vmatprep.subr.bf16.mxu0 0
      %4655 = vmatpush1.bf16.msra.mxu0 0
      %4656 = vmatprep.subr.bf16.mxu0 0
      %4657 = vmatpush1.bf16.msra.mxu0 0
      %4658 = vmatprep.subr.bf16.mxu0 0
      %4659 = vmatpush1.bf16.msra.mxu0 0
      %4660 = vmatprep.subr.bf16.mxu0 0
      %4661 = vmatpush1.bf16.msra.mxu0 0
      %4662 = vmatprep.subr.bf16.mxu0 0
      %4663 = vmatpush1.bf16.msra.mxu0 0
      %4664 = vmatprep.mubr.bf16.mxu0 0
      %4665 = vmatmul.mubr.bf16.gmra.mrb[0].mxu0 %v4630
      %v4666 = vpop.f32.mrb[0].mxu0
      %v4667 = vadd.f32 0.0, %v4666
      %v4668 = vpop.f32.mrb[0].mxu0
      %v4669 = vpop.f32.mrb[0].mxu0
      %v4670 = vpop.f32.mrb[0].mxu0
      %4671 = vdwg.mxu0
      %4673 = vrot.lane.b32.xlu0 %v3795, 64
      %v4674 = vpop.permute.xlu0 %4673
      %v4683 = vunpack.c.l.b16 %v3887
      %v4684 = vunpack.c.l.b16 %v3888
      %v4685 = vunpack.c.l.b16 %v3889
      %v4686 = vunpack.c.l.b16 %v3890
      %v4687 = vunpack.c.l.b16 %v3891
      %v4688 = vunpack.c.l.b16 %v3892
      %v4689 = vunpack.c.l.b16 %v3893
      %v4690 = vunpack.c.l.b16 %v3894
      %v4691 = vpack.c.b16 %v4684, %v4683
      %v4692 = vpack.c.b16 %v4686, %v4685
      %v4693 = vpack.c.b16 %v4688, %v4687
      %v4694 = vpack.c.b16 %v4690, %v4689
      %v4700 = vsel %vm4138, %v4674, 0
      %4702 = vmatprep.subr.bf16.mxu0 0
      %4703 = vmatpush1.bf16.msra.mxu0 %v4691
      %4704 = vmatprep.subr.bf16.mxu0 0
      %4705 = vmatpush1.bf16.msra.mxu0 %v4692
      %4706 = vmatprep.subr.bf16.mxu0 0
      %4707 = vmatpush1.bf16.msra.mxu0 %v4693
      %4708 = vmatprep.subr.bf16.mxu0 0
      %4709 = vmatpush1.bf16.msra.mxu0 %v4694
      %4710 = vmatprep.subr.bf16.mxu0 0
      %4711 = vmatpush1.bf16.msra.mxu0 0
      %4712 = vmatprep.subr.bf16.mxu0 0
      %4713 = vmatpush1.bf16.msra.mxu0 0
      %4714 = vmatprep.subr.bf16.mxu0 0
      %4715 = vmatpush1.bf16.msra.mxu0 0
      %4716 = vmatprep.subr.bf16.mxu0 0
      %4717 = vmatpush1.bf16.msra.mxu0 0
      %4718 = vmatprep.subr.bf16.mxu0 0
      %4719 = vmatpush1.bf16.msra.mxu0 0
      %4720 = vmatprep.subr.bf16.mxu0 0
      %4721 = vmatpush1.bf16.msra.mxu0 0
      %4722 = vmatprep.subr.bf16.mxu0 0
      %4723 = vmatpush1.bf16.msra.mxu0 0
      %4724 = vmatprep.subr.bf16.mxu0 0
      %4725 = vmatpush1.bf16.msra.mxu0 0
      %4726 = vmatprep.subr.bf16.mxu0 0
      %4727 = vmatpush1.bf16.msra.mxu0 0
      %4728 = vmatprep.subr.bf16.mxu0 0
      %4729 = vmatpush1.bf16.msra.mxu0 0
      %4730 = vmatprep.subr.bf16.mxu0 0
      %4731 = vmatpush1.bf16.msra.mxu0 0
      %4732 = vmatprep.subr.bf16.mxu0 0
      %4733 = vmatpush1.bf16.msra.mxu0 0
      %4734 = vmatprep.mubr.bf16.mxu0 0
      %4735 = vmatmul.mubr.bf16.gmra.mrb[0].mxu0 %v4700
      %v4736 = vpop.f32.mrb[0].mxu0
      %v4737 = vadd.f32 0.0, %v4736
      %v4738 = vpop.f32.mrb[0].mxu0
      %v4739 = vpop.f32.mrb[0].mxu0
      %v4740 = vpop.f32.mrb[0].mxu0
      %4741 = vdwg.mxu0
      %4743 = vrot.lane.b32.xlu0 %v3796, 64
      %v4744 = vpop.permute.xlu0 %4743
      %v4753 = vunpack.c.l.b16 %v3895
      %v4754 = vunpack.c.l.b16 %v3896
      %v4755 = vunpack.c.l.b16 %v3897
      %v4756 = vunpack.c.l.b16 %v3898
      %v4757 = vunpack.c.l.b16 %v3899
      %v4758 = vunpack.c.l.b16 %v3900
      %v4759 = vunpack.c.l.b16 %v3901
      %v4760 = vunpack.c.l.b16 %v3902
      %v4761 = vpack.c.b16 %v4754, %v4753
      %v4762 = vpack.c.b16 %v4756, %v4755
      %v4763 = vpack.c.b16 %v4758, %v4757
      %v4764 = vpack.c.b16 %v4760, %v4759
      %v4770 = vsel %vm4138, %v4744, 0
      %4772 = vmatprep.subr.bf16.mxu0 0
      %4773 = vmatpush1.bf16.msra.mxu0 %v4761
      %4774 = vmatprep.subr.bf16.mxu0 0
      %4775 = vmatpush1.bf16.msra.mxu0 %v4762
      %4776 = vmatprep.subr.bf16.mxu0 0
      %4777 = vmatpush1.bf16.msra.mxu0 %v4763
      %4778 = vmatprep.subr.bf16.mxu0 0
      %4779 = vmatpush1.bf16.msra.mxu0 %v4764
      %4780 = vmatprep.subr.bf16.mxu0 0
      %4781 = vmatpush1.bf16.msra.mxu0 0
      %4782 = vmatprep.subr.bf16.mxu0 0
      %4783 = vmatpush1.bf16.msra.mxu0 0
      %4784 = vmatprep.subr.bf16.mxu0 0
      %4785 = vmatpush1.bf16.msra.mxu0 0
      %4786 = vmatprep.subr.bf16.mxu0 0
      %4787 = vmatpush1.bf16.msra.mxu0 0
      %4788 = vmatprep.subr.bf16.mxu0 0
      %4789 = vmatpush1.bf16.msra.mxu0 0
      %4790 = vmatprep.subr.bf16.mxu0 0
      %4791 = vmatpush1.bf16.msra.mxu0 0
      %4792 = vmatprep.subr.bf16.mxu0 0
      %4793 = vmatpush1.bf16.msra.mxu0 0
      %4794 = vmatprep.subr.bf16.mxu0 0
      %4795 = vmatpush1.bf16.msra.mxu0 0
      %4796 = vmatprep.subr.bf16.mxu0 0
      %4797 = vmatpush1.bf16.msra.mxu0 0
      %4798 = vmatprep.subr.bf16.mxu0 0
      %4799 = vmatpush1.bf16.msra.mxu0 0
      %4800 = vmatprep.subr.bf16.mxu0 0
      %4801 = vmatpush1.bf16.msra.mxu0 0
      %4802 = vmatprep.subr.bf16.mxu0 0
      %4803 = vmatpush1.bf16.msra.mxu0 0
      %4804 = vmatprep.mubr.bf16.mxu0 0
      %4805 = vmatmul.mubr.bf16.gmra.mrb[0].mxu0 %v4770
      %v4806 = vpop.f32.mrb[0].mxu0
      %v4807 = vadd.f32 0.0, %v4806
      %v4808 = vpop.f32.mrb[0].mxu0
      %v4809 = vpop.f32.mrb[0].mxu0
      %v4810 = vpop.f32.mrb[0].mxu0
      %4811 = vdwg.mxu0
      %4813 = vrot.lane.b32.xlu0 %v3797, 64
      %v4814 = vpop.permute.xlu0 %4813
      %v4823 = vunpack.c.l.b16 %v3903
      %v4824 = vunpack.c.l.b16 %v3904
      %v4825 = vunpack.c.l.b16 %v3905
      %v4826 = vunpack.c.l.b16 %v3906
      %v4827 = vunpack.c.l.b16 %v3907
      %v4828 = vunpack.c.l.b16 %v3908
      %v4829 = vunpack.c.l.b16 %v3909
      %v4830 = vunpack.c.l.b16 %v3910
      %v4831 = vpack.c.b16 %v4824, %v4823
      %v4832 = vpack.c.b16 %v4826, %v4825
      %v4833 = vpack.c.b16 %v4828, %v4827
      %v4834 = vpack.c.b16 %v4830, %v4829
      %v4840 = vsel %vm4138, %v4814, 0
      %4842 = vmatprep.subr.bf16.mxu0 0
      %4843 = vmatpush1.bf16.msra.mxu0 %v4831
      %4844 = vmatprep.subr.bf16.mxu0 0
      %4845 = vmatpush1.bf16.msra.mxu0 %v4832
      %4846 = vmatprep.subr.bf16.mxu0 0
      %4847 = vmatpush1.bf16.msra.mxu0 %v4833
      %4848 = vmatprep.subr.bf16.mxu0 0
      %4849 = vmatpush1.bf16.msra.mxu0 %v4834
      %4850 = vmatprep.subr.bf16.mxu0 0
      %4851 = vmatpush1.bf16.msra.mxu0 0
      %4852 = vmatprep.subr.bf16.mxu0 0
      %4853 = vmatpush1.bf16.msra.mxu0 0
      %4854 = vmatprep.subr.bf16.mxu0 0
      %4855 = vmatpush1.bf16.msra.mxu0 0
      %4856 = vmatprep.subr.bf16.mxu0 0
      %4857 = vmatpush1.bf16.msra.mxu0 0
      %4858 = vmatprep.subr.bf16.mxu0 0
      %4859 = vmatpush1.bf16.msra.mxu0 0
      %4860 = vmatprep.subr.bf16.mxu0 0
      %4861 = vmatpush1.bf16.msra.mxu0 0
      %4862 = vmatprep.subr.bf16.mxu0 0
      %4863 = vmatpush1.bf16.msra.mxu0 0
      %4864 = vmatprep.subr.bf16.mxu0 0
      %4865 = vmatpush1.bf16.msra.mxu0 0
      %4866 = vmatprep.subr.bf16.mxu0 0
      %4867 = vmatpush1.bf16.msra.mxu0 0
      %4868 = vmatprep.subr.bf16.mxu0 0
      %4869 = vmatpush1.bf16.msra.mxu0 0
      %4870 = vmatprep.subr.bf16.mxu0 0
      %4871 = vmatpush1.bf16.msra.mxu0 0
      %4872 = vmatprep.subr.bf16.mxu0 0
      %4873 = vmatpush1.bf16.msra.mxu0 0
      %4874 = vmatprep.mubr.bf16.mxu0 0
      %4875 = vmatmul.mubr.bf16.gmra.mrb[0].mxu0 %v4840
      %v4876 = vpop.f32.mrb[0].mxu0
      %v4877 = vadd.f32 0.0, %v4876
      %v4878 = vpop.f32.mrb[0].mxu0
      %v4879 = vpop.f32.mrb[0].mxu0
      %v4880 = vpop.f32.mrb[0].mxu0
      %4881 = vdwg.mxu0
      %4883 = vrot.lane.b32.xlu0 %v3798, 64
      %v4884 = vpop.permute.xlu0 %4883
      %v4893 = vunpack.c.l.b16 %v3911
      %v4894 = vunpack.c.l.b16 %v3912
      %v4895 = vunpack.c.l.b16 %v3913
      %v4896 = vunpack.c.l.b16 %v3914
      %v4897 = vunpack.c.l.b16 %v3915
      %v4898 = vunpack.c.l.b16 %v3916
      %v4899 = vunpack.c.l.b16 %v3917
      %v4900 = vunpack.c.l.b16 %v3918
      %v4901 = vpack.c.b16 %v4894, %v4893
      %v4902 = vpack.c.b16 %v4896, %v4895
      %v4903 = vpack.c.b16 %v4898, %v4897
      %v4904 = vpack.c.b16 %v4900, %v4899
      %v4910 = vsel %vm4138, %v4884, 0
      %4912 = vmatprep.subr.bf16.mxu0 0
      %4913 = vmatpush1.bf16.msra.mxu0 %v4901
      %4914 = vmatprep.subr.bf16.mxu0 0
      %4915 = vmatpush1.bf16.msra.mxu0 %v4902
      %4916 = vmatprep.subr.bf16.mxu0 0
      %4917 = vmatpush1.bf16.msra.mxu0 %v4903
      %4918 = vmatprep.subr.bf16.mxu0 0
      %4919 = vmatpush1.bf16.msra.mxu0 %v4904
      %4920 = vmatprep.subr.bf16.mxu0 0
      %4921 = vmatpush1.bf16.msra.mxu0 0
      %4922 = vmatprep.subr.bf16.mxu0 0
      %4923 = vmatpush1.bf16.msra.mxu0 0
      %4924 = vmatprep.subr.bf16.mxu0 0
      %4925 = vmatpush1.bf16.msra.mxu0 0
      %4926 = vmatprep.subr.bf16.mxu0 0
      %4927 = vmatpush1.bf16.msra.mxu0 0
      %4928 = vmatprep.subr.bf16.mxu0 0
      %4929 = vmatpush1.bf16.msra.mxu0 0
      %4930 = vmatprep.subr.bf16.mxu0 0
      %4931 = vmatpush1.bf16.msra.mxu0 0
      %4932 = vmatprep.subr.bf16.mxu0 0
      %4933 = vmatpush1.bf16.msra.mxu0 0
      %4934 = vmatprep.subr.bf16.mxu0 0
      %4935 = vmatpush1.bf16.msra.mxu0 0
      %4936 = vmatprep.subr.bf16.mxu0 0
      %4937 = vmatpush1.bf16.msra.mxu0 0
      %4938 = vmatprep.subr.bf16.mxu0 0
      %4939 = vmatpush1.bf16.msra.mxu0 0
      %4940 = vmatprep.subr.bf16.mxu0 0
      %4941 = vmatpush1.bf16.msra.mxu0 0
      %4942 = vmatprep.subr.bf16.mxu0 0
      %4943 = vmatpush1.bf16.msra.mxu0 0
      %4944 = vmatprep.mubr.bf16.mxu0 0
      %4945 = vmatmul.mubr.bf16.gmra.mrb[0].mxu0 %v4910
      %v4946 = vpop.f32.mrb[0].mxu0
      %v4947 = vadd.f32 0.0, %v4946
      %v4948 = vpop.f32.mrb[0].mxu0
      %v4949 = vpop.f32.mrb[0].mxu0
      %v4950 = vpop.f32.mrb[0].mxu0
      %4951 = vdwg.mxu0
      %4953 = vrot.lane.b32.xlu0 %v3799, 64
      %v4954 = vpop.permute.xlu0 %4953
      %v4963 = vunpack.c.l.b16 %v3919
      %v4964 = vunpack.c.l.b16 %v3920
      %v4965 = vunpack.c.l.b16 %v3921
      %v4966 = vunpack.c.l.b16 %v3922
      %v4967 = vunpack.c.l.b16 %v3923
      %v4968 = vunpack.c.l.b16 %v3924
      %v4969 = vunpack.c.l.b16 %v3925
      %v4970 = vunpack.c.l.b16 %v3926
      %v4971 = vpack.c.b16 %v4964, %v4963
      %v4972 = vpack.c.b16 %v4966, %v4965
      %v4973 = vpack.c.b16 %v4968, %v4967
      %v4974 = vpack.c.b16 %v4970, %v4969
      %v4980 = vsel %vm4138, %v4954, 0
      %4982 = vmatprep.subr.bf16.mxu0 0
      %4983 = vmatpush1.bf16.msra.mxu0 %v4971
      %4984 = vmatprep.subr.bf16.mxu0 0
      %4985 = vmatpush1.bf16.msra.mxu0 %v4972
      %4986 = vmatprep.subr.bf16.mxu0 0
      %4987 = vmatpush1.bf16.msra.mxu0 %v4973
      %4988 = vmatprep.subr.bf16.mxu0 0
      %4989 = vmatpush1.bf16.msra.mxu0 %v4974
      %4990 = vmatprep.subr.bf16.mxu0 0
      %4991 = vmatpush1.bf16.msra.mxu0 0
      %4992 = vmatprep.subr.bf16.mxu0 0
      %4993 = vmatpush1.bf16.msra.mxu0 0
      %4994 = vmatprep.subr.bf16.mxu0 0
      %4995 = vmatpush1.bf16.msra.mxu0 0
      %4996 = vmatprep.subr.bf16.mxu0 0
      %4997 = vmatpush1.bf16.msra.mxu0 0
      %4998 = vmatprep.subr.bf16.mxu0 0
      %4999 = vmatpush1.bf16.msra.mxu0 0
      %5000 = vmatprep.subr.bf16.mxu0 0
      %5001 = vmatpush1.bf16.msra.mxu0 0
      %5002 = vmatprep.subr.bf16.mxu0 0
      %5003 = vmatpush1.bf16.msra.mxu0 0
      %5004 = vmatprep.subr.bf16.mxu0 0
      %5005 = vmatpush1.bf16.msra.mxu0 0
      %5006 = vmatprep.subr.bf16.mxu0 0
      %5007 = vmatpush1.bf16.msra.mxu0 0
      %5008 = vmatprep.subr.bf16.mxu0 0
      %5009 = vmatpush1.bf16.msra.mxu0 0
      %5010 = vmatprep.subr.bf16.mxu0 0
      %5011 = vmatpush1.bf16.msra.mxu0 0
      %5012 = vmatprep.subr.bf16.mxu0 0
      %5013 = vmatpush1.bf16.msra.mxu0 0
      %5014 = vmatprep.mubr.bf16.mxu0 0
      %5015 = vmatmul.mubr.bf16.gmra.mrb[0].mxu0 %v4980
      %v5016 = vpop.f32.mrb[0].mxu0
      %v5017 = vadd.f32 0.0, %v5016
      %v5018 = vpop.f32.mrb[0].mxu0
      %v5019 = vpop.f32.mrb[0].mxu0
      %v5020 = vpop.f32.mrb[0].mxu0
      %5021 = vdwg.mxu0
      %5023 = vrot.lane.b32.xlu0 %v3800, 64
      %v5024 = vpop.permute.xlu0 %5023
      %v5033 = vunpack.c.l.b16 %v3927
      %v5034 = vunpack.c.l.b16 %v3928
      %v5035 = vunpack.c.l.b16 %v3929
      %v5036 = vunpack.c.l.b16 %v3930
      %v5037 = vunpack.c.l.b16 %v3931
      %v5038 = vunpack.c.l.b16 %v3932
      %v5039 = vunpack.c.l.b16 %v3933
      %v5040 = vunpack.c.l.b16 %v3934
      %v5041 = vpack.c.b16 %v5034, %v5033
      %v5042 = vpack.c.b16 %v5036, %v5035
      %v5043 = vpack.c.b16 %v5038, %v5037
      %v5044 = vpack.c.b16 %v5040, %v5039
      %v5050 = vsel %vm4138, %v5024, 0
      %5052 = vmatprep.subr.bf16.mxu0 0
      %5053 = vmatpush1.bf16.msra.mxu0 %v5041
      %5054 = vmatprep.subr.bf16.mxu0 0
      %5055 = vmatpush1.bf16.msra.mxu0 %v5042
      %5056 = vmatprep.subr.bf16.mxu0 0
      %5057 = vmatpush1.bf16.msra.mxu0 %v5043
      %5058 = vmatprep.subr.bf16.mxu0 0
      %5059 = vmatpush1.bf16.msra.mxu0 %v5044
      %5060 = vmatprep.subr.bf16.mxu0 0
      %5061 = vmatpush1.bf16.msra.mxu0 0
      %5062 = vmatprep.subr.bf16.mxu0 0
      %5063 = vmatpush1.bf16.msra.mxu0 0
      %5064 = vmatprep.subr.bf16.mxu0 0
      %5065 = vmatpush1.bf16.msra.mxu0 0
      %5066 = vmatprep.subr.bf16.mxu0 0
      %5067 = vmatpush1.bf16.msra.mxu0 0
      %5068 = vmatprep.subr.bf16.mxu0 0
      %5069 = vmatpush1.bf16.msra.mxu0 0
      %5070 = vmatprep.subr.bf16.mxu0 0
      %5071 = vmatpush1.bf16.msra.mxu0 0
      %5072 = vmatprep.subr.bf16.mxu0 0
      %5073 = vmatpush1.bf16.msra.mxu0 0
      %5074 = vmatprep.subr.bf16.mxu0 0
      %5075 = vmatpush1.bf16.msra.mxu0 0
      %5076 = vmatprep.subr.bf16.mxu0 0
      %5077 = vmatpush1.bf16.msra.mxu0 0
      %5078 = vmatprep.subr.bf16.mxu0 0
      %5079 = vmatpush1.bf16.msra.mxu0 0
      %5080 = vmatprep.subr.bf16.mxu0 0
      %5081 = vmatpush1.bf16.msra.mxu0 0
      %5082 = vmatprep.subr.bf16.mxu0 0
      %5083 = vmatpush1.bf16.msra.mxu0 0
      %5084 = vmatprep.mubr.bf16.mxu0 0
      %5085 = vmatmul.mubr.bf16.gmra.mrb[0].mxu0 %v5050
      %v5086 = vpop.f32.mrb[0].mxu0
      %v5087 = vadd.f32 0.0, %v5086
      %v5088 = vpop.f32.mrb[0].mxu0
      %v5089 = vpop.f32.mrb[0].mxu0
      %v5090 = vpop.f32.mrb[0].mxu0
      %5091 = vdwg.mxu0
      %5093 = vrot.lane.b32.xlu0 %v3801, 64
      %v5094 = vpop.permute.xlu0 %5093
      %v5103 = vunpack.c.l.b16 %v3935
      %v5104 = vunpack.c.l.b16 %v3936
      %v5105 = vunpack.c.l.b16 %v3937
      %v5106 = vunpack.c.l.b16 %v3938
      %v5107 = vunpack.c.l.b16 %v3939
      %v5108 = vunpack.c.l.b16 %v3940
      %v5109 = vunpack.c.l.b16 %v3941
      %v5110 = vunpack.c.l.b16 %v3942
      %v5111 = vpack.c.b16 %v5104, %v5103
      %v5112 = vpack.c.b16 %v5106, %v5105
      %v5113 = vpack.c.b16 %v5108, %v5107
      %v5114 = vpack.c.b16 %v5110, %v5109
      %v5120 = vsel %vm4138, %v5094, 0
      %5122 = vmatprep.subr.bf16.mxu0 0
      %5123 = vmatpush1.bf16.msra.mxu0 %v5111
      %5124 = vmatprep.subr.bf16.mxu0 0
      %5125 = vmatpush1.bf16.msra.mxu0 %v5112
      %5126 = vmatprep.subr.bf16.mxu0 0
      %5127 = vmatpush1.bf16.msra.mxu0 %v5113
      %5128 = vmatprep.subr.bf16.mxu0 0
      %5129 = vmatpush1.bf16.msra.mxu0 %v5114
      %5130 = vmatprep.subr.bf16.mxu0 0
      %5131 = vmatpush1.bf16.msra.mxu0 0
      %5132 = vmatprep.subr.bf16.mxu0 0
      %5133 = vmatpush1.bf16.msra.mxu0 0
      %5134 = vmatprep.subr.bf16.mxu0 0
      %5135 = vmatpush1.bf16.msra.mxu0 0
      %5136 = vmatprep.subr.bf16.mxu0 0
      %5137 = vmatpush1.bf16.msra.mxu0 0
      %5138 = vmatprep.subr.bf16.mxu0 0
      %5139 = vmatpush1.bf16.msra.mxu0 0
      %5140 = vmatprep.subr.bf16.mxu0 0
      %5141 = vmatpush1.bf16.msra.mxu0 0
      %5142 = vmatprep.subr.bf16.mxu0 0
      %5143 = vmatpush1.bf16.msra.mxu0 0
      %5144 = vmatprep.subr.bf16.mxu0 0
      %5145 = vmatpush1.bf16.msra.mxu0 0
      %5146 = vmatprep.subr.bf16.mxu0 0
      %5147 = vmatpush1.bf16.msra.mxu0 0
      %5148 = vmatprep.subr.bf16.mxu0 0
      %5149 = vmatpush1.bf16.msra.mxu0 0
      %5150 = vmatprep.subr.bf16.mxu0 0
      %5151 = vmatpush1.bf16.msra.mxu0 0
      %5152 = vmatprep.subr.bf16.mxu0 0
      %5153 = vmatpush1.bf16.msra.mxu0 0
      %5154 = vmatprep.mubr.bf16.mxu0 0
      %5155 = vmatmul.mubr.bf16.gmra.mrb[0].mxu0 %v5120
      %v5156 = vpop.f32.mrb[0].mxu0
      %v5157 = vadd.f32 0.0, %v5156
      %v5158 = vpop.f32.mrb[0].mxu0
      %v5159 = vpop.f32.mrb[0].mxu0
      %v5160 = vpop.f32.mrb[0].mxu0
      %5161 = vdwg.mxu0
      %5163 = vrot.lane.b32.xlu0 %v3802, 64
      %v5164 = vpop.permute.xlu0 %5163
      %v5173 = vunpack.c.l.b16 %v3943
      %v5174 = vunpack.c.l.b16 %v3944
      %v5175 = vunpack.c.l.b16 %v3945
      %v5176 = vunpack.c.l.b16 %v3946
      %v5177 = vunpack.c.l.b16 %v3947
      %v5178 = vunpack.c.l.b16 %v3948
      %v5179 = vunpack.c.l.b16 %v3949
      %v5180 = vunpack.c.l.b16 %v3950
      %v5181 = vpack.c.b16 %v5174, %v5173
      %v5182 = vpack.c.b16 %v5176, %v5175
      %v5183 = vpack.c.b16 %v5178, %v5177
      %v5184 = vpack.c.b16 %v5180, %v5179
      %v5190 = vsel %vm4138, %v5164, 0
      %5192 = vmatprep.subr.bf16.mxu0 0
      %5193 = vmatpush1.bf16.msra.mxu0 %v5181
      %5194 = vmatprep.subr.bf16.mxu0 0
      %5195 = vmatpush1.bf16.msra.mxu0 %v5182
      %5196 = vmatprep.subr.bf16.mxu0 0
      %5197 = vmatpush1.bf16.msra.mxu0 %v5183
      %5198 = vmatprep.subr.bf16.mxu0 0
      %5199 = vmatpush1.bf16.msra.mxu0 %v5184
      %5200 = vmatprep.subr.bf16.mxu0 0
      %5201 = vmatpush1.bf16.msra.mxu0 0
      %5202 = vmatprep.subr.bf16.mxu0 0
      %5203 = vmatpush1.bf16.msra.mxu0 0
      %5204 = vmatprep.subr.bf16.mxu0 0
      %5205 = vmatpush1.bf16.msra.mxu0 0
      %5206 = vmatprep.subr.bf16.mxu0 0
      %5207 = vmatpush1.bf16.msra.mxu0 0
      %5208 = vmatprep.subr.bf16.mxu0 0
      %5209 = vmatpush1.bf16.msra.mxu0 0
      %5210 = vmatprep.subr.bf16.mxu0 0
      %5211 = vmatpush1.bf16.msra.mxu0 0
      %5212 = vmatprep.subr.bf16.mxu0 0
      %5213 = vmatpush1.bf16.msra.mxu0 0
      %5214 = vmatprep.subr.bf16.mxu0 0
      %5215 = vmatpush1.bf16.msra.mxu0 0
      %5216 = vmatprep.subr.bf16.mxu0 0
      %5217 = vmatpush1.bf16.msra.mxu0 0
      %5218 = vmatprep.subr.bf16.mxu0 0
      %5219 = vmatpush1.bf16.msra.mxu0 0
      %5220 = vmatprep.subr.bf16.mxu0 0
      %5221 = vmatpush1.bf16.msra.mxu0 0
      %5222 = vmatprep.subr.bf16.mxu0 0
      %5223 = vmatpush1.bf16.msra.mxu0 0
      %5224 = vmatprep.mubr.bf16.mxu0 0
      %5225 = vmatmul.mubr.bf16.gmra.mrb[0].mxu0 %v5190
      %v5226 = vpop.f32.mrb[0].mxu0
      %v5227 = vadd.f32 0.0, %v5226
      %v5228 = vpop.f32.mrb[0].mxu0
      %v5229 = vpop.f32.mrb[0].mxu0
      %v5230 = vpop.f32.mrb[0].mxu0
      %5231 = vdwg.mxu0
      %5233 = vrot.lane.b32.xlu0 %v3803, 64
      %v5234 = vpop.permute.xlu0 %5233
      %v5243 = vunpack.c.l.b16 %v3951
      %v5244 = vunpack.c.l.b16 %v3952
      %v5245 = vunpack.c.l.b16 %v3953
      %v5246 = vunpack.c.l.b16 %v3954
      %v5247 = vunpack.c.l.b16 %v3955
      %v5248 = vunpack.c.l.b16 %v3956
      %v5249 = vunpack.c.l.b16 %v3957
      %v5250 = vunpack.c.l.b16 %v3958
      %v5251 = vpack.c.b16 %v5244, %v5243
      %v5252 = vpack.c.b16 %v5246, %v5245
      %v5253 = vpack.c.b16 %v5248, %v5247
      %v5254 = vpack.c.b16 %v5250, %v5249
      %v5260 = vsel %vm4138, %v5234, 0
      %5262 = vmatprep.subr.bf16.mxu0 0
      %5263 = vmatpush1.bf16.msra.mxu0 %v5251
      %5264 = vmatprep.subr.bf16.mxu0 0
      %5265 = vmatpush1.bf16.msra.mxu0 %v5252
      %5266 = vmatprep.subr.bf16.mxu0 0
      %5267 = vmatpush1.bf16.msra.mxu0 %v5253
      %5268 = vmatprep.subr.bf16.mxu0 0
      %5269 = vmatpush1.bf16.msra.mxu0 %v5254
      %5270 = vmatprep.subr.bf16.mxu0 0
      %5271 = vmatpush1.bf16.msra.mxu0 0
      %5272 = vmatprep.subr.bf16.mxu0 0
      %5273 = vmatpush1.bf16.msra.mxu0 0
      %5274 = vmatprep.subr.bf16.mxu0 0
      %5275 = vmatpush1.bf16.msra.mxu0 0
      %5276 = vmatprep.subr.bf16.mxu0 0
      %5277 = vmatpush1.bf16.msra.mxu0 0
      %5278 = vmatprep.subr.bf16.mxu0 0
      %5279 = vmatpush1.bf16.msra.mxu0 0
      %5280 = vmatprep.subr.bf16.mxu0 0
      %5281 = vmatpush1.bf16.msra.mxu0 0
      %5282 = vmatprep.subr.bf16.mxu0 0
      %5283 = vmatpush1.bf16.msra.mxu0 0
      %5284 = vmatprep.subr.bf16.mxu0 0
      %5285 = vmatpush1.bf16.msra.mxu0 0
      %5286 = vmatprep.subr.bf16.mxu0 0
      %5287 = vmatpush1.bf16.msra.mxu0 0
      %5288 = vmatprep.subr.bf16.mxu0 0
      %5289 = vmatpush1.bf16.msra.mxu0 0
      %5290 = vmatprep.subr.bf16.mxu0 0
      %5291 = vmatpush1.bf16.msra.mxu0 0
      %5292 = vmatprep.subr.bf16.mxu0 0
      %5293 = vmatpush1.bf16.msra.mxu0 0
      %5294 = vmatprep.mubr.bf16.mxu0 0
      %5295 = vmatmul.mubr.bf16.gmra.mrb[0].mxu0 %v5260
      %v5296 = vpop.f32.mrb[0].mxu0
      %v5297 = vadd.f32 0.0, %v5296
      %v5298 = vpop.f32.mrb[0].mxu0
      %v5299 = vpop.f32.mrb[0].mxu0
      %v5300 = vpop.f32.mrb[0].mxu0
      %5301 = vdwg.mxu0
      %5303 = vrot.lane.b32.xlu0 %v3804, 64
      %v5304 = vpop.permute.xlu0 %5303
      %v5313 = vunpack.c.l.b16 %v3959
      %v5314 = vunpack.c.l.b16 %v3960
      %v5315 = vunpack.c.l.b16 %v3961
      %v5316 = vunpack.c.l.b16 %v3962
      %v5317 = vunpack.c.l.b16 %v3963
      %v5318 = vunpack.c.l.b16 %v3964
      %v5319 = vunpack.c.l.b16 %v3965
      %v5320 = vunpack.c.l.b16 %v3966
      %v5321 = vpack.c.b16 %v5314, %v5313
      %v5322 = vpack.c.b16 %v5316, %v5315
      %v5323 = vpack.c.b16 %v5318, %v5317
      %v5324 = vpack.c.b16 %v5320, %v5319
      %v5330 = vsel %vm4138, %v5304, 0
      %5332 = vmatprep.subr.bf16.mxu0 0
      %5333 = vmatpush1.bf16.msra.mxu0 %v5321
      %5334 = vmatprep.subr.bf16.mxu0 0
      %5335 = vmatpush1.bf16.msra.mxu0 %v5322
      %5336 = vmatprep.subr.bf16.mxu0 0
      %5337 = vmatpush1.bf16.msra.mxu0 %v5323
      %5338 = vmatprep.subr.bf16.mxu0 0
      %5339 = vmatpush1.bf16.msra.mxu0 %v5324
      %5340 = vmatprep.subr.bf16.mxu0 0
      %5341 = vmatpush1.bf16.msra.mxu0 0
      %5342 = vmatprep.subr.bf16.mxu0 0
      %5343 = vmatpush1.bf16.msra.mxu0 0
      %5344 = vmatprep.subr.bf16.mxu0 0
      %5345 = vmatpush1.bf16.msra.mxu0 0
      %5346 = vmatprep.subr.bf16.mxu0 0
      %5347 = vmatpush1.bf16.msra.mxu0 0
      %5348 = vmatprep.subr.bf16.mxu0 0
      %5349 = vmatpush1.bf16.msra.mxu0 0
      %5350 = vmatprep.subr.bf16.mxu0 0
      %5351 = vmatpush1.bf16.msra.mxu0 0
      %5352 = vmatprep.subr.bf16.mxu0 0
      %5353 = vmatpush1.bf16.msra.mxu0 0
      %5354 = vmatprep.subr.bf16.mxu0 0
      %5355 = vmatpush1.bf16.msra.mxu0 0
      %5356 = vmatprep.subr.bf16.mxu0 0
      %5357 = vmatpush1.bf16.msra.mxu0 0
      %5358 = vmatprep.subr.bf16.mxu0 0
      %5359 = vmatpush1.bf16.msra.mxu0 0
      %5360 = vmatprep.subr.bf16.mxu0 0
      %5361 = vmatpush1.bf16.msra.mxu0 0
      %5362 = vmatprep.subr.bf16.mxu0 0
      %5363 = vmatpush1.bf16.msra.mxu0 0
      %5364 = vmatprep.mubr.bf16.mxu0 0
      %5365 = vmatmul.mubr.bf16.gmra.mrb[0].mxu0 %v5330
      %v5366 = vpop.f32.mrb[0].mxu0
      %v5367 = vadd.f32 0.0, %v5366
      %v5368 = vpop.f32.mrb[0].mxu0
      %v5369 = vpop.f32.mrb[0].mxu0
      %v5370 = vpop.f32.mrb[0].mxu0
      %5371 = vdwg.mxu0
      %5373 = vrot.lane.b32.xlu0 %v3805, 64
      %v5374 = vpop.permute.xlu0 %5373
      %v5383 = vunpack.c.l.b16 %v3967
      %v5384 = vunpack.c.l.b16 %v3968
      %v5385 = vunpack.c.l.b16 %v3969
      %v5386 = vunpack.c.l.b16 %v3970
      %v5387 = vunpack.c.l.b16 %v3971
      %v5388 = vunpack.c.l.b16 %v3972
      %v5389 = vunpack.c.l.b16 %v3973
      %v5390 = vunpack.c.l.b16 %v3974
      %v5391 = vpack.c.b16 %v5384, %v5383
      %v5392 = vpack.c.b16 %v5386, %v5385
      %v5393 = vpack.c.b16 %v5388, %v5387
      %v5394 = vpack.c.b16 %v5390, %v5389
      %v5400 = vsel %vm4138, %v5374, 0
      %5402 = vmatprep.subr.bf16.mxu0 0
      %5403 = vmatpush1.bf16.msra.mxu0 %v5391
      %5404 = vmatprep.subr.bf16.mxu0 0
      %5405 = vmatpush1.bf16.msra.mxu0 %v5392
      %5406 = vmatprep.subr.bf16.mxu0 0
      %5407 = vmatpush1.bf16.msra.mxu0 %v5393
      %5408 = vmatprep.subr.bf16.mxu0 0
      %5409 = vmatpush1.bf16.msra.mxu0 %v5394
      %5410 = vmatprep.subr.bf16.mxu0 0
      %5411 = vmatpush1.bf16.msra.mxu0 0
      %5412 = vmatprep.subr.bf16.mxu0 0
      %5413 = vmatpush1.bf16.msra.mxu0 0
      %5414 = vmatprep.subr.bf16.mxu0 0
      %5415 = vmatpush1.bf16.msra.mxu0 0
      %5416 = vmatprep.subr.bf16.mxu0 0
      %5417 = vmatpush1.bf16.msra.mxu0 0
      %5418 = vmatprep.subr.bf16.mxu0 0
      %5419 = vmatpush1.bf16.msra.mxu0 0
      %5420 = vmatprep.subr.bf16.mxu0 0
      %5421 = vmatpush1.bf16.msra.mxu0 0
      %5422 = vmatprep.subr.bf16.mxu0 0
      %5423 = vmatpush1.bf16.msra.mxu0 0
      %5424 = vmatprep.subr.bf16.mxu0 0
      %5425 = vmatpush1.bf16.msra.mxu0 0
      %5426 = vmatprep.subr.bf16.mxu0 0
      %5427 = vmatpush1.bf16.msra.mxu0 0
      %5428 = vmatprep.subr.bf16.mxu0 0
      %5429 = vmatpush1.bf16.msra.mxu0 0
      %5430 = vmatprep.subr.bf16.mxu0 0
      %5431 = vmatpush1.bf16.msra.mxu0 0
      %5432 = vmatprep.subr.bf16.mxu0 0
      %5433 = vmatpush1.bf16.msra.mxu0 0
      %5434 = vmatprep.mubr.bf16.mxu0 0
      %5435 = vmatmul.mubr.bf16.gmra.mrb[0].mxu0 %v5400
      %v5436 = vpop.f32.mrb[0].mxu0
      %v5437 = vadd.f32 0.0, %v5436
      %v5438 = vpop.f32.mrb[0].mxu0
      %v5439 = vpop.f32.mrb[0].mxu0
      %v5440 = vpop.f32.mrb[0].mxu0
      %5441 = vdwg.mxu0
      %5443 = vrot.lane.b32.xlu0 %v3806, 64
      %v5444 = vpop.permute.xlu0 %5443
      %v5453 = vunpack.c.l.b16 %v3975
      %v5454 = vunpack.c.l.b16 %v3976
      %v5455 = vunpack.c.l.b16 %v3977
      %v5456 = vunpack.c.l.b16 %v3978
      %v5457 = vunpack.c.l.b16 %v3979
      %v5458 = vunpack.c.l.b16 %v3980
      %v5459 = vunpack.c.l.b16 %v3981
      %v5460 = vunpack.c.l.b16 %v3982
      %v5461 = vpack.c.b16 %v5454, %v5453
      %v5462 = vpack.c.b16 %v5456, %v5455
      %v5463 = vpack.c.b16 %v5458, %v5457
      %v5464 = vpack.c.b16 %v5460, %v5459
      %v5470 = vsel %vm4138, %v5444, 0
      %5472 = vmatprep.subr.bf16.mxu0 0
      %5473 = vmatpush1.bf16.msra.mxu0 %v5461
      %5474 = vmatprep.subr.bf16.mxu0 0
      %5475 = vmatpush1.bf16.msra.mxu0 %v5462
      %5476 = vmatprep.subr.bf16.mxu0 0
      %5477 = vmatpush1.bf16.msra.mxu0 %v5463
      %5478 = vmatprep.subr.bf16.mxu0 0
      %5479 = vmatpush1.bf16.msra.mxu0 %v5464
      %5480 = vmatprep.subr.bf16.mxu0 0
      %5481 = vmatpush1.bf16.msra.mxu0 0
      %5482 = vmatprep.subr.bf16.mxu0 0
      %5483 = vmatpush1.bf16.msra.mxu0 0
      %5484 = vmatprep.subr.bf16.mxu0 0
      %5485 = vmatpush1.bf16.msra.mxu0 0
      %5486 = vmatprep.subr.bf16.mxu0 0
      %5487 = vmatpush1.bf16.msra.mxu0 0
      %5488 = vmatprep.subr.bf16.mxu0 0
      %5489 = vmatpush1.bf16.msra.mxu0 0
      %5490 = vmatprep.subr.bf16.mxu0 0
      %5491 = vmatpush1.bf16.msra.mxu0 0
      %5492 = vmatprep.subr.bf16.mxu0 0
      %5493 = vmatpush1.bf16.msra.mxu0 0
      %5494 = vmatprep.subr.bf16.mxu0 0
      %5495 = vmatpush1.bf16.msra.mxu0 0
      %5496 = vmatprep.subr.bf16.mxu0 0
      %5497 = vmatpush1.bf16.msra.mxu0 0
      %5498 = vmatprep.subr.bf16.mxu0 0
      %5499 = vmatpush1.bf16.msra.mxu0 0
      %5500 = vmatprep.subr.bf16.mxu0 0
      %5501 = vmatpush1.bf16.msra.mxu0 0
      %5502 = vmatprep.subr.bf16.mxu0 0
      %5503 = vmatpush1.bf16.msra.mxu0 0
      %5504 = vmatprep.mubr.bf16.mxu0 0
      %5505 = vmatmul.mubr.bf16.gmra.mrb[0].mxu0 %v5470
      %v5506 = vpop.f32.mrb[0].mxu0
      %v5507 = vadd.f32 0.0, %v5506
      %v5508 = vpop.f32.mrb[0].mxu0
      %v5509 = vpop.f32.mrb[0].mxu0
      %v5510 = vpop.f32.mrb[0].mxu0
      %5511 = vdwg.mxu0
      %5513 = vrot.lane.b32.xlu0 %v3807, 64
      %v5514 = vpop.permute.xlu0 %5513
      %v5523 = vunpack.c.l.b16 %v3983
      %v5524 = vunpack.c.l.b16 %v3984
      %v5525 = vunpack.c.l.b16 %v3985
      %v5526 = vunpack.c.l.b16 %v3986
      %v5527 = vunpack.c.l.b16 %v3987
      %v5528 = vunpack.c.l.b16 %v3988
      %v5529 = vunpack.c.l.b16 %v3989
      %v5530 = vunpack.c.l.b16 %v3990
      %v5531 = vpack.c.b16 %v5524, %v5523
      %v5532 = vpack.c.b16 %v5526, %v5525
      %v5533 = vpack.c.b16 %v5528, %v5527
      %v5534 = vpack.c.b16 %v5530, %v5529
      %v5540 = vsel %vm4138, %v5514, 0
      %5542 = vmatprep.subr.bf16.mxu0 0
      %5543 = vmatpush1.bf16.msra.mxu0 %v5531
      %5544 = vmatprep.subr.bf16.mxu0 0
      %5545 = vmatpush1.bf16.msra.mxu0 %v5532
      %5546 = vmatprep.subr.bf16.mxu0 0
      %5547 = vmatpush1.bf16.msra.mxu0 %v5533
      %5548 = vmatprep.subr.bf16.mxu0 0
      %5549 = vmatpush1.bf16.msra.mxu0 %v5534
      %5550 = vmatprep.subr.bf16.mxu0 0
      %5551 = vmatpush1.bf16.msra.mxu0 0
      %5552 = vmatprep.subr.bf16.mxu0 0
      %5553 = vmatpush1.bf16.msra.mxu0 0
      %5554 = vmatprep.subr.bf16.mxu0 0
      %5555 = vmatpush1.bf16.msra.mxu0 0
      %5556 = vmatprep.subr.bf16.mxu0 0
      %5557 = vmatpush1.bf16.msra.mxu0 0
      %5558 = vmatprep.subr.bf16.mxu0 0
      %5559 = vmatpush1.bf16.msra.mxu0 0
      %5560 = vmatprep.subr.bf16.mxu0 0
      %5561 = vmatpush1.bf16.msra.mxu0 0
      %5562 = vmatprep.subr.bf16.mxu0 0
      %5563 = vmatpush1.bf16.msra.mxu0 0
      %5564 = vmatprep.subr.bf16.mxu0 0
      %5565 = vmatpush1.bf16.msra.mxu0 0
      %5566 = vmatprep.subr.bf16.mxu0 0
      %5567 = vmatpush1.bf16.msra.mxu0 0
      %5568 = vmatprep.subr.bf16.mxu0 0
      %5569 = vmatpush1.bf16.msra.mxu0 0
      %5570 = vmatprep.subr.bf16.mxu0 0
      %5571 = vmatpush1.bf16.msra.mxu0 0
      %5572 = vmatprep.subr.bf16.mxu0 0
      %5573 = vmatpush1.bf16.msra.mxu0 0
      %5574 = vmatprep.mubr.bf16.mxu0 0
      %5575 = vmatmul.mubr.bf16.gmra.mrb[0].mxu0 %v5540
      %v5576 = vpop.f32.mrb[0].mxu0
      %v5577 = vadd.f32 0.0, %v5576
      %v5578 = vpop.f32.mrb[0].mxu0
      %v5579 = vpop.f32.mrb[0].mxu0
      %v5580 = vpop.f32.mrb[0].mxu0
      %5581 = vdwg.mxu0
      %5583 = vrot.lane.b32.xlu0 %v3808, 64
      %v5584 = vpop.permute.xlu0 %5583
      %v5593 = vunpack.c.l.b16 %v3991
      %v5594 = vunpack.c.l.b16 %v3992
      %v5595 = vunpack.c.l.b16 %v3993
      %v5596 = vunpack.c.l.b16 %v3994
      %v5597 = vunpack.c.l.b16 %v3995
      %v5598 = vunpack.c.l.b16 %v3996
      %v5599 = vunpack.c.l.b16 %v3997
      %v5600 = vunpack.c.l.b16 %v3998
      %v5601 = vpack.c.b16 %v5594, %v5593
      %v5602 = vpack.c.b16 %v5596, %v5595
      %v5603 = vpack.c.b16 %v5598, %v5597
      %v5604 = vpack.c.b16 %v5600, %v5599
      %v5610 = vsel %vm4138, %v5584, 0
      %5612 = vmatprep.subr.bf16.mxu0 0
      %5613 = vmatpush1.bf16.msra.mxu0 %v5601
      %5614 = vmatprep.subr.bf16.mxu0 0
      %5615 = vmatpush1.bf16.msra.mxu0 %v5602
      %5616 = vmatprep.subr.bf16.mxu0 0
      %5617 = vmatpush1.bf16.msra.mxu0 %v5603
      %5618 = vmatprep.subr.bf16.mxu0 0
      %5619 = vmatpush1.bf16.msra.mxu0 %v5604
      %5620 = vmatprep.subr.bf16.mxu0 0
      %5621 = vmatpush1.bf16.msra.mxu0 0
      %5622 = vmatprep.subr.bf16.mxu0 0
      %5623 = vmatpush1.bf16.msra.mxu0 0
      %5624 = vmatprep.subr.bf16.mxu0 0
      %5625 = vmatpush1.bf16.msra.mxu0 0
      %5626 = vmatprep.subr.bf16.mxu0 0
      %5627 = vmatpush1.bf16.msra.mxu0 0
      %5628 = vmatprep.subr.bf16.mxu0 0
      %5629 = vmatpush1.bf16.msra.mxu0 0
      %5630 = vmatprep.subr.bf16.mxu0 0
      %5631 = vmatpush1.bf16.msra.mxu0 0
      %5632 = vmatprep.subr.bf16.mxu0 0
      %5633 = vmatpush1.bf16.msra.mxu0 0
      %5634 = vmatprep.subr.bf16.mxu0 0
      %5635 = vmatpush1.bf16.msra.mxu0 0
      %5636 = vmatprep.subr.bf16.mxu0 0
      %5637 = vmatpush1.bf16.msra.mxu0 0
      %5638 = vmatprep.subr.bf16.mxu0 0
      %5639 = vmatpush1.bf16.msra.mxu0 0
      %5640 = vmatprep.subr.bf16.mxu0 0
      %5641 = vmatpush1.bf16.msra.mxu0 0
      %5642 = vmatprep.subr.bf16.mxu0 0
      %5643 = vmatpush1.bf16.msra.mxu0 0
      %5644 = vmatprep.mubr.bf16.mxu0 0
      %5645 = vmatmul.mubr.bf16.gmra.mrb[0].mxu0 %v5610
      %v5646 = vpop.f32.mrb[0].mxu0
      %v5647 = vadd.f32 0.0, %v5646
      %v5648 = vpop.f32.mrb[0].mxu0
      %v5649 = vpop.f32.mrb[0].mxu0
      %v5650 = vpop.f32.mrb[0].mxu0
      %5651 = vdwg.mxu0
      %5653 = vrot.lane.b32.xlu0 %v3809, 64
      %v5654 = vpop.permute.xlu0 %5653
      %v5663 = vunpack.c.l.b16 %v3999
      %v5664 = vunpack.c.l.b16 %v4000
      %v5665 = vunpack.c.l.b16 %v4001
      %v5666 = vunpack.c.l.b16 %v4002
      %v5667 = vunpack.c.l.b16 %v4003
      %v5668 = vunpack.c.l.b16 %v4004
      %v5669 = vunpack.c.l.b16 %v4005
      %v5670 = vunpack.c.l.b16 %v4006
      %v5671 = vpack.c.b16 %v5664, %v5663
      %v5672 = vpack.c.b16 %v5666, %v5665
      %v5673 = vpack.c.b16 %v5668, %v5667
      %v5674 = vpack.c.b16 %v5670, %v5669
      %v5680 = vsel %vm4138, %v5654, 0
      %5682 = vmatprep.subr.bf16.mxu0 0
      %5683 = vmatpush1.bf16.msra.mxu0 %v5671
      %5684 = vmatprep.subr.bf16.mxu0 0
      %5685 = vmatpush1.bf16.msra.mxu0 %v5672
      %5686 = vmatprep.subr.bf16.mxu0 0
      %5687 = vmatpush1.bf16.msra.mxu0 %v5673
      %5688 = vmatprep.subr.bf16.mxu0 0
      %5689 = vmatpush1.bf16.msra.mxu0 %v5674
      %5690 = vmatprep.subr.bf16.mxu0 0
      %5691 = vmatpush1.bf16.msra.mxu0 0
      %5692 = vmatprep.subr.bf16.mxu0 0
      %5693 = vmatpush1.bf16.msra.mxu0 0
      %5694 = vmatprep.subr.bf16.mxu0 0
      %5695 = vmatpush1.bf16.msra.mxu0 0
      %5696 = vmatprep.subr.bf16.mxu0 0
      %5697 = vmatpush1.bf16.msra.mxu0 0
      %5698 = vmatprep.subr.bf16.mxu0 0
      %5699 = vmatpush1.bf16.msra.mxu0 0
      %5700 = vmatprep.subr.bf16.mxu0 0
      %5701 = vmatpush1.bf16.msra.mxu0 0
      %5702 = vmatprep.subr.bf16.mxu0 0
      %5703 = vmatpush1.bf16.msra.mxu0 0
      %5704 = vmatprep.subr.bf16.mxu0 0
      %5705 = vmatpush1.bf16.msra.mxu0 0
      %5706 = vmatprep.subr.bf16.mxu0 0
      %5707 = vmatpush1.bf16.msra.mxu0 0
      %5708 = vmatprep.subr.bf16.mxu0 0
      %5709 = vmatpush1.bf16.msra.mxu0 0
      %5710 = vmatprep.subr.bf16.mxu0 0
      %5711 = vmatpush1.bf16.msra.mxu0 0
      %5712 = vmatprep.subr.bf16.mxu0 0
      %5713 = vmatpush1.bf16.msra.mxu0 0
      %5714 = vmatprep.mubr.bf16.mxu0 0
      %5715 = vmatmul.mubr.bf16.gmra.mrb[0].mxu0 %v5680
      %v5716 = vpop.f32.mrb[0].mxu0
      %v5717 = vadd.f32 0.0, %v5716
      %v5718 = vpop.f32.mrb[0].mxu0
      %v5719 = vpop.f32.mrb[0].mxu0
      %v5720 = vpop.f32.mrb[0].mxu0
      %5721 = vdwg.mxu0
      %5723 = vrot.lane.b32.xlu0 %v3810, 64
      %v5724 = vpop.permute.xlu0 %5723
      %v5733 = vunpack.c.l.b16 %v4007
      %v5734 = vunpack.c.l.b16 %v4008
      %v5735 = vunpack.c.l.b16 %v4009
      %v5736 = vunpack.c.l.b16 %v4010
      %v5737 = vunpack.c.l.b16 %v4011
      %v5738 = vunpack.c.l.b16 %v4012
      %v5739 = vunpack.c.l.b16 %v4013
      %v5740 = vunpack.c.l.b16 %v4014
      %v5741 = vpack.c.b16 %v5734, %v5733
      %v5742 = vpack.c.b16 %v5736, %v5735
      %v5743 = vpack.c.b16 %v5738, %v5737
      %v5744 = vpack.c.b16 %v5740, %v5739
      %v5750 = vsel %vm4138, %v5724, 0
      %5752 = vmatprep.subr.bf16.mxu0 0
      %5753 = vmatpush1.bf16.msra.mxu0 %v5741
      %5754 = vmatprep.subr.bf16.mxu0 0
      %5755 = vmatpush1.bf16.msra.mxu0 %v5742
      %5756 = vmatprep.subr.bf16.mxu0 0
      %5757 = vmatpush1.bf16.msra.mxu0 %v5743
      %5758 = vmatprep.subr.bf16.mxu0 0
      %5759 = vmatpush1.bf16.msra.mxu0 %v5744
      %5760 = vmatprep.subr.bf16.mxu0 0
      %5761 = vmatpush1.bf16.msra.mxu0 0
      %5762 = vmatprep.subr.bf16.mxu0 0
      %5763 = vmatpush1.bf16.msra.mxu0 0
      %5764 = vmatprep.subr.bf16.mxu0 0
      %5765 = vmatpush1.bf16.msra.mxu0 0
      %5766 = vmatprep.subr.bf16.mxu0 0
      %5767 = vmatpush1.bf16.msra.mxu0 0
      %5768 = vmatprep.subr.bf16.mxu0 0
      %5769 = vmatpush1.bf16.msra.mxu0 0
      %5770 = vmatprep.subr.bf16.mxu0 0
      %5771 = vmatpush1.bf16.msra.mxu0 0
      %5772 = vmatprep.subr.bf16.mxu0 0
      %5773 = vmatpush1.bf16.msra.mxu0 0
      %5774 = vmatprep.subr.bf16.mxu0 0
      %5775 = vmatpush1.bf16.msra.mxu0 0
      %5776 = vmatprep.subr.bf16.mxu0 0
      %5777 = vmatpush1.bf16.msra.mxu0 0
      %5778 = vmatprep.subr.bf16.mxu0 0
      %5779 = vmatpush1.bf16.msra.mxu0 0
      %5780 = vmatprep.subr.bf16.mxu0 0
      %5781 = vmatpush1.bf16.msra.mxu0 0
      %5782 = vmatprep.subr.bf16.mxu0 0
      %5783 = vmatpush1.bf16.msra.mxu0 0
      %5784 = vmatprep.mubr.bf16.mxu0 0
      %5785 = vmatmul.mubr.bf16.gmra.mrb[0].mxu0 %v5750
      %v5786 = vpop.f32.mrb[0].mxu0
      %v5787 = vadd.f32 0.0, %v5786
      %v5788 = vpop.f32.mrb[0].mxu0
      %v5789 = vpop.f32.mrb[0].mxu0
      %v5790 = vpop.f32.mrb[0].mxu0
      %5791 = vdwg.mxu0
      %5793 = vrot.lane.b32.xlu0 %v3811, 64
      %v5794 = vpop.permute.xlu0 %5793
      %v5803 = vunpack.c.l.b16 %v4015
      %v5804 = vunpack.c.l.b16 %v4016
      %v5805 = vunpack.c.l.b16 %v4017
      %v5806 = vunpack.c.l.b16 %v4018
      %v5807 = vunpack.c.l.b16 %v4019
      %v5808 = vunpack.c.l.b16 %v4020
      %v5809 = vunpack.c.l.b16 %v4021
      %v5810 = vunpack.c.l.b16 %v4022
      %v5811 = vpack.c.b16 %v5804, %v5803
      %v5812 = vpack.c.b16 %v5806, %v5805
      %v5813 = vpack.c.b16 %v5808, %v5807
      %v5814 = vpack.c.b16 %v5810, %v5809
      %v5820 = vsel %vm4138, %v5794, 0
      %5822 = vmatprep.subr.bf16.mxu0 0
      %5823 = vmatpush1.bf16.msra.mxu0 %v5811
      %5824 = vmatprep.subr.bf16.mxu0 0
      %5825 = vmatpush1.bf16.msra.mxu0 %v5812
      %5826 = vmatprep.subr.bf16.mxu0 0
      %5827 = vmatpush1.bf16.msra.mxu0 %v5813
      %5828 = vmatprep.subr.bf16.mxu0 0
      %5829 = vmatpush1.bf16.msra.mxu0 %v5814
      %5830 = vmatprep.subr.bf16.mxu0 0
      %5831 = vmatpush1.bf16.msra.mxu0 0
      %5832 = vmatprep.subr.bf16.mxu0 0
      %5833 = vmatpush1.bf16.msra.mxu0 0
      %5834 = vmatprep.subr.bf16.mxu0 0
      %5835 = vmatpush1.bf16.msra.mxu0 0
      %5836 = vmatprep.subr.bf16.mxu0 0
      %5837 = vmatpush1.bf16.msra.mxu0 0
      %5838 = vmatprep.subr.bf16.mxu0 0
      %5839 = vmatpush1.bf16.msra.mxu0 0
      %5840 = vmatprep.subr.bf16.mxu0 0
      %5841 = vmatpush1.bf16.msra.mxu0 0
      %5842 = vmatprep.subr.bf16.mxu0 0
      %5843 = vmatpush1.bf16.msra.mxu0 0
      %5844 = vmatprep.subr.bf16.mxu0 0
      %5845 = vmatpush1.bf16.msra.mxu0 0
      %5846 = vmatprep.subr.bf16.mxu0 0
      %5847 = vmatpush1.bf16.msra.mxu0 0
      %5848 = vmatprep.subr.bf16.mxu0 0
      %5849 = vmatpush1.bf16.msra.mxu0 0
      %5850 = vmatprep.subr.bf16.mxu0 0
      %5851 = vmatpush1.bf16.msra.mxu0 0
      %5852 = vmatprep.subr.bf16.mxu0 0
      %5853 = vmatpush1.bf16.msra.mxu0 0
      %5854 = vmatprep.mubr.bf16.mxu0 0
      %5855 = vmatmul.mubr.bf16.gmra.mrb[0].mxu0 %v5820
      %v5856 = vpop.f32.mrb[0].mxu0
      %v5857 = vadd.f32 0.0, %v5856
      %v5858 = vpop.f32.mrb[0].mxu0
      %v5859 = vpop.f32.mrb[0].mxu0
      %v5860 = vpop.f32.mrb[0].mxu0
      %5861 = vdwg.mxu0
      %5863 = vrot.lane.b32.xlu0 %v3812, 64
      %v5864 = vpop.permute.xlu0 %5863
      %v5873 = vunpack.c.l.b16 %v4023
      %v5874 = vunpack.c.l.b16 %v4024
      %v5875 = vunpack.c.l.b16 %v4025
      %v5876 = vunpack.c.l.b16 %v4026
      %v5877 = vunpack.c.l.b16 %v4027
      %v5878 = vunpack.c.l.b16 %v4028
      %v5879 = vunpack.c.l.b16 %v4029
      %v5880 = vunpack.c.l.b16 %v4030
      %v5881 = vpack.c.b16 %v5874, %v5873
      %v5882 = vpack.c.b16 %v5876, %v5875
      %v5883 = vpack.c.b16 %v5878, %v5877
      %v5884 = vpack.c.b16 %v5880, %v5879
      %v5890 = vsel %vm4138, %v5864, 0
      %5892 = vmatprep.subr.bf16.mxu0 0
      %5893 = vmatpush1.bf16.msra.mxu0 %v5881
      %5894 = vmatprep.subr.bf16.mxu0 0
      %5895 = vmatpush1.bf16.msra.mxu0 %v5882
      %5896 = vmatprep.subr.bf16.mxu0 0
      %5897 = vmatpush1.bf16.msra.mxu0 %v5883
      %5898 = vmatprep.subr.bf16.mxu0 0
      %5899 = vmatpush1.bf16.msra.mxu0 %v5884
      %5900 = vmatprep.subr.bf16.mxu0 0
      %5901 = vmatpush1.bf16.msra.mxu0 0
      %5902 = vmatprep.subr.bf16.mxu0 0
      %5903 = vmatpush1.bf16.msra.mxu0 0
      %5904 = vmatprep.subr.bf16.mxu0 0
      %5905 = vmatpush1.bf16.msra.mxu0 0
      %5906 = vmatprep.subr.bf16.mxu0 0
      %5907 = vmatpush1.bf16.msra.mxu0 0
      %5908 = vmatprep.subr.bf16.mxu0 0
      %5909 = vmatpush1.bf16.msra.mxu0 0
      %5910 = vmatprep.subr.bf16.mxu0 0
      %5911 = vmatpush1.bf16.msra.mxu0 0
      %5912 = vmatprep.subr.bf16.mxu0 0
      %5913 = vmatpush1.bf16.msra.mxu0 0
      %5914 = vmatprep.subr.bf16.mxu0 0
      %5915 = vmatpush1.bf16.msra.mxu0 0
      %5916 = vmatprep.subr.bf16.mxu0 0
      %5917 = vmatpush1.bf16.msra.mxu0 0
      %5918 = vmatprep.subr.bf16.mxu0 0
      %5919 = vmatpush1.bf16.msra.mxu0 0
      %5920 = vmatprep.subr.bf16.mxu0 0
      %5921 = vmatpush1.bf16.msra.mxu0 0
      %5922 = vmatprep.subr.bf16.mxu0 0
      %5923 = vmatpush1.bf16.msra.mxu0 0
      %5924 = vmatprep.mubr.bf16.mxu0 0
      %5925 = vmatmul.mubr.bf16.gmra.mrb[0].mxu0 %v5890
      %v5926 = vpop.f32.mrb[0].mxu0
      %v5927 = vadd.f32 0.0, %v5926
      %v5928 = vpop.f32.mrb[0].mxu0
      %v5929 = vpop.f32.mrb[0].mxu0
      %v5930 = vpop.f32.mrb[0].mxu0
      %5931 = vdwg.mxu0
      %5933 = vrot.lane.b32.xlu0 %v3813, 64
      %v5934 = vpop.permute.xlu0 %5933
      %v5943 = vunpack.c.l.b16 %v4031
      %v5944 = vunpack.c.l.b16 %v4032
      %v5945 = vunpack.c.l.b16 %v4033
      %v5946 = vunpack.c.l.b16 %v4034
      %v5947 = vunpack.c.l.b16 %v4035
      %v5948 = vunpack.c.l.b16 %v4036
      %v5949 = vunpack.c.l.b16 %v4037
      %v5950 = vunpack.c.l.b16 %v4038
      %v5951 = vpack.c.b16 %v5944, %v5943
      %v5952 = vpack.c.b16 %v5946, %v5945
      %v5953 = vpack.c.b16 %v5948, %v5947
      %v5954 = vpack.c.b16 %v5950, %v5949
      %v5960 = vsel %vm4138, %v5934, 0
      %5962 = vmatprep.subr.bf16.mxu0 0
      %5963 = vmatpush1.bf16.msra.mxu0 %v5951
      %5964 = vmatprep.subr.bf16.mxu0 0
      %5965 = vmatpush1.bf16.msra.mxu0 %v5952
      %5966 = vmatprep.subr.bf16.mxu0 0
      %5967 = vmatpush1.bf16.msra.mxu0 %v5953
      %5968 = vmatprep.subr.bf16.mxu0 0
      %5969 = vmatpush1.bf16.msra.mxu0 %v5954
      %5970 = vmatprep.subr.bf16.mxu0 0
      %5971 = vmatpush1.bf16.msra.mxu0 0
      %5972 = vmatprep.subr.bf16.mxu0 0
      %5973 = vmatpush1.bf16.msra.mxu0 0
      %5974 = vmatprep.subr.bf16.mxu0 0
      %5975 = vmatpush1.bf16.msra.mxu0 0
      %5976 = vmatprep.subr.bf16.mxu0 0
      %5977 = vmatpush1.bf16.msra.mxu0 0
      %5978 = vmatprep.subr.bf16.mxu0 0
      %5979 = vmatpush1.bf16.msra.mxu0 0
      %5980 = vmatprep.subr.bf16.mxu0 0
      %5981 = vmatpush1.bf16.msra.mxu0 0
      %5982 = vmatprep.subr.bf16.mxu0 0
      %5983 = vmatpush1.bf16.msra.mxu0 0
      %5984 = vmatprep.subr.bf16.mxu0 0
      %5985 = vmatpush1.bf16.msra.mxu0 0
      %5986 = vmatprep.subr.bf16.mxu0 0
      %5987 = vmatpush1.bf16.msra.mxu0 0
      %5988 = vmatprep.subr.bf16.mxu0 0
      %5989 = vmatpush1.bf16.msra.mxu0 0
      %5990 = vmatprep.subr.bf16.mxu0 0
      %5991 = vmatpush1.bf16.msra.mxu0 0
      %5992 = vmatprep.subr.bf16.mxu0 0
      %5993 = vmatpush1.bf16.msra.mxu0 0
      %5994 = vmatprep.mubr.bf16.mxu0 0
      %5995 = vmatmul.mubr.bf16.gmra.mrb[0].mxu0 %v5960
      %v5996 = vpop.f32.mrb[0].mxu0
      %v5997 = vadd.f32 0.0, %v5996
      %v5998 = vpop.f32.mrb[0].mxu0
      %v5999 = vpop.f32.mrb[0].mxu0
      %v6000 = vpop.f32.mrb[0].mxu0
      %6001 = vdwg.mxu0
      %6003 = vrot.lane.b32.xlu0 %v3814, 64
      %v6004 = vpop.permute.xlu0 %6003
      %v6013 = vunpack.c.l.b16 %v4039
      %v6014 = vunpack.c.l.b16 %v4040
      %v6015 = vunpack.c.l.b16 %v4041
      %v6016 = vunpack.c.l.b16 %v4042
      %v6017 = vunpack.c.l.b16 %v4043
      %v6018 = vunpack.c.l.b16 %v4044
      %v6019 = vunpack.c.l.b16 %v4045
      %v6020 = vunpack.c.l.b16 %v4046
      %v6021 = vpack.c.b16 %v6014, %v6013
      %v6022 = vpack.c.b16 %v6016, %v6015
      %v6023 = vpack.c.b16 %v6018, %v6017
      %v6024 = vpack.c.b16 %v6020, %v6019
      %v6030 = vsel %vm4138, %v6004, 0
      %6032 = vmatprep.subr.bf16.mxu0 0
      %6033 = vmatpush1.bf16.msra.mxu0 %v6021
      %6034 = vmatprep.subr.bf16.mxu0 0
      %6035 = vmatpush1.bf16.msra.mxu0 %v6022
      %6036 = vmatprep.subr.bf16.mxu0 0
      %6037 = vmatpush1.bf16.msra.mxu0 %v6023
      %6038 = vmatprep.subr.bf16.mxu0 0
      %6039 = vmatpush1.bf16.msra.mxu0 %v6024
      %6040 = vmatprep.subr.bf16.mxu0 0
      %6041 = vmatpush1.bf16.msra.mxu0 0
      %6042 = vmatprep.subr.bf16.mxu0 0
      %6043 = vmatpush1.bf16.msra.mxu0 0
      %6044 = vmatprep.subr.bf16.mxu0 0
      %6045 = vmatpush1.bf16.msra.mxu0 0
      %6046 = vmatprep.subr.bf16.mxu0 0
      %6047 = vmatpush1.bf16.msra.mxu0 0
      %6048 = vmatprep.subr.bf16.mxu0 0
      %6049 = vmatpush1.bf16.msra.mxu0 0
      %6050 = vmatprep.subr.bf16.mxu0 0
      %6051 = vmatpush1.bf16.msra.mxu0 0
      %6052 = vmatprep.subr.bf16.mxu0 0
      %6053 = vmatpush1.bf16.msra.mxu0 0
      %6054 = vmatprep.subr.bf16.mxu0 0
      %6055 = vmatpush1.bf16.msra.mxu0 0
      %6056 = vmatprep.subr.bf16.mxu0 0
      %6057 = vmatpush1.bf16.msra.mxu0 0
      %6058 = vmatprep.subr.bf16.mxu0 0
      %6059 = vmatpush1.bf16.msra.mxu0 0
      %6060 = vmatprep.subr.bf16.mxu0 0
      %6061 = vmatpush1.bf16.msra.mxu0 0
      %6062 = vmatprep.subr.bf16.mxu0 0
      %6063 = vmatpush1.bf16.msra.mxu0 0
      %6064 = vmatprep.mubr.bf16.mxu0 0
      %6065 = vmatmul.mubr.bf16.gmra.mrb[0].mxu0 %v6030
      %v6066 = vpop.f32.mrb[0].mxu0
      %v6067 = vadd.f32 0.0, %v6066
      %v6068 = vpop.f32.mrb[0].mxu0
      %v6069 = vpop.f32.mrb[0].mxu0
      %v6070 = vpop.f32.mrb[0].mxu0
      %6071 = vdwg.mxu0
      %6073 = vrot.lane.b32.xlu0 %v3815, 64
      %v6074 = vpop.permute.xlu0 %6073
      %v6083 = vunpack.c.l.b16 %v4047
      %v6084 = vunpack.c.l.b16 %v4048
      %v6085 = vunpack.c.l.b16 %v4049
      %v6086 = vunpack.c.l.b16 %v4050
      %v6087 = vunpack.c.l.b16 %v4051
      %v6088 = vunpack.c.l.b16 %v4052
      %v6089 = vunpack.c.l.b16 %v4053
      %v6090 = vunpack.c.l.b16 %v4054
      %v6091 = vpack.c.b16 %v6084, %v6083
      %v6092 = vpack.c.b16 %v6086, %v6085
      %v6093 = vpack.c.b16 %v6088, %v6087
      %v6094 = vpack.c.b16 %v6090, %v6089
      %v6100 = vsel %vm4138, %v6074, 0
      %6102 = vmatprep.subr.bf16.mxu0 0
      %6103 = vmatpush1.bf16.msra.mxu0 %v6091
      %6104 = vmatprep.subr.bf16.mxu0 0
      %6105 = vmatpush1.bf16.msra.mxu0 %v6092
      %6106 = vmatprep.subr.bf16.mxu0 0
      %6107 = vmatpush1.bf16.msra.mxu0 %v6093
      %6108 = vmatprep.subr.bf16.mxu0 0
      %6109 = vmatpush1.bf16.msra.mxu0 %v6094
      %6110 = vmatprep.subr.bf16.mxu0 0
      %6111 = vmatpush1.bf16.msra.mxu0 0
      %6112 = vmatprep.subr.bf16.mxu0 0
      %6113 = vmatpush1.bf16.msra.mxu0 0
      %6114 = vmatprep.subr.bf16.mxu0 0
      %6115 = vmatpush1.bf16.msra.mxu0 0
      %6116 = vmatprep.subr.bf16.mxu0 0
      %6117 = vmatpush1.bf16.msra.mxu0 0
      %6118 = vmatprep.subr.bf16.mxu0 0
      %6119 = vmatpush1.bf16.msra.mxu0 0
      %6120 = vmatprep.subr.bf16.mxu0 0
      %6121 = vmatpush1.bf16.msra.mxu0 0
      %6122 = vmatprep.subr.bf16.mxu0 0
      %6123 = vmatpush1.bf16.msra.mxu0 0
      %6124 = vmatprep.subr.bf16.mxu0 0
      %6125 = vmatpush1.bf16.msra.mxu0 0
      %6126 = vmatprep.subr.bf16.mxu0 0
      %6127 = vmatpush1.bf16.msra.mxu0 0
      %6128 = vmatprep.subr.bf16.mxu0 0
      %6129 = vmatpush1.bf16.msra.mxu0 0
      %6130 = vmatprep.subr.bf16.mxu0 0
      %6131 = vmatpush1.bf16.msra.mxu0 0
      %6132 = vmatprep.subr.bf16.mxu0 0
      %6133 = vmatpush1.bf16.msra.mxu0 0
      %6134 = vmatprep.mubr.bf16.mxu0 0
      %6135 = vmatmul.mubr.bf16.gmra.mrb[0].mxu0 %v6100
      %v6136 = vpop.f32.mrb[0].mxu0
      %v6137 = vadd.f32 0.0, %v6136
      %v6138 = vpop.f32.mrb[0].mxu0
      %v6139 = vpop.f32.mrb[0].mxu0
      %v6140 = vpop.f32.mrb[0].mxu0
      %6141 = vdwg.mxu0
      %6143 = vrot.lane.b32.xlu0 %v3816, 64
      %v6144 = vpop.permute.xlu0 %6143
      %v6153 = vunpack.c.l.b16 %v4055
      %v6154 = vunpack.c.l.b16 %v4056
      %v6155 = vunpack.c.l.b16 %v4057
      %v6156 = vunpack.c.l.b16 %v4058
      %v6157 = vunpack.c.l.b16 %v4059
      %v6158 = vunpack.c.l.b16 %v4060
      %v6159 = vunpack.c.l.b16 %v4061
      %v6160 = vunpack.c.l.b16 %v4062
      %v6161 = vpack.c.b16 %v6154, %v6153
      %v6162 = vpack.c.b16 %v6156, %v6155
      %v6163 = vpack.c.b16 %v6158, %v6157
      %v6164 = vpack.c.b16 %v6160, %v6159
      %v6170 = vsel %vm4138, %v6144, 0
      %6172 = vmatprep.subr.bf16.mxu0 0
      %6173 = vmatpush1.bf16.msra.mxu0 %v6161
      %6174 = vmatprep.subr.bf16.mxu0 0
      %6175 = vmatpush1.bf16.msra.mxu0 %v6162
      %6176 = vmatprep.subr.bf16.mxu0 0
      %6177 = vmatpush1.bf16.msra.mxu0 %v6163
      %6178 = vmatprep.subr.bf16.mxu0 0
      %6179 = vmatpush1.bf16.msra.mxu0 %v6164
      %6180 = vmatprep.subr.bf16.mxu0 0
      %6181 = vmatpush1.bf16.msra.mxu0 0
      %6182 = vmatprep.subr.bf16.mxu0 0
      %6183 = vmatpush1.bf16.msra.mxu0 0
      %6184 = vmatprep.subr.bf16.mxu0 0
      %6185 = vmatpush1.bf16.msra.mxu0 0
      %6186 = vmatprep.subr.bf16.mxu0 0
      %6187 = vmatpush1.bf16.msra.mxu0 0
      %6188 = vmatprep.subr.bf16.mxu0 0
      %6189 = vmatpush1.bf16.msra.mxu0 0
      %6190 = vmatprep.subr.bf16.mxu0 0
      %6191 = vmatpush1.bf16.msra.mxu0 0
      %6192 = vmatprep.subr.bf16.mxu0 0
      %6193 = vmatpush1.bf16.msra.mxu0 0
      %6194 = vmatprep.subr.bf16.mxu0 0
      %6195 = vmatpush1.bf16.msra.mxu0 0
      %6196 = vmatprep.subr.bf16.mxu0 0
      %6197 = vmatpush1.bf16.msra.mxu0 0
      %6198 = vmatprep.subr.bf16.mxu0 0
      %6199 = vmatpush1.bf16.msra.mxu0 0
      %6200 = vmatprep.subr.bf16.mxu0 0
      %6201 = vmatpush1.bf16.msra.mxu0 0
      %6202 = vmatprep.subr.bf16.mxu0 0
      %6203 = vmatpush1.bf16.msra.mxu0 0
      %6204 = vmatprep.mubr.bf16.mxu0 0
      %6205 = vmatmul.mubr.bf16.gmra.mrb[0].mxu0 %v6170
      %v6206 = vpop.f32.mrb[0].mxu0
      %v6207 = vadd.f32 0.0, %v6206
      %v6208 = vpop.f32.mrb[0].mxu0
      %v6209 = vpop.f32.mrb[0].mxu0
      %v6210 = vpop.f32.mrb[0].mxu0
      %6211 = vdwg.mxu0
      %6213 = vrot.lane.b32.xlu0 %v3817, 64
      %v6214 = vpop.permute.xlu0 %6213
      %v6223 = vunpack.c.l.b16 %v4063
      %v6224 = vunpack.c.l.b16 %v4064
      %v6225 = vunpack.c.l.b16 %v4065
      %v6226 = vunpack.c.l.b16 %v4066
      %v6227 = vunpack.c.l.b16 %v4067
      %v6228 = vunpack.c.l.b16 %v4068
      %v6229 = vunpack.c.l.b16 %v4069
      %v6230 = vunpack.c.l.b16 %v4070
      %v6231 = vpack.c.b16 %v6224, %v6223
      %v6232 = vpack.c.b16 %v6226, %v6225
      %v6233 = vpack.c.b16 %v6228, %v6227
      %v6234 = vpack.c.b16 %v6230, %v6229
      %v6240 = vsel %vm4138, %v6214, 0
      %6242 = vmatprep.subr.bf16.mxu0 0
      %6243 = vmatpush1.bf16.msra.mxu0 %v6231
      %6244 = vmatprep.subr.bf16.mxu0 0
      %6245 = vmatpush1.bf16.msra.mxu0 %v6232
      %6246 = vmatprep.subr.bf16.mxu0 0
      %6247 = vmatpush1.bf16.msra.mxu0 %v6233
      %6248 = vmatprep.subr.bf16.mxu0 0
      %6249 = vmatpush1.bf16.msra.mxu0 %v6234
      %6250 = vmatprep.subr.bf16.mxu0 0
      %6251 = vmatpush1.bf16.msra.mxu0 0
      %6252 = vmatprep.subr.bf16.mxu0 0
      %6253 = vmatpush1.bf16.msra.mxu0 0
      %6254 = vmatprep.subr.bf16.mxu0 0
      %6255 = vmatpush1.bf16.msra.mxu0 0
      %6256 = vmatprep.subr.bf16.mxu0 0
      %6257 = vmatpush1.bf16.msra.mxu0 0
      %6258 = vmatprep.subr.bf16.mxu0 0
      %6259 = vmatpush1.bf16.msra.mxu0 0
      %6260 = vmatprep.subr.bf16.mxu0 0
      %6261 = vmatpush1.bf16.msra.mxu0 0
      %6262 = vmatprep.subr.bf16.mxu0 0
      %6263 = vmatpush1.bf16.msra.mxu0 0
      %6264 = vmatprep.subr.bf16.mxu0 0
      %6265 = vmatpush1.bf16.msra.mxu0 0
      %6266 = vmatprep.subr.bf16.mxu0 0
      %6267 = vmatpush1.bf16.msra.mxu0 0
      %6268 = vmatprep.subr.bf16.mxu0 0
      %6269 = vmatpush1.bf16.msra.mxu0 0
      %6270 = vmatprep.subr.bf16.mxu0 0
      %6271 = vmatpush1.bf16.msra.mxu0 0
      %6272 = vmatprep.subr.bf16.mxu0 0
      %6273 = vmatpush1.bf16.msra.mxu0 0
      %6274 = vmatprep.mubr.bf16.mxu0 0
      %6275 = vmatmul.mubr.bf16.gmra.mrb[0].mxu0 %v6240
      %v6276 = vpop.f32.mrb[0].mxu0
      %v6277 = vadd.f32 0.0, %v6276
      %v6278 = vpop.f32.mrb[0].mxu0
      %v6279 = vpop.f32.mrb[0].mxu0
      %v6280 = vpop.f32.mrb[0].mxu0
      %6281 = vdwg.mxu0
      %6283 = vrot.lane.b32.xlu0 %v3818, 64
      %v6284 = vpop.permute.xlu0 %6283
      %v6293 = vunpack.c.l.b16 %v4071
      %v6294 = vunpack.c.l.b16 %v4072
      %v6295 = vunpack.c.l.b16 %v4073
      %v6296 = vunpack.c.l.b16 %v4074
      %v6297 = vunpack.c.l.b16 %v4075
      %v6298 = vunpack.c.l.b16 %v4076
      %v6299 = vunpack.c.l.b16 %v4077
      %v6300 = vunpack.c.l.b16 %v4078
      %v6301 = vpack.c.b16 %v6294, %v6293
      %v6302 = vpack.c.b16 %v6296, %v6295
      %v6303 = vpack.c.b16 %v6298, %v6297
      %v6304 = vpack.c.b16 %v6300, %v6299
      %v6310 = vsel %vm4138, %v6284, 0
      %6312 = vmatprep.subr.bf16.mxu0 0
      %6313 = vmatpush1.bf16.msra.mxu0 %v6301
      %6314 = vmatprep.subr.bf16.mxu0 0
      %6315 = vmatpush1.bf16.msra.mxu0 %v6302
      %6316 = vmatprep.subr.bf16.mxu0 0
      %6317 = vmatpush1.bf16.msra.mxu0 %v6303
      %6318 = vmatprep.subr.bf16.mxu0 0
      %6319 = vmatpush1.bf16.msra.mxu0 %v6304
      %6320 = vmatprep.subr.bf16.mxu0 0
      %6321 = vmatpush1.bf16.msra.mxu0 0
      %6322 = vmatprep.subr.bf16.mxu0 0
      %6323 = vmatpush1.bf16.msra.mxu0 0
      %6324 = vmatprep.subr.bf16.mxu0 0
      %6325 = vmatpush1.bf16.msra.mxu0 0
      %6326 = vmatprep.subr.bf16.mxu0 0
      %6327 = vmatpush1.bf16.msra.mxu0 0
      %6328 = vmatprep.subr.bf16.mxu0 0
      %6329 = vmatpush1.bf16.msra.mxu0 0
      %6330 = vmatprep.subr.bf16.mxu0 0
      %6331 = vmatpush1.bf16.msra.mxu0 0
      %6332 = vmatprep.subr.bf16.mxu0 0
      %6333 = vmatpush1.bf16.msra.mxu0 0
      %6334 = vmatprep.subr.bf16.mxu0 0
      %6335 = vmatpush1.bf16.msra.mxu0 0
      %6336 = vmatprep.subr.bf16.mxu0 0
      %6337 = vmatpush1.bf16.msra.mxu0 0
      %6338 = vmatprep.subr.bf16.mxu0 0
      %6339 = vmatpush1.bf16.msra.mxu0 0
      %6340 = vmatprep.subr.bf16.mxu0 0
      %6341 = vmatpush1.bf16.msra.mxu0 0
      %6342 = vmatprep.subr.bf16.mxu0 0
      %6343 = vmatpush1.bf16.msra.mxu0 0
      %6344 = vmatprep.mubr.bf16.mxu0 0
      %6345 = vmatmul.mubr.bf16.gmra.mrb[0].mxu0 %v6310
      %v6346 = vpop.f32.mrb[0].mxu0
      %v6347 = vadd.f32 0.0, %v6346
      %v6348 = vpop.f32.mrb[0].mxu0
      %v6349 = vpop.f32.mrb[0].mxu0
      %v6350 = vpop.f32.mrb[0].mxu0
      %6351 = vdwg.mxu0
      %6353 = vrot.lane.b32.xlu0 %v3819, 64
      %v6354 = vpop.permute.xlu0 %6353
      %v6363 = vunpack.c.l.b16 %v4079
      %v6364 = vunpack.c.l.b16 %v4080
      %v6365 = vunpack.c.l.b16 %v4081
      %v6366 = vunpack.c.l.b16 %v4082
      %v6367 = vunpack.c.l.b16 %v4083
      %v6368 = vunpack.c.l.b16 %v4084
      %v6369 = vunpack.c.l.b16 %v4085
      %v6370 = vunpack.c.l.b16 %v4086
      %v6371 = vpack.c.b16 %v6364, %v6363
      %v6372 = vpack.c.b16 %v6366, %v6365
      %v6373 = vpack.c.b16 %v6368, %v6367
      %v6374 = vpack.c.b16 %v6370, %v6369
      %v6380 = vsel %vm4138, %v6354, 0
      %6382 = vmatprep.subr.bf16.mxu0 0
      %6383 = vmatpush1.bf16.msra.mxu0 %v6371
      %6384 = vmatprep.subr.bf16.mxu0 0
      %6385 = vmatpush1.bf16.msra.mxu0 %v6372
      %6386 = vmatprep.subr.bf16.mxu0 0
      %6387 = vmatpush1.bf16.msra.mxu0 %v6373
      %6388 = vmatprep.subr.bf16.mxu0 0
      %6389 = vmatpush1.bf16.msra.mxu0 %v6374
      %6390 = vmatprep.subr.bf16.mxu0 0
      %6391 = vmatpush1.bf16.msra.mxu0 0
      %6392 = vmatprep.subr.bf16.mxu0 0
      %6393 = vmatpush1.bf16.msra.mxu0 0
      %6394 = vmatprep.subr.bf16.mxu0 0
      %6395 = vmatpush1.bf16.msra.mxu0 0
      %6396 = vmatprep.subr.bf16.mxu0 0
      %6397 = vmatpush1.bf16.msra.mxu0 0
      %6398 = vmatprep.subr.bf16.mxu0 0
      %6399 = vmatpush1.bf16.msra.mxu0 0
      %6400 = vmatprep.subr.bf16.mxu0 0
      %6401 = vmatpush1.bf16.msra.mxu0 0
      %6402 = vmatprep.subr.bf16.mxu0 0
      %6403 = vmatpush1.bf16.msra.mxu0 0
      %6404 = vmatprep.subr.bf16.mxu0 0
      %6405 = vmatpush1.bf16.msra.mxu0 0
      %6406 = vmatprep.subr.bf16.mxu0 0
      %6407 = vmatpush1.bf16.msra.mxu0 0
      %6408 = vmatprep.subr.bf16.mxu0 0
      %6409 = vmatpush1.bf16.msra.mxu0 0
      %6410 = vmatprep.subr.bf16.mxu0 0
      %6411 = vmatpush1.bf16.msra.mxu0 0
      %6412 = vmatprep.subr.bf16.mxu0 0
      %6413 = vmatpush1.bf16.msra.mxu0 0
      %6414 = vmatprep.mubr.bf16.mxu0 0
      %6415 = vmatmul.mubr.bf16.gmra.mrb[0].mxu0 %v6380
      %v6416 = vpop.f32.mrb[0].mxu0
      %v6417 = vadd.f32 0.0, %v6416
      %v6418 = vpop.f32.mrb[0].mxu0
      %v6419 = vpop.f32.mrb[0].mxu0
      %v6420 = vpop.f32.mrb[0].mxu0
      %6421 = vdwg.mxu0
      %6423 = vrot.lane.b32.xlu0 %v3820, 64
      %v6424 = vpop.permute.xlu0 %6423
      %v6433 = vunpack.c.l.b16 %v4087
      %v6434 = vunpack.c.l.b16 %v4088
      %v6435 = vunpack.c.l.b16 %v4089
      %v6436 = vunpack.c.l.b16 %v4090
      %v6437 = vunpack.c.l.b16 %v4091
      %v6438 = vunpack.c.l.b16 %v4092
      %v6439 = vunpack.c.l.b16 %v4093
      %v6440 = vunpack.c.l.b16 %v4094
      %v6441 = vpack.c.b16 %v6434, %v6433
      %v6442 = vpack.c.b16 %v6436, %v6435
      %v6443 = vpack.c.b16 %v6438, %v6437
      %v6444 = vpack.c.b16 %v6440, %v6439
      %v6450 = vsel %vm4138, %v6424, 0
      %6452 = vmatprep.subr.bf16.mxu0 0
      %6453 = vmatpush1.bf16.msra.mxu0 %v6441
      %6454 = vmatprep.subr.bf16.mxu0 0
      %6455 = vmatpush1.bf16.msra.mxu0 %v6442
      %6456 = vmatprep.subr.bf16.mxu0 0
      %6457 = vmatpush1.bf16.msra.mxu0 %v6443
      %6458 = vmatprep.subr.bf16.mxu0 0
      %6459 = vmatpush1.bf16.msra.mxu0 %v6444
      %6460 = vmatprep.subr.bf16.mxu0 0
      %6461 = vmatpush1.bf16.msra.mxu0 0
      %6462 = vmatprep.subr.bf16.mxu0 0
      %6463 = vmatpush1.bf16.msra.mxu0 0
      %6464 = vmatprep.subr.bf16.mxu0 0
      %6465 = vmatpush1.bf16.msra.mxu0 0
      %6466 = vmatprep.subr.bf16.mxu0 0
      %6467 = vmatpush1.bf16.msra.mxu0 0
      %6468 = vmatprep.subr.bf16.mxu0 0
      %6469 = vmatpush1.bf16.msra.mxu0 0
      %6470 = vmatprep.subr.bf16.mxu0 0
      %6471 = vmatpush1.bf16.msra.mxu0 0
      %6472 = vmatprep.subr.bf16.mxu0 0
      %6473 = vmatpush1.bf16.msra.mxu0 0
      %6474 = vmatprep.subr.bf16.mxu0 0
      %6475 = vmatpush1.bf16.msra.mxu0 0
      %6476 = vmatprep.subr.bf16.mxu0 0
      %6477 = vmatpush1.bf16.msra.mxu0 0
      %6478 = vmatprep.subr.bf16.mxu0 0
      %6479 = vmatpush1.bf16.msra.mxu0 0
      %6480 = vmatprep.subr.bf16.mxu0 0
      %6481 = vmatpush1.bf16.msra.mxu0 0
      %6482 = vmatprep.subr.bf16.mxu0 0
      %6483 = vmatpush1.bf16.msra.mxu0 0
      %6484 = vmatprep.mubr.bf16.mxu0 0
      %6485 = vmatmul.mubr.bf16.gmra.mrb[0].mxu0 %v6450
      %v6486 = vpop.f32.mrb[0].mxu0
      %v6487 = vadd.f32 0.0, %v6486
      %v6488 = vpop.f32.mrb[0].mxu0
      %v6489 = vpop.f32.mrb[0].mxu0
      %v6490 = vpop.f32.mrb[0].mxu0
      %6491 = vdwg.mxu0
      %6493 = vrot.lane.b32.xlu0 %v3821, 64
      %v6494 = vpop.permute.xlu0 %6493
      %v6503 = vunpack.c.l.b16 %v4095
      %v6504 = vunpack.c.l.b16 %v4096
      %v6505 = vunpack.c.l.b16 %v4097
      %v6506 = vunpack.c.l.b16 %v4098
      %v6507 = vunpack.c.l.b16 %v4099
      %v6508 = vunpack.c.l.b16 %v4100
      %v6509 = vunpack.c.l.b16 %v4101
      %v6510 = vunpack.c.l.b16 %v4102
      %v6511 = vpack.c.b16 %v6504, %v6503
      %v6512 = vpack.c.b16 %v6506, %v6505
      %v6513 = vpack.c.b16 %v6508, %v6507
      %v6514 = vpack.c.b16 %v6510, %v6509
      %v6520 = vsel %vm4138, %v6494, 0
      %6522 = vmatprep.subr.bf16.mxu0 0
      %6523 = vmatpush1.bf16.msra.mxu0 %v6511
      %6524 = vmatprep.subr.bf16.mxu0 0
      %6525 = vmatpush1.bf16.msra.mxu0 %v6512
      %6526 = vmatprep.subr.bf16.mxu0 0
      %6527 = vmatpush1.bf16.msra.mxu0 %v6513
      %6528 = vmatprep.subr.bf16.mxu0 0
      %6529 = vmatpush1.bf16.msra.mxu0 %v6514
      %6530 = vmatprep.subr.bf16.mxu0 0
      %6531 = vmatpush1.bf16.msra.mxu0 0
      %6532 = vmatprep.subr.bf16.mxu0 0
      %6533 = vmatpush1.bf16.msra.mxu0 0
      %6534 = vmatprep.subr.bf16.mxu0 0
      %6535 = vmatpush1.bf16.msra.mxu0 0
      %6536 = vmatprep.subr.bf16.mxu0 0
      %6537 = vmatpush1.bf16.msra.mxu0 0
      %6538 = vmatprep.subr.bf16.mxu0 0
      %6539 = vmatpush1.bf16.msra.mxu0 0
      %6540 = vmatprep.subr.bf16.mxu0 0
      %6541 = vmatpush1.bf16.msra.mxu0 0
      %6542 = vmatprep.subr.bf16.mxu0 0
      %6543 = vmatpush1.bf16.msra.mxu0 0
      %6544 = vmatprep.subr.bf16.mxu0 0
      %6545 = vmatpush1.bf16.msra.mxu0 0
      %6546 = vmatprep.subr.bf16.mxu0 0
      %6547 = vmatpush1.bf16.msra.mxu0 0
      %6548 = vmatprep.subr.bf16.mxu0 0
      %6549 = vmatpush1.bf16.msra.mxu0 0
      %6550 = vmatprep.subr.bf16.mxu0 0
      %6551 = vmatpush1.bf16.msra.mxu0 0
      %6552 = vmatprep.subr.bf16.mxu0 0
      %6553 = vmatpush1.bf16.msra.mxu0 0
      %6554 = vmatprep.mubr.bf16.mxu0 0
      %6555 = vmatmul.mubr.bf16.gmra.mrb[0].mxu0 %v6520
      %v6556 = vpop.f32.mrb[0].mxu0
      %v6557 = vadd.f32 0.0, %v6556
      %v6558 = vpop.f32.mrb[0].mxu0
      %v6559 = vpop.f32.mrb[0].mxu0
      %v6560 = vpop.f32.mrb[0].mxu0
      %6561 = vdwg.mxu0
      %6563 = vrot.lane.b32.xlu0 %v3822, 64
      %v6564 = vpop.permute.xlu0 %6563
      %v6573 = vunpack.c.l.b16 %v4103
      %v6574 = vunpack.c.l.b16 %v4104
      %v6575 = vunpack.c.l.b16 %v4105
      %v6576 = vunpack.c.l.b16 %v4106
      %v6577 = vunpack.c.l.b16 %v4107
      %v6578 = vunpack.c.l.b16 %v4108
      %v6579 = vunpack.c.l.b16 %v4109
      %v6580 = vunpack.c.l.b16 %v4110
      %v6581 = vpack.c.b16 %v6574, %v6573
      %v6582 = vpack.c.b16 %v6576, %v6575
      %v6583 = vpack.c.b16 %v6578, %v6577
      %v6584 = vpack.c.b16 %v6580, %v6579
      %v6590 = vsel %vm4138, %v6564, 0
      %6592 = vmatprep.subr.bf16.mxu0 0
      %6593 = vmatpush1.bf16.msra.mxu0 %v6581
      %6594 = vmatprep.subr.bf16.mxu0 0
      %6595 = vmatpush1.bf16.msra.mxu0 %v6582
      %6596 = vmatprep.subr.bf16.mxu0 0
      %6597 = vmatpush1.bf16.msra.mxu0 %v6583
      %6598 = vmatprep.subr.bf16.mxu0 0
      %6599 = vmatpush1.bf16.msra.mxu0 %v6584
      %6600 = vmatprep.subr.bf16.mxu0 0
      %6601 = vmatpush1.bf16.msra.mxu0 0
      %6602 = vmatprep.subr.bf16.mxu0 0
      %6603 = vmatpush1.bf16.msra.mxu0 0
      %6604 = vmatprep.subr.bf16.mxu0 0
      %6605 = vmatpush1.bf16.msra.mxu0 0
      %6606 = vmatprep.subr.bf16.mxu0 0
      %6607 = vmatpush1.bf16.msra.mxu0 0
      %6608 = vmatprep.subr.bf16.mxu0 0
      %6609 = vmatpush1.bf16.msra.mxu0 0
      %6610 = vmatprep.subr.bf16.mxu0 0
      %6611 = vmatpush1.bf16.msra.mxu0 0
      %6612 = vmatprep.subr.bf16.mxu0 0
      %6613 = vmatpush1.bf16.msra.mxu0 0
      %6614 = vmatprep.subr.bf16.mxu0 0
      %6615 = vmatpush1.bf16.msra.mxu0 0
      %6616 = vmatprep.subr.bf16.mxu0 0
      %6617 = vmatpush1.bf16.msra.mxu0 0
      %6618 = vmatprep.subr.bf16.mxu0 0
      %6619 = vmatpush1.bf16.msra.mxu0 0
      %6620 = vmatprep.subr.bf16.mxu0 0
      %6621 = vmatpush1.bf16.msra.mxu0 0
      %6622 = vmatprep.subr.bf16.mxu0 0
      %6623 = vmatpush1.bf16.msra.mxu0 0
      %6624 = vmatprep.mubr.bf16.mxu0 0
      %6625 = vmatmul.mubr.bf16.gmra.mrb[0].mxu0 %v6590
      %v6626 = vpop.f32.mrb[0].mxu0
      %v6627 = vadd.f32 0.0, %v6626
      %v6628 = vpop.f32.mrb[0].mxu0
      %v6629 = vpop.f32.mrb[0].mxu0
      %v6630 = vpop.f32.mrb[0].mxu0
      %6631 = vdwg.mxu0
      %v6668 = vrot.slane %v4177, 2
      %v6669 = vrot.slane %v4247, 2
      %v6670 = vrot.slane %v4317, 2
      %v6671 = vrot.slane %v4387, 2
      %v6672 = vrot.slane %v4457, 2
      %v6673 = vrot.slane %v4527, 2
      %v6674 = vrot.slane %v4597, 2
      %v6675 = vrot.slane %v4667, 2
      %v6676 = vrot.slane %v4737, 2
      %v6677 = vrot.slane %v4807, 2
      %v6678 = vrot.slane %v4877, 2
      %v6679 = vrot.slane %v4947, 2
      %v6680 = vrot.slane %v5017, 2
      %v6681 = vrot.slane %v5087, 2
      %v6682 = vrot.slane %v5157, 2
      %v6683 = vrot.slane %v5227, 2
      %v6684 = vrot.slane %v5297, 2
      %v6685 = vrot.slane %v5367, 2
      %v6686 = vrot.slane %v5437, 2
      %v6687 = vrot.slane %v5507, 2
      %v6688 = vrot.slane %v5577, 2
      %v6689 = vrot.slane %v5647, 2
      %v6690 = vrot.slane %v5717, 2
      %v6691 = vrot.slane %v5787, 2
      %v6692 = vrot.slane %v5857, 2
      %v6693 = vrot.slane %v5927, 2
      %v6694 = vrot.slane %v5997, 2
      %v6695 = vrot.slane %v6067, 2
      %v6696 = vrot.slane %v6137, 2
      %v6697 = vrot.slane %v6207, 2
      %v6698 = vrot.slane %v6277, 2
      %v6699 = vrot.slane %v6347, 2
      %v6700 = vrot.slane %v6417, 2
      %v6701 = vrot.slane %v6487, 2
      %v6702 = vrot.slane %v6557, 2
      %v6703 = vrot.slane %v6627, 2
      %6704 = vrot.lane.b32.xlu0 %v6668, 96
      %v6705 = vpop.permute.xlu0 %6704
      %6706 = vrot.lane.b32.xlu0 %v6669, 96
      %v6707 = vpop.permute.xlu0 %6706
      %6708 = vrot.lane.b32.xlu0 %v6670, 96
      %v6709 = vpop.permute.xlu0 %6708
      %6710 = vrot.lane.b32.xlu0 %v6671, 96
      %v6711 = vpop.permute.xlu0 %6710
      %6712 = vrot.lane.b32.xlu0 %v6672, 96
      %v6713 = vpop.permute.xlu0 %6712
      %6714 = vrot.lane.b32.xlu0 %v6673, 96
      %v6715 = vpop.permute.xlu0 %6714
      %6716 = vrot.lane.b32.xlu0 %v6674, 96
      %v6717 = vpop.permute.xlu0 %6716
      %6718 = vrot.lane.b32.xlu0 %v6675, 96
      %v6719 = vpop.permute.xlu0 %6718
      %6720 = vrot.lane.b32.xlu0 %v6676, 96
      %v6721 = vpop.permute.xlu0 %6720
      %6722 = vrot.lane.b32.xlu0 %v6677, 96
      %v6723 = vpop.permute.xlu0 %6722
      %6724 = vrot.lane.b32.xlu0 %v6678, 96
      %v6725 = vpop.permute.xlu0 %6724
      %6726 = vrot.lane.b32.xlu0 %v6679, 96
      %v6727 = vpop.permute.xlu0 %6726
      %6728 = vrot.lane.b32.xlu0 %v6680, 96
      %v6729 = vpop.permute.xlu0 %6728
      %6730 = vrot.lane.b32.xlu0 %v6681, 96
      %v6731 = vpop.permute.xlu0 %6730
      %6732 = vrot.lane.b32.xlu0 %v6682, 96
      %v6733 = vpop.permute.xlu0 %6732
      %6734 = vrot.lane.b32.xlu0 %v6683, 96
      %v6735 = vpop.permute.xlu0 %6734
      %6736 = vrot.lane.b32.xlu0 %v6684, 96
      %v6737 = vpop.permute.xlu0 %6736
      %6738 = vrot.lane.b32.xlu0 %v6685, 96
      %v6739 = vpop.permute.xlu0 %6738
      %6740 = vrot.lane.b32.xlu0 %v6686, 96
      %v6741 = vpop.permute.xlu0 %6740
      %6742 = vrot.lane.b32.xlu0 %v6687, 96
      %v6743 = vpop.permute.xlu0 %6742
      %6744 = vrot.lane.b32.xlu0 %v6688, 96
      %v6745 = vpop.permute.xlu0 %6744
      %6746 = vrot.lane.b32.xlu0 %v6689, 96
      %v6747 = vpop.permute.xlu0 %6746
      %6748 = vrot.lane.b32.xlu0 %v6690, 96
      %v6749 = vpop.permute.xlu0 %6748
      %6750 = vrot.lane.b32.xlu0 %v6691, 96
      %v6751 = vpop.permute.xlu0 %6750
      %6752 = vrot.lane.b32.xlu0 %v6692, 96
      %v6753 = vpop.permute.xlu0 %6752
      %6754 = vrot.lane.b32.xlu0 %v6693, 96
      %v6755 = vpop.permute.xlu0 %6754
      %6756 = vrot.lane.b32.xlu0 %v6694, 96
      %v6757 = vpop.permute.xlu0 %6756
      %6758 = vrot.lane.b32.xlu0 %v6695, 96
      %v6759 = vpop.permute.xlu0 %6758
      %6760 = vrot.lane.b32.xlu0 %v6696, 96
      %v6761 = vpop.permute.xlu0 %6760
      %6762 = vrot.lane.b32.xlu0 %v6697, 96
      %v6763 = vpop.permute.xlu0 %6762
      %6764 = vrot.lane.b32.xlu0 %v6698, 96
      %v6765 = vpop.permute.xlu0 %6764
      %6766 = vrot.lane.b32.xlu0 %v6699, 96
      %v6767 = vpop.permute.xlu0 %6766
      %6768 = vrot.lane.b32.xlu0 %v6700, 96
      %v6769 = vpop.permute.xlu0 %6768
      %6770 = vrot.lane.b32.xlu0 %v6701, 96
      %v6771 = vpop.permute.xlu0 %6770
      %6772 = vrot.lane.b32.xlu0 %v6702, 96
      %v6773 = vpop.permute.xlu0 %6772
      %6774 = vrot.lane.b32.xlu0 %v6703, 96
      %v6775 = vpop.permute.xlu0 %6774
      %v6812 = vsub.f32 %v4177, %v6705
      %v6813 = vsub.f32 %v4247, %v6707
      %v6814 = vsub.f32 %v4317, %v6709
      %v6815 = vsub.f32 %v4387, %v6711
      %v6816 = vsub.f32 %v4457, %v6713
      %v6817 = vsub.f32 %v4527, %v6715
      %v6818 = vsub.f32 %v4597, %v6717
      %v6819 = vsub.f32 %v4667, %v6719
      %v6820 = vsub.f32 %v4737, %v6721
      %v6821 = vsub.f32 %v4807, %v6723
      %v6822 = vsub.f32 %v4877, %v6725
      %v6823 = vsub.f32 %v4947, %v6727
      %v6824 = vsub.f32 %v5017, %v6729
      %v6825 = vsub.f32 %v5087, %v6731
      %v6826 = vsub.f32 %v5157, %v6733
      %v6827 = vsub.f32 %v5227, %v6735
      %v6828 = vsub.f32 %v5297, %v6737
      %v6829 = vsub.f32 %v5367, %v6739
      %v6830 = vsub.f32 %v5437, %v6741
      %v6831 = vsub.f32 %v5507, %v6743
      %v6832 = vsub.f32 %v5577, %v6745
      %v6833 = vsub.f32 %v5647, %v6747
      %v6834 = vsub.f32 %v5717, %v6749
      %v6835 = vsub.f32 %v5787, %v6751
      %v6836 = vsub.f32 %v5857, %v6753
      %v6837 = vsub.f32 %v5927, %v6755
      %v6838 = vsub.f32 %v5997, %v6757
      %v6839 = vsub.f32 %v6067, %v6759
      %v6840 = vsub.f32 %v6137, %v6761
      %v6841 = vsub.f32 %v6207, %v6763
      %v6842 = vsub.f32 %v6277, %v6765
      %v6843 = vsub.f32 %v6347, %v6767
      %v6844 = vsub.f32 %v6417, %v6769
      %v6845 = vsub.f32 %v6487, %v6771
      %v6846 = vsub.f32 %v6557, %v6773
      %v6847 = vsub.f32 %v6627, %v6775
      %6848 = vrot.lane.b32.xlu0 %v6668, 32
      %v6849 = vpop.permute.xlu0 %6848
      %6850 = vrot.lane.b32.xlu0 %v6669, 32
      %v6851 = vpop.permute.xlu0 %6850
      %6852 = vrot.lane.b32.xlu0 %v6670, 32
      %v6853 = vpop.permute.xlu0 %6852
      %6854 = vrot.lane.b32.xlu0 %v6671, 32
      %v6855 = vpop.permute.xlu0 %6854
      %6856 = vrot.lane.b32.xlu0 %v6672, 32
      %v6857 = vpop.permute.xlu0 %6856
      %6858 = vrot.lane.b32.xlu0 %v6673, 32
      %v6859 = vpop.permute.xlu0 %6858
      %6860 = vrot.lane.b32.xlu0 %v6674, 32
      %v6861 = vpop.permute.xlu0 %6860
      %6862 = vrot.lane.b32.xlu0 %v6675, 32
      %v6863 = vpop.permute.xlu0 %6862
      %6864 = vrot.lane.b32.xlu0 %v6676, 32
      %v6865 = vpop.permute.xlu0 %6864
      %6866 = vrot.lane.b32.xlu0 %v6677, 32
      %v6867 = vpop.permute.xlu0 %6866
      %6868 = vrot.lane.b32.xlu0 %v6678, 32
      %v6869 = vpop.permute.xlu0 %6868
      %6870 = vrot.lane.b32.xlu0 %v6679, 32
      %v6871 = vpop.permute.xlu0 %6870
      %6872 = vrot.lane.b32.xlu0 %v6680, 32
      %v6873 = vpop.permute.xlu0 %6872
      %6874 = vrot.lane.b32.xlu0 %v6681, 32
      %v6875 = vpop.permute.xlu0 %6874
      %6876 = vrot.lane.b32.xlu0 %v6682, 32
      %v6877 = vpop.permute.xlu0 %6876
      %6878 = vrot.lane.b32.xlu0 %v6683, 32
      %v6879 = vpop.permute.xlu0 %6878
      %6880 = vrot.lane.b32.xlu0 %v6684, 32
      %v6881 = vpop.permute.xlu0 %6880
      %6882 = vrot.lane.b32.xlu0 %v6685, 32
      %v6883 = vpop.permute.xlu0 %6882
      %6884 = vrot.lane.b32.xlu0 %v6686, 32
      %v6885 = vpop.permute.xlu0 %6884
      %6886 = vrot.lane.b32.xlu0 %v6687, 32
      %v6887 = vpop.permute.xlu0 %6886
      %6888 = vrot.lane.b32.xlu0 %v6688, 32
      %v6889 = vpop.permute.xlu0 %6888
      %6890 = vrot.lane.b32.xlu0 %v6689, 32
      %v6891 = vpop.permute.xlu0 %6890
      %6892 = vrot.lane.b32.xlu0 %v6690, 32
      %v6893 = vpop.permute.xlu0 %6892
      %6894 = vrot.lane.b32.xlu0 %v6691, 32
      %v6895 = vpop.permute.xlu0 %6894
      %6896 = vrot.lane.b32.xlu0 %v6692, 32
      %v6897 = vpop.permute.xlu0 %6896
      %6898 = vrot.lane.b32.xlu0 %v6693, 32
      %v6899 = vpop.permute.xlu0 %6898
      %6900 = vrot.lane.b32.xlu0 %v6694, 32
      %v6901 = vpop.permute.xlu0 %6900
      %6902 = vrot.lane.b32.xlu0 %v6695, 32
      %v6903 = vpop.permute.xlu0 %6902
      %6904 = vrot.lane.b32.xlu0 %v6696, 32
      %v6905 = vpop.permute.xlu0 %6904
      %6906 = vrot.lane.b32.xlu0 %v6697, 32
      %v6907 = vpop.permute.xlu0 %6906
      %6908 = vrot.lane.b32.xlu0 %v6698, 32
      %v6909 = vpop.permute.xlu0 %6908
      %6910 = vrot.lane.b32.xlu0 %v6699, 32
      %v6911 = vpop.permute.xlu0 %6910
      %6912 = vrot.lane.b32.xlu0 %v6700, 32
      %v6913 = vpop.permute.xlu0 %6912
      %6914 = vrot.lane.b32.xlu0 %v6701, 32
      %v6915 = vpop.permute.xlu0 %6914
      %6916 = vrot.lane.b32.xlu0 %v6702, 32
      %v6917 = vpop.permute.xlu0 %6916
      %6918 = vrot.lane.b32.xlu0 %v6703, 32
      %v6919 = vpop.permute.xlu0 %6918
      %v6956 = vadd.f32 %v4177, %v6849
      %v6957 = vadd.f32 %v4247, %v6851
      %v6958 = vadd.f32 %v4317, %v6853
      %v6959 = vadd.f32 %v4387, %v6855
      %v6960 = vadd.f32 %v4457, %v6857
      %v6961 = vadd.f32 %v4527, %v6859
      %v6962 = vadd.f32 %v4597, %v6861
      %v6963 = vadd.f32 %v4667, %v6863
      %v6964 = vadd.f32 %v4737, %v6865
      %v6965 = vadd.f32 %v4807, %v6867
      %v6966 = vadd.f32 %v4877, %v6869
      %v6967 = vadd.f32 %v4947, %v6871
      %v6968 = vadd.f32 %v5017, %v6873
      %v6969 = vadd.f32 %v5087, %v6875
      %v6970 = vadd.f32 %v5157, %v6877
      %v6971 = vadd.f32 %v5227, %v6879
      %v6972 = vadd.f32 %v5297, %v6881
      %v6973 = vadd.f32 %v5367, %v6883
      %v6974 = vadd.f32 %v5437, %v6885
      %v6975 = vadd.f32 %v5507, %v6887
      %v6976 = vadd.f32 %v5577, %v6889
      %v6977 = vadd.f32 %v5647, %v6891
      %v6978 = vadd.f32 %v5717, %v6893
      %v6979 = vadd.f32 %v5787, %v6895
      %v6980 = vadd.f32 %v5857, %v6897
      %v6981 = vadd.f32 %v5927, %v6899
      %v6982 = vadd.f32 %v5997, %v6901
      %v6983 = vadd.f32 %v6067, %v6903
      %v6984 = vadd.f32 %v6137, %v6905
      %v6985 = vadd.f32 %v6207, %v6907
      %v6986 = vadd.f32 %v6277, %v6909
      %v6987 = vadd.f32 %v6347, %v6911
      %v6988 = vadd.f32 %v6417, %v6913
      %v6989 = vadd.f32 %v6487, %v6915
      %v6990 = vadd.f32 %v6557, %v6917
      %v6991 = vadd.f32 %v6627, %v6919
      %v6992 = vadd.f32 %v2954, %v6812
      %v6993 = vadd.f32 %v2955, %v6813
      %v6994 = vadd.f32 %v2956, %v6814
      %v6995 = vadd.f32 %v2957, %v6815
      %v6996 = vadd.f32 %v2958, %v6816
      %v6997 = vadd.f32 %v2959, %v6817
      %v6998 = vadd.f32 %v2960, %v6818
      %v6999 = vadd.f32 %v2961, %v6819
      %v7000 = vadd.f32 %v2962, %v6820
      %v7001 = vadd.f32 %v2963, %v6821
      %v7002 = vadd.f32 %v2964, %v6822
      %v7003 = vadd.f32 %v2965, %v6823
      %v7004 = vadd.f32 %v2966, %v6824
      %v7005 = vadd.f32 %v2967, %v6825
      %v7006 = vadd.f32 %v2968, %v6826
      %v7007 = vadd.f32 %v2969, %v6827
      %v7008 = vadd.f32 %v2970, %v6828
      %v7009 = vadd.f32 %v2971, %v6829
      %v7010 = vadd.f32 %v2972, %v6830
      %v7011 = vadd.f32 %v2973, %v6831
      %v7012 = vadd.f32 %v2974, %v6832
      %v7013 = vadd.f32 %v2975, %v6833
      %v7014 = vadd.f32 %v2976, %v6834
      %v7015 = vadd.f32 %v2977, %v6835
      %v7016 = vadd.f32 %v2978, %v6836
      %v7017 = vadd.f32 %v2979, %v6837
      %v7018 = vadd.f32 %v2980, %v6838
      %v7019 = vadd.f32 %v2981, %v6839
      %v7020 = vadd.f32 %v2982, %v6840
      %v7021 = vadd.f32 %v2983, %v6841
      %v7022 = vadd.f32 %v2984, %v6842
      %v7023 = vadd.f32 %v2985, %v6843
      %v7024 = vadd.f32 %v2986, %v6844
      %v7025 = vadd.f32 %v2987, %v6845
      %v7026 = vadd.f32 %v2988, %v6846
      %v7027 = vadd.f32 %v2989, %v6847
      %v7028 = vadd.f32 %v3098, %v6956
      %v7029 = vadd.f32 %v3099, %v6957
      %v7030 = vadd.f32 %v3100, %v6958
      %v7031 = vadd.f32 %v3101, %v6959
      %v7032 = vadd.f32 %v3102, %v6960
      %v7033 = vadd.f32 %v3103, %v6961
      %v7034 = vadd.f32 %v3104, %v6962
      %v7035 = vadd.f32 %v3105, %v6963
      %v7036 = vadd.f32 %v3106, %v6964
      %v7037 = vadd.f32 %v3107, %v6965
      %v7038 = vadd.f32 %v3108, %v6966
      %v7039 = vadd.f32 %v3109, %v6967
      %v7040 = vadd.f32 %v3110, %v6968
      %v7041 = vadd.f32 %v3111, %v6969
      %v7042 = vadd.f32 %v3112, %v6970
      %v7043 = vadd.f32 %v3113, %v6971
      %v7044 = vadd.f32 %v3114, %v6972
      %v7045 = vadd.f32 %v3115, %v6973
      %v7046 = vadd.f32 %v3116, %v6974
      %v7047 = vadd.f32 %v3117, %v6975
      %v7048 = vadd.f32 %v3118, %v6976
      %v7049 = vadd.f32 %v3119, %v6977
      %v7050 = vadd.f32 %v3120, %v6978
      %v7051 = vadd.f32 %v3121, %v6979
      %v7052 = vadd.f32 %v3122, %v6980
      %v7053 = vadd.f32 %v3123, %v6981
      %v7054 = vadd.f32 %v3124, %v6982
      %v7055 = vadd.f32 %v3125, %v6983
      %v7056 = vadd.f32 %v3126, %v6984
      %v7057 = vadd.f32 %v3127, %v6985
      %v7058 = vadd.f32 %v3128, %v6986
      %v7059 = vadd.f32 %v3129, %v6987
      %v7060 = vadd.f32 %v3130, %v6988
      %v7061 = vadd.f32 %v3131, %v6989
      %v7062 = vadd.f32 %v3132, %v6990
      %v7063 = vadd.f32 %v3133, %v6991
      %v7100 = vrot.slane %v7028, 6
      %v7101 = vrot.slane %v7029, 6
      %v7102 = vrot.slane %v7030, 6
      %v7103 = vrot.slane %v7031, 6
      %v7104 = vrot.slane %v7032, 6
      %v7105 = vrot.slane %v7033, 6
      %v7106 = vrot.slane %v7034, 6
      %v7107 = vrot.slane %v7035, 6
      %v7108 = vrot.slane %v7036, 6
      %v7109 = vrot.slane %v7037, 6
      %v7110 = vrot.slane %v7038, 6
      %v7111 = vrot.slane %v7039, 6
      %v7112 = vrot.slane %v7040, 6
      %v7113 = vrot.slane %v7041, 6
      %v7114 = vrot.slane %v7042, 6
      %v7115 = vrot.slane %v7043, 6
      %v7116 = vrot.slane %v7044, 6
      %v7117 = vrot.slane %v7045, 6
      %v7118 = vrot.slane %v7046, 6
      %v7119 = vrot.slane %v7047, 6
      %v7120 = vrot.slane %v7048, 6
      %v7121 = vrot.slane %v7049, 6
      %v7122 = vrot.slane %v7050, 6
      %v7123 = vrot.slane %v7051, 6
      %v7124 = vrot.slane %v7052, 6
      %v7125 = vrot.slane %v7053, 6
      %v7126 = vrot.slane %v7054, 6
      %v7127 = vrot.slane %v7055, 6
      %v7128 = vrot.slane %v7056, 6
      %v7129 = vrot.slane %v7057, 6
      %v7130 = vrot.slane %v7058, 6
      %v7131 = vrot.slane %v7059, 6
      %v7132 = vrot.slane %v7060, 6
      %v7133 = vrot.slane %v7061, 6
      %v7134 = vrot.slane %v7062, 6
      %v7135 = vrot.slane %v7063, 6
      %7136 = vrot.lane.b32.xlu0 %v7100, 96
      %v7137 = vpop.permute.xlu0 %7136
      %7138 = vrot.lane.b32.xlu0 %v7101, 96
      %v7139 = vpop.permute.xlu0 %7138
      %7140 = vrot.lane.b32.xlu0 %v7102, 96
      %v7141 = vpop.permute.xlu0 %7140
      %7142 = vrot.lane.b32.xlu0 %v7103, 96
      %v7143 = vpop.permute.xlu0 %7142
      %7144 = vrot.lane.b32.xlu0 %v7104, 96
      %v7145 = vpop.permute.xlu0 %7144
      %7146 = vrot.lane.b32.xlu0 %v7105, 96
      %v7147 = vpop.permute.xlu0 %7146
      %7148 = vrot.lane.b32.xlu0 %v7106, 96
      %v7149 = vpop.permute.xlu0 %7148
      %7150 = vrot.lane.b32.xlu0 %v7107, 96
      %v7151 = vpop.permute.xlu0 %7150
      %7152 = vrot.lane.b32.xlu0 %v7108, 96
      %v7153 = vpop.permute.xlu0 %7152
      %7154 = vrot.lane.b32.xlu0 %v7109, 96
      %v7155 = vpop.permute.xlu0 %7154
      %7156 = vrot.lane.b32.xlu0 %v7110, 96
      %v7157 = vpop.permute.xlu0 %7156
      %7158 = vrot.lane.b32.xlu0 %v7111, 96
      %v7159 = vpop.permute.xlu0 %7158
      %7160 = vrot.lane.b32.xlu0 %v7112, 96
      %v7161 = vpop.permute.xlu0 %7160
      %7162 = vrot.lane.b32.xlu0 %v7113, 96
      %v7163 = vpop.permute.xlu0 %7162
      %7164 = vrot.lane.b32.xlu0 %v7114, 96
      %v7165 = vpop.permute.xlu0 %7164
      %7166 = vrot.lane.b32.xlu0 %v7115, 96
      %v7167 = vpop.permute.xlu0 %7166
      %7168 = vrot.lane.b32.xlu0 %v7116, 96
      %v7169 = vpop.permute.xlu0 %7168
      %7170 = vrot.lane.b32.xlu0 %v7117, 96
      %v7171 = vpop.permute.xlu0 %7170
      %7172 = vrot.lane.b32.xlu0 %v7118, 96
      %v7173 = vpop.permute.xlu0 %7172
      %7174 = vrot.lane.b32.xlu0 %v7119, 96
      %v7175 = vpop.permute.xlu0 %7174
      %7176 = vrot.lane.b32.xlu0 %v7120, 96
      %v7177 = vpop.permute.xlu0 %7176
      %7178 = vrot.lane.b32.xlu0 %v7121, 96
      %v7179 = vpop.permute.xlu0 %7178
      %7180 = vrot.lane.b32.xlu0 %v7122, 96
      %v7181 = vpop.permute.xlu0 %7180
      %7182 = vrot.lane.b32.xlu0 %v7123, 96
      %v7183 = vpop.permute.xlu0 %7182
      %7184 = vrot.lane.b32.xlu0 %v7124, 96
      %v7185 = vpop.permute.xlu0 %7184
      %7186 = vrot.lane.b32.xlu0 %v7125, 96
      %v7187 = vpop.permute.xlu0 %7186
      %7188 = vrot.lane.b32.xlu0 %v7126, 96
      %v7189 = vpop.permute.xlu0 %7188
      %7190 = vrot.lane.b32.xlu0 %v7127, 96
      %v7191 = vpop.permute.xlu0 %7190
      %7192 = vrot.lane.b32.xlu0 %v7128, 96
      %v7193 = vpop.permute.xlu0 %7192
      %7194 = vrot.lane.b32.xlu0 %v7129, 96
      %v7195 = vpop.permute.xlu0 %7194
      %7196 = vrot.lane.b32.xlu0 %v7130, 96
      %v7197 = vpop.permute.xlu0 %7196
      %7198 = vrot.lane.b32.xlu0 %v7131, 96
      %v7199 = vpop.permute.xlu0 %7198
      %7200 = vrot.lane.b32.xlu0 %v7132, 96
      %v7201 = vpop.permute.xlu0 %7200
      %7202 = vrot.lane.b32.xlu0 %v7133, 96
      %v7203 = vpop.permute.xlu0 %7202
      %7204 = vrot.lane.b32.xlu0 %v7134, 96
      %v7205 = vpop.permute.xlu0 %7204
      %7206 = vrot.lane.b32.xlu0 %v7135, 96
      %v7207 = vpop.permute.xlu0 %7206
      %v7244 = vsel %vm3750, %v6992, %v7137
      %v7245 = vsel %vm3750, %v6993, %v7139
      %v7246 = vsel %vm3750, %v6994, %v7141
      %v7247 = vsel %vm3750, %v6995, %v7143
      %v7248 = vsel %vm3750, %v6996, %v7145
      %v7249 = vsel %vm3750, %v6997, %v7147
      %v7250 = vsel %vm3750, %v6998, %v7149
      %v7251 = vsel %vm3750, %v6999, %v7151
      %v7252 = vsel %vm3750, %v7000, %v7153
      %v7253 = vsel %vm3750, %v7001, %v7155
      %v7254 = vsel %vm3750, %v7002, %v7157
      %v7255 = vsel %vm3750, %v7003, %v7159
      %v7256 = vsel %vm3750, %v7004, %v7161
      %v7257 = vsel %vm3750, %v7005, %v7163
      %v7258 = vsel %vm3750, %v7006, %v7165
      %v7259 = vsel %vm3750, %v7007, %v7167
      %v7260 = vsel %vm3750, %v7008, %v7169
      %v7261 = vsel %vm3750, %v7009, %v7171
      %v7262 = vsel %vm3750, %v7010, %v7173
      %v7263 = vsel %vm3750, %v7011, %v7175
      %v7264 = vsel %vm3750, %v7012, %v7177
      %v7265 = vsel %vm3750, %v7013, %v7179
      %v7266 = vsel %vm3750, %v7014, %v7181
      %v7267 = vsel %vm3750, %v7015, %v7183
      %v7268 = vsel %vm3750, %v7016, %v7185
      %v7269 = vsel %vm3750, %v7017, %v7187
      %v7270 = vsel %vm3750, %v7018, %v7189
      %v7271 = vsel %vm3750, %v7019, %v7191
      %v7272 = vsel %vm3750, %v7020, %v7193
      %v7273 = vsel %vm3750, %v7021, %v7195
      %v7274 = vsel %vm3750, %v7022, %v7197
      %v7275 = vsel %vm3750, %v7023, %v7199
      %v7276 = vsel %vm3750, %v7024, %v7201
      %v7277 = vsel %vm3750, %v7025, %v7203
      %v7278 = vsel %vm3750, %v7026, %v7205
      %v7279 = vsel %vm3750, %v7027, %v7207
      %vm7280 = vcmask 257024
      %7281 = vst.msk [vmem:[%s249] sm:$0xf] %vm7280, %v7244
      %7282 = vst.msk [vmem:[%s249 + $0x4] sm:$0xf] %vm7280, %v7245
      %7283 = vst.msk [vmem:[%s249 + $0x8] sm:$0xf] %vm7280, %v7246
      %7284 = vst.msk [vmem:[%s249 + $0xc] sm:$0xf] %vm7280, %v7247
      %7285 = vst.msk [vmem:[%s249 + $0x10] sm:$0xf] %vm7280, %v7248
      %7286 = vst.msk [vmem:[%s249 + $0x14] sm:$0xf] %vm7280, %v7249
      %7287 = vst.msk [vmem:[%s249 + $0x18] sm:$0xf] %vm7280, %v7250
      %7288 = vst.msk [vmem:[%s249 + $0x1c] sm:$0xf] %vm7280, %v7251
      %7289 = vst.msk [vmem:[%s249 + $0x20] sm:$0xf] %vm7280, %v7252
      %7290 = vst.msk [vmem:[%s249 + $0x24] sm:$0xf] %vm7280, %v7253
      %7291 = vst.msk [vmem:[%s249 + $0x28] sm:$0xf] %vm7280, %v7254
      %7292 = vst.msk [vmem:[%s249 + $0x2c] sm:$0xf] %vm7280, %v7255
      %7293 = vst.msk [vmem:[%s249 + $0x30] sm:$0xf] %vm7280, %v7256
      %7294 = vst.msk [vmem:[%s249 + $0x34] sm:$0xf] %vm7280, %v7257
      %7295 = vst.msk [vmem:[%s249 + $0x38] sm:$0xf] %vm7280, %v7258
      %7296 = vst.msk [vmem:[%s249 + $0x3c] sm:$0xf] %vm7280, %v7259
      %7297 = vst.msk [vmem:[%s249 + $0x40] sm:$0xf] %vm7280, %v7260
      %7298 = vst.msk [vmem:[%s249 + $0x44] sm:$0xf] %vm7280, %v7261
      %7299 = vst.msk [vmem:[%s249 + $0x48] sm:$0xf] %vm7280, %v7262
      %7300 = vst.msk [vmem:[%s249 + $0x4c] sm:$0xf] %vm7280, %v7263
      %7301 = vst.msk [vmem:[%s249 + $0x50] sm:$0xf] %vm7280, %v7264
      %7302 = vst.msk [vmem:[%s249 + $0x54] sm:$0xf] %vm7280, %v7265
      %7303 = vst.msk [vmem:[%s249 + $0x58] sm:$0xf] %vm7280, %v7266
      %7304 = vst.msk [vmem:[%s249 + $0x5c] sm:$0xf] %vm7280, %v7267
      %7305 = vst.msk [vmem:[%s249 + $0x60] sm:$0xf] %vm7280, %v7268
      %7306 = vst.msk [vmem:[%s249 + $0x64] sm:$0xf] %vm7280, %v7269
      %7307 = vst.msk [vmem:[%s249 + $0x68] sm:$0xf] %vm7280, %v7270
      %7308 = vst.msk [vmem:[%s249 + $0x6c] sm:$0xf] %vm7280, %v7271
      %7309 = vst.msk [vmem:[%s249 + $0x70] sm:$0xf] %vm7280, %v7272
      %7310 = vst.msk [vmem:[%s249 + $0x74] sm:$0xf] %vm7280, %v7273
      %7311 = vst.msk [vmem:[%s249 + $0x78] sm:$0xf] %vm7280, %v7274
      %7312 = vst.msk [vmem:[%s249 + $0x7c] sm:$0xf] %vm7280, %v7275
      %7313 = vst.msk [vmem:[%s249 + $0x80] sm:$0xf] %vm7280, %v7276
      %7314 = vst.msk [vmem:[%s249 + $0x84] sm:$0xf] %vm7280, %v7277
      %7315 = vst.msk [vmem:[%s249 + $0x88] sm:$0xf] %vm7280, %v7278
      %7316 = vst.msk [vmem:[%s249 + $0x8c] sm:$0xf] %vm7280, %v7279
      %s7317 = smul.u32 36, %s15
      %p7318 = scmp.lt.s32.totalorder %s7317, 71
      %s7319 = scalar_select %p7318, %s7317, 71
      %s7320 = smul.addr %s7319, 4
      %s7321 = scalar_lea.vmem %s4, %s7320
      // Predicated region
      $region37: #{freqmoe_forward.11} parent=35 // pred_check
        %p7322 = pneg %p132
      $region38: #{freqmoe_forward.11} parent=35 // pred_check_branch
        %7324 = sbr.rel (%p7322) target = $region40
      $region39: #{freqmoe_forward.11} parent=35 // pred_region
        %s7325 = smul.u32 36, %s15
      $region40: #{freqmoe_forward.11} parent=35 // pred_fallthru
        _
    $region36: #{freqmoe_forward.11} parent=5 // pred_fallthru
      _
    %p7326 = scmp.le.s32.totalorder 2, %s10
    // Predicated region
    $region41: #{freqmoe_forward.11} parent=5 // pred_check
      %p7327 = pneg %p7326
    $region42: #{freqmoe_forward.11} parent=5 // pred_check_branch
      %7329 = sbr.rel (%p7327) target = $region44
    $region43: #{freqmoe_forward.11} parent=5 // pred_region
      %s7330 = ssub.s32 %s10, 2
      // Predicated region
      $region45: #{freqmoe_forward.11} parent=43 // pred_check
        %p7331 = pneg %p138
      $region46: #{freqmoe_forward.11} parent=43 // pred_check_branch
        %7333 = sbr.rel (%p7331) target = $region48
      $region47: #{freqmoe_forward.11} parent=43 // pred_region
        %s7334 = smul.u32 36, %s16
        %p7335 = scmp.lt.s32.totalorder %s7334, 71
        %s7336 = scalar_select %p7335, %s7334, 71
        %s7337 = smul.addr %s7336, 4
        %s7338 = scalar_lea.vmem %s4, %s7337
      $region48: #{freqmoe_forward.11} parent=43 // pred_fallthru
        _
    $region44: #{freqmoe_forward.11} parent=5 // pred_fallthru
      _
  $region6: #{freqmoe_forward.11} parent=0 // loop_footer
    %s14 = sadd.s32 1, %s10
  $region7: #{freqmoe_forward.11} parent=0 // loop_footer_branch
    %9 = sbr.rel target = $region3
  $region8: #{freqmoe_forward.11} parent=0 // loop_exit
    _

// kernel: freqmoe_forward.12
$region0: #{freqmoe_forward.12}
  #allocation0 [shape = 'u32[]', space=smem, size = 0x4, offset = 0x4, fixed_abs, tag = 'smem constant byte address 0x4 - core index']
  #allocation1 [shape = 'u32[144,128]{1,0:T(1,128)}', space=vmem, size = 0x12000, scoped, tag = 'internal scratch']
  %s0 = inlined_call_operand.vmem [shape: f32[648,32], index: 0, kind: input, shape index: {}]
  %s1 = inlined_call_operand.vmem [shape: bf16[32,32], index: 1, kind: input, shape index: {}]
  %s2 = inlined_call_operand.vmem [shape: f32[1,32], index: 2, kind: input, shape index: {}]
  %s3 = inlined_call_operand.vmem [shape: f32[648,32], index: 3, kind: input, shape index: {}]
  %s4 = inlined_call_operand.vmem [shape: f32[648,32], index: 4, kind: output, shape index: {}]
  %s5 = sld [smem:[#allocation0]]
  $region26: #{freqmoe_forward.12} parent=0
    _
  %s7 = ssub.s32 1, %s5
  %s8 = scalar_select 0, %s7, %s5
  // Predicated region
  $region2: #{freqmoe_forward.12} parent=0 // pred_check
    _
  $region3: #{freqmoe_forward.12} parent=0 // pred_check_branch
    %10 = sbr.rel (0) target = $region5
  $region4: #{freqmoe_forward.12} parent=0 // pred_region
    _
  $region5: #{freqmoe_forward.12} parent=0 // pred_fallthru
    _
  // Predicated region
  $region6: #{freqmoe_forward.12} parent=0 // pred_check
    _
  $region7: #{freqmoe_forward.12} parent=0 // pred_check_branch
    %12 = sbr.rel (0) target = $region9
  $region8: #{freqmoe_forward.12} parent=0 // pred_region
    _
  $region9: #{freqmoe_forward.12} parent=0 // pred_fallthru
    _
  // Predicated region
  $region10: #{freqmoe_forward.12} parent=0 // pred_check
    _
  $region11: #{freqmoe_forward.12} parent=0 // pred_check_branch
    %14 = sbr.rel (0) target = $region13
  $region12: #{freqmoe_forward.12} parent=0 // pred_region
    _
  $region13: #{freqmoe_forward.12} parent=0 // pred_fallthru
    _
  // Predicated region
  $region14: #{freqmoe_forward.12} parent=0 // pred_check
    _
  $region15: #{freqmoe_forward.12} parent=0 // pred_check_branch
    %16 = sbr.rel (0) target = $region17
  $region16: #{freqmoe_forward.12} parent=0 // pred_region
    _
  $region17: #{freqmoe_forward.12} parent=0 // pred_fallthru
    _
  %v18 = vld [vmem:[%s0] sm:$0xff]
  %v19 = vld [vmem:[%s0 + $0x8] sm:$0xff]
  %v20 = vld [vmem:[%s0 + $0x10] sm:$0xff]
  %v21 = vld [vmem:[%s0 + $0x18] sm:$0xff]
  %v22 = vld [vmem:[%s0 + $0x20] sm:$0xff]
  %v23 = vld [vmem:[%s0 + $0x28] sm:$0xff]
  %v24 = vld [vmem:[%s0 + $0x30] sm:$0xff]
  %v25 = vld [vmem:[%s0 + $0x38] sm:$0xff]
  %v26 = vld [vmem:[%s0 + $0x40] sm:$0xff]
  %v27 = vld [vmem:[%s0 + $0x48] sm:$0xff]
  %v28 = vld [vmem:[%s0 + $0x50] sm:$0xff]
  %v29 = vld [vmem:[%s0 + $0x58] sm:$0xff]
  %v30 = vld [vmem:[%s0 + $0x60] sm:$0xff]
  %v31 = vld [vmem:[%s0 + $0x68] sm:$0xff]
  %v32 = vld [vmem:[%s0 + $0x70] sm:$0xff]
  %v33 = vld [vmem:[%s0 + $0x78] sm:$0xff]
  %v34 = vld [vmem:[%s0 + $0x80] sm:$0xff]
  %v35 = vld [vmem:[%s0 + $0x88] sm:$0xff]
  %v36 = vld [vmem:[%s0 + $0x90] sm:$0xff]
  %v37 = vld [vmem:[%s0 + $0x98] sm:$0xff]
  %v38 = vld [vmem:[%s0 + $0xa0] sm:$0xff]
  %v39 = vld [vmem:[%s0 + $0xa8] sm:$0xff]
  %v40 = vld [vmem:[%s0 + $0xb0] sm:$0xff]
  %v41 = vld [vmem:[%s0 + $0xb8] sm:$0xff]
  %v42 = vld [vmem:[%s0 + $0xc0] sm:$0xff]
  %v43 = vld [vmem:[%s0 + $0xc8] sm:$0xff]
  %v44 = vld [vmem:[%s0 + $0xd0] sm:$0xff]
  %v45 = vld [vmem:[%s0 + $0xd8] sm:$0xff]
  %v46 = vld [vmem:[%s0 + $0xe0] sm:$0xff]
  %v47 = vld [vmem:[%s0 + $0xe8] sm:$0xff]
  %v48 = vld [vmem:[%s0 + $0xf0] sm:$0xff]
  %v49 = vld [vmem:[%s0 + $0xf8] sm:$0xff]
  %v50 = vld [vmem:[%s0 + $0x100] sm:$0xff]
  %v51 = vld [vmem:[%s0 + $0x108] sm:$0xff]
  %v52 = vld [vmem:[%s0 + $0x110] sm:$0xff]
  %v53 = vld [vmem:[%s0 + $0x118] sm:$0xff]
  %v54 = vld [vmem:[%s0 + $0x120] sm:$0xff]
  %v55 = vld [vmem:[%s0 + $0x128] sm:$0xff]
  %v56 = vld [vmem:[%s0 + $0x130] sm:$0xff]
  %v57 = vld [vmem:[%s0 + $0x138] sm:$0xff]
  %v58 = vld [vmem:[%s0 + $0x140] sm:$0xff]
  %v59 = vld [vmem:[%s0 + $0x148] sm:$0xff]
  %v60 = vld [vmem:[%s0 + $0x150] sm:$0xff]
  %v61 = vld [vmem:[%s0 + $0x158] sm:$0xff]
  %v62 = vld [vmem:[%s0 + $0x160] sm:$0xff]
  %v63 = vld [vmem:[%s0 + $0x168] sm:$0xff]
  %v64 = vld [vmem:[%s0 + $0x170] sm:$0xff]
  %v65 = vld [vmem:[%s0 + $0x178] sm:$0xff]
  %v66 = vld [vmem:[%s0 + $0x180] sm:$0xff]
  %v67 = vld [vmem:[%s0 + $0x188] sm:$0xff]
  %v68 = vld [vmem:[%s0 + $0x190] sm:$0xff]
  %v69 = vld [vmem:[%s0 + $0x198] sm:$0xff]
  %v70 = vld [vmem:[%s0 + $0x1a0] sm:$0xff]
  %v71 = vld [vmem:[%s0 + $0x1a8] sm:$0xff]
  %v72 = vld [vmem:[%s0 + $0x1b0] sm:$0xff]
  %v73 = vld [vmem:[%s0 + $0x1b8] sm:$0xff]
  %v74 = vld [vmem:[%s0 + $0x1c0] sm:$0xff]
  %v75 = vld [vmem:[%s0 + $0x1c8] sm:$0xff]
  %v76 = vld [vmem:[%s0 + $0x1d0] sm:$0xff]
  %v77 = vld [vmem:[%s0 + $0x1d8] sm:$0xff]
  %v78 = vld [vmem:[%s0 + $0x1e0] sm:$0xff]
  %v79 = vld [vmem:[%s0 + $0x1e8] sm:$0xff]
  %v80 = vld [vmem:[%s0 + $0x1f0] sm:$0xff]
  %v81 = vld [vmem:[%s0 + $0x1f8] sm:$0xff]
  %v82 = vld [vmem:[%s0 + $0x200] sm:$0xff]
  %v83 = vld [vmem:[%s0 + $0x208] sm:$0xff]
  %v84 = vld [vmem:[%s0 + $0x210] sm:$0xff]
  %v85 = vld [vmem:[%s0 + $0x218] sm:$0xff]
  %v86 = vld [vmem:[%s0 + $0x220] sm:$0xff]
  %v87 = vld [vmem:[%s0 + $0x228] sm:$0xff]
  %v88 = vld [vmem:[%s0 + $0x230] sm:$0xff]
  %v89 = vld [vmem:[%s0 + $0x238] sm:$0xff]
  %v90 = vld [vmem:[%s0 + $0x240] sm:$0xff]
  %v91 = vld [vmem:[%s0 + $0x248] sm:$0xff]
  %v92 = vld [vmem:[%s0 + $0x250] sm:$0xff]
  %v93 = vld [vmem:[%s0 + $0x258] sm:$0xff]
  %v94 = vld [vmem:[%s0 + $0x260] sm:$0xff]
  %v95 = vld [vmem:[%s0 + $0x268] sm:$0xff]
  %v96 = vld [vmem:[%s0 + $0x270] sm:$0xff]
  %v97 = vld [vmem:[%s0 + $0x278] sm:$0xff]
  %v98 = vld [vmem:[%s0 + $0x280] sm:$0xff]
  %v99 = vpack.c.bf16 %v19, %v18
  %v100 = vpack.c.bf16 %v21, %v20
  %v101 = vpack.c.bf16 %v23, %v22
  %v102 = vpack.c.bf16 %v25, %v24
  %v103 = vpack.c.bf16 %v27, %v26
  %v104 = vpack.c.bf16 %v29, %v28
  %v105 = vpack.c.bf16 %v31, %v30
  %v106 = vpack.c.bf16 %v33, %v32
  %v107 = vpack.c.bf16 %v35, %v34
  %v108 = vpack.c.bf16 %v37, %v36
  %v109 = vpack.c.bf16 %v39, %v38
  %v110 = vpack.c.bf16 %v41, %v40
  %v111 = vpack.c.bf16 %v43, %v42
  %v112 = vpack.c.bf16 %v45, %v44
  %v113 = vpack.c.bf16 %v47, %v46
  %v114 = vpack.c.bf16 %v49, %v48
  %v115 = vpack.c.bf16 %v51, %v50
  %v116 = vpack.c.bf16 %v53, %v52
  %v117 = vpack.c.bf16 %v55, %v54
  %v118 = vpack.c.bf16 %v57, %v56
  %v119 = vpack.c.bf16 %v59, %v58
  %v120 = vpack.c.bf16 %v61, %v60
  %v121 = vpack.c.bf16 %v63, %v62
  %v122 = vpack.c.bf16 %v65, %v64
  %v123 = vpack.c.bf16 %v67, %v66
  %v124 = vpack.c.bf16 %v69, %v68
  %v125 = vpack.c.bf16 %v71, %v70
  %v126 = vpack.c.bf16 %v73, %v72
  %v127 = vpack.c.bf16 %v75, %v74
  %v128 = vpack.c.bf16 %v77, %v76
  %v129 = vpack.c.bf16 %v79, %v78
  %v130 = vpack.c.bf16 %v81, %v80
  %v131 = vpack.c.bf16 %v83, %v82
  %v132 = vpack.c.bf16 %v85, %v84
  %v133 = vpack.c.bf16 %v87, %v86
  %v134 = vpack.c.bf16 %v89, %v88
  %v135 = vpack.c.bf16 %v91, %v90
  %v136 = vpack.c.bf16 %v93, %v92
  %v137 = vpack.c.bf16 %v95, %v94
  %v138 = vpack.c.bf16 %v97, %v96
  %v139 = vpack.c.bf16 %v98, %v98
  %v140 = vld [vmem:[%s1] sm:$0xf]
  %v141 = vld [vmem:[%s1 + $0x4] sm:$0xf]
  %v142 = vld [vmem:[%s1 + $0x8] sm:$0xf]
  %v143 = vld [vmem:[%s1 + $0xc] sm:$0xf]
  %v144 = vld [vmem:[%s2] sm:$0x1]
  %v146 = vlaneseq
  %v147 = vshrl.u32 %v146, 7
  %v148 = vsub.s32 0, %v147
  %v149 = vrot.slane %v144, %v148
  %v155 = vunpack.c.l.b16 %v140
  %v156 = vunpack.c.l.b16 %v141
  %v157 = vunpack.c.l.b16 %v142
  %v158 = vunpack.c.l.b16 %v143
  %v159 = vpack.c.b16 %v156, %v155
  %v160 = vpack.c.b16 %v158, %v157
  %vm163 = vcmask 261120
  %v165 = vsel %vm163, %v99, 0
  %v168 = vsel %vm163, %v100, 0
  %v171 = vsel %vm163, %v101, 0
  %v174 = vsel %vm163, %v102, 0
  %v177 = vsel %vm163, %v103, 0
  %v180 = vsel %vm163, %v104, 0
  %v183 = vsel %vm163, %v105, 0
  %v186 = vsel %vm163, %v106, 0
  %v189 = vsel %vm163, %v107, 0
  %v192 = vsel %vm163, %v108, 0
  %v195 = vsel %vm163, %v109, 0
  %v198 = vsel %vm163, %v110, 0
  %v201 = vsel %vm163, %v111, 0
  %v204 = vsel %vm163, %v112, 0
  %v207 = vsel %vm163, %v113, 0
  %v210 = vsel %vm163, %v114, 0
  %v213 = vsel %vm163, %v115, 0
  %v216 = vsel %vm163, %v116, 0
  %v219 = vsel %vm163, %v117, 0
  %v222 = vsel %vm163, %v118, 0
  %v225 = vsel %vm163, %v119, 0
  %v228 = vsel %vm163, %v120, 0
  %v231 = vsel %vm163, %v121, 0
  %v234 = vsel %vm163, %v122, 0
  %v237 = vsel %vm163, %v123, 0
  %v240 = vsel %vm163, %v124, 0
  %v243 = vsel %vm163, %v125, 0
  %v246 = vsel %vm163, %v126, 0
  %v249 = vsel %vm163, %v127, 0
  %v252 = vsel %vm163, %v128, 0
  %v255 = vsel %vm163, %v129, 0
  %v258 = vsel %vm163, %v130, 0
  %v261 = vsel %vm163, %v131, 0
  %v264 = vsel %vm163, %v132, 0
  %v267 = vsel %vm163, %v133, 0
  %v270 = vsel %vm163, %v134, 0
  %v273 = vsel %vm163, %v135, 0
  %v276 = vsel %vm163, %v136, 0
  %v279 = vsel %vm163, %v137, 0
  %v282 = vsel %vm163, %v138, 0
  %v285 = vsel %vm163, %v139, 0
  %287 = vmatprep.subr.bf16.mxu0 0
  %288 = vmatpush1.bf16.msra.mxu0 %v159
  %289 = vmatprep.subr.bf16.mxu0 0
  %290 = vmatpush1.bf16.msra.mxu0 %v160
  %291 = vmatprep.subr.bf16.mxu0 0
  %292 = vmatpush1.bf16.msra.mxu0 0
  %293 = vmatprep.subr.bf16.mxu0 0
  %294 = vmatpush1.bf16.msra.mxu0 0
  %295 = vmatprep.subr.bf16.mxu0 0
  %296 = vmatpush1.bf16.msra.mxu0 0
  %297 = vmatprep.subr.bf16.mxu0 0
  %298 = vmatpush1.bf16.msra.mxu0 0
  %299 = vmatprep.subr.bf16.mxu0 0
  %300 = vmatpush1.bf16.msra.mxu0 0
  %301 = vmatprep.subr.bf16.mxu0 0
  %302 = vmatpush1.bf16.msra.mxu0 0
  %303 = vmatprep.subr.bf16.mxu0 0
  %304 = vmatpush1.bf16.msra.mxu0 0
  %305 = vmatprep.subr.bf16.mxu0 0
  %306 = vmatpush1.bf16.msra.mxu0 0
  %307 = vmatprep.subr.bf16.mxu0 0
  %308 = vmatpush1.bf16.msra.mxu0 0
  %309 = vmatprep.subr.bf16.mxu0 0
  %310 = vmatpush1.bf16.msra.mxu0 0
  %311 = vmatprep.subr.bf16.mxu0 0
  %312 = vmatpush1.bf16.msra.mxu0 0
  %313 = vmatprep.subr.bf16.mxu0 0
  %314 = vmatpush1.bf16.msra.mxu0 0
  %315 = vmatprep.subr.bf16.mxu0 0
  %316 = vmatpush1.bf16.msra.mxu0 0
  %317 = vmatprep.subr.bf16.mxu0 0
  %318 = vmatpush1.bf16.msra.mxu0 0
  %319 = vmatprep.mubr.bf16.mxu0 0
  %320 = vmatmul.mubr.bf16.gmra.mrb[0].mxu0 %v165
  %v321 = vpop.f32.mrb[0].mxu0
  %v322 = vadd.f32 %v149, %v321
  %v323 = vpop.f32.mrb[0].mxu0
  %v324 = vpop.f32.mrb[0].mxu0
  %v325 = vadd.f32 %v149, %v324
  %v326 = vpop.f32.mrb[0].mxu0
  %327 = vmatprep.mubr.bf16.mxu0 0
  %328 = vmatmul.mubr.bf16.gmra.mrb[0].mxu0 %v168
  %v329 = vpop.f32.mrb[0].mxu0
  %v330 = vadd.f32 %v149, %v329
  %v331 = vpop.f32.mrb[0].mxu0
  %v332 = vpop.f32.mrb[0].mxu0
  %v333 = vadd.f32 %v149, %v332
  %v334 = vpop.f32.mrb[0].mxu0
  %335 = vmatprep.mubr.bf16.mxu0 0
  %336 = vmatmul.mubr.bf16.gmra.mrb[0].mxu0 %v171
  %v337 = vpop.f32.mrb[0].mxu0
  %v338 = vadd.f32 %v149, %v337
  %v339 = vpop.f32.mrb[0].mxu0
  %v340 = vpop.f32.mrb[0].mxu0
  %v341 = vadd.f32 %v149, %v340
  %v342 = vpop.f32.mrb[0].mxu0
  %343 = vmatprep.mubr.bf16.mxu0 0
  %344 = vmatmul.mubr.bf16.gmra.mrb[0].mxu0 %v174
  %v345 = vpop.f32.mrb[0].mxu0
  %v346 = vadd.f32 %v149, %v345
  %v347 = vpop.f32.mrb[0].mxu0
  %v348 = vpop.f32.mrb[0].mxu0
  %v349 = vadd.f32 %v149, %v348
  %v350 = vpop.f32.mrb[0].mxu0
  %351 = vmatprep.mubr.bf16.mxu0 0
  %352 = vmatmul.mubr.bf16.gmra.mrb[0].mxu0 %v177
  %v353 = vpop.f32.mrb[0].mxu0
  %v354 = vadd.f32 %v149, %v353
  %v355 = vpop.f32.mrb[0].mxu0
  %v356 = vpop.f32.mrb[0].mxu0
  %v357 = vadd.f32 %v149, %v356
  %v358 = vpop.f32.mrb[0].mxu0
  %359 = vmatprep.mubr.bf16.mxu0 0
  %360 = vmatmul.mubr.bf16.gmra.mrb[0].mxu0 %v180
  %v361 = vpop.f32.mrb[0].mxu0
  %v362 = vadd.f32 %v149, %v361
  %v363 = vpop.f32.mrb[0].mxu0
  %v364 = vpop.f32.mrb[0].mxu0
  %v365 = vadd.f32 %v149, %v364
  %v366 = vpop.f32.mrb[0].mxu0
  %367 = vmatprep.mubr.bf16.mxu0 0
  %368 = vmatmul.mubr.bf16.gmra.mrb[0].mxu0 %v183
  %v369 = vpop.f32.mrb[0].mxu0
  %v370 = vadd.f32 %v149, %v369
  %v371 = vpop.f32.mrb[0].mxu0
  %v372 = vpop.f32.mrb[0].mxu0
  %v373 = vadd.f32 %v149, %v372
  %v374 = vpop.f32.mrb[0].mxu0
  %375 = vmatprep.mubr.bf16.mxu0 0
  %376 = vmatmul.mubr.bf16.gmra.mrb[0].mxu0 %v186
  %v377 = vpop.f32.mrb[0].mxu0
  %v378 = vadd.f32 %v149, %v377
  %v379 = vpop.f32.mrb[0].mxu0
  %v380 = vpop.f32.mrb[0].mxu0
  %v381 = vadd.f32 %v149, %v380
  %v382 = vpop.f32.mrb[0].mxu0
  %383 = vmatprep.mubr.bf16.mxu0 0
  %384 = vmatmul.mubr.bf16.gmra.mrb[0].mxu0 %v189
  %v385 = vpop.f32.mrb[0].mxu0
  %v386 = vadd.f32 %v149, %v385
  %v387 = vpop.f32.mrb[0].mxu0
  %v388 = vpop.f32.mrb[0].mxu0
  %v389 = vadd.f32 %v149, %v388
  %v390 = vpop.f32.mrb[0].mxu0
  %391 = vmatprep.mubr.bf16.mxu0 0
  %392 = vmatmul.mubr.bf16.gmra.mrb[0].mxu0 %v192
  %v393 = vpop.f32.mrb[0].mxu0
  %v394 = vadd.f32 %v149, %v393
  %v395 = vpop.f32.mrb[0].mxu0
  %v396 = vpop.f32.mrb[0].mxu0
  %v397 = vadd.f32 %v149, %v396
  %v398 = vpop.f32.mrb[0].mxu0
  %399 = vmatprep.mubr.bf16.mxu0 0
  %400 = vmatmul.mubr.bf16.gmra.mrb[0].mxu0 %v195
  %v401 = vpop.f32.mrb[0].mxu0
  %v402 = vadd.f32 %v149, %v401
  %v403 = vpop.f32.mrb[0].mxu0
  %v404 = vpop.f32.mrb[0].mxu0
  %v405 = vadd.f32 %v149, %v404
  %v406 = vpop.f32.mrb[0].mxu0
  %407 = vmatprep.mubr.bf16.mxu0 0
  %408 = vmatmul.mubr.bf16.gmra.mrb[0].mxu0 %v198
  %v409 = vpop.f32.mrb[0].mxu0
  %v410 = vadd.f32 %v149, %v409
  %v411 = vpop.f32.mrb[0].mxu0
  %v412 = vpop.f32.mrb[0].mxu0
  %v413 = vadd.f32 %v149, %v412
  %v414 = vpop.f32.mrb[0].mxu0
  %415 = vmatprep.mubr.bf16.mxu0 0
  %416 = vmatmul.mubr.bf16.gmra.mrb[0].mxu0 %v201
  %v417 = vpop.f32.mrb[0].mxu0
  %v418 = vadd.f32 %v149, %v417
  %v419 = vpop.f32.mrb[0].mxu0
  %v420 = vpop.f32.mrb[0].mxu0
  %v421 = vadd.f32 %v149, %v420
  %v422 = vpop.f32.mrb[0].mxu0
  %423 = vmatprep.mubr.bf16.mxu0 0
  %424 = vmatmul.mubr.bf16.gmra.mrb[0].mxu0 %v204
  %v425 = vpop.f32.mrb[0].mxu0
  %v426 = vadd.f32 %v149, %v425
  %v427 = vpop.f32.mrb[0].mxu0
  %v428 = vpop.f32.mrb[0].mxu0
  %v429 = vadd.f32 %v149, %v428
  %v430 = vpop.f32.mrb[0].mxu0
  %431 = vmatprep.mubr.bf16.mxu0 0
  %432 = vmatmul.mubr.bf16.gmra.mrb[0].mxu0 %v207
  %v433 = vpop.f32.mrb[0].mxu0
  %v434 = vadd.f32 %v149, %v433
  %v435 = vpop.f32.mrb[0].mxu0
  %v436 = vpop.f32.mrb[0].mxu0
  %v437 = vadd.f32 %v149, %v436
  %v438 = vpop.f32.mrb[0].mxu0
  %439 = vmatprep.mubr.bf16.mxu0 0
  %440 = vmatmul.mubr.bf16.gmra.mrb[0].mxu0 %v210
  %v441 = vpop.f32.mrb[0].mxu0
  %v442 = vadd.f32 %v149, %v441
  %v443 = vpop.f32.mrb[0].mxu0
  %v444 = vpop.f32.mrb[0].mxu0
  %v445 = vadd.f32 %v149, %v444
  %v446 = vpop.f32.mrb[0].mxu0
  %447 = vmatprep.mubr.bf16.mxu0 0
  %448 = vmatmul.mubr.bf16.gmra.mrb[0].mxu0 %v213
  %v449 = vpop.f32.mrb[0].mxu0
  %v450 = vadd.f32 %v149, %v449
  %v451 = vpop.f32.mrb[0].mxu0
  %v452 = vpop.f32.mrb[0].mxu0
  %v453 = vadd.f32 %v149, %v452
  %v454 = vpop.f32.mrb[0].mxu0
  %455 = vmatprep.mubr.bf16.mxu0 0
  %456 = vmatmul.mubr.bf16.gmra.mrb[0].mxu0 %v216
  %v457 = vpop.f32.mrb[0].mxu0
  %v458 = vadd.f32 %v149, %v457
  %v459 = vpop.f32.mrb[0].mxu0
  %v460 = vpop.f32.mrb[0].mxu0
  %v461 = vadd.f32 %v149, %v460
  %v462 = vpop.f32.mrb[0].mxu0
  %463 = vmatprep.mubr.bf16.mxu0 0
  %464 = vmatmul.mubr.bf16.gmra.mrb[0].mxu0 %v219
  %v465 = vpop.f32.mrb[0].mxu0
  %v466 = vadd.f32 %v149, %v465
  %v467 = vpop.f32.mrb[0].mxu0
  %v468 = vpop.f32.mrb[0].mxu0
  %v469 = vadd.f32 %v149, %v468
  %v470 = vpop.f32.mrb[0].mxu0
  %471 = vmatprep.mubr.bf16.mxu0 0
  %472 = vmatmul.mubr.bf16.gmra.mrb[0].mxu0 %v222
  %v473 = vpop.f32.mrb[0].mxu0
  %v474 = vadd.f32 %v149, %v473
  %v475 = vpop.f32.mrb[0].mxu0
  %v476 = vpop.f32.mrb[0].mxu0
  %v477 = vadd.f32 %v149, %v476
  %v478 = vpop.f32.mrb[0].mxu0
  %479 = vmatprep.mubr.bf16.mxu0 0
  %480 = vmatmul.mubr.bf16.gmra.mrb[0].mxu0 %v225
  %v481 = vpop.f32.mrb[0].mxu0
  %v482 = vadd.f32 %v149, %v481
  %v483 = vpop.f32.mrb[0].mxu0
  %v484 = vpop.f32.mrb[0].mxu0
  %v485 = vadd.f32 %v149, %v484
  %v486 = vpop.f32.mrb[0].mxu0
  %487 = vmatprep.mubr.bf16.mxu0 0
  %488 = vmatmul.mubr.bf16.gmra.mrb[0].mxu0 %v228
  %v489 = vpop.f32.mrb[0].mxu0
  %v490 = vadd.f32 %v149, %v489
  %v491 = vpop.f32.mrb[0].mxu0
  %v492 = vpop.f32.mrb[0].mxu0
  %v493 = vadd.f32 %v149, %v492
  %v494 = vpop.f32.mrb[0].mxu0
  %495 = vmatprep.mubr.bf16.mxu0 0
  %496 = vmatmul.mubr.bf16.gmra.mrb[0].mxu0 %v231
  %v497 = vpop.f32.mrb[0].mxu0
  %v498 = vadd.f32 %v149, %v497
  %v499 = vpop.f32.mrb[0].mxu0
  %v500 = vpop.f32.mrb[0].mxu0
  %v501 = vadd.f32 %v149, %v500
  %v502 = vpop.f32.mrb[0].mxu0
  %503 = vmatprep.mubr.bf16.mxu0 0
  %504 = vmatmul.mubr.bf16.gmra.mrb[0].mxu0 %v234
  %v505 = vpop.f32.mrb[0].mxu0
  %v506 = vadd.f32 %v149, %v505
  %v507 = vpop.f32.mrb[0].mxu0
  %v508 = vpop.f32.mrb[0].mxu0
  %v509 = vadd.f32 %v149, %v508
  %v510 = vpop.f32.mrb[0].mxu0
  %511 = vmatprep.mubr.bf16.mxu0 0
  %512 = vmatmul.mubr.bf16.gmra.mrb[0].mxu0 %v237
  %v513 = vpop.f32.mrb[0].mxu0
  %v514 = vadd.f32 %v149, %v513
  %v515 = vpop.f32.mrb[0].mxu0
  %v516 = vpop.f32.mrb[0].mxu0
  %v517 = vadd.f32 %v149, %v516
  %v518 = vpop.f32.mrb[0].mxu0
  %519 = vmatprep.mubr.bf16.mxu0 0
  %520 = vmatmul.mubr.bf16.gmra.mrb[0].mxu0 %v240
  %v521 = vpop.f32.mrb[0].mxu0
  %v522 = vadd.f32 %v149, %v521
  %v523 = vpop.f32.mrb[0].mxu0
  %v524 = vpop.f32.mrb[0].mxu0
  %v525 = vadd.f32 %v149, %v524
  %v526 = vpop.f32.mrb[0].mxu0
  %527 = vmatprep.mubr.bf16.mxu0 0
  %528 = vmatmul.mubr.bf16.gmra.mrb[0].mxu0 %v243
  %v529 = vpop.f32.mrb[0].mxu0
  %v530 = vadd.f32 %v149, %v529
  %v531 = vpop.f32.mrb[0].mxu0
  %v532 = vpop.f32.mrb[0].mxu0
  %v533 = vadd.f32 %v149, %v532
  %v534 = vpop.f32.mrb[0].mxu0
  %535 = vmatprep.mubr.bf16.mxu0 0
  %536 = vmatmul.mubr.bf16.gmra.mrb[0].mxu0 %v246
  %v537 = vpop.f32.mrb[0].mxu0
  %v538 = vadd.f32 %v149, %v537
  %v539 = vpop.f32.mrb[0].mxu0
  %v540 = vpop.f32.mrb[0].mxu0
  %v541 = vadd.f32 %v149, %v540
  %v542 = vpop.f32.mrb[0].mxu0
  %543 = vmatprep.mubr.bf16.mxu0 0
  %544 = vmatmul.mubr.bf16.gmra.mrb[0].mxu0 %v249
  %v545 = vpop.f32.mrb[0].mxu0
  %v546 = vadd.f32 %v149, %v545
  %v547 = vpop.f32.mrb[0].mxu0
  %v548 = vpop.f32.mrb[0].mxu0
  %v549 = vadd.f32 %v149, %v548
  %v550 = vpop.f32.mrb[0].mxu0
  %551 = vmatprep.mubr.bf16.mxu0 0
  %552 = vmatmul.mubr.bf16.gmra.mrb[0].mxu0 %v252
  %v553 = vpop.f32.mrb[0].mxu0
  %v554 = vadd.f32 %v149, %v553
  %v555 = vpop.f32.mrb[0].mxu0
  %v556 = vpop.f32.mrb[0].mxu0
  %v557 = vadd.f32 %v149, %v556
  %v558 = vpop.f32.mrb[0].mxu0
  %559 = vmatprep.mubr.bf16.mxu0 0
  %560 = vmatmul.mubr.bf16.gmra.mrb[0].mxu0 %v255
  %v561 = vpop.f32.mrb[0].mxu0
  %v562 = vadd.f32 %v149, %v561
  %v563 = vpop.f32.mrb[0].mxu0
  %v564 = vpop.f32.mrb[0].mxu0
  %v565 = vadd.f32 %v149, %v564
  %v566 = vpop.f32.mrb[0].mxu0
  %567 = vmatprep.mubr.bf16.mxu0 0
  %568 = vmatmul.mubr.bf16.gmra.mrb[0].mxu0 %v258
  %v569 = vpop.f32.mrb[0].mxu0
  %v570 = vadd.f32 %v149, %v569
  %v571 = vpop.f32.mrb[0].mxu0
  %v572 = vpop.f32.mrb[0].mxu0
  %v573 = vadd.f32 %v149, %v572
  %v574 = vpop.f32.mrb[0].mxu0
  %575 = vmatprep.mubr.bf16.mxu0 0
  %576 = vmatmul.mubr.bf16.gmra.mrb[0].mxu0 %v261
  %v577 = vpop.f32.mrb[0].mxu0
  %v578 = vadd.f32 %v149, %v577
  %v579 = vpop.f32.mrb[0].mxu0
  %v580 = vpop.f32.mrb[0].mxu0
  %v581 = vadd.f32 %v149, %v580
  %v582 = vpop.f32.mrb[0].mxu0
  %583 = vmatprep.mubr.bf16.mxu0 0
  %584 = vmatmul.mubr.bf16.gmra.mrb[0].mxu0 %v264
  %v585 = vpop.f32.mrb[0].mxu0
  %v586 = vadd.f32 %v149, %v585
  %v587 = vpop.f32.mrb[0].mxu0
  %v588 = vpop.f32.mrb[0].mxu0
  %v589 = vadd.f32 %v149, %v588
  %v590 = vpop.f32.mrb[0].mxu0
  %591 = vmatprep.mubr.bf16.mxu0 0
  %592 = vmatmul.mubr.bf16.gmra.mrb[0].mxu0 %v267
  %v593 = vpop.f32.mrb[0].mxu0
  %v594 = vadd.f32 %v149, %v593
  %v595 = vpop.f32.mrb[0].mxu0
  %v596 = vpop.f32.mrb[0].mxu0
  %v597 = vadd.f32 %v149, %v596
  %v598 = vpop.f32.mrb[0].mxu0
  %599 = vmatprep.mubr.bf16.mxu0 0
  %600 = vmatmul.mubr.bf16.gmra.mrb[0].mxu0 %v270
  %v601 = vpop.f32.mrb[0].mxu0
  %v602 = vadd.f32 %v149, %v601
  %v603 = vpop.f32.mrb[0].mxu0
  %v604 = vpop.f32.mrb[0].mxu0
  %v605 = vadd.f32 %v149, %v604
  %v606 = vpop.f32.mrb[0].mxu0
  %607 = vmatprep.mubr.bf16.mxu0 0
  %608 = vmatmul.mubr.bf16.gmra.mrb[0].mxu0 %v273
  %v609 = vpop.f32.mrb[0].mxu0
  %v610 = vadd.f32 %v149, %v609
  %v611 = vpop.f32.mrb[0].mxu0
  %v612 = vpop.f32.mrb[0].mxu0
  %v613 = vadd.f32 %v149, %v612
  %v614 = vpop.f32.mrb[0].mxu0
  %615 = vmatprep.mubr.bf16.mxu0 0
  %616 = vmatmul.mubr.bf16.gmra.mrb[0].mxu0 %v276
  %v617 = vpop.f32.mrb[0].mxu0
  %v618 = vadd.f32 %v149, %v617
  %v619 = vpop.f32.mrb[0].mxu0
  %v620 = vpop.f32.mrb[0].mxu0
  %v621 = vadd.f32 %v149, %v620
  %v622 = vpop.f32.mrb[0].mxu0
  %623 = vmatprep.mubr.bf16.mxu0 0
  %624 = vmatmul.mubr.bf16.gmra.mrb[0].mxu0 %v279
  %v625 = vpop.f32.mrb[0].mxu0
  %v626 = vadd.f32 %v149, %v625
  %v627 = vpop.f32.mrb[0].mxu0
  %v628 = vpop.f32.mrb[0].mxu0
  %v629 = vadd.f32 %v149, %v628
  %v630 = vpop.f32.mrb[0].mxu0
  %631 = vmatprep.mubr.bf16.mxu0 0
  %632 = vmatmul.mubr.bf16.gmra.mrb[0].mxu0 %v282
  %v633 = vpop.f32.mrb[0].mxu0
  %v634 = vadd.f32 %v149, %v633
  %v635 = vpop.f32.mrb[0].mxu0
  %v636 = vpop.f32.mrb[0].mxu0
  %v637 = vadd.f32 %v149, %v636
  %v638 = vpop.f32.mrb[0].mxu0
  %639 = vmatprep.mubr.bf16.mxu0 0
  %640 = vmatmul.mubr.bf16.gmra.mrb[0].mxu0 %v285
  %v641 = vpop.f32.mrb[0].mxu0
  %v642 = vadd.f32 %v149, %v641
  %v643 = vpop.f32.mrb[0].mxu0
  %v644 = vpop.f32.mrb[0].mxu0
  %v645 = vpop.f32.mrb[0].mxu0
  %646 = vdwg.mxu0
  %v647 = vld [vmem:[%s3] sm:$0xff]
  %v648 = vld [vmem:[%s3 + $0x8] sm:$0xff]
  %v649 = vld [vmem:[%s3 + $0x10] sm:$0xff]
  %v650 = vld [vmem:[%s3 + $0x18] sm:$0xff]
  %v651 = vld [vmem:[%s3 + $0x20] sm:$0xff]
  %v652 = vld [vmem:[%s3 + $0x28] sm:$0xff]
  %v653 = vld [vmem:[%s3 + $0x30] sm:$0xff]
  %v654 = vld [vmem:[%s3 + $0x38] sm:$0xff]
  %v655 = vld [vmem:[%s3 + $0x40] sm:$0xff]
  %v656 = vld [vmem:[%s3 + $0x48] sm:$0xff]
  %v657 = vld [vmem:[%s3 + $0x50] sm:$0xff]
  %v658 = vld [vmem:[%s3 + $0x58] sm:$0xff]
  %v659 = vld [vmem:[%s3 + $0x60] sm:$0xff]
  %v660 = vld [vmem:[%s3 + $0x68] sm:$0xff]
  %v661 = vld [vmem:[%s3 + $0x70] sm:$0xff]
  %v662 = vld [vmem:[%s3 + $0x78] sm:$0xff]
  %v663 = vld [vmem:[%s3 + $0x80] sm:$0xff]
  %v664 = vld [vmem:[%s3 + $0x88] sm:$0xff]
  %v665 = vld [vmem:[%s3 + $0x90] sm:$0xff]
  %v666 = vld [vmem:[%s3 + $0x98] sm:$0xff]
  %v667 = vld [vmem:[%s3 + $0xa0] sm:$0xff]
  %v668 = vld [vmem:[%s3 + $0xa8] sm:$0xff]
  %v669 = vld [vmem:[%s3 + $0xb0] sm:$0xff]
  %v670 = vld [vmem:[%s3 + $0xb8] sm:$0xff]
  %v671 = vld [vmem:[%s3 + $0xc0] sm:$0xff]
  %v672 = vld [vmem:[%s3 + $0xc8] sm:$0xff]
  %v673 = vld [vmem:[%s3 + $0xd0] sm:$0xff]
  %v674 = vld [vmem:[%s3 + $0xd8] sm:$0xff]
  %v675 = vld [vmem:[%s3 + $0xe0] sm:$0xff]
  %v676 = vld [vmem:[%s3 + $0xe8] sm:$0xff]
  %v677 = vld [vmem:[%s3 + $0xf0] sm:$0xff]
  %v678 = vld [vmem:[%s3 + $0xf8] sm:$0xff]
  %v679 = vld [vmem:[%s3 + $0x100] sm:$0xff]
  %v680 = vld [vmem:[%s3 + $0x108] sm:$0xff]
  %v681 = vld [vmem:[%s3 + $0x110] sm:$0xff]
  %v682 = vld [vmem:[%s3 + $0x118] sm:$0xff]
  %v683 = vld [vmem:[%s3 + $0x120] sm:$0xff]
  %v684 = vld [vmem:[%s3 + $0x128] sm:$0xff]
  %v685 = vld [vmem:[%s3 + $0x130] sm:$0xff]
  %v686 = vld [vmem:[%s3 + $0x138] sm:$0xff]
  %v687 = vld [vmem:[%s3 + $0x140] sm:$0xff]
  %v688 = vld [vmem:[%s3 + $0x148] sm:$0xff]
  %v689 = vld [vmem:[%s3 + $0x150] sm:$0xff]
  %v690 = vld [vmem:[%s3 + $0x158] sm:$0xff]
  %v691 = vld [vmem:[%s3 + $0x160] sm:$0xff]
  %v692 = vld [vmem:[%s3 + $0x168] sm:$0xff]
  %v693 = vld [vmem:[%s3 + $0x170] sm:$0xff]
  %v694 = vld [vmem:[%s3 + $0x178] sm:$0xff]
  %v695 = vld [vmem:[%s3 + $0x180] sm:$0xff]
  %v696 = vld [vmem:[%s3 + $0x188] sm:$0xff]
  %v697 = vld [vmem:[%s3 + $0x190] sm:$0xff]
  %v698 = vld [vmem:[%s3 + $0x198] sm:$0xff]
  %v699 = vld [vmem:[%s3 + $0x1a0] sm:$0xff]
  %v700 = vld [vmem:[%s3 + $0x1a8] sm:$0xff]
  %v701 = vld [vmem:[%s3 + $0x1b0] sm:$0xff]
  %v702 = vld [vmem:[%s3 + $0x1b8] sm:$0xff]
  %v703 = vld [vmem:[%s3 + $0x1c0] sm:$0xff]
  %v704 = vld [vmem:[%s3 + $0x1c8] sm:$0xff]
  %v705 = vld [vmem:[%s3 + $0x1d0] sm:$0xff]
  %v706 = vld [vmem:[%s3 + $0x1d8] sm:$0xff]
  %v707 = vld [vmem:[%s3 + $0x1e0] sm:$0xff]
  %v708 = vld [vmem:[%s3 + $0x1e8] sm:$0xff]
  %v709 = vld [vmem:[%s3 + $0x1f0] sm:$0xff]
  %v710 = vld [vmem:[%s3 + $0x1f8] sm:$0xff]
  %v711 = vld [vmem:[%s3 + $0x200] sm:$0xff]
  %v712 = vld [vmem:[%s3 + $0x208] sm:$0xff]
  %v713 = vld [vmem:[%s3 + $0x210] sm:$0xff]
  %v714 = vld [vmem:[%s3 + $0x218] sm:$0xff]
  %v715 = vld [vmem:[%s3 + $0x220] sm:$0xff]
  %v716 = vld [vmem:[%s3 + $0x228] sm:$0xff]
  %v717 = vld [vmem:[%s3 + $0x230] sm:$0xff]
  %v718 = vld [vmem:[%s3 + $0x238] sm:$0xff]
  %v719 = vld [vmem:[%s3 + $0x240] sm:$0xff]
  %v720 = vld [vmem:[%s3 + $0x248] sm:$0xff]
  %v721 = vld [vmem:[%s3 + $0x250] sm:$0xff]
  %v722 = vld [vmem:[%s3 + $0x258] sm:$0xff]
  %v723 = vld [vmem:[%s3 + $0x260] sm:$0xff]
  %v724 = vld [vmem:[%s3 + $0x268] sm:$0xff]
  %v725 = vld [vmem:[%s3 + $0x270] sm:$0xff]
  %v726 = vld [vmem:[%s3 + $0x278] sm:$0xff]
  %v727 = vld [vmem:[%s3 + $0x280] sm:$0xff]
  %v728 = vadd.f32 %v322, %v647
  %v729 = vadd.f32 %v325, %v648
  %v730 = vadd.f32 %v330, %v649
  %v731 = vadd.f32 %v333, %v650
  %v732 = vadd.f32 %v338, %v651
  %v733 = vadd.f32 %v341, %v652
  %v734 = vadd.f32 %v346, %v653
  %v735 = vadd.f32 %v349, %v654
  %v736 = vadd.f32 %v354, %v655
  %v737 = vadd.f32 %v357, %v656
  %v738 = vadd.f32 %v362, %v657
  %v739 = vadd.f32 %v365, %v658
  %v740 = vadd.f32 %v370, %v659
  %v741 = vadd.f32 %v373, %v660
  %v742 = vadd.f32 %v378, %v661
  %v743 = vadd.f32 %v381, %v662
  %v744 = vadd.f32 %v386, %v663
  %v745 = vadd.f32 %v389, %v664
  %v746 = vadd.f32 %v394, %v665
  %v747 = vadd.f32 %v397, %v666
  %v748 = vadd.f32 %v402, %v667
  %v749 = vadd.f32 %v405, %v668
  %v750 = vadd.f32 %v410, %v669
  %v751 = vadd.f32 %v413, %v670
  %v752 = vadd.f32 %v418, %v671
  %v753 = vadd.f32 %v421, %v672
  %v754 = vadd.f32 %v426, %v673
  %v755 = vadd.f32 %v429, %v674
  %v756 = vadd.f32 %v434, %v675
  %v757 = vadd.f32 %v437, %v676
  %v758 = vadd.f32 %v442, %v677
  %v759 = vadd.f32 %v445, %v678
  %v760 = vadd.f32 %v450, %v679
  %v761 = vadd.f32 %v453, %v680
  %v762 = vadd.f32 %v458, %v681
  %v763 = vadd.f32 %v461, %v682
  %v764 = vadd.f32 %v466, %v683
  %v765 = vadd.f32 %v469, %v684
  %v766 = vadd.f32 %v474, %v685
  %v767 = vadd.f32 %v477, %v686
  %v768 = vadd.f32 %v482, %v687
  %v769 = vadd.f32 %v485, %v688
  %v770 = vadd.f32 %v490, %v689
  %v771 = vadd.f32 %v493, %v690
  %v772 = vadd.f32 %v498, %v691
  %v773 = vadd.f32 %v501, %v692
  %v774 = vadd.f32 %v506, %v693
  %v775 = vadd.f32 %v509, %v694
  %v776 = vadd.f32 %v514, %v695
  %v777 = vadd.f32 %v517, %v696
  %v778 = vadd.f32 %v522, %v697
  %v779 = vadd.f32 %v525, %v698
  %v780 = vadd.f32 %v530, %v699
  %v781 = vadd.f32 %v533, %v700
  %v782 = vadd.f32 %v538, %v701
  %v783 = vadd.f32 %v541, %v702
  %v784 = vadd.f32 %v546, %v703
  %v785 = vadd.f32 %v549, %v704
  %v786 = vadd.f32 %v554, %v705
  %v787 = vadd.f32 %v557, %v706
  %v788 = vadd.f32 %v562, %v707
  %v789 = vadd.f32 %v565, %v708
  %v790 = vadd.f32 %v570, %v709
  %v791 = vadd.f32 %v573, %v710
  %v792 = vadd.f32 %v578, %v711
  %v793 = vadd.f32 %v581, %v712
  %v794 = vadd.f32 %v586, %v713
  %v795 = vadd.f32 %v589, %v714
  %v796 = vadd.f32 %v594, %v715
  %v797 = vadd.f32 %v597, %v716
  %v798 = vadd.f32 %v602, %v717
  %v799 = vadd.f32 %v605, %v718
  %v800 = vadd.f32 %v610, %v719
  %v801 = vadd.f32 %v613, %v720
  %v802 = vadd.f32 %v618, %v721
  %v803 = vadd.f32 %v621, %v722
  %v804 = vadd.f32 %v626, %v723
  %v805 = vadd.f32 %v629, %v724
  %v806 = vadd.f32 %v634, %v725
  %v807 = vadd.f32 %v637, %v726
  %v808 = vadd.f32 %v642, %v727
  %v809 = vmul.f32 %v728, 0.5
  %v810 = vmul.f32 %v729, 0.5
  %v811 = vmul.f32 %v730, 0.5
  %v812 = vmul.f32 %v731, 0.5
  %v813 = vmul.f32 %v732, 0.5
  %v814 = vmul.f32 %v733, 0.5
  %v815 = vmul.f32 %v734, 0.5
  %v816 = vmul.f32 %v735, 0.5
  %v817 = vmul.f32 %v736, 0.5
  %v818 = vmul.f32 %v737, 0.5
  %v819 = vmul.f32 %v738, 0.5
  %v820 = vmul.f32 %v739, 0.5
  %v821 = vmul.f32 %v740, 0.5
  %v822 = vmul.f32 %v741, 0.5
  %v823 = vmul.f32 %v742, 0.5
  %v824 = vmul.f32 %v743, 0.5
  %v825 = vmul.f32 %v744, 0.5
  %v826 = vmul.f32 %v745, 0.5
  %v827 = vmul.f32 %v746, 0.5
  %v828 = vmul.f32 %v747, 0.5
  %v829 = vmul.f32 %v748, 0.5
  %v830 = vmul.f32 %v749, 0.5
  %v831 = vmul.f32 %v750, 0.5
  %v832 = vmul.f32 %v751, 0.5
  %v833 = vmul.f32 %v752, 0.5
  %v834 = vmul.f32 %v753, 0.5
  %v835 = vmul.f32 %v754, 0.5
  %v836 = vmul.f32 %v755, 0.5
  %v837 = vmul.f32 %v756, 0.5
  %v838 = vmul.f32 %v757, 0.5
  %v839 = vmul.f32 %v758, 0.5
  %v840 = vmul.f32 %v759, 0.5
  %v841 = vmul.f32 %v760, 0.5
  %v842 = vmul.f32 %v761, 0.5
  %v843 = vmul.f32 %v762, 0.5
  %v844 = vmul.f32 %v763, 0.5
  %v845 = vmul.f32 %v764, 0.5
  %v846 = vmul.f32 %v765, 0.5
  %v847 = vmul.f32 %v766, 0.5
  %v848 = vmul.f32 %v767, 0.5
  %v849 = vmul.f32 %v768, 0.5
  %v850 = vmul.f32 %v769, 0.5
  %v851 = vmul.f32 %v770, 0.5
  %v852 = vmul.f32 %v771, 0.5
  %v853 = vmul.f32 %v772, 0.5
  %v854 = vmul.f32 %v773, 0.5
  %v855 = vmul.f32 %v774, 0.5
  %v856 = vmul.f32 %v775, 0.5
  %v857 = vmul.f32 %v776, 0.5
  %v858 = vmul.f32 %v777, 0.5
  %v859 = vmul.f32 %v778, 0.5
  %v860 = vmul.f32 %v779, 0.5
  %v861 = vmul.f32 %v780, 0.5
  %v862 = vmul.f32 %v781, 0.5
  %v863 = vmul.f32 %v782, 0.5
  %v864 = vmul.f32 %v783, 0.5
  %v865 = vmul.f32 %v784, 0.5
  %v866 = vmul.f32 %v785, 0.5
  %v867 = vmul.f32 %v786, 0.5
  %v868 = vmul.f32 %v787, 0.5
  %v869 = vmul.f32 %v788, 0.5
  %v870 = vmul.f32 %v789, 0.5
  %v871 = vmul.f32 %v790, 0.5
  %v872 = vmul.f32 %v791, 0.5
  %v873 = vmul.f32 %v792, 0.5
  %v874 = vmul.f32 %v793, 0.5
  %v875 = vmul.f32 %v794, 0.5
  %v876 = vmul.f32 %v795, 0.5
  %v877 = vmul.f32 %v796, 0.5
  %v878 = vmul.f32 %v797, 0.5
  %v879 = vmul.f32 %v798, 0.5
  %v880 = vmul.f32 %v799, 0.5
  %v881 = vmul.f32 %v800, 0.5
  %v882 = vmul.f32 %v801, 0.5
  %v883 = vmul.f32 %v802, 0.5
  %v884 = vmul.f32 %v803, 0.5
  %v885 = vmul.f32 %v804, 0.5
  %v886 = vmul.f32 %v805, 0.5
  %v887 = vmul.f32 %v806, 0.5
  %v888 = vmul.f32 %v807, 0.5
  %v889 = vmul.f32 %v808, 0.5
  %v890 = vmul.f32 %v728, 0.044715
  %v891 = vmul.f32 %v729, 0.044715
  %v892 = vmul.f32 %v730, 0.044715
  %v893 = vmul.f32 %v731, 0.044715
  %v894 = vmul.f32 %v732, 0.044715
  %v895 = vmul.f32 %v733, 0.044715
  %v896 = vmul.f32 %v734, 0.044715
  %v897 = vmul.f32 %v735, 0.044715
  %v898 = vmul.f32 %v736, 0.044715
  %v899 = vmul.f32 %v737, 0.044715
  %v900 = vmul.f32 %v738, 0.044715
  %v901 = vmul.f32 %v739, 0.044715
  %v902 = vmul.f32 %v740, 0.044715
  %v903 = vmul.f32 %v741, 0.044715
  %v904 = vmul.f32 %v742, 0.044715
  %v905 = vmul.f32 %v743, 0.044715
  %v906 = vmul.f32 %v744, 0.044715
  %v907 = vmul.f32 %v745, 0.044715
  %v908 = vmul.f32 %v746, 0.044715
  %v909 = vmul.f32 %v747, 0.044715
  %v910 = vmul.f32 %v748, 0.044715
  %v911 = vmul.f32 %v749, 0.044715
  %v912 = vmul.f32 %v750, 0.044715
  %v913 = vmul.f32 %v751, 0.044715
  %v914 = vmul.f32 %v752, 0.044715
  %v915 = vmul.f32 %v753, 0.044715
  %v916 = vmul.f32 %v754, 0.044715
  %v917 = vmul.f32 %v755, 0.044715
  %v918 = vmul.f32 %v756, 0.044715
  %v919 = vmul.f32 %v757, 0.044715
  %v920 = vmul.f32 %v758, 0.044715
  %v921 = vmul.f32 %v759, 0.044715
  %v922 = vmul.f32 %v760, 0.044715
  %v923 = vmul.f32 %v761, 0.044715
  %v924 = vmul.f32 %v762, 0.044715
  %v925 = vmul.f32 %v763, 0.044715
  %v926 = vmul.f32 %v764, 0.044715
  %v927 = vmul.f32 %v765, 0.044715
  %v928 = vmul.f32 %v766, 0.044715
  %v929 = vmul.f32 %v767, 0.044715
  %v930 = vmul.f32 %v768, 0.044715
  %v931 = vmul.f32 %v769, 0.044715
  %v932 = vmul.f32 %v770, 0.044715
  %v933 = vmul.f32 %v771, 0.044715
  %v934 = vmul.f32 %v772, 0.044715
  %v935 = vmul.f32 %v773, 0.044715
  %v936 = vmul.f32 %v774, 0.044715
  %v937 = vmul.f32 %v775, 0.044715
  %v938 = vmul.f32 %v776, 0.044715
  %v939 = vmul.f32 %v777, 0.044715
  %v940 = vmul.f32 %v778, 0.044715
  %v941 = vmul.f32 %v779, 0.044715
  %v942 = vmul.f32 %v780, 0.044715
  %v943 = vmul.f32 %v781, 0.044715
  %v944 = vmul.f32 %v782, 0.044715
  %v945 = vmul.f32 %v783, 0.044715
  %v946 = vmul.f32 %v784, 0.044715
  %v947 = vmul.f32 %v785, 0.044715
  %v948 = vmul.f32 %v786, 0.044715
  %v949 = vmul.f32 %v787, 0.044715
  %v950 = vmul.f32 %v788, 0.044715
  %v951 = vmul.f32 %v789, 0.044715
  %v952 = vmul.f32 %v790, 0.044715
  %v953 = vmul.f32 %v791, 0.044715
  %v954 = vmul.f32 %v792, 0.044715
  %v955 = vmul.f32 %v793, 0.044715
  %v956 = vmul.f32 %v794, 0.044715
  %v957 = vmul.f32 %v795, 0.044715
  %v958 = vmul.f32 %v796, 0.044715
  %v959 = vmul.f32 %v797, 0.044715
  %v960 = vmul.f32 %v798, 0.044715
  %v961 = vmul.f32 %v799, 0.044715
  %v962 = vmul.f32 %v800, 0.044715
  %v963 = vmul.f32 %v801, 0.044715
  %v964 = vmul.f32 %v802, 0.044715
  %v965 = vmul.f32 %v803, 0.044715
  %v966 = vmul.f32 %v804, 0.044715
  %v967 = vmul.f32 %v805, 0.044715
  %v968 = vmul.f32 %v806, 0.044715
  %v969 = vmul.f32 %v807, 0.044715
  %v970 = vmul.f32 %v808, 0.044715
  %v971 = vmul.f32 %v890, %v728
  %v972 = vmul.f32 %v891, %v729
  %v973 = vmul.f32 %v892, %v730
  %v974 = vmul.f32 %v893, %v731
  %v975 = vmul.f32 %v894, %v732
  %v976 = vmul.f32 %v895, %v733
  %v977 = vmul.f32 %v896, %v734
  %v978 = vmul.f32 %v897, %v735
  %v979 = vmul.f32 %v898, %v736
  %v980 = vmul.f32 %v899, %v737
  %v981 = vmul.f32 %v900, %v738
  %v982 = vmul.f32 %v901, %v739
  %v983 = vmul.f32 %v902, %v740
  %v984 = vmul.f32 %v903, %v741
  %v985 = vmul.f32 %v904, %v742
  %v986 = vmul.f32 %v905, %v743
  %v987 = vmul.f32 %v906, %v744
  %v988 = vmul.f32 %v907, %v745
  %v989 = vmul.f32 %v908, %v746
  %v990 = vmul.f32 %v909, %v747
  %v991 = vmul.f32 %v910, %v748
  %v992 = vmul.f32 %v911, %v749
  %v993 = vmul.f32 %v912, %v750
  %v994 = vmul.f32 %v913, %v751
  %v995 = vmul.f32 %v914, %v752
  %v996 = vmul.f32 %v915, %v753
  %v997 = vmul.f32 %v916, %v754
  %v998 = vmul.f32 %v917, %v755
  %v999 = vmul.f32 %v918, %v756
  %v1000 = vmul.f32 %v919, %v757
  %v1001 = vmul.f32 %v920, %v758
  %v1002 = vmul.f32 %v921, %v759
  %v1003 = vmul.f32 %v922, %v760
  %v1004 = vmul.f32 %v923, %v761
  %v1005 = vmul.f32 %v924, %v762
  %v1006 = vmul.f32 %v925, %v763
  %v1007 = vmul.f32 %v926, %v764
  %v1008 = vmul.f32 %v927, %v765
  %v1009 = vmul.f32 %v928, %v766
  %v1010 = vmul.f32 %v929, %v767
  %v1011 = vmul.f32 %v930, %v768
  %v1012 = vmul.f32 %v931, %v769
  %v1013 = vmul.f32 %v932, %v770
  %v1014 = vmul.f32 %v933, %v771
  %v1015 = vmul.f32 %v934, %v772
  %v1016 = vmul.f32 %v935, %v773
  %v1017 = vmul.f32 %v936, %v774
  %v1018 = vmul.f32 %v937, %v775
  %v1019 = vmul.f32 %v938, %v776
  %v1020 = vmul.f32 %v939, %v777
  %v1021 = vmul.f32 %v940, %v778
  %v1022 = vmul.f32 %v941, %v779
  %v1023 = vmul.f32 %v942, %v780
  %v1024 = vmul.f32 %v943, %v781
  %v1025 = vmul.f32 %v944, %v782
  %v1026 = vmul.f32 %v945, %v783
  %v1027 = vmul.f32 %v946, %v784
  %v1028 = vmul.f32 %v947, %v785
  %v1029 = vmul.f32 %v948, %v786
  %v1030 = vmul.f32 %v949, %v787
  %v1031 = vmul.f32 %v950, %v788
  %v1032 = vmul.f32 %v951, %v789
  %v1033 = vmul.f32 %v952, %v790
  %v1034 = vmul.f32 %v953, %v791
  %v1035 = vmul.f32 %v954, %v792
  %v1036 = vmul.f32 %v955, %v793
  %v1037 = vmul.f32 %v956, %v794
  %v1038 = vmul.f32 %v957, %v795
  %v1039 = vmul.f32 %v958, %v796
  %v1040 = vmul.f32 %v959, %v797
  %v1041 = vmul.f32 %v960, %v798
  %v1042 = vmul.f32 %v961, %v799
  %v1043 = vmul.f32 %v962, %v800
  %v1044 = vmul.f32 %v963, %v801
  %v1045 = vmul.f32 %v964, %v802
  %v1046 = vmul.f32 %v965, %v803
  %v1047 = vmul.f32 %v966, %v804
  %v1048 = vmul.f32 %v967, %v805
  %v1049 = vmul.f32 %v968, %v806
  %v1050 = vmul.f32 %v969, %v807
  %v1051 = vmul.f32 %v970, %v808
  %v1052 = vmul.f32 %v971, %v728
  %v1053 = vmul.f32 %v972, %v729
  %v1054 = vmul.f32 %v973, %v730
  %v1055 = vmul.f32 %v974, %v731
  %v1056 = vmul.f32 %v975, %v732
  %v1057 = vmul.f32 %v976, %v733
  %v1058 = vmul.f32 %v977, %v734
  %v1059 = vmul.f32 %v978, %v735
  %v1060 = vmul.f32 %v979, %v736
  %v1061 = vmul.f32 %v980, %v737
  %v1062 = vmul.f32 %v981, %v738
  %v1063 = vmul.f32 %v982, %v739
  %v1064 = vmul.f32 %v983, %v740
  %v1065 = vmul.f32 %v984, %v741
  %v1066 = vmul.f32 %v985, %v742
  %v1067 = vmul.f32 %v986, %v743
  %v1068 = vmul.f32 %v987, %v744
  %v1069 = vmul.f32 %v988, %v745
  %v1070 = vmul.f32 %v989, %v746
  %v1071 = vmul.f32 %v990, %v747
  %v1072 = vmul.f32 %v991, %v748
  %v1073 = vmul.f32 %v992, %v749
  %v1074 = vmul.f32 %v993, %v750
  %v1075 = vmul.f32 %v994, %v751
  %v1076 = vmul.f32 %v995, %v752
  %v1077 = vmul.f32 %v996, %v753
  %v1078 = vmul.f32 %v997, %v754
  %v1079 = vmul.f32 %v998, %v755
  %v1080 = vmul.f32 %v999, %v756
  %v1081 = vmul.f32 %v1000, %v757
  %v1082 = vmul.f32 %v1001, %v758
  %v1083 = vmul.f32 %v1002, %v759
  %v1084 = vmul.f32 %v1003, %v760
  %v1085 = vmul.f32 %v1004, %v761
  %v1086 = vmul.f32 %v1005, %v762
  %v1087 = vmul.f32 %v1006, %v763
  %v1088 = vmul.f32 %v1007, %v764
  %v1089 = vmul.f32 %v1008, %v765
  %v1090 = vmul.f32 %v1009, %v766
  %v1091 = vmul.f32 %v1010, %v767
  %v1092 = vmul.f32 %v1011, %v768
  %v1093 = vmul.f32 %v1012, %v769
  %v1094 = vmul.f32 %v1013, %v770
  %v1095 = vmul.f32 %v1014, %v771
  %v1096 = vmul.f32 %v1015, %v772
  %v1097 = vmul.f32 %v1016, %v773
  %v1098 = vmul.f32 %v1017, %v774
  %v1099 = vmul.f32 %v1018, %v775
  %v1100 = vmul.f32 %v1019, %v776
  %v1101 = vmul.f32 %v1020, %v777
  %v1102 = vmul.f32 %v1021, %v778
  %v1103 = vmul.f32 %v1022, %v779
  %v1104 = vmul.f32 %v1023, %v780
  %v1105 = vmul.f32 %v1024, %v781
  %v1106 = vmul.f32 %v1025, %v782
  %v1107 = vmul.f32 %v1026, %v783
  %v1108 = vmul.f32 %v1027, %v784
  %v1109 = vmul.f32 %v1028, %v785
  %v1110 = vmul.f32 %v1029, %v786
  %v1111 = vmul.f32 %v1030, %v787
  %v1112 = vmul.f32 %v1031, %v788
  %v1113 = vmul.f32 %v1032, %v789
  %v1114 = vmul.f32 %v1033, %v790
  %v1115 = vmul.f32 %v1034, %v791
  %v1116 = vmul.f32 %v1035, %v792
  %v1117 = vmul.f32 %v1036, %v793
  %v1118 = vmul.f32 %v1037, %v794
  %v1119 = vmul.f32 %v1038, %v795
  %v1120 = vmul.f32 %v1039, %v796
  %v1121 = vmul.f32 %v1040, %v797
  %v1122 = vmul.f32 %v1041, %v798
  %v1123 = vmul.f32 %v1042, %v799
  %v1124 = vmul.f32 %v1043, %v800
  %v1125 = vmul.f32 %v1044, %v801
  %v1126 = vmul.f32 %v1045, %v802
  %v1127 = vmul.f32 %v1046, %v803
  %v1128 = vmul.f32 %v1047, %v804
  %v1129 = vmul.f32 %v1048, %v805
  %v1130 = vmul.f32 %v1049, %v806
  %v1131 = vmul.f32 %v1050, %v807
  %v1132 = vmul.f32 %v1051, %v808
  %v1133 = vadd.f32 %v728, %v1052
  %v1134 = vadd.f32 %v729, %v1053
  %v1135 = vadd.f32 %v730, %v1054
  %v1136 = vadd.f32 %v731, %v1055
  %v1137 = vadd.f32 %v732, %v1056
  %v1138 = vadd.f32 %v733, %v1057
  %v1139 = vadd.f32 %v734, %v1058
  %v1140 = vadd.f32 %v735, %v1059
  %v1141 = vadd.f32 %v736, %v1060
  %v1142 = vadd.f32 %v737, %v1061
  %v1143 = vadd.f32 %v738, %v1062
  %v1144 = vadd.f32 %v739, %v1063
  %v1145 = vadd.f32 %v740, %v1064
  %v1146 = vadd.f32 %v741, %v1065
  %v1147 = vadd.f32 %v742, %v1066
  %v1148 = vadd.f32 %v743, %v1067
  %v1149 = vadd.f32 %v744, %v1068
  %v1150 = vadd.f32 %v745, %v1069
  %v1151 = vadd.f32 %v746, %v1070
  %v1152 = vadd.f32 %v747, %v1071
  %v1153 = vadd.f32 %v748, %v1072
  %v1154 = vadd.f32 %v749, %v1073
  %v1155 = vadd.f32 %v750, %v1074
  %v1156 = vadd.f32 %v751, %v1075
  %v1157 = vadd.f32 %v752, %v1076
  %v1158 = vadd.f32 %v753, %v1077
  %v1159 = vadd.f32 %v754, %v1078
  %v1160 = vadd.f32 %v755, %v1079
  %v1161 = vadd.f32 %v756, %v1080
  %v1162 = vadd.f32 %v757, %v1081
  %v1163 = vadd.f32 %v758, %v1082
  %v1164 = vadd.f32 %v759, %v1083
  %v1165 = vadd.f32 %v760, %v1084
  %v1166 = vadd.f32 %v761, %v1085
  %v1167 = vadd.f32 %v762, %v1086
  %v1168 = vadd.f32 %v763, %v1087
  %v1169 = vadd.f32 %v764, %v1088
  %v1170 = vadd.f32 %v765, %v1089
  %v1171 = vadd.f32 %v766, %v1090
  %v1172 = vadd.f32 %v767, %v1091
  %v1173 = vadd.f32 %v768, %v1092
  %v1174 = vadd.f32 %v769, %v1093
  %v1175 = vadd.f32 %v770, %v1094
  %v1176 = vadd.f32 %v771, %v1095
  %v1177 = vadd.f32 %v772, %v1096
  %v1178 = vadd.f32 %v773, %v1097
  %v1179 = vadd.f32 %v774, %v1098
  %v1180 = vadd.f32 %v775, %v1099
  %v1181 = vadd.f32 %v776, %v1100
  %v1182 = vadd.f32 %v777, %v1101
  %v1183 = vadd.f32 %v778, %v1102
  %v1184 = vadd.f32 %v779, %v1103
  %v1185 = vadd.f32 %v780, %v1104
  %v1186 = vadd.f32 %v781, %v1105
  %v1187 = vadd.f32 %v782, %v1106
  %v1188 = vadd.f32 %v783, %v1107
  %v1189 = vadd.f32 %v784, %v1108
  %v1190 = vadd.f32 %v785, %v1109
  %v1191 = vadd.f32 %v786, %v1110
  %v1192 = vadd.f32 %v787, %v1111
  %v1193 = vadd.f32 %v788, %v1112
  %v1194 = vadd.f32 %v789, %v1113
  %v1195 = vadd.f32 %v790, %v1114
  %v1196 = vadd.f32 %v791, %v1115
  %v1197 = vadd.f32 %v792, %v1116
  %v1198 = vadd.f32 %v793, %v1117
  %v1199 = vadd.f32 %v794, %v1118
  %v1200 = vadd.f32 %v795, %v1119
  %v1201 = vadd.f32 %v796, %v1120
  %v1202 = vadd.f32 %v797, %v1121
  %v1203 = vadd.f32 %v798, %v1122
  %v1204 = vadd.f32 %v799, %v1123
  %v1205 = vadd.f32 %v800, %v1124
  %v1206 = vadd.f32 %v801, %v1125
  %v1207 = vadd.f32 %v802, %v1126
  %v1208 = vadd.f32 %v803, %v1127
  %v1209 = vadd.f32 %v804, %v1128
  %v1210 = vadd.f32 %v805, %v1129
  %v1211 = vadd.f32 %v806, %v1130
  %v1212 = vadd.f32 %v807, %v1131
  %v1213 = vadd.f32 %v808, %v1132
  %v1214 = vmul.f32 %v1133, 0.7978846
  %v1215 = vmul.f32 %v1134, 0.7978846
  %v1216 = vmul.f32 %v1135, 0.7978846
  %v1217 = vmul.f32 %v1136, 0.7978846
  %v1218 = vmul.f32 %v1137, 0.7978846
  %v1219 = vmul.f32 %v1138, 0.7978846
  %v1220 = vmul.f32 %v1139, 0.7978846
  %v1221 = vmul.f32 %v1140, 0.7978846
  %v1222 = vmul.f32 %v1141, 0.7978846
  %v1223 = vmul.f32 %v1142, 0.7978846
  %v1224 = vmul.f32 %v1143, 0.7978846
  %v1225 = vmul.f32 %v1144, 0.7978846
  %v1226 = vmul.f32 %v1145, 0.7978846
  %v1227 = vmul.f32 %v1146, 0.7978846
  %v1228 = vmul.f32 %v1147, 0.7978846
  %v1229 = vmul.f32 %v1148, 0.7978846
  %v1230 = vmul.f32 %v1149, 0.7978846
  %v1231 = vmul.f32 %v1150, 0.7978846
  %v1232 = vmul.f32 %v1151, 0.7978846
  %v1233 = vmul.f32 %v1152, 0.7978846
  %v1234 = vmul.f32 %v1153, 0.7978846
  %v1235 = vmul.f32 %v1154, 0.7978846
  %v1236 = vmul.f32 %v1155, 0.7978846
  %v1237 = vmul.f32 %v1156, 0.7978846
  %v1238 = vmul.f32 %v1157, 0.7978846
  %v1239 = vmul.f32 %v1158, 0.7978846
  %v1240 = vmul.f32 %v1159, 0.7978846
  %v1241 = vmul.f32 %v1160, 0.7978846
  %v1242 = vmul.f32 %v1161, 0.7978846
  %v1243 = vmul.f32 %v1162, 0.7978846
  %v1244 = vmul.f32 %v1163, 0.7978846
  %v1245 = vmul.f32 %v1164, 0.7978846
  %v1246 = vmul.f32 %v1165, 0.7978846
  %v1247 = vmul.f32 %v1166, 0.7978846
  %v1248 = vmul.f32 %v1167, 0.7978846
  %v1249 = vmul.f32 %v1168, 0.7978846
  %v1250 = vmul.f32 %v1169, 0.7978846
  %v1251 = vmul.f32 %v1170, 0.7978846
  %v1252 = vmul.f32 %v1171, 0.7978846
  %v1253 = vmul.f32 %v1172, 0.7978846
  %v1254 = vmul.f32 %v1173, 0.7978846
  %v1255 = vmul.f32 %v1174, 0.7978846
  %v1256 = vmul.f32 %v1175, 0.7978846
  %v1257 = vmul.f32 %v1176, 0.7978846
  %v1258 = vmul.f32 %v1177, 0.7978846
  %v1259 = vmul.f32 %v1178, 0.7978846
  %v1260 = vmul.f32 %v1179, 0.7978846
  %v1261 = vmul.f32 %v1180, 0.7978846
  %v1262 = vmul.f32 %v1181, 0.7978846
  %v1263 = vmul.f32 %v1182, 0.7978846
  %v1264 = vmul.f32 %v1183, 0.7978846
  %v1265 = vmul.f32 %v1184, 0.7978846
  %v1266 = vmul.f32 %v1185, 0.7978846
  %v1267 = vmul.f32 %v1186, 0.7978846
  %v1268 = vmul.f32 %v1187, 0.7978846
  %v1269 = vmul.f32 %v1188, 0.7978846
  %v1270 = vmul.f32 %v1189, 0.7978846
  %v1271 = vmul.f32 %v1190, 0.7978846
  %v1272 = vmul.f32 %v1191, 0.7978846
  %v1273 = vmul.f32 %v1192, 0.7978846
  %v1274 = vmul.f32 %v1193, 0.7978846
  %v1275 = vmul.f32 %v1194, 0.7978846
  %v1276 = vmul.f32 %v1195, 0.7978846
  %v1277 = vmul.f32 %v1196, 0.7978846
  %v1278 = vmul.f32 %v1197, 0.7978846
  %v1279 = vmul.f32 %v1198, 0.7978846
  %v1280 = vmul.f32 %v1199, 0.7978846
  %v1281 = vmul.f32 %v1200, 0.7978846
  %v1282 = vmul.f32 %v1201, 0.7978846
  %v1283 = vmul.f32 %v1202, 0.7978846
  %v1284 = vmul.f32 %v1203, 0.7978846
  %v1285 = vmul.f32 %v1204, 0.7978846
  %v1286 = vmul.f32 %v1205, 0.7978846
  %v1287 = vmul.f32 %v1206, 0.7978846
  %v1288 = vmul.f32 %v1207, 0.7978846
  %v1289 = vmul.f32 %v1208, 0.7978846
  %v1290 = vmul.f32 %v1209, 0.7978846
  %v1291 = vmul.f32 %v1210, 0.7978846
  %v1292 = vmul.f32 %v1211, 0.7978846
  %v1293 = vmul.f32 %v1212, 0.7978846
  %v1294 = vmul.f32 %v1213, 0.7978846
  %v1295 = vtanh.pop %v1214
  %v1296 = vtanh.pop %v1215
  %v1297 = vtanh.pop %v1216
  %v1298 = vtanh.pop %v1217
  %v1299 = vtanh.pop %v1218
  %v1300 = vtanh.pop %v1219
  %v1301 = vtanh.pop %v1220
  %v1302 = vtanh.pop %v1221
  %v1303 = vtanh.pop %v1222
  %v1304 = vtanh.pop %v1223
  %v1305 = vtanh.pop %v1224
  %v1306 = vtanh.pop %v1225
  %v1307 = vtanh.pop %v1226
  %v1308 = vtanh.pop %v1227
  %v1309 = vtanh.pop %v1228
  %v1310 = vtanh.pop %v1229
  %v1311 = vtanh.pop %v1230
  %v1312 = vtanh.pop %v1231
  %v1313 = vtanh.pop %v1232
  %v1314 = vtanh.pop %v1233
  %v1315 = vtanh.pop %v1234
  %v1316 = vtanh.pop %v1235
  %v1317 = vtanh.pop %v1236
  %v1318 = vtanh.pop %v1237
  %v1319 = vtanh.pop %v1238
  %v1320 = vtanh.pop %v1239
  %v1321 = vtanh.pop %v1240
  %v1322 = vtanh.pop %v1241
  %v1323 = vtanh.pop %v1242
  %v1324 = vtanh.pop %v1243
  %v1325 = vtanh.pop %v1244
  %v1326 = vtanh.pop %v1245
  %v1327 = vtanh.pop %v1246
  %v1328 = vtanh.pop %v1247
  %v1329 = vtanh.pop %v1248
  %v1330 = vtanh.pop %v1249
  %v1331 = vtanh.pop %v1250
  %v1332 = vtanh.pop %v1251
  %v1333 = vtanh.pop %v1252
  %v1334 = vtanh.pop %v1253
  %v1335 = vtanh.pop %v1254
  %v1336 = vtanh.pop %v1255
  %v1337 = vtanh.pop %v1256
  %v1338 = vtanh.pop %v1257
  %v1339 = vtanh.pop %v1258
  %v1340 = vtanh.pop %v1259
  %v1341 = vtanh.pop %v1260
  %v1342 = vtanh.pop %v1261
  %v1343 = vtanh.pop %v1262
  %v1344 = vtanh.pop %v1263
  %v1345 = vtanh.pop %v1264
  %v1346 = vtanh.pop %v1265
  %v1347 = vtanh.pop %v1266
  %v1348 = vtanh.pop %v1267
  %v1349 = vtanh.pop %v1268
  %v1350 = vtanh.pop %v1269
  %v1351 = vtanh.pop %v1270
  %v1352 = vtanh.pop %v1271
  %v1353 = vtanh.pop %v1272
  %v1354 = vtanh.pop %v1273
  %v1355 = vtanh.pop %v1274
  %v1356 = vtanh.pop %v1275
  %v1357 = vtanh.pop %v1276
  %v1358 = vtanh.pop %v1277
  %v1359 = vtanh.pop %v1278
  %v1360 = vtanh.pop %v1279
  %v1361 = vtanh.pop %v1280
  %v1362 = vtanh.pop %v1281
  %v1363 = vtanh.pop %v1282
  %v1364 = vtanh.pop %v1283
  %v1365 = vtanh.pop %v1284
  %v1366 = vtanh.pop %v1285
  %v1367 = vtanh.pop %v1286
  %v1368 = vtanh.pop %v1287
  %v1369 = vtanh.pop %v1288
  %v1370 = vtanh.pop %v1289
  %v1371 = vtanh.pop %v1290
  %v1372 = vtanh.pop %v1291
  %v1373 = vtanh.pop %v1292
  %v1374 = vtanh.pop %v1293
  %v1375 = vtanh.pop %v1294
  %v1376 = vadd.f32 %v1295, 1.0
  %v1377 = vadd.f32 %v1296, 1.0
  %v1378 = vadd.f32 %v1297, 1.0
  %v1379 = vadd.f32 %v1298, 1.0
  %v1380 = vadd.f32 %v1299, 1.0
  %v1381 = vadd.f32 %v1300, 1.0
  %v1382 = vadd.f32 %v1301, 1.0
  %v1383 = vadd.f32 %v1302, 1.0
  %v1384 = vadd.f32 %v1303, 1.0
  %v1385 = vadd.f32 %v1304, 1.0
  %v1386 = vadd.f32 %v1305, 1.0
  %v1387 = vadd.f32 %v1306, 1.0
  %v1388 = vadd.f32 %v1307, 1.0
  %v1389 = vadd.f32 %v1308, 1.0
  %v1390 = vadd.f32 %v1309, 1.0
  %v1391 = vadd.f32 %v1310, 1.0
  %v1392 = vadd.f32 %v1311, 1.0
  %v1393 = vadd.f32 %v1312, 1.0
  %v1394 = vadd.f32 %v1313, 1.0
  %v1395 = vadd.f32 %v1314, 1.0
  %v1396 = vadd.f32 %v1315, 1.0
  %v1397 = vadd.f32 %v1316, 1.0
  %v1398 = vadd.f32 %v1317, 1.0
  %v1399 = vadd.f32 %v1318, 1.0
  %v1400 = vadd.f32 %v1319, 1.0
  %v1401 = vadd.f32 %v1320, 1.0
  %v1402 = vadd.f32 %v1321, 1.0
  %v1403 = vadd.f32 %v1322, 1.0
  %v1404 = vadd.f32 %v1323, 1.0
  %v1405 = vadd.f32 %v1324, 1.0
  %v1406 = vadd.f32 %v1325, 1.0
  %v1407 = vadd.f32 %v1326, 1.0
  %v1408 = vadd.f32 %v1327, 1.0
  %v1409 = vadd.f32 %v1328, 1.0
  %v1410 = vadd.f32 %v1329, 1.0
  %v1411 = vadd.f32 %v1330, 1.0
  %v1412 = vadd.f32 %v1331, 1.0
  %v1413 = vadd.f32 %v1332, 1.0
  %v1414 = vadd.f32 %v1333, 1.0
  %v1415 = vadd.f32 %v1334, 1.0
  %v1416 = vadd.f32 %v1335, 1.0
  %v1417 = vadd.f32 %v1336, 1.0
  %v1418 = vadd.f32 %v1337, 1.0
  %v1419 = vadd.f32 %v1338, 1.0
  %v1420 = vadd.f32 %v1339, 1.0
  %v1421 = vadd.f32 %v1340, 1.0
  %v1422 = vadd.f32 %v1341, 1.0
  %v1423 = vadd.f32 %v1342, 1.0
  %v1424 = vadd.f32 %v1343, 1.0
  %v1425 = vadd.f32 %v1344, 1.0
  %v1426 = vadd.f32 %v1345, 1.0
  %v1427 = vadd.f32 %v1346, 1.0
  %v1428 = vadd.f32 %v1347, 1.0
  %v1429 = vadd.f32 %v1348, 1.0
  %v1430 = vadd.f32 %v1349, 1.0
  %v1431 = vadd.f32 %v1350, 1.0
  %v1432 = vadd.f32 %v1351, 1.0
  %v1433 = vadd.f32 %v1352, 1.0
  %v1434 = vadd.f32 %v1353, 1.0
  %v1435 = vadd.f32 %v1354, 1.0
  %v1436 = vadd.f32 %v1355, 1.0
  %v1437 = vadd.f32 %v1356, 1.0
  %v1438 = vadd.f32 %v1357, 1.0
  %v1439 = vadd.f32 %v1358, 1.0
  %v1440 = vadd.f32 %v1359, 1.0
  %v1441 = vadd.f32 %v1360, 1.0
  %v1442 = vadd.f32 %v1361, 1.0
  %v1443 = vadd.f32 %v1362, 1.0
  %v1444 = vadd.f32 %v1363, 1.0
  %v1445 = vadd.f32 %v1364, 1.0
  %v1446 = vadd.f32 %v1365, 1.0
  %v1447 = vadd.f32 %v1366, 1.0
  %v1448 = vadd.f32 %v1367, 1.0
  %v1449 = vadd.f32 %v1368, 1.0
  %v1450 = vadd.f32 %v1369, 1.0
  %v1451 = vadd.f32 %v1370, 1.0
  %v1452 = vadd.f32 %v1371, 1.0
  %v1453 = vadd.f32 %v1372, 1.0
  %v1454 = vadd.f32 %v1373, 1.0
  %v1455 = vadd.f32 %v1374, 1.0
  %v1456 = vadd.f32 %v1375, 1.0
  %v1457 = vmul.f32 %v809, %v1376
  %v1458 = vmul.f32 %v810, %v1377
  %v1459 = vmul.f32 %v811, %v1378
  %v1460 = vmul.f32 %v812, %v1379
  %v1461 = vmul.f32 %v813, %v1380
  %v1462 = vmul.f32 %v814, %v1381
  %v1463 = vmul.f32 %v815, %v1382
  %v1464 = vmul.f32 %v816, %v1383
  %v1465 = vmul.f32 %v817, %v1384
  %v1466 = vmul.f32 %v818, %v1385
  %v1467 = vmul.f32 %v819, %v1386
  %v1468 = vmul.f32 %v820, %v1387
  %v1469 = vmul.f32 %v821, %v1388
  %v1470 = vmul.f32 %v822, %v1389
  %v1471 = vmul.f32 %v823, %v1390
  %v1472 = vmul.f32 %v824, %v1391
  %v1473 = vmul.f32 %v825, %v1392
  %v1474 = vmul.f32 %v826, %v1393
  %v1475 = vmul.f32 %v827, %v1394
  %v1476 = vmul.f32 %v828, %v1395
  %v1477 = vmul.f32 %v829, %v1396
  %v1478 = vmul.f32 %v830, %v1397
  %v1479 = vmul.f32 %v831, %v1398
  %v1480 = vmul.f32 %v832, %v1399
  %v1481 = vmul.f32 %v833, %v1400
  %v1482 = vmul.f32 %v834, %v1401
  %v1483 = vmul.f32 %v835, %v1402
  %v1484 = vmul.f32 %v836, %v1403
  %v1485 = vmul.f32 %v837, %v1404
  %v1486 = vmul.f32 %v838, %v1405
  %v1487 = vmul.f32 %v839, %v1406
  %v1488 = vmul.f32 %v840, %v1407
  %v1489 = vmul.f32 %v841, %v1408
  %v1490 = vmul.f32 %v842, %v1409
  %v1491 = vmul.f32 %v843, %v1410
  %v1492 = vmul.f32 %v844, %v1411
  %v1493 = vmul.f32 %v845, %v1412
  %v1494 = vmul.f32 %v846, %v1413
  %v1495 = vmul.f32 %v847, %v1414
  %v1496 = vmul.f32 %v848, %v1415
  %v1497 = vmul.f32 %v849, %v1416
  %v1498 = vmul.f32 %v850, %v1417
  %v1499 = vmul.f32 %v851, %v1418
  %v1500 = vmul.f32 %v852, %v1419
  %v1501 = vmul.f32 %v853, %v1420
  %v1502 = vmul.f32 %v854, %v1421
  %v1503 = vmul.f32 %v855, %v1422
  %v1504 = vmul.f32 %v856, %v1423
  %v1505 = vmul.f32 %v857, %v1424
  %v1506 = vmul.f32 %v858, %v1425
  %v1507 = vmul.f32 %v859, %v1426
  %v1508 = vmul.f32 %v860, %v1427
  %v1509 = vmul.f32 %v861, %v1428
  %v1510 = vmul.f32 %v862, %v1429
  %v1511 = vmul.f32 %v863, %v1430
  %v1512 = vmul.f32 %v864, %v1431
  %v1513 = vmul.f32 %v865, %v1432
  %v1514 = vmul.f32 %v866, %v1433
  %v1515 = vmul.f32 %v867, %v1434
  %v1516 = vmul.f32 %v868, %v1435
  %v1517 = vmul.f32 %v869, %v1436
  %v1518 = vmul.f32 %v870, %v1437
  %v1519 = vmul.f32 %v871, %v1438
  %v1520 = vmul.f32 %v872, %v1439
  %v1521 = vmul.f32 %v873, %v1440
  %v1522 = vmul.f32 %v874, %v1441
  %v1523 = vmul.f32 %v875, %v1442
  %v1524 = vmul.f32 %v876, %v1443
  %v1525 = vmul.f32 %v877, %v1444
  %v1526 = vmul.f32 %v878, %v1445
  %v1527 = vmul.f32 %v879, %v1446
  %v1528 = vmul.f32 %v880, %v1447
  %v1529 = vmul.f32 %v881, %v1448
  %v1530 = vmul.f32 %v882, %v1449
  %v1531 = vmul.f32 %v883, %v1450
  %v1532 = vmul.f32 %v884, %v1451
  %v1533 = vmul.f32 %v885, %v1452
  %v1534 = vmul.f32 %v886, %v1453
  %v1535 = vmul.f32 %v887, %v1454
  %v1536 = vmul.f32 %v888, %v1455
  %v1537 = vmul.f32 %v889, %v1456
  %1538 = vst.msk [vmem:[%s4] sm:$0xff] %vm163, %v1457
  %1539 = vst.msk [vmem:[%s4 + $0x8] sm:$0xff] %vm163, %v1458
  %1540 = vst.msk [vmem:[%s4 + $0x10] sm:$0xff] %vm163, %v1459
  %1541 = vst.msk [vmem:[%s4 + $0x18] sm:$0xff] %vm163, %v1460
  %1542 = vst.msk [vmem:[%s4 + $0x20] sm:$0xff] %vm163, %v1461
  %1543 = vst.msk [vmem:[%s4 + $0x28] sm:$0xff] %vm163, %v1462
  %1544 = vst.msk [vmem:[%s4 + $0x30] sm:$0xff] %vm163, %v1463
  %1545 = vst.msk [vmem:[%s4 + $0x38] sm:$0xff] %vm163, %v1464
  %1546 = vst.msk [vmem:[%s4 + $0x40] sm:$0xff] %vm163, %v1465
  %1547 = vst.msk [vmem:[%s4 + $0x48] sm:$0xff] %vm163, %v1466
  %1548 = vst.msk [vmem:[%s4 + $0x50] sm:$0xff] %vm163, %v1467
  %1549 = vst.msk [vmem:[%s4 + $0x58] sm:$0xff] %vm163, %v1468
  %1550 = vst.msk [vmem:[%s4 + $0x60] sm:$0xff] %vm163, %v1469
  %1551 = vst.msk [vmem:[%s4 + $0x68] sm:$0xff] %vm163, %v1470
  %1552 = vst.msk [vmem:[%s4 + $0x70] sm:$0xff] %vm163, %v1471
  %1553 = vst.msk [vmem:[%s4 + $0x78] sm:$0xff] %vm163, %v1472
  %1554 = vst.msk [vmem:[%s4 + $0x80] sm:$0xff] %vm163, %v1473
  %1555 = vst.msk [vmem:[%s4 + $0x88] sm:$0xff] %vm163, %v1474
  %1556 = vst.msk [vmem:[%s4 + $0x90] sm:$0xff] %vm163, %v1475
  %1557 = vst.msk [vmem:[%s4 + $0x98] sm:$0xff] %vm163, %v1476
  %1558 = vst.msk [vmem:[%s4 + $0xa0] sm:$0xff] %vm163, %v1477
  %1559 = vst.msk [vmem:[%s4 + $0xa8] sm:$0xff] %vm163, %v1478
  %1560 = vst.msk [vmem:[%s4 + $0xb0] sm:$0xff] %vm163, %v1479
  %1561 = vst.msk [vmem:[%s4 + $0xb8] sm:$0xff] %vm163, %v1480
  %1562 = vst.msk [vmem:[%s4 + $0xc0] sm:$0xff] %vm163, %v1481
  %1563 = vst.msk [vmem:[%s4 + $0xc8] sm:$0xff] %vm163, %v1482
  %1564 = vst.msk [vmem:[%s4 + $0xd0] sm:$0xff] %vm163, %v1483
  %1565 = vst.msk [vmem:[%s4 + $0xd8] sm:$0xff] %vm163, %v1484
  %1566 = vst.msk [vmem:[%s4 + $0xe0] sm:$0xff] %vm163, %v1485
  %1567 = vst.msk [vmem:[%s4 + $0xe8] sm:$0xff] %vm163, %v1486
  %1568 = vst.msk [vmem:[%s4 + $0xf0] sm:$0xff] %vm163, %v1487
  %1569 = vst.msk [vmem:[%s4 + $0xf8] sm:$0xff] %vm163, %v1488
  %1570 = vst.msk [vmem:[%s4 + $0x100] sm:$0xff] %vm163, %v1489
  %1571 = vst.msk [vmem:[%s4 + $0x108] sm:$0xff] %vm163, %v1490
  %1572 = vst.msk [vmem:[%s4 + $0x110] sm:$0xff] %vm163, %v1491
  %1573 = vst.msk [vmem:[%s4 + $0x118] sm:$0xff] %vm163, %v1492
  %1574 = vst.msk [vmem:[%s4 + $0x120] sm:$0xff] %vm163, %v1493
  %1575 = vst.msk [vmem:[%s4 + $0x128] sm:$0xff] %vm163, %v1494
  %1576 = vst.msk [vmem:[%s4 + $0x130] sm:$0xff] %vm163, %v1495
  %1577 = vst.msk [vmem:[%s4 + $0x138] sm:$0xff] %vm163, %v1496
  %1578 = vst.msk [vmem:[%s4 + $0x140] sm:$0xff] %vm163, %v1497
  %1579 = vst.msk [vmem:[%s4 + $0x148] sm:$0xff] %vm163, %v1498
  %1580 = vst.msk [vmem:[%s4 + $0x150] sm:$0xff] %vm163, %v1499
  %1581 = vst.msk [vmem:[%s4 + $0x158] sm:$0xff] %vm163, %v1500
  %1582 = vst.msk [vmem:[%s4 + $0x160] sm:$0xff] %vm163, %v1501
  %1583 = vst.msk [vmem:[%s4 + $0x168] sm:$0xff] %vm163, %v1502
  %1584 = vst.msk [vmem:[%s4 + $0x170] sm:$0xff] %vm163, %v1503
  %1585 = vst.msk [vmem:[%s4 + $0x178] sm:$0xff] %vm163, %v1504
  %1586 = vst.msk [vmem:[%s4 + $0x180] sm:$0xff] %vm163, %v1505
  %1587 = vst.msk [vmem:[%s4 + $0x188] sm:$0xff] %vm163, %v1506
  %1588 = vst.msk [vmem:[%s4 + $0x190] sm:$0xff] %vm163, %v1507
  %1589 = vst.msk [vmem:[%s4 + $0x198] sm:$0xff] %vm163, %v1508
  %1590 = vst.msk [vmem:[%s4 + $0x1a0] sm:$0xff] %vm163, %v1509
  %1591 = vst.msk [vmem:[%s4 + $0x1a8] sm:$0xff] %vm163, %v1510
  %1592 = vst.msk [vmem:[%s4 + $0x1b0] sm:$0xff] %vm163, %v1511
  %1593 = vst.msk [vmem:[%s4 + $0x1b8] sm:$0xff] %vm163, %v1512
  %1594 = vst.msk [vmem:[%s4 + $0x1c0] sm:$0xff] %vm163, %v1513
  %1595 = vst.msk [vmem:[%s4 + $0x1c8] sm:$0xff] %vm163, %v1514
  %1596 = vst.msk [vmem:[%s4 + $0x1d0] sm:$0xff] %vm163, %v1515
  %1597 = vst.msk [vmem:[%s4 + $0x1d8] sm:$0xff] %vm163, %v1516
  %1598 = vst.msk [vmem:[%s4 + $0x1e0] sm:$0xff] %vm163, %v1517
  %1599 = vst.msk [vmem:[%s4 + $0x1e8] sm:$0xff] %vm163, %v1518
  %1600 = vst.msk [vmem:[%s4 + $0x1f0] sm:$0xff] %vm163, %v1519
  %1601 = vst.msk [vmem:[%s4 + $0x1f8] sm:$0xff] %vm163, %v1520
  %1602 = vst.msk [vmem:[%s4 + $0x200] sm:$0xff] %vm163, %v1521
  %1603 = vst.msk [vmem:[%s4 + $0x208] sm:$0xff] %vm163, %v1522
  %1604 = vst.msk [vmem:[%s4 + $0x210] sm:$0xff] %vm163, %v1523
  %1605 = vst.msk [vmem:[%s4 + $0x218] sm:$0xff] %vm163, %v1524
  %1606 = vst.msk [vmem:[%s4 + $0x220] sm:$0xff] %vm163, %v1525
  %1607 = vst.msk [vmem:[%s4 + $0x228] sm:$0xff] %vm163, %v1526
  %1608 = vst.msk [vmem:[%s4 + $0x230] sm:$0xff] %vm163, %v1527
  %1609 = vst.msk [vmem:[%s4 + $0x238] sm:$0xff] %vm163, %v1528
  %1610 = vst.msk [vmem:[%s4 + $0x240] sm:$0xff] %vm163, %v1529
  %1611 = vst.msk [vmem:[%s4 + $0x248] sm:$0xff] %vm163, %v1530
  %1612 = vst.msk [vmem:[%s4 + $0x250] sm:$0xff] %vm163, %v1531
  %1613 = vst.msk [vmem:[%s4 + $0x258] sm:$0xff] %vm163, %v1532
  %1614 = vst.msk [vmem:[%s4 + $0x260] sm:$0xff] %vm163, %v1533
  %1615 = vst.msk [vmem:[%s4 + $0x268] sm:$0xff] %vm163, %v1534
  %1616 = vst.msk [vmem:[%s4 + $0x270] sm:$0xff] %vm163, %v1535
  %1617 = vst.msk [vmem:[%s4 + $0x278] sm:$0xff] %vm163, %v1536
  %1618 = vst.msk [vmem:[%s4 + $0x280] sm:$0xff] %vm163, %v1537
  // Predicated region
  $region18: #{freqmoe_forward.12} parent=0 // pred_check
    _
  $region19: #{freqmoe_forward.12} parent=0 // pred_check_branch
    %1620 = sbr.rel (0) target = $region21
  $region20: #{freqmoe_forward.12} parent=0 // pred_region
    _
  $region21: #{freqmoe_forward.12} parent=0 // pred_fallthru
    _
  // Predicated region
  $region22: #{freqmoe_forward.12} parent=0 // pred_check
    _
  $region23: #{freqmoe_forward.12} parent=0 // pred_check_branch
    %1622 = sbr.rel (0) target = $region25
  $region24: #{freqmoe_forward.12} parent=0 // pred_region
    _
  $region25: #{freqmoe_forward.12} parent=0 // pred_fallthru
    _

// kernel: freqmoe_forward.18
$region0: #{freqmoe_forward.18}
  #allocation0 [shape = 'u32[]', space=smem, size = 0x4, offset = 0x4, fixed_abs, tag = 'smem constant byte address 0x4 - core index']
  #allocation1 [shape = 'u32[144,128]{1,0:T(1,128)}', space=vmem, size = 0x12000, scoped, tag = 'internal scratch']
  %s0 = inlined_call_operand.vmem [shape: f32[648,32], index: 0, kind: input, shape index: {}]
  %s1 = inlined_call_operand.vmem [shape: bf16[32,32], index: 1, kind: input, shape index: {}]
  %s2 = inlined_call_operand.vmem [shape: f32[1,32], index: 2, kind: input, shape index: {}]
  %s3 = inlined_call_operand.vmem [shape: f32[648,32], index: 3, kind: input, shape index: {}]
  %s4 = inlined_call_operand.vmem [shape: f32[648,32], index: 4, kind: output, shape index: {}]
  %s5 = sld [smem:[#allocation0]]
  $region26: #{freqmoe_forward.18} parent=0
    _
  %s7 = ssub.s32 1, %s5
  %s8 = scalar_select 0, %s7, %s5
  // Predicated region
  $region2: #{freqmoe_forward.18} parent=0 // pred_check
    _
  $region3: #{freqmoe_forward.18} parent=0 // pred_check_branch
    %10 = sbr.rel (0) target = $region5
  $region4: #{freqmoe_forward.18} parent=0 // pred_region
    _
  $region5: #{freqmoe_forward.18} parent=0 // pred_fallthru
    _
  // Predicated region
  $region6: #{freqmoe_forward.18} parent=0 // pred_check
    _
  $region7: #{freqmoe_forward.18} parent=0 // pred_check_branch
    %12 = sbr.rel (0) target = $region9
  $region8: #{freqmoe_forward.18} parent=0 // pred_region
    _
  $region9: #{freqmoe_forward.18} parent=0 // pred_fallthru
    _
  // Predicated region
  $region10: #{freqmoe_forward.18} parent=0 // pred_check
    _
  $region11: #{freqmoe_forward.18} parent=0 // pred_check_branch
    %14 = sbr.rel (0) target = $region13
  $region12: #{freqmoe_forward.18} parent=0 // pred_region
    _
  $region13: #{freqmoe_forward.18} parent=0 // pred_fallthru
    _
  // Predicated region
  $region14: #{freqmoe_forward.18} parent=0 // pred_check
    _
  $region15: #{freqmoe_forward.18} parent=0 // pred_check_branch
    %16 = sbr.rel (0) target = $region17
  $region16: #{freqmoe_forward.18} parent=0 // pred_region
    _
  $region17: #{freqmoe_forward.18} parent=0 // pred_fallthru
    _
  %v18 = vld [vmem:[%s0] sm:$0xff]
  %v19 = vld [vmem:[%s0 + $0x8] sm:$0xff]
  %v20 = vld [vmem:[%s0 + $0x10] sm:$0xff]
  %v21 = vld [vmem:[%s0 + $0x18] sm:$0xff]
  %v22 = vld [vmem:[%s0 + $0x20] sm:$0xff]
  %v23 = vld [vmem:[%s0 + $0x28] sm:$0xff]
  %v24 = vld [vmem:[%s0 + $0x30] sm:$0xff]
  %v25 = vld [vmem:[%s0 + $0x38] sm:$0xff]
  %v26 = vld [vmem:[%s0 + $0x40] sm:$0xff]
  %v27 = vld [vmem:[%s0 + $0x48] sm:$0xff]
  %v28 = vld [vmem:[%s0 + $0x50] sm:$0xff]
  %v29 = vld [vmem:[%s0 + $0x58] sm:$0xff]
  %v30 = vld [vmem:[%s0 + $0x60] sm:$0xff]
  %v31 = vld [vmem:[%s0 + $0x68] sm:$0xff]
  %v32 = vld [vmem:[%s0 + $0x70] sm:$0xff]
  %v33 = vld [vmem:[%s0 + $0x78] sm:$0xff]
  %v34 = vld [vmem:[%s0 + $0x80] sm:$0xff]
  %v35 = vld [vmem:[%s0 + $0x88] sm:$0xff]
  %v36 = vld [vmem:[%s0 + $0x90] sm:$0xff]
  %v37 = vld [vmem:[%s0 + $0x98] sm:$0xff]
  %v38 = vld [vmem:[%s0 + $0xa0] sm:$0xff]
  %v39 = vld [vmem:[%s0 + $0xa8] sm:$0xff]
  %v40 = vld [vmem:[%s0 + $0xb0] sm:$0xff]
  %v41 = vld [vmem:[%s0 + $0xb8] sm:$0xff]
  %v42 = vld [vmem:[%s0 + $0xc0] sm:$0xff]
  %v43 = vld [vmem:[%s0 + $0xc8] sm:$0xff]
  %v44 = vld [vmem:[%s0 + $0xd0] sm:$0xff]
  %v45 = vld [vmem:[%s0 + $0xd8] sm:$0xff]
  %v46 = vld [vmem:[%s0 + $0xe0] sm:$0xff]
  %v47 = vld [vmem:[%s0 + $0xe8] sm:$0xff]
  %v48 = vld [vmem:[%s0 + $0xf0] sm:$0xff]
  %v49 = vld [vmem:[%s0 + $0xf8] sm:$0xff]
  %v50 = vld [vmem:[%s0 + $0x100] sm:$0xff]
  %v51 = vld [vmem:[%s0 + $0x108] sm:$0xff]
  %v52 = vld [vmem:[%s0 + $0x110] sm:$0xff]
  %v53 = vld [vmem:[%s0 + $0x118] sm:$0xff]
  %v54 = vld [vmem:[%s0 + $0x120] sm:$0xff]
  %v55 = vld [vmem:[%s0 + $0x128] sm:$0xff]
  %v56 = vld [vmem:[%s0 + $0x130] sm:$0xff]
  %v57 = vld [vmem:[%s0 + $0x138] sm:$0xff]
  %v58 = vld [vmem:[%s0 + $0x140] sm:$0xff]
  %v59 = vld [vmem:[%s0 + $0x148] sm:$0xff]
  %v60 = vld [vmem:[%s0 + $0x150] sm:$0xff]
  %v61 = vld [vmem:[%s0 + $0x158] sm:$0xff]
  %v62 = vld [vmem:[%s0 + $0x160] sm:$0xff]
  %v63 = vld [vmem:[%s0 + $0x168] sm:$0xff]
  %v64 = vld [vmem:[%s0 + $0x170] sm:$0xff]
  %v65 = vld [vmem:[%s0 + $0x178] sm:$0xff]
  %v66 = vld [vmem:[%s0 + $0x180] sm:$0xff]
  %v67 = vld [vmem:[%s0 + $0x188] sm:$0xff]
  %v68 = vld [vmem:[%s0 + $0x190] sm:$0xff]
  %v69 = vld [vmem:[%s0 + $0x198] sm:$0xff]
  %v70 = vld [vmem:[%s0 + $0x1a0] sm:$0xff]
  %v71 = vld [vmem:[%s0 + $0x1a8] sm:$0xff]
  %v72 = vld [vmem:[%s0 + $0x1b0] sm:$0xff]
  %v73 = vld [vmem:[%s0 + $0x1b8] sm:$0xff]
  %v74 = vld [vmem:[%s0 + $0x1c0] sm:$0xff]
  %v75 = vld [vmem:[%s0 + $0x1c8] sm:$0xff]
  %v76 = vld [vmem:[%s0 + $0x1d0] sm:$0xff]
  %v77 = vld [vmem:[%s0 + $0x1d8] sm:$0xff]
  %v78 = vld [vmem:[%s0 + $0x1e0] sm:$0xff]
  %v79 = vld [vmem:[%s0 + $0x1e8] sm:$0xff]
  %v80 = vld [vmem:[%s0 + $0x1f0] sm:$0xff]
  %v81 = vld [vmem:[%s0 + $0x1f8] sm:$0xff]
  %v82 = vld [vmem:[%s0 + $0x200] sm:$0xff]
  %v83 = vld [vmem:[%s0 + $0x208] sm:$0xff]
  %v84 = vld [vmem:[%s0 + $0x210] sm:$0xff]
  %v85 = vld [vmem:[%s0 + $0x218] sm:$0xff]
  %v86 = vld [vmem:[%s0 + $0x220] sm:$0xff]
  %v87 = vld [vmem:[%s0 + $0x228] sm:$0xff]
  %v88 = vld [vmem:[%s0 + $0x230] sm:$0xff]
  %v89 = vld [vmem:[%s0 + $0x238] sm:$0xff]
  %v90 = vld [vmem:[%s0 + $0x240] sm:$0xff]
  %v91 = vld [vmem:[%s0 + $0x248] sm:$0xff]
  %v92 = vld [vmem:[%s0 + $0x250] sm:$0xff]
  %v93 = vld [vmem:[%s0 + $0x258] sm:$0xff]
  %v94 = vld [vmem:[%s0 + $0x260] sm:$0xff]
  %v95 = vld [vmem:[%s0 + $0x268] sm:$0xff]
  %v96 = vld [vmem:[%s0 + $0x270] sm:$0xff]
  %v97 = vld [vmem:[%s0 + $0x278] sm:$0xff]
  %v98 = vld [vmem:[%s0 + $0x280] sm:$0xff]
  %v99 = vpack.c.bf16 %v19, %v18
  %v100 = vpack.c.bf16 %v21, %v20
  %v101 = vpack.c.bf16 %v23, %v22
  %v102 = vpack.c.bf16 %v25, %v24
  %v103 = vpack.c.bf16 %v27, %v26
  %v104 = vpack.c.bf16 %v29, %v28
  %v105 = vpack.c.bf16 %v31, %v30
  %v106 = vpack.c.bf16 %v33, %v32
  %v107 = vpack.c.bf16 %v35, %v34
  %v108 = vpack.c.bf16 %v37, %v36
  %v109 = vpack.c.bf16 %v39, %v38
  %v110 = vpack.c.bf16 %v41, %v40
  %v111 = vpack.c.bf16 %v43, %v42
  %v112 = vpack.c.bf16 %v45, %v44
  %v113 = vpack.c.bf16 %v47, %v46
  %v114 = vpack.c.bf16 %v49, %v48
  %v115 = vpack.c.bf16 %v51, %v50
  %v116 = vpack.c.bf16 %v53, %v52
  %v117 = vpack.c.bf16 %v55, %v54
  %v118 = vpack.c.bf16 %v57, %v56
  %v119 = vpack.c.bf16 %v59, %v58
  %v120 = vpack.c.bf16 %v61, %v60
  %v121 = vpack.c.bf16 %v63, %v62
  %v122 = vpack.c.bf16 %v65, %v64
  %v123 = vpack.c.bf16 %v67, %v66
  %v124 = vpack.c.bf16 %v69, %v68
  %v125 = vpack.c.bf16 %v71, %v70
  %v126 = vpack.c.bf16 %v73, %v72
  %v127 = vpack.c.bf16 %v75, %v74
  %v128 = vpack.c.bf16 %v77, %v76
  %v129 = vpack.c.bf16 %v79, %v78
  %v130 = vpack.c.bf16 %v81, %v80
  %v131 = vpack.c.bf16 %v83, %v82
  %v132 = vpack.c.bf16 %v85, %v84
  %v133 = vpack.c.bf16 %v87, %v86
  %v134 = vpack.c.bf16 %v89, %v88
  %v135 = vpack.c.bf16 %v91, %v90
  %v136 = vpack.c.bf16 %v93, %v92
  %v137 = vpack.c.bf16 %v95, %v94
  %v138 = vpack.c.bf16 %v97, %v96
  %v139 = vpack.c.bf16 %v98, %v98
  %v140 = vld [vmem:[%s1] sm:$0xf]
  %v141 = vld [vmem:[%s1 + $0x4] sm:$0xf]
  %v142 = vld [vmem:[%s1 + $0x8] sm:$0xf]
  %v143 = vld [vmem:[%s1 + $0xc] sm:$0xf]
  %v144 = vld [vmem:[%s2] sm:$0x1]
  %v146 = vlaneseq
  %v147 = vshrl.u32 %v146, 7
  %v148 = vsub.s32 0, %v147
  %v149 = vrot.slane %v144, %v148
  %v155 = vunpack.c.l.b16 %v140
  %v156 = vunpack.c.l.b16 %v141
  %v157 = vunpack.c.l.b16 %v142
  %v158 = vunpack.c.l.b16 %v143
  %v159 = vpack.c.b16 %v156, %v155
  %v160 = vpack.c.b16 %v158, %v157
  %vm163 = vcmask 261120
  %v165 = vsel %vm163, %v99, 0
  %v168 = vsel %vm163, %v100, 0
  %v171 = vsel %vm163, %v101, 0
  %v174 = vsel %vm163, %v102, 0
  %v177 = vsel %vm163, %v103, 0
  %v180 = vsel %vm163, %v104, 0
  %v183 = vsel %vm163, %v105, 0
  %v186 = vsel %vm163, %v106, 0
  %v189 = vsel %vm163, %v107, 0
  %v192 = vsel %vm163, %v108, 0
  %v195 = vsel %vm163, %v109, 0
  %v198 = vsel %vm163, %v110, 0
  %v201 = vsel %vm163, %v111, 0
  %v204 = vsel %vm163, %v112, 0
  %v207 = vsel %vm163, %v113, 0
  %v210 = vsel %vm163, %v114, 0
  %v213 = vsel %vm163, %v115, 0
  %v216 = vsel %vm163, %v116, 0
  %v219 = vsel %vm163, %v117, 0
  %v222 = vsel %vm163, %v118, 0
  %v225 = vsel %vm163, %v119, 0
  %v228 = vsel %vm163, %v120, 0
  %v231 = vsel %vm163, %v121, 0
  %v234 = vsel %vm163, %v122, 0
  %v237 = vsel %vm163, %v123, 0
  %v240 = vsel %vm163, %v124, 0
  %v243 = vsel %vm163, %v125, 0
  %v246 = vsel %vm163, %v126, 0
  %v249 = vsel %vm163, %v127, 0
  %v252 = vsel %vm163, %v128, 0
  %v255 = vsel %vm163, %v129, 0
  %v258 = vsel %vm163, %v130, 0
  %v261 = vsel %vm163, %v131, 0
  %v264 = vsel %vm163, %v132, 0
  %v267 = vsel %vm163, %v133, 0
  %v270 = vsel %vm163, %v134, 0
  %v273 = vsel %vm163, %v135, 0
  %v276 = vsel %vm163, %v136, 0
  %v279 = vsel %vm163, %v137, 0
  %v282 = vsel %vm163, %v138, 0
  %v285 = vsel %vm163, %v139, 0
  %287 = vmatprep.subr.bf16.mxu0 0
  %288 = vmatpush1.bf16.msra.mxu0 %v159
  %289 = vmatprep.subr.bf16.mxu0 0
  %290 = vmatpush1.bf16.msra.mxu0 %v160
  %291 = vmatprep.subr.bf16.mxu0 0
  %292 = vmatpush1.bf16.msra.mxu0 0
  %293 = vmatprep.subr.bf16.mxu0 0
  %294 = vmatpush1.bf16.msra.mxu0 0
  %295 = vmatprep.subr.bf16.mxu0 0
  %296 = vmatpush1.bf16.msra.mxu0 0
  %297 = vmatprep.subr.bf16.mxu0 0
  %298 = vmatpush1.bf16.msra.mxu0 0
  %299 = vmatprep.subr.bf16.mxu0 0
  %300 = vmatpush1.bf16.msra.mxu0 0
  %301 = vmatprep.subr.bf16.mxu0 0
  %302 = vmatpush1.bf16.msra.mxu0 0
  %303 = vmatprep.subr.bf16.mxu0 0
  %304 = vmatpush1.bf16.msra.mxu0 0
  %305 = vmatprep.subr.bf16.mxu0 0
  %306 = vmatpush1.bf16.msra.mxu0 0
  %307 = vmatprep.subr.bf16.mxu0 0
  %308 = vmatpush1.bf16.msra.mxu0 0
  %309 = vmatprep.subr.bf16.mxu0 0
  %310 = vmatpush1.bf16.msra.mxu0 0
  %311 = vmatprep.subr.bf16.mxu0 0
  %312 = vmatpush1.bf16.msra.mxu0 0
  %313 = vmatprep.subr.bf16.mxu0 0
  %314 = vmatpush1.bf16.msra.mxu0 0
  %315 = vmatprep.subr.bf16.mxu0 0
  %316 = vmatpush1.bf16.msra.mxu0 0
  %317 = vmatprep.subr.bf16.mxu0 0
  %318 = vmatpush1.bf16.msra.mxu0 0
  %319 = vmatprep.mubr.bf16.mxu0 0
  %320 = vmatmul.mubr.bf16.gmra.mrb[0].mxu0 %v165
  %v321 = vpop.f32.mrb[0].mxu0
  %v322 = vadd.f32 %v149, %v321
  %v323 = vpop.f32.mrb[0].mxu0
  %v324 = vpop.f32.mrb[0].mxu0
  %v325 = vadd.f32 %v149, %v324
  %v326 = vpop.f32.mrb[0].mxu0
  %327 = vmatprep.mubr.bf16.mxu0 0
  %328 = vmatmul.mubr.bf16.gmra.mrb[0].mxu0 %v168
  %v329 = vpop.f32.mrb[0].mxu0
  %v330 = vadd.f32 %v149, %v329
  %v331 = vpop.f32.mrb[0].mxu0
  %v332 = vpop.f32.mrb[0].mxu0
  %v333 = vadd.f32 %v149, %v332
  %v334 = vpop.f32.mrb[0].mxu0
  %335 = vmatprep.mubr.bf16.mxu0 0
  %336 = vmatmul.mubr.bf16.gmra.mrb[0].mxu0 %v171
  %v337 = vpop.f32.mrb[0].mxu0
  %v338 = vadd.f32 %v149, %v337
  %v339 = vpop.f32.mrb[0].mxu0
  %v340 = vpop.f32.mrb[0].mxu0
  %v341 = vadd.f32 %v149, %v340
  %v342 = vpop.f32.mrb[0].mxu0
  %343 = vmatprep.mubr.bf16.mxu0 0
  %344 = vmatmul.mubr.bf16.gmra.mrb[0].mxu0 %v174
  %v345 = vpop.f32.mrb[0].mxu0
  %v346 = vadd.f32 %v149, %v345
  %v347 = vpop.f32.mrb[0].mxu0
  %v348 = vpop.f32.mrb[0].mxu0
  %v349 = vadd.f32 %v149, %v348
  %v350 = vpop.f32.mrb[0].mxu0
  %351 = vmatprep.mubr.bf16.mxu0 0
  %352 = vmatmul.mubr.bf16.gmra.mrb[0].mxu0 %v177
  %v353 = vpop.f32.mrb[0].mxu0
  %v354 = vadd.f32 %v149, %v353
  %v355 = vpop.f32.mrb[0].mxu0
  %v356 = vpop.f32.mrb[0].mxu0
  %v357 = vadd.f32 %v149, %v356
  %v358 = vpop.f32.mrb[0].mxu0
  %359 = vmatprep.mubr.bf16.mxu0 0
  %360 = vmatmul.mubr.bf16.gmra.mrb[0].mxu0 %v180
  %v361 = vpop.f32.mrb[0].mxu0
  %v362 = vadd.f32 %v149, %v361
  %v363 = vpop.f32.mrb[0].mxu0
  %v364 = vpop.f32.mrb[0].mxu0
  %v365 = vadd.f32 %v149, %v364
  %v366 = vpop.f32.mrb[0].mxu0
  %367 = vmatprep.mubr.bf16.mxu0 0
  %368 = vmatmul.mubr.bf16.gmra.mrb[0].mxu0 %v183
  %v369 = vpop.f32.mrb[0].mxu0
  %v370 = vadd.f32 %v149, %v369
  %v371 = vpop.f32.mrb[0].mxu0
  %v372 = vpop.f32.mrb[0].mxu0
  %v373 = vadd.f32 %v149, %v372
  %v374 = vpop.f32.mrb[0].mxu0
  %375 = vmatprep.mubr.bf16.mxu0 0
  %376 = vmatmul.mubr.bf16.gmra.mrb[0].mxu0 %v186
  %v377 = vpop.f32.mrb[0].mxu0
  %v378 = vadd.f32 %v149, %v377
  %v379 = vpop.f32.mrb[0].mxu0
  %v380 = vpop.f32.mrb[0].mxu0
  %v381 = vadd.f32 %v149, %v380
  %v382 = vpop.f32.mrb[0].mxu0
  %383 = vmatprep.mubr.bf16.mxu0 0
  %384 = vmatmul.mubr.bf16.gmra.mrb[0].mxu0 %v189
  %v385 = vpop.f32.mrb[0].mxu0
  %v386 = vadd.f32 %v149, %v385
  %v387 = vpop.f32.mrb[0].mxu0
  %v388 = vpop.f32.mrb[0].mxu0
  %v389 = vadd.f32 %v149, %v388
  %v390 = vpop.f32.mrb[0].mxu0
  %391 = vmatprep.mubr.bf16.mxu0 0
  %392 = vmatmul.mubr.bf16.gmra.mrb[0].mxu0 %v192
  %v393 = vpop.f32.mrb[0].mxu0
  %v394 = vadd.f32 %v149, %v393
  %v395 = vpop.f32.mrb[0].mxu0
  %v396 = vpop.f32.mrb[0].mxu0
  %v397 = vadd.f32 %v149, %v396
  %v398 = vpop.f32.mrb[0].mxu0
  %399 = vmatprep.mubr.bf16.mxu0 0
  %400 = vmatmul.mubr.bf16.gmra.mrb[0].mxu0 %v195
  %v401 = vpop.f32.mrb[0].mxu0
  %v402 = vadd.f32 %v149, %v401
  %v403 = vpop.f32.mrb[0].mxu0
  %v404 = vpop.f32.mrb[0].mxu0
  %v405 = vadd.f32 %v149, %v404
  %v406 = vpop.f32.mrb[0].mxu0
  %407 = vmatprep.mubr.bf16.mxu0 0
  %408 = vmatmul.mubr.bf16.gmra.mrb[0].mxu0 %v198
  %v409 = vpop.f32.mrb[0].mxu0
  %v410 = vadd.f32 %v149, %v409
  %v411 = vpop.f32.mrb[0].mxu0
  %v412 = vpop.f32.mrb[0].mxu0
  %v413 = vadd.f32 %v149, %v412
  %v414 = vpop.f32.mrb[0].mxu0
  %415 = vmatprep.mubr.bf16.mxu0 0
  %416 = vmatmul.mubr.bf16.gmra.mrb[0].mxu0 %v201
  %v417 = vpop.f32.mrb[0].mxu0
  %v418 = vadd.f32 %v149, %v417
  %v419 = vpop.f32.mrb[0].mxu0
  %v420 = vpop.f32.mrb[0].mxu0
  %v421 = vadd.f32 %v149, %v420
  %v422 = vpop.f32.mrb[0].mxu0
  %423 = vmatprep.mubr.bf16.mxu0 0
  %424 = vmatmul.mubr.bf16.gmra.mrb[0].mxu0 %v204
  %v425 = vpop.f32.mrb[0].mxu0
  %v426 = vadd.f32 %v149, %v425
  %v427 = vpop.f32.mrb[0].mxu0
  %v428 = vpop.f32.mrb[0].mxu0
  %v429 = vadd.f32 %v149, %v428
  %v430 = vpop.f32.mrb[0].mxu0
  %431 = vmatprep.mubr.bf16.mxu0 0
  %432 = vmatmul.mubr.bf16.gmra.mrb[0].mxu0 %v207
  %v433 = vpop.f32.mrb[0].mxu0
  %v434 = vadd.f32 %v149, %v433
  %v435 = vpop.f32.mrb[0].mxu0
  %v436 = vpop.f32.mrb[0].mxu0
  %v437 = vadd.f32 %v149, %v436
  %v438 = vpop.f32.mrb[0].mxu0
  %439 = vmatprep.mubr.bf16.mxu0 0
  %440 = vmatmul.mubr.bf16.gmra.mrb[0].mxu0 %v210
  %v441 = vpop.f32.mrb[0].mxu0
  %v442 = vadd.f32 %v149, %v441
  %v443 = vpop.f32.mrb[0].mxu0
  %v444 = vpop.f32.mrb[0].mxu0
  %v445 = vadd.f32 %v149, %v444
  %v446 = vpop.f32.mrb[0].mxu0
  %447 = vmatprep.mubr.bf16.mxu0 0
  %448 = vmatmul.mubr.bf16.gmra.mrb[0].mxu0 %v213
  %v449 = vpop.f32.mrb[0].mxu0
  %v450 = vadd.f32 %v149, %v449
  %v451 = vpop.f32.mrb[0].mxu0
  %v452 = vpop.f32.mrb[0].mxu0
  %v453 = vadd.f32 %v149, %v452
  %v454 = vpop.f32.mrb[0].mxu0
  %455 = vmatprep.mubr.bf16.mxu0 0
  %456 = vmatmul.mubr.bf16.gmra.mrb[0].mxu0 %v216
  %v457 = vpop.f32.mrb[0].mxu0
  %v458 = vadd.f32 %v149, %v457
  %v459 = vpop.f32.mrb[0].mxu0
  %v460 = vpop.f32.mrb[0].mxu0
  %v461 = vadd.f32 %v149, %v460
  %v462 = vpop.f32.mrb[0].mxu0
  %463 = vmatprep.mubr.bf16.mxu0 0
  %464 = vmatmul.mubr.bf16.gmra.mrb[0].mxu0 %v219
  %v465 = vpop.f32.mrb[0].mxu0
  %v466 = vadd.f32 %v149, %v465
  %v467 = vpop.f32.mrb[0].mxu0
  %v468 = vpop.f32.mrb[0].mxu0
  %v469 = vadd.f32 %v149, %v468
  %v470 = vpop.f32.mrb[0].mxu0
  %471 = vmatprep.mubr.bf16.mxu0 0
  %472 = vmatmul.mubr.bf16.gmra.mrb[0].mxu0 %v222
  %v473 = vpop.f32.mrb[0].mxu0
  %v474 = vadd.f32 %v149, %v473
  %v475 = vpop.f32.mrb[0].mxu0
  %v476 = vpop.f32.mrb[0].mxu0
  %v477 = vadd.f32 %v149, %v476
  %v478 = vpop.f32.mrb[0].mxu0
  %479 = vmatprep.mubr.bf16.mxu0 0
  %480 = vmatmul.mubr.bf16.gmra.mrb[0].mxu0 %v225
  %v481 = vpop.f32.mrb[0].mxu0
  %v482 = vadd.f32 %v149, %v481
  %v483 = vpop.f32.mrb[0].mxu0
  %v484 = vpop.f32.mrb[0].mxu0
  %v485 = vadd.f32 %v149, %v484
  %v486 = vpop.f32.mrb[0].mxu0
  %487 = vmatprep.mubr.bf16.mxu0 0
  %488 = vmatmul.mubr.bf16.gmra.mrb[0].mxu0 %v228
  %v489 = vpop.f32.mrb[0].mxu0
  %v490 = vadd.f32 %v149, %v489
  %v491 = vpop.f32.mrb[0].mxu0
  %v492 = vpop.f32.mrb[0].mxu0
  %v493 = vadd.f32 %v149, %v492
  %v494 = vpop.f32.mrb[0].mxu0
  %495 = vmatprep.mubr.bf16.mxu0 0
  %496 = vmatmul.mubr.bf16.gmra.mrb[0].mxu0 %v231
  %v497 = vpop.f32.mrb[0].mxu0
  %v498 = vadd.f32 %v149, %v497
  %v499 = vpop.f32.mrb[0].mxu0
  %v500 = vpop.f32.mrb[0].mxu0
  %v501 = vadd.f32 %v149, %v500
  %v502 = vpop.f32.mrb[0].mxu0
  %503 = vmatprep.mubr.bf16.mxu0 0
  %504 = vmatmul.mubr.bf16.gmra.mrb[0].mxu0 %v234
  %v505 = vpop.f32.mrb[0].mxu0
  %v506 = vadd.f32 %v149, %v505
  %v507 = vpop.f32.mrb[0].mxu0
  %v508 = vpop.f32.mrb[0].mxu0
  %v509 = vadd.f32 %v149, %v508
  %v510 = vpop.f32.mrb[0].mxu0
  %511 = vmatprep.mubr.bf16.mxu0 0
  %512 = vmatmul.mubr.bf16.gmra.mrb[0].mxu0 %v237
  %v513 = vpop.f32.mrb[0].mxu0
  %v514 = vadd.f32 %v149, %v513
  %v515 = vpop.f32.mrb[0].mxu0
  %v516 = vpop.f32.mrb[0].mxu0
  %v517 = vadd.f32 %v149, %v516
  %v518 = vpop.f32.mrb[0].mxu0
  %519 = vmatprep.mubr.bf16.mxu0 0
  %520 = vmatmul.mubr.bf16.gmra.mrb[0].mxu0 %v240
  %v521 = vpop.f32.mrb[0].mxu0
  %v522 = vadd.f32 %v149, %v521
  %v523 = vpop.f32.mrb[0].mxu0
  %v524 = vpop.f32.mrb[0].mxu0
  %v525 = vadd.f32 %v149, %v524
  %v526 = vpop.f32.mrb[0].mxu0
  %527 = vmatprep.mubr.bf16.mxu0 0
  %528 = vmatmul.mubr.bf16.gmra.mrb[0].mxu0 %v243
  %v529 = vpop.f32.mrb[0].mxu0
  %v530 = vadd.f32 %v149, %v529
  %v531 = vpop.f32.mrb[0].mxu0
  %v532 = vpop.f32.mrb[0].mxu0
  %v533 = vadd.f32 %v149, %v532
  %v534 = vpop.f32.mrb[0].mxu0
  %535 = vmatprep.mubr.bf16.mxu0 0
  %536 = vmatmul.mubr.bf16.gmra.mrb[0].mxu0 %v246
  %v537 = vpop.f32.mrb[0].mxu0
  %v538 = vadd.f32 %v149, %v537
  %v539 = vpop.f32.mrb[0].mxu0
  %v540 = vpop.f32.mrb[0].mxu0
  %v541 = vadd.f32 %v149, %v540
  %v542 = vpop.f32.mrb[0].mxu0
  %543 = vmatprep.mubr.bf16.mxu0 0
  %544 = vmatmul.mubr.bf16.gmra.mrb[0].mxu0 %v249
  %v545 = vpop.f32.mrb[0].mxu0
  %v546 = vadd.f32 %v149, %v545
  %v547 = vpop.f32.mrb[0].mxu0
  %v548 = vpop.f32.mrb[0].mxu0
  %v549 = vadd.f32 %v149, %v548
  %v550 = vpop.f32.mrb[0].mxu0
  %551 = vmatprep.mubr.bf16.mxu0 0
  %552 = vmatmul.mubr.bf16.gmra.mrb[0].mxu0 %v252
  %v553 = vpop.f32.mrb[0].mxu0
  %v554 = vadd.f32 %v149, %v553
  %v555 = vpop.f32.mrb[0].mxu0
  %v556 = vpop.f32.mrb[0].mxu0
  %v557 = vadd.f32 %v149, %v556
  %v558 = vpop.f32.mrb[0].mxu0
  %559 = vmatprep.mubr.bf16.mxu0 0
  %560 = vmatmul.mubr.bf16.gmra.mrb[0].mxu0 %v255
  %v561 = vpop.f32.mrb[0].mxu0
  %v562 = vadd.f32 %v149, %v561
  %v563 = vpop.f32.mrb[0].mxu0
  %v564 = vpop.f32.mrb[0].mxu0
  %v565 = vadd.f32 %v149, %v564
  %v566 = vpop.f32.mrb[0].mxu0
  %567 = vmatprep.mubr.bf16.mxu0 0
  %568 = vmatmul.mubr.bf16.gmra.mrb[0].mxu0 %v258
  %v569 = vpop.f32.mrb[0].mxu0
  %v570 = vadd.f32 %v149, %v569
  %v571 = vpop.f32.mrb[0].mxu0
  %v572 = vpop.f32.mrb[0].mxu0
  %v573 = vadd.f32 %v149, %v572
  %v574 = vpop.f32.mrb[0].mxu0
  %575 = vmatprep.mubr.bf16.mxu0 0
  %576 = vmatmul.mubr.bf16.gmra.mrb[0].mxu0 %v261
  %v577 = vpop.f32.mrb[0].mxu0
  %v578 = vadd.f32 %v149, %v577
  %v579 = vpop.f32.mrb[0].mxu0
  %v580 = vpop.f32.mrb[0].mxu0
  %v581 = vadd.f32 %v149, %v580
  %v582 = vpop.f32.mrb[0].mxu0
  %583 = vmatprep.mubr.bf16.mxu0 0
  %584 = vmatmul.mubr.bf16.gmra.mrb[0].mxu0 %v264
  %v585 = vpop.f32.mrb[0].mxu0
  %v586 = vadd.f32 %v149, %v585
  %v587 = vpop.f32.mrb[0].mxu0
  %v588 = vpop.f32.mrb[0].mxu0
  %v589 = vadd.f32 %v149, %v588
  %v590 = vpop.f32.mrb[0].mxu0
  %591 = vmatprep.mubr.bf16.mxu0 0
  %592 = vmatmul.mubr.bf16.gmra.mrb[0].mxu0 %v267
  %v593 = vpop.f32.mrb[0].mxu0
  %v594 = vadd.f32 %v149, %v593
  %v595 = vpop.f32.mrb[0].mxu0
  %v596 = vpop.f32.mrb[0].mxu0
  %v597 = vadd.f32 %v149, %v596
  %v598 = vpop.f32.mrb[0].mxu0
  %599 = vmatprep.mubr.bf16.mxu0 0
  %600 = vmatmul.mubr.bf16.gmra.mrb[0].mxu0 %v270
  %v601 = vpop.f32.mrb[0].mxu0
  %v602 = vadd.f32 %v149, %v601
  %v603 = vpop.f32.mrb[0].mxu0
  %v604 = vpop.f32.mrb[0].mxu0
  %v605 = vadd.f32 %v149, %v604
  %v606 = vpop.f32.mrb[0].mxu0
  %607 = vmatprep.mubr.bf16.mxu0 0
  %608 = vmatmul.mubr.bf16.gmra.mrb[0].mxu0 %v273
  %v609 = vpop.f32.mrb[0].mxu0
  %v610 = vadd.f32 %v149, %v609
  %v611 = vpop.f32.mrb[0].mxu0
  %v612 = vpop.f32.mrb[0].mxu0
  %v613 = vadd.f32 %v149, %v612
  %v614 = vpop.f32.mrb[0].mxu0
  %615 = vmatprep.mubr.bf16.mxu0 0
  %616 = vmatmul.mubr.bf16.gmra.mrb[0].mxu0 %v276
  %v617 = vpop.f32.mrb[0].mxu0
  %v618 = vadd.f32 %v149, %v617
  %v619 = vpop.f32.mrb[0].mxu0
  %v620 = vpop.f32.mrb[0].mxu0
  %v621 = vadd.f32 %v149, %v620
  %v622 = vpop.f32.mrb[0].mxu0
  %623 = vmatprep.mubr.bf16.mxu0 0
  %624 = vmatmul.mubr.bf16.gmra.mrb[0].mxu0 %v279
  %v625 = vpop.f32.mrb[0].mxu0
  %v626 = vadd.f32 %v149, %v625
  %v627 = vpop.f32.mrb[0].mxu0
  %v628 = vpop.f32.mrb[0].mxu0
  %v629 = vadd.f32 %v149, %v628
  %v630 = vpop.f32.mrb[0].mxu0
  %631 = vmatprep.mubr.bf16.mxu0 0
  %632 = vmatmul.mubr.bf16.gmra.mrb[0].mxu0 %v282
  %v633 = vpop.f32.mrb[0].mxu0
  %v634 = vadd.f32 %v149, %v633
  %v635 = vpop.f32.mrb[0].mxu0
  %v636 = vpop.f32.mrb[0].mxu0
  %v637 = vadd.f32 %v149, %v636
  %v638 = vpop.f32.mrb[0].mxu0
  %639 = vmatprep.mubr.bf16.mxu0 0
  %640 = vmatmul.mubr.bf16.gmra.mrb[0].mxu0 %v285
  %v641 = vpop.f32.mrb[0].mxu0
  %v642 = vadd.f32 %v149, %v641
  %v643 = vpop.f32.mrb[0].mxu0
  %v644 = vpop.f32.mrb[0].mxu0
  %v645 = vpop.f32.mrb[0].mxu0
  %646 = vdwg.mxu0
  %v647 = vld [vmem:[%s3] sm:$0xff]
  %v648 = vld [vmem:[%s3 + $0x8] sm:$0xff]
  %v649 = vld [vmem:[%s3 + $0x10] sm:$0xff]
  %v650 = vld [vmem:[%s3 + $0x18] sm:$0xff]
  %v651 = vld [vmem:[%s3 + $0x20] sm:$0xff]
  %v652 = vld [vmem:[%s3 + $0x28] sm:$0xff]
  %v653 = vld [vmem:[%s3 + $0x30] sm:$0xff]
  %v654 = vld [vmem:[%s3 + $0x38] sm:$0xff]
  %v655 = vld [vmem:[%s3 + $0x40] sm:$0xff]
  %v656 = vld [vmem:[%s3 + $0x48] sm:$0xff]
  %v657 = vld [vmem:[%s3 + $0x50] sm:$0xff]
  %v658 = vld [vmem:[%s3 + $0x58] sm:$0xff]
  %v659 = vld [vmem:[%s3 + $0x60] sm:$0xff]
  %v660 = vld [vmem:[%s3 + $0x68] sm:$0xff]
  %v661 = vld [vmem:[%s3 + $0x70] sm:$0xff]
  %v662 = vld [vmem:[%s3 + $0x78] sm:$0xff]
  %v663 = vld [vmem:[%s3 + $0x80] sm:$0xff]
  %v664 = vld [vmem:[%s3 + $0x88] sm:$0xff]
  %v665 = vld [vmem:[%s3 + $0x90] sm:$0xff]
  %v666 = vld [vmem:[%s3 + $0x98] sm:$0xff]
  %v667 = vld [vmem:[%s3 + $0xa0] sm:$0xff]
  %v668 = vld [vmem:[%s3 + $0xa8] sm:$0xff]
  %v669 = vld [vmem:[%s3 + $0xb0] sm:$0xff]
  %v670 = vld [vmem:[%s3 + $0xb8] sm:$0xff]
  %v671 = vld [vmem:[%s3 + $0xc0] sm:$0xff]
  %v672 = vld [vmem:[%s3 + $0xc8] sm:$0xff]
  %v673 = vld [vmem:[%s3 + $0xd0] sm:$0xff]
  %v674 = vld [vmem:[%s3 + $0xd8] sm:$0xff]
  %v675 = vld [vmem:[%s3 + $0xe0] sm:$0xff]
  %v676 = vld [vmem:[%s3 + $0xe8] sm:$0xff]
  %v677 = vld [vmem:[%s3 + $0xf0] sm:$0xff]
  %v678 = vld [vmem:[%s3 + $0xf8] sm:$0xff]
  %v679 = vld [vmem:[%s3 + $0x100] sm:$0xff]
  %v680 = vld [vmem:[%s3 + $0x108] sm:$0xff]
  %v681 = vld [vmem:[%s3 + $0x110] sm:$0xff]
  %v682 = vld [vmem:[%s3 + $0x118] sm:$0xff]
  %v683 = vld [vmem:[%s3 + $0x120] sm:$0xff]
  %v684 = vld [vmem:[%s3 + $0x128] sm:$0xff]
  %v685 = vld [vmem:[%s3 + $0x130] sm:$0xff]
  %v686 = vld [vmem:[%s3 + $0x138] sm:$0xff]
  %v687 = vld [vmem:[%s3 + $0x140] sm:$0xff]
  %v688 = vld [vmem:[%s3 + $0x148] sm:$0xff]
  %v689 = vld [vmem:[%s3 + $0x150] sm:$0xff]
  %v690 = vld [vmem:[%s3 + $0x158] sm:$0xff]
  %v691 = vld [vmem:[%s3 + $0x160] sm:$0xff]
  %v692 = vld [vmem:[%s3 + $0x168] sm:$0xff]
  %v693 = vld [vmem:[%s3 + $0x170] sm:$0xff]
  %v694 = vld [vmem:[%s3 + $0x178] sm:$0xff]
  %v695 = vld [vmem:[%s3 + $0x180] sm:$0xff]
  %v696 = vld [vmem:[%s3 + $0x188] sm:$0xff]
  %v697 = vld [vmem:[%s3 + $0x190] sm:$0xff]
  %v698 = vld [vmem:[%s3 + $0x198] sm:$0xff]
  %v699 = vld [vmem:[%s3 + $0x1a0] sm:$0xff]
  %v700 = vld [vmem:[%s3 + $0x1a8] sm:$0xff]
  %v701 = vld [vmem:[%s3 + $0x1b0] sm:$0xff]
  %v702 = vld [vmem:[%s3 + $0x1b8] sm:$0xff]
  %v703 = vld [vmem:[%s3 + $0x1c0] sm:$0xff]
  %v704 = vld [vmem:[%s3 + $0x1c8] sm:$0xff]
  %v705 = vld [vmem:[%s3 + $0x1d0] sm:$0xff]
  %v706 = vld [vmem:[%s3 + $0x1d8] sm:$0xff]
  %v707 = vld [vmem:[%s3 + $0x1e0] sm:$0xff]
  %v708 = vld [vmem:[%s3 + $0x1e8] sm:$0xff]
  %v709 = vld [vmem:[%s3 + $0x1f0] sm:$0xff]
  %v710 = vld [vmem:[%s3 + $0x1f8] sm:$0xff]
  %v711 = vld [vmem:[%s3 + $0x200] sm:$0xff]
  %v712 = vld [vmem:[%s3 + $0x208] sm:$0xff]
  %v713 = vld [vmem:[%s3 + $0x210] sm:$0xff]
  %v714 = vld [vmem:[%s3 + $0x218] sm:$0xff]
  %v715 = vld [vmem:[%s3 + $0x220] sm:$0xff]
  %v716 = vld [vmem:[%s3 + $0x228] sm:$0xff]
  %v717 = vld [vmem:[%s3 + $0x230] sm:$0xff]
  %v718 = vld [vmem:[%s3 + $0x238] sm:$0xff]
  %v719 = vld [vmem:[%s3 + $0x240] sm:$0xff]
  %v720 = vld [vmem:[%s3 + $0x248] sm:$0xff]
  %v721 = vld [vmem:[%s3 + $0x250] sm:$0xff]
  %v722 = vld [vmem:[%s3 + $0x258] sm:$0xff]
  %v723 = vld [vmem:[%s3 + $0x260] sm:$0xff]
  %v724 = vld [vmem:[%s3 + $0x268] sm:$0xff]
  %v725 = vld [vmem:[%s3 + $0x270] sm:$0xff]
  %v726 = vld [vmem:[%s3 + $0x278] sm:$0xff]
  %v727 = vld [vmem:[%s3 + $0x280] sm:$0xff]
  %v728 = vadd.f32 %v322, %v647
  %v729 = vadd.f32 %v325, %v648
  %v730 = vadd.f32 %v330, %v649
  %v731 = vadd.f32 %v333, %v650
  %v732 = vadd.f32 %v338, %v651
  %v733 = vadd.f32 %v341, %v652
  %v734 = vadd.f32 %v346, %v653
  %v735 = vadd.f32 %v349, %v654
  %v736 = vadd.f32 %v354, %v655
  %v737 = vadd.f32 %v357, %v656
  %v738 = vadd.f32 %v362, %v657
  %v739 = vadd.f32 %v365, %v658
  %v740 = vadd.f32 %v370, %v659
  %v741 = vadd.f32 %v373, %v660
  %v742 = vadd.f32 %v378, %v661
  %v743 = vadd.f32 %v381, %v662
  %v744 = vadd.f32 %v386, %v663
  %v745 = vadd.f32 %v389, %v664
  %v746 = vadd.f32 %v394, %v665
  %v747 = vadd.f32 %v397, %v666
  %v748 = vadd.f32 %v402, %v667
  %v749 = vadd.f32 %v405, %v668
  %v750 = vadd.f32 %v410, %v669
  %v751 = vadd.f32 %v413, %v670
  %v752 = vadd.f32 %v418, %v671
  %v753 = vadd.f32 %v421, %v672
  %v754 = vadd.f32 %v426, %v673
  %v755 = vadd.f32 %v429, %v674
  %v756 = vadd.f32 %v434, %v675
  %v757 = vadd.f32 %v437, %v676
  %v758 = vadd.f32 %v442, %v677
  %v759 = vadd.f32 %v445, %v678
  %v760 = vadd.f32 %v450, %v679
  %v761 = vadd.f32 %v453, %v680
  %v762 = vadd.f32 %v458, %v681
  %v763 = vadd.f32 %v461, %v682
  %v764 = vadd.f32 %v466, %v683
  %v765 = vadd.f32 %v469, %v684
  %v766 = vadd.f32 %v474, %v685
  %v767 = vadd.f32 %v477, %v686
  %v768 = vadd.f32 %v482, %v687
  %v769 = vadd.f32 %v485, %v688
  %v770 = vadd.f32 %v490, %v689
  %v771 = vadd.f32 %v493, %v690
  %v772 = vadd.f32 %v498, %v691
  %v773 = vadd.f32 %v501, %v692
  %v774 = vadd.f32 %v506, %v693
  %v775 = vadd.f32 %v509, %v694
  %v776 = vadd.f32 %v514, %v695
  %v777 = vadd.f32 %v517, %v696
  %v778 = vadd.f32 %v522, %v697
  %v779 = vadd.f32 %v525, %v698
  %v780 = vadd.f32 %v530, %v699
  %v781 = vadd.f32 %v533, %v700
  %v782 = vadd.f32 %v538, %v701
  %v783 = vadd.f32 %v541, %v702
  %v784 = vadd.f32 %v546, %v703
  %v785 = vadd.f32 %v549, %v704
  %v786 = vadd.f32 %v554, %v705
  %v787 = vadd.f32 %v557, %v706
  %v788 = vadd.f32 %v562, %v707
  %v789 = vadd.f32 %v565, %v708
  %v790 = vadd.f32 %v570, %v709
  %v791 = vadd.f32 %v573, %v710
  %v792 = vadd.f32 %v578, %v711
  %v793 = vadd.f32 %v581, %v712
  %v794 = vadd.f32 %v586, %v713
  %v795 = vadd.f32 %v589, %v714
  %v796 = vadd.f32 %v594, %v715
  %v797 = vadd.f32 %v597, %v716
  %v798 = vadd.f32 %v602, %v717
  %v799 = vadd.f32 %v605, %v718
  %v800 = vadd.f32 %v610, %v719
  %v801 = vadd.f32 %v613, %v720
  %v802 = vadd.f32 %v618, %v721
  %v803 = vadd.f32 %v621, %v722
  %v804 = vadd.f32 %v626, %v723
  %v805 = vadd.f32 %v629, %v724
  %v806 = vadd.f32 %v634, %v725
  %v807 = vadd.f32 %v637, %v726
  %v808 = vadd.f32 %v642, %v727
  %809 = vst.msk [vmem:[%s4] sm:$0xff] %vm163, %v728
  %810 = vst.msk [vmem:[%s4 + $0x8] sm:$0xff] %vm163, %v729
  %811 = vst.msk [vmem:[%s4 + $0x10] sm:$0xff] %vm163, %v730
  %812 = vst.msk [vmem:[%s4 + $0x18] sm:$0xff] %vm163, %v731
  %813 = vst.msk [vmem:[%s4 + $0x20] sm:$0xff] %vm163, %v732
  %814 = vst.msk [vmem:[%s4 + $0x28] sm:$0xff] %vm163, %v733
  %815 = vst.msk [vmem:[%s4 + $0x30] sm:$0xff] %vm163, %v734
  %816 = vst.msk [vmem:[%s4 + $0x38] sm:$0xff] %vm163, %v735
  %817 = vst.msk [vmem:[%s4 + $0x40] sm:$0xff] %vm163, %v736
  %818 = vst.msk [vmem:[%s4 + $0x48] sm:$0xff] %vm163, %v737
  %819 = vst.msk [vmem:[%s4 + $0x50] sm:$0xff] %vm163, %v738
  %820 = vst.msk [vmem:[%s4 + $0x58] sm:$0xff] %vm163, %v739
  %821 = vst.msk [vmem:[%s4 + $0x60] sm:$0xff] %vm163, %v740
  %822 = vst.msk [vmem:[%s4 + $0x68] sm:$0xff] %vm163, %v741
  %823 = vst.msk [vmem:[%s4 + $0x70] sm:$0xff] %vm163, %v742
  %824 = vst.msk [vmem:[%s4 + $0x78] sm:$0xff] %vm163, %v743
  %825 = vst.msk [vmem:[%s4 + $0x80] sm:$0xff] %vm163, %v744
  %826 = vst.msk [vmem:[%s4 + $0x88] sm:$0xff] %vm163, %v745
  %827 = vst.msk [vmem:[%s4 + $0x90] sm:$0xff] %vm163, %v746
  %828 = vst.msk [vmem:[%s4 + $0x98] sm:$0xff] %vm163, %v747
  %829 = vst.msk [vmem:[%s4 + $0xa0] sm:$0xff] %vm163, %v748
  %830 = vst.msk [vmem:[%s4 + $0xa8] sm:$0xff] %vm163, %v749
  %831 = vst.msk [vmem:[%s4 + $0xb0] sm:$0xff] %vm163, %v750
  %832 = vst.msk [vmem:[%s4 + $0xb8] sm:$0xff] %vm163, %v751
  %833 = vst.msk [vmem:[%s4 + $0xc0] sm:$0xff] %vm163, %v752
  %834 = vst.msk [vmem:[%s4 + $0xc8] sm:$0xff] %vm163, %v753
  %835 = vst.msk [vmem:[%s4 + $0xd0] sm:$0xff] %vm163, %v754
  %836 = vst.msk [vmem:[%s4 + $0xd8] sm:$0xff] %vm163, %v755
  %837 = vst.msk [vmem:[%s4 + $0xe0] sm:$0xff] %vm163, %v756
  %838 = vst.msk [vmem:[%s4 + $0xe8] sm:$0xff] %vm163, %v757
  %839 = vst.msk [vmem:[%s4 + $0xf0] sm:$0xff] %vm163, %v758
  %840 = vst.msk [vmem:[%s4 + $0xf8] sm:$0xff] %vm163, %v759
  %841 = vst.msk [vmem:[%s4 + $0x100] sm:$0xff] %vm163, %v760
  %842 = vst.msk [vmem:[%s4 + $0x108] sm:$0xff] %vm163, %v761
  %843 = vst.msk [vmem:[%s4 + $0x110] sm:$0xff] %vm163, %v762
  %844 = vst.msk [vmem:[%s4 + $0x118] sm:$0xff] %vm163, %v763
  %845 = vst.msk [vmem:[%s4 + $0x120] sm:$0xff] %vm163, %v764
  %846 = vst.msk [vmem:[%s4 + $0x128] sm:$0xff] %vm163, %v765
  %847 = vst.msk [vmem:[%s4 + $0x130] sm:$0xff] %vm163, %v766
  %848 = vst.msk [vmem:[%s4 + $0x138] sm:$0xff] %vm163, %v767
  %849 = vst.msk [vmem:[%s4 + $0x140] sm:$0xff] %vm163, %v768
  %850 = vst.msk [vmem:[%s4 + $0x148] sm:$0xff] %vm163, %v769
  %851 = vst.msk [vmem:[%s4 + $0x150] sm:$0xff] %vm163, %v770
  %852 = vst.msk [vmem:[%s4 + $0x158] sm:$0xff] %vm163, %v771
  %853 = vst.msk [vmem:[%s4 + $0x160] sm:$0xff] %vm163, %v772
  %854 = vst.msk [vmem:[%s4 + $0x168] sm:$0xff] %vm163, %v773
  %855 = vst.msk [vmem:[%s4 + $0x170] sm:$0xff] %vm163, %v774
  %856 = vst.msk [vmem:[%s4 + $0x178] sm:$0xff] %vm163, %v775
  %857 = vst.msk [vmem:[%s4 + $0x180] sm:$0xff] %vm163, %v776
  %858 = vst.msk [vmem:[%s4 + $0x188] sm:$0xff] %vm163, %v777
  %859 = vst.msk [vmem:[%s4 + $0x190] sm:$0xff] %vm163, %v778
  %860 = vst.msk [vmem:[%s4 + $0x198] sm:$0xff] %vm163, %v779
  %861 = vst.msk [vmem:[%s4 + $0x1a0] sm:$0xff] %vm163, %v780
  %862 = vst.msk [vmem:[%s4 + $0x1a8] sm:$0xff] %vm163, %v781
  %863 = vst.msk [vmem:[%s4 + $0x1b0] sm:$0xff] %vm163, %v782
  %864 = vst.msk [vmem:[%s4 + $0x1b8] sm:$0xff] %vm163, %v783
  %865 = vst.msk [vmem:[%s4 + $0x1c0] sm:$0xff] %vm163, %v784
  %866 = vst.msk [vmem:[%s4 + $0x1c8] sm:$0xff] %vm163, %v785
  %867 = vst.msk [vmem:[%s4 + $0x1d0] sm:$0xff] %vm163, %v786
  %868 = vst.msk [vmem:[%s4 + $0x1d8] sm:$0xff] %vm163, %v787
  %869 = vst.msk [vmem:[%s4 + $0x1e0] sm:$0xff] %vm163, %v788
  %870 = vst.msk [vmem:[%s4 + $0x1e8] sm:$0xff] %vm163, %v789
  %871 = vst.msk [vmem:[%s4 + $0x1f0] sm:$0xff] %vm163, %v790
  %872 = vst.msk [vmem:[%s4 + $0x1f8] sm:$0xff] %vm163, %v791
  %873 = vst.msk [vmem:[%s4 + $0x200] sm:$0xff] %vm163, %v792
  %874 = vst.msk [vmem:[%s4 + $0x208] sm:$0xff] %vm163, %v793
  %875 = vst.msk [vmem:[%s4 + $0x210] sm:$0xff] %vm163, %v794
  %876 = vst.msk [vmem:[%s4 + $0x218] sm:$0xff] %vm163, %v795
  %877 = vst.msk [vmem:[%s4 + $0x220] sm:$0xff] %vm163, %v796
  %878 = vst.msk [vmem:[%s4 + $0x228] sm:$0xff] %vm163, %v797
  %879 = vst.msk [vmem:[%s4 + $0x230] sm:$0xff] %vm163, %v798
  %880 = vst.msk [vmem:[%s4 + $0x238] sm:$0xff] %vm163, %v799
  %881 = vst.msk [vmem:[%s4 + $0x240] sm:$0xff] %vm163, %v800
  %882 = vst.msk [vmem:[%s4 + $0x248] sm:$0xff] %vm163, %v801
  %883 = vst.msk [vmem:[%s4 + $0x250] sm:$0xff] %vm163, %v802
  %884 = vst.msk [vmem:[%s4 + $0x258] sm:$0xff] %vm163, %v803
  %885 = vst.msk [vmem:[%s4 + $0x260] sm:$0xff] %vm163, %v804
  %886 = vst.msk [vmem:[%s4 + $0x268] sm:$0xff] %vm163, %v805
  %887 = vst.msk [vmem:[%s4 + $0x270] sm:$0xff] %vm163, %v806
  %888 = vst.msk [vmem:[%s4 + $0x278] sm:$0xff] %vm163, %v807
  %889 = vst.msk [vmem:[%s4 + $0x280] sm:$0xff] %vm163, %v808
  // Predicated region
  $region18: #{freqmoe_forward.18} parent=0 // pred_check
    _
  $region19: #{freqmoe_forward.18} parent=0 // pred_check_branch
    %891 = sbr.rel (0) target = $region21
  $region20: #{freqmoe_forward.18} parent=0 // pred_region
    _
  $region21: #{freqmoe_forward.18} parent=0 // pred_fallthru
    _
  // Predicated region
  $region22: #{freqmoe_forward.18} parent=0 // pred_check
    _
  $region23: #{freqmoe_forward.18} parent=0 // pred_check_branch
    %893 = sbr.rel (0) target = $region25
  $region24: #{freqmoe_forward.18} parent=0 // pred_region
    _
  $region25: #{freqmoe_forward.18} parent=0 // pred_fallthru
    _

// kernel: freqmoe_forward.19
$region0: #{freqmoe_forward.19}
  #allocation0 [shape = 'u32[]', space=smem, size = 0x4, offset = 0x4, fixed_abs, tag = 'smem constant byte address 0x4 - core index']
  #allocation1 [shape = 'u32[144,128]{1,0:T(1,128)}', space=vmem, size = 0x12000, scoped, tag = 'internal scratch']
  %s0 = inlined_call_operand.vmem [shape: f32[512,32], index: 0, kind: input, shape index: {}]
  %s1 = inlined_call_operand.vmem [shape: bf16[32,128], index: 1, kind: input, shape index: {}]
  %s2 = inlined_call_operand.vmem [shape: f32[1,128], index: 2, kind: input, shape index: {}]
  %s3 = inlined_call_operand.vmem [shape: bf16[128,4], index: 3, kind: input, shape index: {}]
  %s4 = inlined_call_operand.vmem [shape: f32[1,4], index: 4, kind: input, shape index: {}]
  %s5 = inlined_call_operand.vmem [shape: f32[512,4], index: 5, kind: output, shape index: {}]
  %s6 = sld [smem:[#allocation0]]
  $region30: #{freqmoe_forward.19} parent=0
    _
  %s8 = ssub.s32 1, %s6
  %s9 = scalar_select 0, %s8, %s6
  // Predicated region
  $region2: #{freqmoe_forward.19} parent=0 // pred_check
    _
  $region3: #{freqmoe_forward.19} parent=0 // pred_check_branch
    %11 = sbr.rel (0) target = $region5
  $region4: #{freqmoe_forward.19} parent=0 // pred_region
    _
  $region5: #{freqmoe_forward.19} parent=0 // pred_fallthru
    _
  // Predicated region
  $region6: #{freqmoe_forward.19} parent=0 // pred_check
    _
  $region7: #{freqmoe_forward.19} parent=0 // pred_check_branch
    %13 = sbr.rel (0) target = $region9
  $region8: #{freqmoe_forward.19} parent=0 // pred_region
    _
  $region9: #{freqmoe_forward.19} parent=0 // pred_fallthru
    _
  // Predicated region
  $region10: #{freqmoe_forward.19} parent=0 // pred_check
    _
  $region11: #{freqmoe_forward.19} parent=0 // pred_check_branch
    %15 = sbr.rel (0) target = $region13
  $region12: #{freqmoe_forward.19} parent=0 // pred_region
    _
  $region13: #{freqmoe_forward.19} parent=0 // pred_fallthru
    _
  // Predicated region
  $region14: #{freqmoe_forward.19} parent=0 // pred_check
    _
  $region15: #{freqmoe_forward.19} parent=0 // pred_check_branch
    %17 = sbr.rel (0) target = $region17
  $region16: #{freqmoe_forward.19} parent=0 // pred_region
    _
  $region17: #{freqmoe_forward.19} parent=0 // pred_fallthru
    _
  // Predicated region
  $region18: #{freqmoe_forward.19} parent=0 // pred_check
    _
  $region19: #{freqmoe_forward.19} parent=0 // pred_check_branch
    %19 = sbr.rel (0) target = $region21
  $region20: #{freqmoe_forward.19} parent=0 // pred_region
    _
  $region21: #{freqmoe_forward.19} parent=0 // pred_fallthru
    _
  %v21 = vld [vmem:[%s0] sm:$0xff]
  %v22 = vld [vmem:[%s0 + $0x8] sm:$0xff]
  %v23 = vld [vmem:[%s0 + $0x10] sm:$0xff]
  %v24 = vld [vmem:[%s0 + $0x18] sm:$0xff]
  %v25 = vld [vmem:[%s0 + $0x20] sm:$0xff]
  %v26 = vld [vmem:[%s0 + $0x28] sm:$0xff]
  %v27 = vld [vmem:[%s0 + $0x30] sm:$0xff]
  %v28 = vld [vmem:[%s0 + $0x38] sm:$0xff]
  %v29 = vld [vmem:[%s0 + $0x40] sm:$0xff]
  %v30 = vld [vmem:[%s0 + $0x48] sm:$0xff]
  %v31 = vld [vmem:[%s0 + $0x50] sm:$0xff]
  %v32 = vld [vmem:[%s0 + $0x58] sm:$0xff]
  %v33 = vld [vmem:[%s0 + $0x60] sm:$0xff]
  %v34 = vld [vmem:[%s0 + $0x68] sm:$0xff]
  %v35 = vld [vmem:[%s0 + $0x70] sm:$0xff]
  %v36 = vld [vmem:[%s0 + $0x78] sm:$0xff]
  %v37 = vld [vmem:[%s0 + $0x80] sm:$0xff]
  %v38 = vld [vmem:[%s0 + $0x88] sm:$0xff]
  %v39 = vld [vmem:[%s0 + $0x90] sm:$0xff]
  %v40 = vld [vmem:[%s0 + $0x98] sm:$0xff]
  %v41 = vld [vmem:[%s0 + $0xa0] sm:$0xff]
  %v42 = vld [vmem:[%s0 + $0xa8] sm:$0xff]
  %v43 = vld [vmem:[%s0 + $0xb0] sm:$0xff]
  %v44 = vld [vmem:[%s0 + $0xb8] sm:$0xff]
  %v45 = vld [vmem:[%s0 + $0xc0] sm:$0xff]
  %v46 = vld [vmem:[%s0 + $0xc8] sm:$0xff]
  %v47 = vld [vmem:[%s0 + $0xd0] sm:$0xff]
  %v48 = vld [vmem:[%s0 + $0xd8] sm:$0xff]
  %v49 = vld [vmem:[%s0 + $0xe0] sm:$0xff]
  %v50 = vld [vmem:[%s0 + $0xe8] sm:$0xff]
  %v51 = vld [vmem:[%s0 + $0xf0] sm:$0xff]
  %v52 = vld [vmem:[%s0 + $0xf8] sm:$0xff]
  %v53 = vld [vmem:[%s0 + $0x100] sm:$0xff]
  %v54 = vld [vmem:[%s0 + $0x108] sm:$0xff]
  %v55 = vld [vmem:[%s0 + $0x110] sm:$0xff]
  %v56 = vld [vmem:[%s0 + $0x118] sm:$0xff]
  %v57 = vld [vmem:[%s0 + $0x120] sm:$0xff]
  %v58 = vld [vmem:[%s0 + $0x128] sm:$0xff]
  %v59 = vld [vmem:[%s0 + $0x130] sm:$0xff]
  %v60 = vld [vmem:[%s0 + $0x138] sm:$0xff]
  %v61 = vld [vmem:[%s0 + $0x140] sm:$0xff]
  %v62 = vld [vmem:[%s0 + $0x148] sm:$0xff]
  %v63 = vld [vmem:[%s0 + $0x150] sm:$0xff]
  %v64 = vld [vmem:[%s0 + $0x158] sm:$0xff]
  %v65 = vld [vmem:[%s0 + $0x160] sm:$0xff]
  %v66 = vld [vmem:[%s0 + $0x168] sm:$0xff]
  %v67 = vld [vmem:[%s0 + $0x170] sm:$0xff]
  %v68 = vld [vmem:[%s0 + $0x178] sm:$0xff]
  %v69 = vld [vmem:[%s0 + $0x180] sm:$0xff]
  %v70 = vld [vmem:[%s0 + $0x188] sm:$0xff]
  %v71 = vld [vmem:[%s0 + $0x190] sm:$0xff]
  %v72 = vld [vmem:[%s0 + $0x198] sm:$0xff]
  %v73 = vld [vmem:[%s0 + $0x1a0] sm:$0xff]
  %v74 = vld [vmem:[%s0 + $0x1a8] sm:$0xff]
  %v75 = vld [vmem:[%s0 + $0x1b0] sm:$0xff]
  %v76 = vld [vmem:[%s0 + $0x1b8] sm:$0xff]
  %v77 = vld [vmem:[%s0 + $0x1c0] sm:$0xff]
  %v78 = vld [vmem:[%s0 + $0x1c8] sm:$0xff]
  %v79 = vld [vmem:[%s0 + $0x1d0] sm:$0xff]
  %v80 = vld [vmem:[%s0 + $0x1d8] sm:$0xff]
  %v81 = vld [vmem:[%s0 + $0x1e0] sm:$0xff]
  %v82 = vld [vmem:[%s0 + $0x1e8] sm:$0xff]
  %v83 = vld [vmem:[%s0 + $0x1f0] sm:$0xff]
  %v84 = vld [vmem:[%s0 + $0x1f8] sm:$0xff]
  %v85 = vpack.c.bf16 %v22, %v21
  %v86 = vpack.c.bf16 %v24, %v23
  %v87 = vpack.c.bf16 %v26, %v25
  %v88 = vpack.c.bf16 %v28, %v27
  %v89 = vpack.c.bf16 %v30, %v29
  %v90 = vpack.c.bf16 %v32, %v31
  %v91 = vpack.c.bf16 %v34, %v33
  %v92 = vpack.c.bf16 %v36, %v35
  %v93 = vpack.c.bf16 %v38, %v37
  %v94 = vpack.c.bf16 %v40, %v39
  %v95 = vpack.c.bf16 %v42, %v41
  %v96 = vpack.c.bf16 %v44, %v43
  %v97 = vpack.c.bf16 %v46, %v45
  %v98 = vpack.c.bf16 %v48, %v47
  %v99 = vpack.c.bf16 %v50, %v49
  %v100 = vpack.c.bf16 %v52, %v51
  %v101 = vpack.c.bf16 %v54, %v53
  %v102 = vpack.c.bf16 %v56, %v55
  %v103 = vpack.c.bf16 %v58, %v57
  %v104 = vpack.c.bf16 %v60, %v59
  %v105 = vpack.c.bf16 %v62, %v61
  %v106 = vpack.c.bf16 %v64, %v63
  %v107 = vpack.c.bf16 %v66, %v65
  %v108 = vpack.c.bf16 %v68, %v67
  %v109 = vpack.c.bf16 %v70, %v69
  %v110 = vpack.c.bf16 %v72, %v71
  %v111 = vpack.c.bf16 %v74, %v73
  %v112 = vpack.c.bf16 %v76, %v75
  %v113 = vpack.c.bf16 %v78, %v77
  %v114 = vpack.c.bf16 %v80, %v79
  %v115 = vpack.c.bf16 %v82, %v81
  %v116 = vpack.c.bf16 %v84, %v83
  %v117 = vld [vmem:[%s1] sm:$0xf]
  %v118 = vld [vmem:[%s1 + $0x4] sm:$0xf]
  %v119 = vld [vmem:[%s1 + $0x8] sm:$0xf]
  %v120 = vld [vmem:[%s1 + $0xc] sm:$0xf]
  %v121 = vld [vmem:[%s2] sm:$0x1]
  %v123 = vlaneseq
  %v124 = vshrl.u32 %v123, 7
  %v125 = vsub.s32 0, %v124
  %v126 = vrot.slane %v121, %v125
  %v132 = vunpack.c.l.b16 %v117
  %v133 = vunpack.c.l.b16 %v118
  %v134 = vunpack.c.l.b16 %v119
  %v135 = vunpack.c.l.b16 %v120
  %v136 = vpack.c.b16 %v133, %v132
  %v137 = vpack.c.b16 %v135, %v134
  %vm140 = vcmask 261120
  %v142 = vsel %vm140, %v85, 0
  %v145 = vsel %vm140, %v86, 0
  %v148 = vsel %vm140, %v87, 0
  %v151 = vsel %vm140, %v88, 0
  %v154 = vsel %vm140, %v89, 0
  %v157 = vsel %vm140, %v90, 0
  %v160 = vsel %vm140, %v91, 0
  %v163 = vsel %vm140, %v92, 0
  %v166 = vsel %vm140, %v93, 0
  %v169 = vsel %vm140, %v94, 0
  %v172 = vsel %vm140, %v95, 0
  %v175 = vsel %vm140, %v96, 0
  %v178 = vsel %vm140, %v97, 0
  %v181 = vsel %vm140, %v98, 0
  %v184 = vsel %vm140, %v99, 0
  %v187 = vsel %vm140, %v100, 0
  %v190 = vsel %vm140, %v101, 0
  %v193 = vsel %vm140, %v102, 0
  %v196 = vsel %vm140, %v103, 0
  %v199 = vsel %vm140, %v104, 0
  %v202 = vsel %vm140, %v105, 0
  %v205 = vsel %vm140, %v106, 0
  %v208 = vsel %vm140, %v107, 0
  %v211 = vsel %vm140, %v108, 0
  %v214 = vsel %vm140, %v109, 0
  %v217 = vsel %vm140, %v110, 0
  %v220 = vsel %vm140, %v111, 0
  %v223 = vsel %vm140, %v112, 0
  %v226 = vsel %vm140, %v113, 0
  %v229 = vsel %vm140, %v114, 0
  %v232 = vsel %vm140, %v115, 0
  %v235 = vsel %vm140, %v116, 0
  %237 = vmatprep.subr.bf16.mxu0 0
  %238 = vmatpush1.bf16.msra.mxu0 %v136
  %239 = vmatprep.subr.bf16.mxu0 0
  %240 = vmatpush1.bf16.msra.mxu0 %v137
  %241 = vmatprep.subr.bf16.mxu0 0
  %242 = vmatpush1.bf16.msra.mxu0 0
  %243 = vmatprep.subr.bf16.mxu0 0
  %244 = vmatpush1.bf16.msra.mxu0 0
  %245 = vmatprep.subr.bf16.mxu0 0
  %246 = vmatpush1.bf16.msra.mxu0 0
  %247 = vmatprep.subr.bf16.mxu0 0
  %248 = vmatpush1.bf16.msra.mxu0 0
  %249 = vmatprep.subr.bf16.mxu0 0
  %250 = vmatpush1.bf16.msra.mxu0 0
  %251 = vmatprep.subr.bf16.mxu0 0
  %252 = vmatpush1.bf16.msra.mxu0 0
  %253 = vmatprep.subr.bf16.mxu0 0
  %254 = vmatpush1.bf16.msra.mxu0 0
  %255 = vmatprep.subr.bf16.mxu0 0
  %256 = vmatpush1.bf16.msra.mxu0 0
  %257 = vmatprep.subr.bf16.mxu0 0
  %258 = vmatpush1.bf16.msra.mxu0 0
  %259 = vmatprep.subr.bf16.mxu0 0
  %260 = vmatpush1.bf16.msra.mxu0 0
  %261 = vmatprep.subr.bf16.mxu0 0
  %262 = vmatpush1.bf16.msra.mxu0 0
  %263 = vmatprep.subr.bf16.mxu0 0
  %264 = vmatpush1.bf16.msra.mxu0 0
  %265 = vmatprep.subr.bf16.mxu0 0
  %266 = vmatpush1.bf16.msra.mxu0 0
  %267 = vmatprep.subr.bf16.mxu0 0
  %268 = vmatpush1.bf16.msra.mxu0 0
  %269 = vmatprep.mubr.bf16.mxu0 0
  %270 = vmatmul.mubr.bf16.gmra.mrb[0].mxu0 %v142
  %v271 = vpop.f32.mrb[0].mxu0
  %v272 = vadd.f32 %v126, %v271
  %v273 = vpop.f32.mrb[0].mxu0
  %v274 = vpop.f32.mrb[0].mxu0
  %v275 = vadd.f32 %v126, %v274
  %v276 = vpop.f32.mrb[0].mxu0
  %277 = vmatprep.mubr.bf16.mxu0 0
  %278 = vmatmul.mubr.bf16.gmra.mrb[0].mxu0 %v145
  %v279 = vpop.f32.mrb[0].mxu0
  %v280 = vadd.f32 %v126, %v279
  %v281 = vpop.f32.mrb[0].mxu0
  %v282 = vpop.f32.mrb[0].mxu0
  %v283 = vadd.f32 %v126, %v282
  %v284 = vpop.f32.mrb[0].mxu0
  %285 = vmatprep.mubr.bf16.mxu0 0
  %286 = vmatmul.mubr.bf16.gmra.mrb[0].mxu0 %v148
  %v287 = vpop.f32.mrb[0].mxu0
  %v288 = vadd.f32 %v126, %v287
  %v289 = vpop.f32.mrb[0].mxu0
  %v290 = vpop.f32.mrb[0].mxu0
  %v291 = vadd.f32 %v126, %v290
  %v292 = vpop.f32.mrb[0].mxu0
  %293 = vmatprep.mubr.bf16.mxu0 0
  %294 = vmatmul.mubr.bf16.gmra.mrb[0].mxu0 %v151
  %v295 = vpop.f32.mrb[0].mxu0
  %v296 = vadd.f32 %v126, %v295
  %v297 = vpop.f32.mrb[0].mxu0
  %v298 = vpop.f32.mrb[0].mxu0
  %v299 = vadd.f32 %v126, %v298
  %v300 = vpop.f32.mrb[0].mxu0
  %301 = vmatprep.mubr.bf16.mxu0 0
  %302 = vmatmul.mubr.bf16.gmra.mrb[0].mxu0 %v154
  %v303 = vpop.f32.mrb[0].mxu0
  %v304 = vadd.f32 %v126, %v303
  %v305 = vpop.f32.mrb[0].mxu0
  %v306 = vpop.f32.mrb[0].mxu0
  %v307 = vadd.f32 %v126, %v306
  %v308 = vpop.f32.mrb[0].mxu0
  %309 = vmatprep.mubr.bf16.mxu0 0
  %310 = vmatmul.mubr.bf16.gmra.mrb[0].mxu0 %v157
  %v311 = vpop.f32.mrb[0].mxu0
  %v312 = vadd.f32 %v126, %v311
  %v313 = vpop.f32.mrb[0].mxu0
  %v314 = vpop.f32.mrb[0].mxu0
  %v315 = vadd.f32 %v126, %v314
  %v316 = vpop.f32.mrb[0].mxu0
  %317 = vmatprep.mubr.bf16.mxu0 0
  %318 = vmatmul.mubr.bf16.gmra.mrb[0].mxu0 %v160
  %v319 = vpop.f32.mrb[0].mxu0
  %v320 = vadd.f32 %v126, %v319
  %v321 = vpop.f32.mrb[0].mxu0
  %v322 = vpop.f32.mrb[0].mxu0
  %v323 = vadd.f32 %v126, %v322
  %v324 = vpop.f32.mrb[0].mxu0
  %325 = vmatprep.mubr.bf16.mxu0 0
  %326 = vmatmul.mubr.bf16.gmra.mrb[0].mxu0 %v163
  %v327 = vpop.f32.mrb[0].mxu0
  %v328 = vadd.f32 %v126, %v327
  %v329 = vpop.f32.mrb[0].mxu0
  %v330 = vpop.f32.mrb[0].mxu0
  %v331 = vadd.f32 %v126, %v330
  %v332 = vpop.f32.mrb[0].mxu0
  %333 = vmatprep.mubr.bf16.mxu0 0
  %334 = vmatmul.mubr.bf16.gmra.mrb[0].mxu0 %v166
  %v335 = vpop.f32.mrb[0].mxu0
  %v336 = vadd.f32 %v126, %v335
  %v337 = vpop.f32.mrb[0].mxu0
  %v338 = vpop.f32.mrb[0].mxu0
  %v339 = vadd.f32 %v126, %v338
  %v340 = vpop.f32.mrb[0].mxu0
  %341 = vmatprep.mubr.bf16.mxu0 0
  %342 = vmatmul.mubr.bf16.gmra.mrb[0].mxu0 %v169
  %v343 = vpop.f32.mrb[0].mxu0
  %v344 = vadd.f32 %v126, %v343
  %v345 = vpop.f32.mrb[0].mxu0
  %v346 = vpop.f32.mrb[0].mxu0
  %v347 = vadd.f32 %v126, %v346
  %v348 = vpop.f32.mrb[0].mxu0
  %349 = vmatprep.mubr.bf16.mxu0 0
  %350 = vmatmul.mubr.bf16.gmra.mrb[0].mxu0 %v172
  %v351 = vpop.f32.mrb[0].mxu0
  %v352 = vadd.f32 %v126, %v351
  %v353 = vpop.f32.mrb[0].mxu0
  %v354 = vpop.f32.mrb[0].mxu0
  %v355 = vadd.f32 %v126, %v354
  %v356 = vpop.f32.mrb[0].mxu0
  %357 = vmatprep.mubr.bf16.mxu0 0
  %358 = vmatmul.mubr.bf16.gmra.mrb[0].mxu0 %v175
  %v359 = vpop.f32.mrb[0].mxu0
  %v360 = vadd.f32 %v126, %v359
  %v361 = vpop.f32.mrb[0].mxu0
  %v362 = vpop.f32.mrb[0].mxu0
  %v363 = vadd.f32 %v126, %v362
  %v364 = vpop.f32.mrb[0].mxu0
  %365 = vmatprep.mubr.bf16.mxu0 0
  %366 = vmatmul.mubr.bf16.gmra.mrb[0].mxu0 %v178
  %v367 = vpop.f32.mrb[0].mxu0
  %v368 = vadd.f32 %v126, %v367
  %v369 = vpop.f32.mrb[0].mxu0
  %v370 = vpop.f32.mrb[0].mxu0
  %v371 = vadd.f32 %v126, %v370
  %v372 = vpop.f32.mrb[0].mxu0
  %373 = vmatprep.mubr.bf16.mxu0 0
  %374 = vmatmul.mubr.bf16.gmra.mrb[0].mxu0 %v181
  %v375 = vpop.f32.mrb[0].mxu0
  %v376 = vadd.f32 %v126, %v375
  %v377 = vpop.f32.mrb[0].mxu0
  %v378 = vpop.f32.mrb[0].mxu0
  %v379 = vadd.f32 %v126, %v378
  %v380 = vpop.f32.mrb[0].mxu0
  %381 = vmatprep.mubr.bf16.mxu0 0
  %382 = vmatmul.mubr.bf16.gmra.mrb[0].mxu0 %v184
  %v383 = vpop.f32.mrb[0].mxu0
  %v384 = vadd.f32 %v126, %v383
  %v385 = vpop.f32.mrb[0].mxu0
  %v386 = vpop.f32.mrb[0].mxu0
  %v387 = vadd.f32 %v126, %v386
  %v388 = vpop.f32.mrb[0].mxu0
  %389 = vmatprep.mubr.bf16.mxu0 0
  %390 = vmatmul.mubr.bf16.gmra.mrb[0].mxu0 %v187
  %v391 = vpop.f32.mrb[0].mxu0
  %v392 = vadd.f32 %v126, %v391
  %v393 = vpop.f32.mrb[0].mxu0
  %v394 = vpop.f32.mrb[0].mxu0
  %v395 = vadd.f32 %v126, %v394
  %v396 = vpop.f32.mrb[0].mxu0
  %397 = vmatprep.mubr.bf16.mxu0 0
  %398 = vmatmul.mubr.bf16.gmra.mrb[0].mxu0 %v190
  %v399 = vpop.f32.mrb[0].mxu0
  %v400 = vadd.f32 %v126, %v399
  %v401 = vpop.f32.mrb[0].mxu0
  %v402 = vpop.f32.mrb[0].mxu0
  %v403 = vadd.f32 %v126, %v402
  %v404 = vpop.f32.mrb[0].mxu0
  %405 = vmatprep.mubr.bf16.mxu0 0
  %406 = vmatmul.mubr.bf16.gmra.mrb[0].mxu0 %v193
  %v407 = vpop.f32.mrb[0].mxu0
  %v408 = vadd.f32 %v126, %v407
  %v409 = vpop.f32.mrb[0].mxu0
  %v410 = vpop.f32.mrb[0].mxu0
  %v411 = vadd.f32 %v126, %v410
  %v412 = vpop.f32.mrb[0].mxu0
  %413 = vmatprep.mubr.bf16.mxu0 0
  %414 = vmatmul.mubr.bf16.gmra.mrb[0].mxu0 %v196
  %v415 = vpop.f32.mrb[0].mxu0
  %v416 = vadd.f32 %v126, %v415
  %v417 = vpop.f32.mrb[0].mxu0
  %v418 = vpop.f32.mrb[0].mxu0
  %v419 = vadd.f32 %v126, %v418
  %v420 = vpop.f32.mrb[0].mxu0
  %421 = vmatprep.mubr.bf16.mxu0 0
  %422 = vmatmul.mubr.bf16.gmra.mrb[0].mxu0 %v199
  %v423 = vpop.f32.mrb[0].mxu0
  %v424 = vadd.f32 %v126, %v423
  %v425 = vpop.f32.mrb[0].mxu0
  %v426 = vpop.f32.mrb[0].mxu0
  %v427 = vadd.f32 %v126, %v426
  %v428 = vpop.f32.mrb[0].mxu0
  %429 = vmatprep.mubr.bf16.mxu0 0
  %430 = vmatmul.mubr.bf16.gmra.mrb[0].mxu0 %v202
  %v431 = vpop.f32.mrb[0].mxu0
  %v432 = vadd.f32 %v126, %v431
  %v433 = vpop.f32.mrb[0].mxu0
  %v434 = vpop.f32.mrb[0].mxu0
  %v435 = vadd.f32 %v126, %v434
  %v436 = vpop.f32.mrb[0].mxu0
  %437 = vmatprep.mubr.bf16.mxu0 0
  %438 = vmatmul.mubr.bf16.gmra.mrb[0].mxu0 %v205
  %v439 = vpop.f32.mrb[0].mxu0
  %v440 = vadd.f32 %v126, %v439
  %v441 = vpop.f32.mrb[0].mxu0
  %v442 = vpop.f32.mrb[0].mxu0
  %v443 = vadd.f32 %v126, %v442
  %v444 = vpop.f32.mrb[0].mxu0
  %445 = vmatprep.mubr.bf16.mxu0 0
  %446 = vmatmul.mubr.bf16.gmra.mrb[0].mxu0 %v208
  %v447 = vpop.f32.mrb[0].mxu0
  %v448 = vadd.f32 %v126, %v447
  %v449 = vpop.f32.mrb[0].mxu0
  %v450 = vpop.f32.mrb[0].mxu0
  %v451 = vadd.f32 %v126, %v450
  %v452 = vpop.f32.mrb[0].mxu0
  %453 = vmatprep.mubr.bf16.mxu0 0
  %454 = vmatmul.mubr.bf16.gmra.mrb[0].mxu0 %v211
  %v455 = vpop.f32.mrb[0].mxu0
  %v456 = vadd.f32 %v126, %v455
  %v457 = vpop.f32.mrb[0].mxu0
  %v458 = vpop.f32.mrb[0].mxu0
  %v459 = vadd.f32 %v126, %v458
  %v460 = vpop.f32.mrb[0].mxu0
  %461 = vmatprep.mubr.bf16.mxu0 0
  %462 = vmatmul.mubr.bf16.gmra.mrb[0].mxu0 %v214
  %v463 = vpop.f32.mrb[0].mxu0
  %v464 = vadd.f32 %v126, %v463
  %v465 = vpop.f32.mrb[0].mxu0
  %v466 = vpop.f32.mrb[0].mxu0
  %v467 = vadd.f32 %v126, %v466
  %v468 = vpop.f32.mrb[0].mxu0
  %469 = vmatprep.mubr.bf16.mxu0 0
  %470 = vmatmul.mubr.bf16.gmra.mrb[0].mxu0 %v217
  %v471 = vpop.f32.mrb[0].mxu0
  %v472 = vadd.f32 %v126, %v471
  %v473 = vpop.f32.mrb[0].mxu0
  %v474 = vpop.f32.mrb[0].mxu0
  %v475 = vadd.f32 %v126, %v474
  %v476 = vpop.f32.mrb[0].mxu0
  %477 = vmatprep.mubr.bf16.mxu0 0
  %478 = vmatmul.mubr.bf16.gmra.mrb[0].mxu0 %v220
  %v479 = vpop.f32.mrb[0].mxu0
  %v480 = vadd.f32 %v126, %v479
  %v481 = vpop.f32.mrb[0].mxu0
  %v482 = vpop.f32.mrb[0].mxu0
  %v483 = vadd.f32 %v126, %v482
  %v484 = vpop.f32.mrb[0].mxu0
  %485 = vmatprep.mubr.bf16.mxu0 0
  %486 = vmatmul.mubr.bf16.gmra.mrb[0].mxu0 %v223
  %v487 = vpop.f32.mrb[0].mxu0
  %v488 = vadd.f32 %v126, %v487
  %v489 = vpop.f32.mrb[0].mxu0
  %v490 = vpop.f32.mrb[0].mxu0
  %v491 = vadd.f32 %v126, %v490
  %v492 = vpop.f32.mrb[0].mxu0
  %493 = vmatprep.mubr.bf16.mxu0 0
  %494 = vmatmul.mubr.bf16.gmra.mrb[0].mxu0 %v226
  %v495 = vpop.f32.mrb[0].mxu0
  %v496 = vadd.f32 %v126, %v495
  %v497 = vpop.f32.mrb[0].mxu0
  %v498 = vpop.f32.mrb[0].mxu0
  %v499 = vadd.f32 %v126, %v498
  %v500 = vpop.f32.mrb[0].mxu0
  %501 = vmatprep.mubr.bf16.mxu0 0
  %502 = vmatmul.mubr.bf16.gmra.mrb[0].mxu0 %v229
  %v503 = vpop.f32.mrb[0].mxu0
  %v504 = vadd.f32 %v126, %v503
  %v505 = vpop.f32.mrb[0].mxu0
  %v506 = vpop.f32.mrb[0].mxu0
  %v507 = vadd.f32 %v126, %v506
  %v508 = vpop.f32.mrb[0].mxu0
  %509 = vmatprep.mubr.bf16.mxu0 0
  %510 = vmatmul.mubr.bf16.gmra.mrb[0].mxu0 %v232
  %v511 = vpop.f32.mrb[0].mxu0
  %v512 = vadd.f32 %v126, %v511
  %v513 = vpop.f32.mrb[0].mxu0
  %v514 = vpop.f32.mrb[0].mxu0
  %v515 = vadd.f32 %v126, %v514
  %v516 = vpop.f32.mrb[0].mxu0
  %517 = vmatprep.mubr.bf16.mxu0 0
  %518 = vmatmul.mubr.bf16.gmra.mrb[0].mxu0 %v235
  %v519 = vpop.f32.mrb[0].mxu0
  %v520 = vadd.f32 %v126, %v519
  %v521 = vpop.f32.mrb[0].mxu0
  %v522 = vpop.f32.mrb[0].mxu0
  %v523 = vadd.f32 %v126, %v522
  %v524 = vpop.f32.mrb[0].mxu0
  %525 = vdwg.mxu0
  %v526 = vmul.f32 %v272, 0.5
  %v527 = vmul.f32 %v275, 0.5
  %v528 = vmul.f32 %v280, 0.5
  %v529 = vmul.f32 %v283, 0.5
  %v530 = vmul.f32 %v288, 0.5
  %v531 = vmul.f32 %v291, 0.5
  %v532 = vmul.f32 %v296, 0.5
  %v533 = vmul.f32 %v299, 0.5
  %v534 = vmul.f32 %v304, 0.5
  %v535 = vmul.f32 %v307, 0.5
  %v536 = vmul.f32 %v312, 0.5
  %v537 = vmul.f32 %v315, 0.5
  %v538 = vmul.f32 %v320, 0.5
  %v539 = vmul.f32 %v323, 0.5
  %v540 = vmul.f32 %v328, 0.5
  %v541 = vmul.f32 %v331, 0.5
  %v542 = vmul.f32 %v336, 0.5
  %v543 = vmul.f32 %v339, 0.5
  %v544 = vmul.f32 %v344, 0.5
  %v545 = vmul.f32 %v347, 0.5
  %v546 = vmul.f32 %v352, 0.5
  %v547 = vmul.f32 %v355, 0.5
  %v548 = vmul.f32 %v360, 0.5
  %v549 = vmul.f32 %v363, 0.5
  %v550 = vmul.f32 %v368, 0.5
  %v551 = vmul.f32 %v371, 0.5
  %v552 = vmul.f32 %v376, 0.5
  %v553 = vmul.f32 %v379, 0.5
  %v554 = vmul.f32 %v384, 0.5
  %v555 = vmul.f32 %v387, 0.5
  %v556 = vmul.f32 %v392, 0.5
  %v557 = vmul.f32 %v395, 0.5
  %v558 = vmul.f32 %v400, 0.5
  %v559 = vmul.f32 %v403, 0.5
  %v560 = vmul.f32 %v408, 0.5
  %v561 = vmul.f32 %v411, 0.5
  %v562 = vmul.f32 %v416, 0.5
  %v563 = vmul.f32 %v419, 0.5
  %v564 = vmul.f32 %v424, 0.5
  %v565 = vmul.f32 %v427, 0.5
  %v566 = vmul.f32 %v432, 0.5
  %v567 = vmul.f32 %v435, 0.5
  %v568 = vmul.f32 %v440, 0.5
  %v569 = vmul.f32 %v443, 0.5
  %v570 = vmul.f32 %v448, 0.5
  %v571 = vmul.f32 %v451, 0.5
  %v572 = vmul.f32 %v456, 0.5
  %v573 = vmul.f32 %v459, 0.5
  %v574 = vmul.f32 %v464, 0.5
  %v575 = vmul.f32 %v467, 0.5
  %v576 = vmul.f32 %v472, 0.5
  %v577 = vmul.f32 %v475, 0.5
  %v578 = vmul.f32 %v480, 0.5
  %v579 = vmul.f32 %v483, 0.5
  %v580 = vmul.f32 %v488, 0.5
  %v581 = vmul.f32 %v491, 0.5
  %v582 = vmul.f32 %v496, 0.5
  %v583 = vmul.f32 %v499, 0.5
  %v584 = vmul.f32 %v504, 0.5
  %v585 = vmul.f32 %v507, 0.5
  %v586 = vmul.f32 %v512, 0.5
  %v587 = vmul.f32 %v515, 0.5
  %v588 = vmul.f32 %v520, 0.5
  %v589 = vmul.f32 %v523, 0.5
  %v590 = vmul.f32 %v272, 0.044715
  %v591 = vmul.f32 %v275, 0.044715
  %v592 = vmul.f32 %v280, 0.044715
  %v593 = vmul.f32 %v283, 0.044715
  %v594 = vmul.f32 %v288, 0.044715
  %v595 = vmul.f32 %v291, 0.044715
  %v596 = vmul.f32 %v296, 0.044715
  %v597 = vmul.f32 %v299, 0.044715
  %v598 = vmul.f32 %v304, 0.044715
  %v599 = vmul.f32 %v307, 0.044715
  %v600 = vmul.f32 %v312, 0.044715
  %v601 = vmul.f32 %v315, 0.044715
  %v602 = vmul.f32 %v320, 0.044715
  %v603 = vmul.f32 %v323, 0.044715
  %v604 = vmul.f32 %v328, 0.044715
  %v605 = vmul.f32 %v331, 0.044715
  %v606 = vmul.f32 %v336, 0.044715
  %v607 = vmul.f32 %v339, 0.044715
  %v608 = vmul.f32 %v344, 0.044715
  %v609 = vmul.f32 %v347, 0.044715
  %v610 = vmul.f32 %v352, 0.044715
  %v611 = vmul.f32 %v355, 0.044715
  %v612 = vmul.f32 %v360, 0.044715
  %v613 = vmul.f32 %v363, 0.044715
  %v614 = vmul.f32 %v368, 0.044715
  %v615 = vmul.f32 %v371, 0.044715
  %v616 = vmul.f32 %v376, 0.044715
  %v617 = vmul.f32 %v379, 0.044715
  %v618 = vmul.f32 %v384, 0.044715
  %v619 = vmul.f32 %v387, 0.044715
  %v620 = vmul.f32 %v392, 0.044715
  %v621 = vmul.f32 %v395, 0.044715
  %v622 = vmul.f32 %v400, 0.044715
  %v623 = vmul.f32 %v403, 0.044715
  %v624 = vmul.f32 %v408, 0.044715
  %v625 = vmul.f32 %v411, 0.044715
  %v626 = vmul.f32 %v416, 0.044715
  %v627 = vmul.f32 %v419, 0.044715
  %v628 = vmul.f32 %v424, 0.044715
  %v629 = vmul.f32 %v427, 0.044715
  %v630 = vmul.f32 %v432, 0.044715
  %v631 = vmul.f32 %v435, 0.044715
  %v632 = vmul.f32 %v440, 0.044715
  %v633 = vmul.f32 %v443, 0.044715
  %v634 = vmul.f32 %v448, 0.044715
  %v635 = vmul.f32 %v451, 0.044715
  %v636 = vmul.f32 %v456, 0.044715
  %v637 = vmul.f32 %v459, 0.044715
  %v638 = vmul.f32 %v464, 0.044715
  %v639 = vmul.f32 %v467, 0.044715
  %v640 = vmul.f32 %v472, 0.044715
  %v641 = vmul.f32 %v475, 0.044715
  %v642 = vmul.f32 %v480, 0.044715
  %v643 = vmul.f32 %v483, 0.044715
  %v644 = vmul.f32 %v488, 0.044715
  %v645 = vmul.f32 %v491, 0.044715
  %v646 = vmul.f32 %v496, 0.044715
  %v647 = vmul.f32 %v499, 0.044715
  %v648 = vmul.f32 %v504, 0.044715
  %v649 = vmul.f32 %v507, 0.044715
  %v650 = vmul.f32 %v512, 0.044715
  %v651 = vmul.f32 %v515, 0.044715
  %v652 = vmul.f32 %v520, 0.044715
  %v653 = vmul.f32 %v523, 0.044715
  %v654 = vmul.f32 %v590, %v272
  %v655 = vmul.f32 %v591, %v275
  %v656 = vmul.f32 %v592, %v280
  %v657 = vmul.f32 %v593, %v283
  %v658 = vmul.f32 %v594, %v288
  %v659 = vmul.f32 %v595, %v291
  %v660 = vmul.f32 %v596, %v296
  %v661 = vmul.f32 %v597, %v299
  %v662 = vmul.f32 %v598, %v304
  %v663 = vmul.f32 %v599, %v307
  %v664 = vmul.f32 %v600, %v312
  %v665 = vmul.f32 %v601, %v315
  %v666 = vmul.f32 %v602, %v320
  %v667 = vmul.f32 %v603, %v323
  %v668 = vmul.f32 %v604, %v328
  %v669 = vmul.f32 %v605, %v331
  %v670 = vmul.f32 %v606, %v336
  %v671 = vmul.f32 %v607, %v339
  %v672 = vmul.f32 %v608, %v344
  %v673 = vmul.f32 %v609, %v347
  %v674 = vmul.f32 %v610, %v352
  %v675 = vmul.f32 %v611, %v355
  %v676 = vmul.f32 %v612, %v360
  %v677 = vmul.f32 %v613, %v363
  %v678 = vmul.f32 %v614, %v368
  %v679 = vmul.f32 %v615, %v371
  %v680 = vmul.f32 %v616, %v376
  %v681 = vmul.f32 %v617, %v379
  %v682 = vmul.f32 %v618, %v384
  %v683 = vmul.f32 %v619, %v387
  %v684 = vmul.f32 %v620, %v392
  %v685 = vmul.f32 %v621, %v395
  %v686 = vmul.f32 %v622, %v400
  %v687 = vmul.f32 %v623, %v403
  %v688 = vmul.f32 %v624, %v408
  %v689 = vmul.f32 %v625, %v411
  %v690 = vmul.f32 %v626, %v416
  %v691 = vmul.f32 %v627, %v419
  %v692 = vmul.f32 %v628, %v424
  %v693 = vmul.f32 %v629, %v427
  %v694 = vmul.f32 %v630, %v432
  %v695 = vmul.f32 %v631, %v435
  %v696 = vmul.f32 %v632, %v440
  %v697 = vmul.f32 %v633, %v443
  %v698 = vmul.f32 %v634, %v448
  %v699 = vmul.f32 %v635, %v451
  %v700 = vmul.f32 %v636, %v456
  %v701 = vmul.f32 %v637, %v459
  %v702 = vmul.f32 %v638, %v464
  %v703 = vmul.f32 %v639, %v467
  %v704 = vmul.f32 %v640, %v472
  %v705 = vmul.f32 %v641, %v475
  %v706 = vmul.f32 %v642, %v480
  %v707 = vmul.f32 %v643, %v483
  %v708 = vmul.f32 %v644, %v488
  %v709 = vmul.f32 %v645, %v491
  %v710 = vmul.f32 %v646, %v496
  %v711 = vmul.f32 %v647, %v499
  %v712 = vmul.f32 %v648, %v504
  %v713 = vmul.f32 %v649, %v507
  %v714 = vmul.f32 %v650, %v512
  %v715 = vmul.f32 %v651, %v515
  %v716 = vmul.f32 %v652, %v520
  %v717 = vmul.f32 %v653, %v523
  %v718 = vmul.f32 %v654, %v272
  %v719 = vmul.f32 %v655, %v275
  %v720 = vmul.f32 %v656, %v280
  %v721 = vmul.f32 %v657, %v283
  %v722 = vmul.f32 %v658, %v288
  %v723 = vmul.f32 %v659, %v291
  %v724 = vmul.f32 %v660, %v296
  %v725 = vmul.f32 %v661, %v299
  %v726 = vmul.f32 %v662, %v304
  %v727 = vmul.f32 %v663, %v307
  %v728 = vmul.f32 %v664, %v312
  %v729 = vmul.f32 %v665, %v315
  %v730 = vmul.f32 %v666, %v320
  %v731 = vmul.f32 %v667, %v323
  %v732 = vmul.f32 %v668, %v328
  %v733 = vmul.f32 %v669, %v331
  %v734 = vmul.f32 %v670, %v336
  %v735 = vmul.f32 %v671, %v339
  %v736 = vmul.f32 %v672, %v344
  %v737 = vmul.f32 %v673, %v347
  %v738 = vmul.f32 %v674, %v352
  %v739 = vmul.f32 %v675, %v355
  %v740 = vmul.f32 %v676, %v360
  %v741 = vmul.f32 %v677, %v363
  %v742 = vmul.f32 %v678, %v368
  %v743 = vmul.f32 %v679, %v371
  %v744 = vmul.f32 %v680, %v376
  %v745 = vmul.f32 %v681, %v379
  %v746 = vmul.f32 %v682, %v384
  %v747 = vmul.f32 %v683, %v387
  %v748 = vmul.f32 %v684, %v392
  %v749 = vmul.f32 %v685, %v395
  %v750 = vmul.f32 %v686, %v400
  %v751 = vmul.f32 %v687, %v403
  %v752 = vmul.f32 %v688, %v408
  %v753 = vmul.f32 %v689, %v411
  %v754 = vmul.f32 %v690, %v416
  %v755 = vmul.f32 %v691, %v419
  %v756 = vmul.f32 %v692, %v424
  %v757 = vmul.f32 %v693, %v427
  %v758 = vmul.f32 %v694, %v432
  %v759 = vmul.f32 %v695, %v435
  %v760 = vmul.f32 %v696, %v440
  %v761 = vmul.f32 %v697, %v443
  %v762 = vmul.f32 %v698, %v448
  %v763 = vmul.f32 %v699, %v451
  %v764 = vmul.f32 %v700, %v456
  %v765 = vmul.f32 %v701, %v459
  %v766 = vmul.f32 %v702, %v464
  %v767 = vmul.f32 %v703, %v467
  %v768 = vmul.f32 %v704, %v472
  %v769 = vmul.f32 %v705, %v475
  %v770 = vmul.f32 %v706, %v480
  %v771 = vmul.f32 %v707, %v483
  %v772 = vmul.f32 %v708, %v488
  %v773 = vmul.f32 %v709, %v491
  %v774 = vmul.f32 %v710, %v496
  %v775 = vmul.f32 %v711, %v499
  %v776 = vmul.f32 %v712, %v504
  %v777 = vmul.f32 %v713, %v507
  %v778 = vmul.f32 %v714, %v512
  %v779 = vmul.f32 %v715, %v515
  %v780 = vmul.f32 %v716, %v520
  %v781 = vmul.f32 %v717, %v523
  %v782 = vadd.f32 %v272, %v718
  %v783 = vadd.f32 %v275, %v719
  %v784 = vadd.f32 %v280, %v720
  %v785 = vadd.f32 %v283, %v721
  %v786 = vadd.f32 %v288, %v722
  %v787 = vadd.f32 %v291, %v723
  %v788 = vadd.f32 %v296, %v724
  %v789 = vadd.f32 %v299, %v725
  %v790 = vadd.f32 %v304, %v726
  %v791 = vadd.f32 %v307, %v727
  %v792 = vadd.f32 %v312, %v728
  %v793 = vadd.f32 %v315, %v729
  %v794 = vadd.f32 %v320, %v730
  %v795 = vadd.f32 %v323, %v731
  %v796 = vadd.f32 %v328, %v732
  %v797 = vadd.f32 %v331, %v733
  %v798 = vadd.f32 %v336, %v734
  %v799 = vadd.f32 %v339, %v735
  %v800 = vadd.f32 %v344, %v736
  %v801 = vadd.f32 %v347, %v737
  %v802 = vadd.f32 %v352, %v738
  %v803 = vadd.f32 %v355, %v739
  %v804 = vadd.f32 %v360, %v740
  %v805 = vadd.f32 %v363, %v741
  %v806 = vadd.f32 %v368, %v742
  %v807 = vadd.f32 %v371, %v743
  %v808 = vadd.f32 %v376, %v744
  %v809 = vadd.f32 %v379, %v745
  %v810 = vadd.f32 %v384, %v746
  %v811 = vadd.f32 %v387, %v747
  %v812 = vadd.f32 %v392, %v748
  %v813 = vadd.f32 %v395, %v749
  %v814 = vadd.f32 %v400, %v750
  %v815 = vadd.f32 %v403, %v751
  %v816 = vadd.f32 %v408, %v752
  %v817 = vadd.f32 %v411, %v753
  %v818 = vadd.f32 %v416, %v754
  %v819 = vadd.f32 %v419, %v755
  %v820 = vadd.f32 %v424, %v756
  %v821 = vadd.f32 %v427, %v757
  %v822 = vadd.f32 %v432, %v758
  %v823 = vadd.f32 %v435, %v759
  %v824 = vadd.f32 %v440, %v760
  %v825 = vadd.f32 %v443, %v761
  %v826 = vadd.f32 %v448, %v762
  %v827 = vadd.f32 %v451, %v763
  %v828 = vadd.f32 %v456, %v764
  %v829 = vadd.f32 %v459, %v765
  %v830 = vadd.f32 %v464, %v766
  %v831 = vadd.f32 %v467, %v767
  %v832 = vadd.f32 %v472, %v768
  %v833 = vadd.f32 %v475, %v769
  %v834 = vadd.f32 %v480, %v770
  %v835 = vadd.f32 %v483, %v771
  %v836 = vadd.f32 %v488, %v772
  %v837 = vadd.f32 %v491, %v773
  %v838 = vadd.f32 %v496, %v774
  %v839 = vadd.f32 %v499, %v775
  %v840 = vadd.f32 %v504, %v776
  %v841 = vadd.f32 %v507, %v777
  %v842 = vadd.f32 %v512, %v778
  %v843 = vadd.f32 %v515, %v779
  %v844 = vadd.f32 %v520, %v780
  %v845 = vadd.f32 %v523, %v781
  %v846 = vmul.f32 %v782, 0.7978846
  %v847 = vmul.f32 %v783, 0.7978846
  %v848 = vmul.f32 %v784, 0.7978846
  %v849 = vmul.f32 %v785, 0.7978846
  %v850 = vmul.f32 %v786, 0.7978846
  %v851 = vmul.f32 %v787, 0.7978846
  %v852 = vmul.f32 %v788, 0.7978846
  %v853 = vmul.f32 %v789, 0.7978846
  %v854 = vmul.f32 %v790, 0.7978846
  %v855 = vmul.f32 %v791, 0.7978846
  %v856 = vmul.f32 %v792, 0.7978846
  %v857 = vmul.f32 %v793, 0.7978846
  %v858 = vmul.f32 %v794, 0.7978846
  %v859 = vmul.f32 %v795, 0.7978846
  %v860 = vmul.f32 %v796, 0.7978846
  %v861 = vmul.f32 %v797, 0.7978846
  %v862 = vmul.f32 %v798, 0.7978846
  %v863 = vmul.f32 %v799, 0.7978846
  %v864 = vmul.f32 %v800, 0.7978846
  %v865 = vmul.f32 %v801, 0.7978846
  %v866 = vmul.f32 %v802, 0.7978846
  %v867 = vmul.f32 %v803, 0.7978846
  %v868 = vmul.f32 %v804, 0.7978846
  %v869 = vmul.f32 %v805, 0.7978846
  %v870 = vmul.f32 %v806, 0.7978846
  %v871 = vmul.f32 %v807, 0.7978846
  %v872 = vmul.f32 %v808, 0.7978846
  %v873 = vmul.f32 %v809, 0.7978846
  %v874 = vmul.f32 %v810, 0.7978846
  %v875 = vmul.f32 %v811, 0.7978846
  %v876 = vmul.f32 %v812, 0.7978846
  %v877 = vmul.f32 %v813, 0.7978846
  %v878 = vmul.f32 %v814, 0.7978846
  %v879 = vmul.f32 %v815, 0.7978846
  %v880 = vmul.f32 %v816, 0.7978846
  %v881 = vmul.f32 %v817, 0.7978846
  %v882 = vmul.f32 %v818, 0.7978846
  %v883 = vmul.f32 %v819, 0.7978846
  %v884 = vmul.f32 %v820, 0.7978846
  %v885 = vmul.f32 %v821, 0.7978846
  %v886 = vmul.f32 %v822, 0.7978846
  %v887 = vmul.f32 %v823, 0.7978846
  %v888 = vmul.f32 %v824, 0.7978846
  %v889 = vmul.f32 %v825, 0.7978846
  %v890 = vmul.f32 %v826, 0.7978846
  %v891 = vmul.f32 %v827, 0.7978846
  %v892 = vmul.f32 %v828, 0.7978846
  %v893 = vmul.f32 %v829, 0.7978846
  %v894 = vmul.f32 %v830, 0.7978846
  %v895 = vmul.f32 %v831, 0.7978846
  %v896 = vmul.f32 %v832, 0.7978846
  %v897 = vmul.f32 %v833, 0.7978846
  %v898 = vmul.f32 %v834, 0.7978846
  %v899 = vmul.f32 %v835, 0.7978846
  %v900 = vmul.f32 %v836, 0.7978846
  %v901 = vmul.f32 %v837, 0.7978846
  %v902 = vmul.f32 %v838, 0.7978846
  %v903 = vmul.f32 %v839, 0.7978846
  %v904 = vmul.f32 %v840, 0.7978846
  %v905 = vmul.f32 %v841, 0.7978846
  %v906 = vmul.f32 %v842, 0.7978846
  %v907 = vmul.f32 %v843, 0.7978846
  %v908 = vmul.f32 %v844, 0.7978846
  %v909 = vmul.f32 %v845, 0.7978846
  %v910 = vtanh.pop %v846
  %v911 = vtanh.pop %v847
  %v912 = vtanh.pop %v848
  %v913 = vtanh.pop %v849
  %v914 = vtanh.pop %v850
  %v915 = vtanh.pop %v851
  %v916 = vtanh.pop %v852
  %v917 = vtanh.pop %v853
  %v918 = vtanh.pop %v854
  %v919 = vtanh.pop %v855
  %v920 = vtanh.pop %v856
  %v921 = vtanh.pop %v857
  %v922 = vtanh.pop %v858
  %v923 = vtanh.pop %v859
  %v924 = vtanh.pop %v860
  %v925 = vtanh.pop %v861
  %v926 = vtanh.pop %v862
  %v927 = vtanh.pop %v863
  %v928 = vtanh.pop %v864
  %v929 = vtanh.pop %v865
  %v930 = vtanh.pop %v866
  %v931 = vtanh.pop %v867
  %v932 = vtanh.pop %v868
  %v933 = vtanh.pop %v869
  %v934 = vtanh.pop %v870
  %v935 = vtanh.pop %v871
  %v936 = vtanh.pop %v872
  %v937 = vtanh.pop %v873
  %v938 = vtanh.pop %v874
  %v939 = vtanh.pop %v875
  %v940 = vtanh.pop %v876
  %v941 = vtanh.pop %v877
  %v942 = vtanh.pop %v878
  %v943 = vtanh.pop %v879
  %v944 = vtanh.pop %v880
  %v945 = vtanh.pop %v881
  %v946 = vtanh.pop %v882
  %v947 = vtanh.pop %v883
  %v948 = vtanh.pop %v884
  %v949 = vtanh.pop %v885
  %v950 = vtanh.pop %v886
  %v951 = vtanh.pop %v887
  %v952 = vtanh.pop %v888
  %v953 = vtanh.pop %v889
  %v954 = vtanh.pop %v890
  %v955 = vtanh.pop %v891
  %v956 = vtanh.pop %v892
  %v957 = vtanh.pop %v893
  %v958 = vtanh.pop %v894
  %v959 = vtanh.pop %v895
  %v960 = vtanh.pop %v896
  %v961 = vtanh.pop %v897
  %v962 = vtanh.pop %v898
  %v963 = vtanh.pop %v899
  %v964 = vtanh.pop %v900
  %v965 = vtanh.pop %v901
  %v966 = vtanh.pop %v902
  %v967 = vtanh.pop %v903
  %v968 = vtanh.pop %v904
  %v969 = vtanh.pop %v905
  %v970 = vtanh.pop %v906
  %v971 = vtanh.pop %v907
  %v972 = vtanh.pop %v908
  %v973 = vtanh.pop %v909
  %v974 = vadd.f32 %v910, 1.0
  %v975 = vadd.f32 %v911, 1.0
  %v976 = vadd.f32 %v912, 1.0
  %v977 = vadd.f32 %v913, 1.0
  %v978 = vadd.f32 %v914, 1.0
  %v979 = vadd.f32 %v915, 1.0
  %v980 = vadd.f32 %v916, 1.0
  %v981 = vadd.f32 %v917, 1.0
  %v982 = vadd.f32 %v918, 1.0
  %v983 = vadd.f32 %v919, 1.0
  %v984 = vadd.f32 %v920, 1.0
  %v985 = vadd.f32 %v921, 1.0
  %v986 = vadd.f32 %v922, 1.0
  %v987 = vadd.f32 %v923, 1.0
  %v988 = vadd.f32 %v924, 1.0
  %v989 = vadd.f32 %v925, 1.0
  %v990 = vadd.f32 %v926, 1.0
  %v991 = vadd.f32 %v927, 1.0
  %v992 = vadd.f32 %v928, 1.0
  %v993 = vadd.f32 %v929, 1.0
  %v994 = vadd.f32 %v930, 1.0
  %v995 = vadd.f32 %v931, 1.0
  %v996 = vadd.f32 %v932, 1.0
  %v997 = vadd.f32 %v933, 1.0
  %v998 = vadd.f32 %v934, 1.0
  %v999 = vadd.f32 %v935, 1.0
  %v1000 = vadd.f32 %v936, 1.0
  %v1001 = vadd.f32 %v937, 1.0
  %v1002 = vadd.f32 %v938, 1.0
  %v1003 = vadd.f32 %v939, 1.0
  %v1004 = vadd.f32 %v940, 1.0
  %v1005 = vadd.f32 %v941, 1.0
  %v1006 = vadd.f32 %v942, 1.0
  %v1007 = vadd.f32 %v943, 1.0
  %v1008 = vadd.f32 %v944, 1.0
  %v1009 = vadd.f32 %v945, 1.0
  %v1010 = vadd.f32 %v946, 1.0
  %v1011 = vadd.f32 %v947, 1.0
  %v1012 = vadd.f32 %v948, 1.0
  %v1013 = vadd.f32 %v949, 1.0
  %v1014 = vadd.f32 %v950, 1.0
  %v1015 = vadd.f32 %v951, 1.0
  %v1016 = vadd.f32 %v952, 1.0
  %v1017 = vadd.f32 %v953, 1.0
  %v1018 = vadd.f32 %v954, 1.0
  %v1019 = vadd.f32 %v955, 1.0
  %v1020 = vadd.f32 %v956, 1.0
  %v1021 = vadd.f32 %v957, 1.0
  %v1022 = vadd.f32 %v958, 1.0
  %v1023 = vadd.f32 %v959, 1.0
  %v1024 = vadd.f32 %v960, 1.0
  %v1025 = vadd.f32 %v961, 1.0
  %v1026 = vadd.f32 %v962, 1.0
  %v1027 = vadd.f32 %v963, 1.0
  %v1028 = vadd.f32 %v964, 1.0
  %v1029 = vadd.f32 %v965, 1.0
  %v1030 = vadd.f32 %v966, 1.0
  %v1031 = vadd.f32 %v967, 1.0
  %v1032 = vadd.f32 %v968, 1.0
  %v1033 = vadd.f32 %v969, 1.0
  %v1034 = vadd.f32 %v970, 1.0
  %v1035 = vadd.f32 %v971, 1.0
  %v1036 = vadd.f32 %v972, 1.0
  %v1037 = vadd.f32 %v973, 1.0
  %v1038 = vmul.f32 %v526, %v974
  %v1039 = vmul.f32 %v527, %v975
  %v1040 = vmul.f32 %v528, %v976
  %v1041 = vmul.f32 %v529, %v977
  %v1042 = vmul.f32 %v530, %v978
  %v1043 = vmul.f32 %v531, %v979
  %v1044 = vmul.f32 %v532, %v980
  %v1045 = vmul.f32 %v533, %v981
  %v1046 = vmul.f32 %v534, %v982
  %v1047 = vmul.f32 %v535, %v983
  %v1048 = vmul.f32 %v536, %v984
  %v1049 = vmul.f32 %v537, %v985
  %v1050 = vmul.f32 %v538, %v986
  %v1051 = vmul.f32 %v539, %v987
  %v1052 = vmul.f32 %v540, %v988
  %v1053 = vmul.f32 %v541, %v989
  %v1054 = vmul.f32 %v542, %v990
  %v1055 = vmul.f32 %v543, %v991
  %v1056 = vmul.f32 %v544, %v992
  %v1057 = vmul.f32 %v545, %v993
  %v1058 = vmul.f32 %v546, %v994
  %v1059 = vmul.f32 %v547, %v995
  %v1060 = vmul.f32 %v548, %v996
  %v1061 = vmul.f32 %v549, %v997
  %v1062 = vmul.f32 %v550, %v998
  %v1063 = vmul.f32 %v551, %v999
  %v1064 = vmul.f32 %v552, %v1000
  %v1065 = vmul.f32 %v553, %v1001
  %v1066 = vmul.f32 %v554, %v1002
  %v1067 = vmul.f32 %v555, %v1003
  %v1068 = vmul.f32 %v556, %v1004
  %v1069 = vmul.f32 %v557, %v1005
  %v1070 = vmul.f32 %v558, %v1006
  %v1071 = vmul.f32 %v559, %v1007
  %v1072 = vmul.f32 %v560, %v1008
  %v1073 = vmul.f32 %v561, %v1009
  %v1074 = vmul.f32 %v562, %v1010
  %v1075 = vmul.f32 %v563, %v1011
  %v1076 = vmul.f32 %v564, %v1012
  %v1077 = vmul.f32 %v565, %v1013
  %v1078 = vmul.f32 %v566, %v1014
  %v1079 = vmul.f32 %v567, %v1015
  %v1080 = vmul.f32 %v568, %v1016
  %v1081 = vmul.f32 %v569, %v1017
  %v1082 = vmul.f32 %v570, %v1018
  %v1083 = vmul.f32 %v571, %v1019
  %v1084 = vmul.f32 %v572, %v1020
  %v1085 = vmul.f32 %v573, %v1021
  %v1086 = vmul.f32 %v574, %v1022
  %v1087 = vmul.f32 %v575, %v1023
  %v1088 = vmul.f32 %v576, %v1024
  %v1089 = vmul.f32 %v577, %v1025
  %v1090 = vmul.f32 %v578, %v1026
  %v1091 = vmul.f32 %v579, %v1027
  %v1092 = vmul.f32 %v580, %v1028
  %v1093 = vmul.f32 %v581, %v1029
  %v1094 = vmul.f32 %v582, %v1030
  %v1095 = vmul.f32 %v583, %v1031
  %v1096 = vmul.f32 %v584, %v1032
  %v1097 = vmul.f32 %v585, %v1033
  %v1098 = vmul.f32 %v586, %v1034
  %v1099 = vmul.f32 %v587, %v1035
  %v1100 = vmul.f32 %v588, %v1036
  %v1101 = vmul.f32 %v589, %v1037
  %v1102 = vpack.c.bf16 %v1039, %v1038
  %v1103 = vpack.c.bf16 %v1041, %v1040
  %v1104 = vpack.c.bf16 %v1043, %v1042
  %v1105 = vpack.c.bf16 %v1045, %v1044
  %v1106 = vpack.c.bf16 %v1047, %v1046
  %v1107 = vpack.c.bf16 %v1049, %v1048
  %v1108 = vpack.c.bf16 %v1051, %v1050
  %v1109 = vpack.c.bf16 %v1053, %v1052
  %v1110 = vpack.c.bf16 %v1055, %v1054
  %v1111 = vpack.c.bf16 %v1057, %v1056
  %v1112 = vpack.c.bf16 %v1059, %v1058
  %v1113 = vpack.c.bf16 %v1061, %v1060
  %v1114 = vpack.c.bf16 %v1063, %v1062
  %v1115 = vpack.c.bf16 %v1065, %v1064
  %v1116 = vpack.c.bf16 %v1067, %v1066
  %v1117 = vpack.c.bf16 %v1069, %v1068
  %v1118 = vpack.c.bf16 %v1071, %v1070
  %v1119 = vpack.c.bf16 %v1073, %v1072
  %v1120 = vpack.c.bf16 %v1075, %v1074
  %v1121 = vpack.c.bf16 %v1077, %v1076
  %v1122 = vpack.c.bf16 %v1079, %v1078
  %v1123 = vpack.c.bf16 %v1081, %v1080
  %v1124 = vpack.c.bf16 %v1083, %v1082
  %v1125 = vpack.c.bf16 %v1085, %v1084
  %v1126 = vpack.c.bf16 %v1087, %v1086
  %v1127 = vpack.c.bf16 %v1089, %v1088
  %v1128 = vpack.c.bf16 %v1091, %v1090
  %v1129 = vpack.c.bf16 %v1093, %v1092
  %v1130 = vpack.c.bf16 %v1095, %v1094
  %v1131 = vpack.c.bf16 %v1097, %v1096
  %v1132 = vpack.c.bf16 %v1099, %v1098
  %v1133 = vpack.c.bf16 %v1101, %v1100
  %v1134 = vld [vmem:[%s3] sm:$0xf]
  %v1135 = vld [vmem:[%s3 + $0x4] sm:$0xf]
  %v1136 = vld [vmem:[%s3 + $0x8] sm:$0xf]
  %v1137 = vld [vmem:[%s3 + $0xc] sm:$0xf]
  %v1138 = vld [vmem:[%s3 + $0x10] sm:$0xf]
  %v1139 = vld [vmem:[%s3 + $0x14] sm:$0xf]
  %v1140 = vld [vmem:[%s3 + $0x18] sm:$0xf]
  %v1141 = vld [vmem:[%s3 + $0x1c] sm:$0xf]
  %v1142 = vld [vmem:[%s3 + $0x20] sm:$0xf]
  %v1143 = vld [vmem:[%s3 + $0x24] sm:$0xf]
  %v1144 = vld [vmem:[%s3 + $0x28] sm:$0xf]
  %v1145 = vld [vmem:[%s3 + $0x2c] sm:$0xf]
  %v1146 = vld [vmem:[%s3 + $0x30] sm:$0xf]
  %v1147 = vld [vmem:[%s3 + $0x34] sm:$0xf]
  %v1148 = vld [vmem:[%s3 + $0x38] sm:$0xf]
  %v1149 = vld [vmem:[%s3 + $0x3c] sm:$0xf]
  %v1150 = vld [vmem:[%s4] sm:$0x1]
  %v1152 = vlaneseq
  %v1153 = vshrl.u32 %v1152, 7
  %v1154 = vsub.s32 0, %v1153
  %v1155 = vrot.slane %v1150, %v1154
  %v1173 = vunpack.c.l.b16 %v1134
  %v1174 = vunpack.c.l.b16 %v1135
  %v1175 = vunpack.c.l.b16 %v1136
  %v1176 = vunpack.c.l.b16 %v1137
  %v1177 = vunpack.c.l.b16 %v1138
  %v1178 = vunpack.c.l.b16 %v1139
  %v1179 = vunpack.c.l.b16 %v1140
  %v1180 = vunpack.c.l.b16 %v1141
  %v1181 = vunpack.c.l.b16 %v1142
  %v1182 = vunpack.c.l.b16 %v1143
  %v1183 = vunpack.c.l.b16 %v1144
  %v1184 = vunpack.c.l.b16 %v1145
  %v1185 = vunpack.c.l.b16 %v1146
  %v1186 = vunpack.c.l.b16 %v1147
  %v1187 = vunpack.c.l.b16 %v1148
  %v1188 = vunpack.c.l.b16 %v1149
  %v1189 = vpack.c.b16 %v1174, %v1173
  %v1190 = vpack.c.b16 %v1176, %v1175
  %v1191 = vpack.c.b16 %v1178, %v1177
  %v1192 = vpack.c.b16 %v1180, %v1179
  %v1193 = vpack.c.b16 %v1182, %v1181
  %v1194 = vpack.c.b16 %v1184, %v1183
  %v1195 = vpack.c.b16 %v1186, %v1185
  %v1196 = vpack.c.b16 %v1188, %v1187
  %1205 = vmatprep.subr.bf16.mxu0 0
  %1206 = vmatpush1.bf16.msra.mxu0 %v1189
  %1207 = vmatprep.subr.bf16.mxu0 0
  %1208 = vmatpush1.bf16.msra.mxu0 %v1190
  %1209 = vmatprep.subr.bf16.mxu0 0
  %1210 = vmatpush1.bf16.msra.mxu0 %v1191
  %1211 = vmatprep.subr.bf16.mxu0 0
  %1212 = vmatpush1.bf16.msra.mxu0 %v1192
  %1213 = vmatprep.subr.bf16.mxu0 0
  %1214 = vmatpush1.bf16.msra.mxu0 %v1193
  %1215 = vmatprep.subr.bf16.mxu0 0
  %1216 = vmatpush1.bf16.msra.mxu0 %v1194
  %1217 = vmatprep.subr.bf16.mxu0 0
  %1218 = vmatpush1.bf16.msra.mxu0 %v1195
  %1219 = vmatprep.subr.bf16.mxu0 0
  %1220 = vmatpush1.bf16.msra.mxu0 %v1196
  %1221 = vmatprep.subr.bf16.mxu0 0
  %1222 = vmatpush1.bf16.msra.mxu0 0
  %1223 = vmatprep.subr.bf16.mxu0 0
  %1224 = vmatpush1.bf16.msra.mxu0 0
  %1225 = vmatprep.subr.bf16.mxu0 0
  %1226 = vmatpush1.bf16.msra.mxu0 0
  %1227 = vmatprep.subr.bf16.mxu0 0
  %1228 = vmatpush1.bf16.msra.mxu0 0
  %1229 = vmatprep.subr.bf16.mxu0 0
  %1230 = vmatpush1.bf16.msra.mxu0 0
  %1231 = vmatprep.subr.bf16.mxu0 0
  %1232 = vmatpush1.bf16.msra.mxu0 0
  %1233 = vmatprep.subr.bf16.mxu0 0
  %1234 = vmatpush1.bf16.msra.mxu0 0
  %1235 = vmatprep.subr.bf16.mxu0 0
  %1236 = vmatpush1.bf16.msra.mxu0 0
  %1237 = vmatprep.mubr.bf16.mxu0 0
  %1238 = vmatmul.mubr.bf16.gmra.mrb[0].mxu0 %v1102
  %v1239 = vpop.f32.mrb[0].mxu0
  %v1240 = vadd.f32 %v1155, %v1239
  %v1241 = vpop.f32.mrb[0].mxu0
  %v1242 = vpop.f32.mrb[0].mxu0
  %v1243 = vadd.f32 %v1155, %v1242
  %v1244 = vpop.f32.mrb[0].mxu0
  %1245 = vmatprep.mubr.bf16.mxu0 0
  %1246 = vmatmul.mubr.bf16.gmra.mrb[0].mxu0 %v1103
  %v1247 = vpop.f32.mrb[0].mxu0
  %v1248 = vadd.f32 %v1155, %v1247
  %v1249 = vpop.f32.mrb[0].mxu0
  %v1250 = vpop.f32.mrb[0].mxu0
  %v1251 = vadd.f32 %v1155, %v1250
  %v1252 = vpop.f32.mrb[0].mxu0
  %1253 = vmatprep.mubr.bf16.mxu0 0
  %1254 = vmatmul.mubr.bf16.gmra.mrb[0].mxu0 %v1104
  %v1255 = vpop.f32.mrb[0].mxu0
  %v1256 = vadd.f32 %v1155, %v1255
  %v1257 = vpop.f32.mrb[0].mxu0
  %v1258 = vpop.f32.mrb[0].mxu0
  %v1259 = vadd.f32 %v1155, %v1258
  %v1260 = vpop.f32.mrb[0].mxu0
  %1261 = vmatprep.mubr.bf16.mxu0 0
  %1262 = vmatmul.mubr.bf16.gmra.mrb[0].mxu0 %v1105
  %v1263 = vpop.f32.mrb[0].mxu0
  %v1264 = vadd.f32 %v1155, %v1263
  %v1265 = vpop.f32.mrb[0].mxu0
  %v1266 = vpop.f32.mrb[0].mxu0
  %v1267 = vadd.f32 %v1155, %v1266
  %v1268 = vpop.f32.mrb[0].mxu0
  %1269 = vmatprep.mubr.bf16.mxu0 0
  %1270 = vmatmul.mubr.bf16.gmra.mrb[0].mxu0 %v1106
  %v1271 = vpop.f32.mrb[0].mxu0
  %v1272 = vadd.f32 %v1155, %v1271
  %v1273 = vpop.f32.mrb[0].mxu0
  %v1274 = vpop.f32.mrb[0].mxu0
  %v1275 = vadd.f32 %v1155, %v1274
  %v1276 = vpop.f32.mrb[0].mxu0
  %1277 = vmatprep.mubr.bf16.mxu0 0
  %1278 = vmatmul.mubr.bf16.gmra.mrb[0].mxu0 %v1107
  %v1279 = vpop.f32.mrb[0].mxu0
  %v1280 = vadd.f32 %v1155, %v1279
  %v1281 = vpop.f32.mrb[0].mxu0
  %v1282 = vpop.f32.mrb[0].mxu0
  %v1283 = vadd.f32 %v1155, %v1282
  %v1284 = vpop.f32.mrb[0].mxu0
  %1285 = vmatprep.mubr.bf16.mxu0 0
  %1286 = vmatmul.mubr.bf16.gmra.mrb[0].mxu0 %v1108
  %v1287 = vpop.f32.mrb[0].mxu0
  %v1288 = vadd.f32 %v1155, %v1287
  %v1289 = vpop.f32.mrb[0].mxu0
  %v1290 = vpop.f32.mrb[0].mxu0
  %v1291 = vadd.f32 %v1155, %v1290
  %v1292 = vpop.f32.mrb[0].mxu0
  %1293 = vmatprep.mubr.bf16.mxu0 0
  %1294 = vmatmul.mubr.bf16.gmra.mrb[0].mxu0 %v1109
  %v1295 = vpop.f32.mrb[0].mxu0
  %v1296 = vadd.f32 %v1155, %v1295
  %v1297 = vpop.f32.mrb[0].mxu0
  %v1298 = vpop.f32.mrb[0].mxu0
  %v1299 = vadd.f32 %v1155, %v1298
  %v1300 = vpop.f32.mrb[0].mxu0
  %1301 = vmatprep.mubr.bf16.mxu0 0
  %1302 = vmatmul.mubr.bf16.gmra.mrb[0].mxu0 %v1110
  %v1303 = vpop.f32.mrb[0].mxu0
  %v1304 = vadd.f32 %v1155, %v1303
  %v1305 = vpop.f32.mrb[0].mxu0
  %v1306 = vpop.f32.mrb[0].mxu0
  %v1307 = vadd.f32 %v1155, %v1306
  %v1308 = vpop.f32.mrb[0].mxu0
  %1309 = vmatprep.mubr.bf16.mxu0 0
  %1310 = vmatmul.mubr.bf16.gmra.mrb[0].mxu0 %v1111
  %v1311 = vpop.f32.mrb[0].mxu0
  %v1312 = vadd.f32 %v1155, %v1311
  %v1313 = vpop.f32.mrb[0].mxu0
  %v1314 = vpop.f32.mrb[0].mxu0
  %v1315 = vadd.f32 %v1155, %v1314
  %v1316 = vpop.f32.mrb[0].mxu0
  %1317 = vmatprep.mubr.bf16.mxu0 0
  %1318 = vmatmul.mubr.bf16.gmra.mrb[0].mxu0 %v1112
  %v1319 = vpop.f32.mrb[0].mxu0
  %v1320 = vadd.f32 %v1155, %v1319
  %v1321 = vpop.f32.mrb[0].mxu0
  %v1322 = vpop.f32.mrb[0].mxu0
  %v1323 = vadd.f32 %v1155, %v1322
  %v1324 = vpop.f32.mrb[0].mxu0
  %1325 = vmatprep.mubr.bf16.mxu0 0
  %1326 = vmatmul.mubr.bf16.gmra.mrb[0].mxu0 %v1113
  %v1327 = vpop.f32.mrb[0].mxu0
  %v1328 = vadd.f32 %v1155, %v1327
  %v1329 = vpop.f32.mrb[0].mxu0
  %v1330 = vpop.f32.mrb[0].mxu0
  %v1331 = vadd.f32 %v1155, %v1330
  %v1332 = vpop.f32.mrb[0].mxu0
  %1333 = vmatprep.mubr.bf16.mxu0 0
  %1334 = vmatmul.mubr.bf16.gmra.mrb[0].mxu0 %v1114
  %v1335 = vpop.f32.mrb[0].mxu0
  %v1336 = vadd.f32 %v1155, %v1335
  %v1337 = vpop.f32.mrb[0].mxu0
  %v1338 = vpop.f32.mrb[0].mxu0
  %v1339 = vadd.f32 %v1155, %v1338
  %v1340 = vpop.f32.mrb[0].mxu0
  %1341 = vmatprep.mubr.bf16.mxu0 0
  %1342 = vmatmul.mubr.bf16.gmra.mrb[0].mxu0 %v1115
  %v1343 = vpop.f32.mrb[0].mxu0
  %v1344 = vadd.f32 %v1155, %v1343
  %v1345 = vpop.f32.mrb[0].mxu0
  %v1346 = vpop.f32.mrb[0].mxu0
  %v1347 = vadd.f32 %v1155, %v1346
  %v1348 = vpop.f32.mrb[0].mxu0
  %1349 = vmatprep.mubr.bf16.mxu0 0
  %1350 = vmatmul.mubr.bf16.gmra.mrb[0].mxu0 %v1116
  %v1351 = vpop.f32.mrb[0].mxu0
  %v1352 = vadd.f32 %v1155, %v1351
  %v1353 = vpop.f32.mrb[0].mxu0
  %v1354 = vpop.f32.mrb[0].mxu0
  %v1355 = vadd.f32 %v1155, %v1354
  %v1356 = vpop.f32.mrb[0].mxu0
  %1357 = vmatprep.mubr.bf16.mxu0 0
  %1358 = vmatmul.mubr.bf16.gmra.mrb[0].mxu0 %v1117
  %v1359 = vpop.f32.mrb[0].mxu0
  %v1360 = vadd.f32 %v1155, %v1359
  %v1361 = vpop.f32.mrb[0].mxu0
  %v1362 = vpop.f32.mrb[0].mxu0
  %v1363 = vadd.f32 %v1155, %v1362
  %v1364 = vpop.f32.mrb[0].mxu0
  %1365 = vmatprep.mubr.bf16.mxu0 0
  %1366 = vmatmul.mubr.bf16.gmra.mrb[0].mxu0 %v1118
  %v1367 = vpop.f32.mrb[0].mxu0
  %v1368 = vadd.f32 %v1155, %v1367
  %v1369 = vpop.f32.mrb[0].mxu0
  %v1370 = vpop.f32.mrb[0].mxu0
  %v1371 = vadd.f32 %v1155, %v1370
  %v1372 = vpop.f32.mrb[0].mxu0
  %1373 = vmatprep.mubr.bf16.mxu0 0
  %1374 = vmatmul.mubr.bf16.gmra.mrb[0].mxu0 %v1119
  %v1375 = vpop.f32.mrb[0].mxu0
  %v1376 = vadd.f32 %v1155, %v1375
  %v1377 = vpop.f32.mrb[0].mxu0
  %v1378 = vpop.f32.mrb[0].mxu0
  %v1379 = vadd.f32 %v1155, %v1378
  %v1380 = vpop.f32.mrb[0].mxu0
  %1381 = vmatprep.mubr.bf16.mxu0 0
  %1382 = vmatmul.mubr.bf16.gmra.mrb[0].mxu0 %v1120
  %v1383 = vpop.f32.mrb[0].mxu0
  %v1384 = vadd.f32 %v1155, %v1383
  %v1385 = vpop.f32.mrb[0].mxu0
  %v1386 = vpop.f32.mrb[0].mxu0
  %v1387 = vadd.f32 %v1155, %v1386
  %v1388 = vpop.f32.mrb[0].mxu0
  %1389 = vmatprep.mubr.bf16.mxu0 0
  %1390 = vmatmul.mubr.bf16.gmra.mrb[0].mxu0 %v1121
  %v1391 = vpop.f32.mrb[0].mxu0
  %v1392 = vadd.f32 %v1155, %v1391
  %v1393 = vpop.f32.mrb[0].mxu0
  %v1394 = vpop.f32.mrb[0].mxu0
  %v1395 = vadd.f32 %v1155, %v1394
  %v1396 = vpop.f32.mrb[0].mxu0
  %1397 = vmatprep.mubr.bf16.mxu0 0
  %1398 = vmatmul.mubr.bf16.gmra.mrb[0].mxu0 %v1122
  %v1399 = vpop.f32.mrb[0].mxu0
  %v1400 = vadd.f32 %v1155, %v1399
  %v1401 = vpop.f32.mrb[0].mxu0
  %v1402 = vpop.f32.mrb[0].mxu0
  %v1403 = vadd.f32 %v1155, %v1402
  %v1404 = vpop.f32.mrb[0].mxu0
  %1405 = vmatprep.mubr.bf16.mxu0 0
  %1406 = vmatmul.mubr.bf16.gmra.mrb[0].mxu0 %v1123
  %v1407 = vpop.f32.mrb[0].mxu0
  %v1408 = vadd.f32 %v1155, %v1407
  %v1409 = vpop.f32.mrb[0].mxu0
  %v1410 = vpop.f32.mrb[0].mxu0
  %v1411 = vadd.f32 %v1155, %v1410
  %v1412 = vpop.f32.mrb[0].mxu0
  %1413 = vmatprep.mubr.bf16.mxu0 0
  %1414 = vmatmul.mubr.bf16.gmra.mrb[0].mxu0 %v1124
  %v1415 = vpop.f32.mrb[0].mxu0
  %v1416 = vadd.f32 %v1155, %v1415
  %v1417 = vpop.f32.mrb[0].mxu0
  %v1418 = vpop.f32.mrb[0].mxu0
  %v1419 = vadd.f32 %v1155, %v1418
  %v1420 = vpop.f32.mrb[0].mxu0
  %1421 = vmatprep.mubr.bf16.mxu0 0
  %1422 = vmatmul.mubr.bf16.gmra.mrb[0].mxu0 %v1125
  %v1423 = vpop.f32.mrb[0].mxu0
  %v1424 = vadd.f32 %v1155, %v1423
  %v1425 = vpop.f32.mrb[0].mxu0
  %v1426 = vpop.f32.mrb[0].mxu0
  %v1427 = vadd.f32 %v1155, %v1426
  %v1428 = vpop.f32.mrb[0].mxu0
  %1429 = vmatprep.mubr.bf16.mxu0 0
  %1430 = vmatmul.mubr.bf16.gmra.mrb[0].mxu0 %v1126
  %v1431 = vpop.f32.mrb[0].mxu0
  %v1432 = vadd.f32 %v1155, %v1431
  %v1433 = vpop.f32.mrb[0].mxu0
  %v1434 = vpop.f32.mrb[0].mxu0
  %v1435 = vadd.f32 %v1155, %v1434
  %v1436 = vpop.f32.mrb[0].mxu0
  %1437 = vmatprep.mubr.bf16.mxu0 0
  %1438 = vmatmul.mubr.bf16.gmra.mrb[0].mxu0 %v1127
  %v1439 = vpop.f32.mrb[0].mxu0
  %v1440 = vadd.f32 %v1155, %v1439
  %v1441 = vpop.f32.mrb[0].mxu0
  %v1442 = vpop.f32.mrb[0].mxu0
  %v1443 = vadd.f32 %v1155, %v1442
  %v1444 = vpop.f32.mrb[0].mxu0
  %1445 = vmatprep.mubr.bf16.mxu0 0
  %1446 = vmatmul.mubr.bf16.gmra.mrb[0].mxu0 %v1128
  %v1447 = vpop.f32.mrb[0].mxu0
  %v1448 = vadd.f32 %v1155, %v1447
  %v1449 = vpop.f32.mrb[0].mxu0
  %v1450 = vpop.f32.mrb[0].mxu0
  %v1451 = vadd.f32 %v1155, %v1450
  %v1452 = vpop.f32.mrb[0].mxu0
  %1453 = vmatprep.mubr.bf16.mxu0 0
  %1454 = vmatmul.mubr.bf16.gmra.mrb[0].mxu0 %v1129
  %v1455 = vpop.f32.mrb[0].mxu0
  %v1456 = vadd.f32 %v1155, %v1455
  %v1457 = vpop.f32.mrb[0].mxu0
  %v1458 = vpop.f32.mrb[0].mxu0
  %v1459 = vadd.f32 %v1155, %v1458
  %v1460 = vpop.f32.mrb[0].mxu0
  %1461 = vmatprep.mubr.bf16.mxu0 0
  %1462 = vmatmul.mubr.bf16.gmra.mrb[0].mxu0 %v1130
  %v1463 = vpop.f32.mrb[0].mxu0
  %v1464 = vadd.f32 %v1155, %v1463
  %v1465 = vpop.f32.mrb[0].mxu0
  %v1466 = vpop.f32.mrb[0].mxu0
  %v1467 = vadd.f32 %v1155, %v1466
  %v1468 = vpop.f32.mrb[0].mxu0
  %1469 = vmatprep.mubr.bf16.mxu0 0
  %1470 = vmatmul.mubr.bf16.gmra.mrb[0].mxu0 %v1131
  %v1471 = vpop.f32.mrb[0].mxu0
  %v1472 = vadd.f32 %v1155, %v1471
  %v1473 = vpop.f32.mrb[0].mxu0
  %v1474 = vpop.f32.mrb[0].mxu0
  %v1475 = vadd.f32 %v1155, %v1474
  %v1476 = vpop.f32.mrb[0].mxu0
  %1477 = vmatprep.mubr.bf16.mxu0 0
  %1478 = vmatmul.mubr.bf16.gmra.mrb[0].mxu0 %v1132
  %v1479 = vpop.f32.mrb[0].mxu0
  %v1480 = vadd.f32 %v1155, %v1479
  %v1481 = vpop.f32.mrb[0].mxu0
  %v1482 = vpop.f32.mrb[0].mxu0
  %v1483 = vadd.f32 %v1155, %v1482
  %v1484 = vpop.f32.mrb[0].mxu0
  %1485 = vmatprep.mubr.bf16.mxu0 0
  %1486 = vmatmul.mubr.bf16.gmra.mrb[0].mxu0 %v1133
  %v1487 = vpop.f32.mrb[0].mxu0
  %v1488 = vadd.f32 %v1155, %v1487
  %v1489 = vpop.f32.mrb[0].mxu0
  %v1490 = vpop.f32.mrb[0].mxu0
  %v1491 = vadd.f32 %v1155, %v1490
  %v1492 = vpop.f32.mrb[0].mxu0
  %1493 = vdwg.mxu0
  %vm1494 = vcmask 31744
  %1495 = vst.msk [vmem:[%s5] sm:$0xff] %vm1494, %v1240
  %1496 = vst.msk [vmem:[%s5 + $0x8] sm:$0xff] %vm1494, %v1243
  %1497 = vst.msk [vmem:[%s5 + $0x10] sm:$0xff] %vm1494, %v1248
  %1498 = vst.msk [vmem:[%s5 + $0x18] sm:$0xff] %vm1494, %v1251
  %1499 = vst.msk [vmem:[%s5 + $0x20] sm:$0xff] %vm1494, %v1256
  %1500 = vst.msk [vmem:[%s5 + $0x28] sm:$0xff] %vm1494, %v1259
  %1501 = vst.msk [vmem:[%s5 + $0x30] sm:$0xff] %vm1494, %v1264
  %1502 = vst.msk [vmem:[%s5 + $0x38] sm:$0xff] %vm1494, %v1267
  %1503 = vst.msk [vmem:[%s5 + $0x40] sm:$0xff] %vm1494, %v1272
  %1504 = vst.msk [vmem:[%s5 + $0x48] sm:$0xff] %vm1494, %v1275
  %1505 = vst.msk [vmem:[%s5 + $0x50] sm:$0xff] %vm1494, %v1280
  %1506 = vst.msk [vmem:[%s5 + $0x58] sm:$0xff] %vm1494, %v1283
  %1507 = vst.msk [vmem:[%s5 + $0x60] sm:$0xff] %vm1494, %v1288
  %1508 = vst.msk [vmem:[%s5 + $0x68] sm:$0xff] %vm1494, %v1291
  %1509 = vst.msk [vmem:[%s5 + $0x70] sm:$0xff] %vm1494, %v1296
  %1510 = vst.msk [vmem:[%s5 + $0x78] sm:$0xff] %vm1494, %v1299
  %1511 = vst.msk [vmem:[%s5 + $0x80] sm:$0xff] %vm1494, %v1304
  %1512 = vst.msk [vmem:[%s5 + $0x88] sm:$0xff] %vm1494, %v1307
  %1513 = vst.msk [vmem:[%s5 + $0x90] sm:$0xff] %vm1494, %v1312
  %1514 = vst.msk [vmem:[%s5 + $0x98] sm:$0xff] %vm1494, %v1315
  %1515 = vst.msk [vmem:[%s5 + $0xa0] sm:$0xff] %vm1494, %v1320
  %1516 = vst.msk [vmem:[%s5 + $0xa8] sm:$0xff] %vm1494, %v1323
  %1517 = vst.msk [vmem:[%s5 + $0xb0] sm:$0xff] %vm1494, %v1328
  %1518 = vst.msk [vmem:[%s5 + $0xb8] sm:$0xff] %vm1494, %v1331
  %1519 = vst.msk [vmem:[%s5 + $0xc0] sm:$0xff] %vm1494, %v1336
  %1520 = vst.msk [vmem:[%s5 + $0xc8] sm:$0xff] %vm1494, %v1339
  %1521 = vst.msk [vmem:[%s5 + $0xd0] sm:$0xff] %vm1494, %v1344
  %1522 = vst.msk [vmem:[%s5 + $0xd8] sm:$0xff] %vm1494, %v1347
  %1523 = vst.msk [vmem:[%s5 + $0xe0] sm:$0xff] %vm1494, %v1352
  %1524 = vst.msk [vmem:[%s5 + $0xe8] sm:$0xff] %vm1494, %v1355
  %1525 = vst.msk [vmem:[%s5 + $0xf0] sm:$0xff] %vm1494, %v1360
  %1526 = vst.msk [vmem:[%s5 + $0xf8] sm:$0xff] %vm1494, %v1363
  %1527 = vst.msk [vmem:[%s5 + $0x100] sm:$0xff] %vm1494, %v1368
  %1528 = vst.msk [vmem:[%s5 + $0x108] sm:$0xff] %vm1494, %v1371
  %1529 = vst.msk [vmem:[%s5 + $0x110] sm:$0xff] %vm1494, %v1376
  %1530 = vst.msk [vmem:[%s5 + $0x118] sm:$0xff] %vm1494, %v1379
  %1531 = vst.msk [vmem:[%s5 + $0x120] sm:$0xff] %vm1494, %v1384
  %1532 = vst.msk [vmem:[%s5 + $0x128] sm:$0xff] %vm1494, %v1387
  %1533 = vst.msk [vmem:[%s5 + $0x130] sm:$0xff] %vm1494, %v1392
  %1534 = vst.msk [vmem:[%s5 + $0x138] sm:$0xff] %vm1494, %v1395
  %1535 = vst.msk [vmem:[%s5 + $0x140] sm:$0xff] %vm1494, %v1400
  %1536 = vst.msk [vmem:[%s5 + $0x148] sm:$0xff] %vm1494, %v1403
  %1537 = vst.msk [vmem:[%s5 + $0x150] sm:$0xff] %vm1494, %v1408
  %1538 = vst.msk [vmem:[%s5 + $0x158] sm:$0xff] %vm1494, %v1411
  %1539 = vst.msk [vmem:[%s5 + $0x160] sm:$0xff] %vm1494, %v1416
  %1540 = vst.msk [vmem:[%s5 + $0x168] sm:$0xff] %vm1494, %v1419
  %1541 = vst.msk [vmem:[%s5 + $0x170] sm:$0xff] %vm1494, %v1424
  %1542 = vst.msk [vmem:[%s5 + $0x178] sm:$0xff] %vm1494, %v1427
  %1543 = vst.msk [vmem:[%s5 + $0x180] sm:$0xff] %vm1494, %v1432
  %1544 = vst.msk [vmem:[%s5 + $0x188] sm:$0xff] %vm1494, %v1435
  %1545 = vst.msk [vmem:[%s5 + $0x190] sm:$0xff] %vm1494, %v1440
  %1546 = vst.msk [vmem:[%s5 + $0x198] sm:$0xff] %vm1494, %v1443
  %1547 = vst.msk [vmem:[%s5 + $0x1a0] sm:$0xff] %vm1494, %v1448
  %1548 = vst.msk [vmem:[%s5 + $0x1a8] sm:$0xff] %vm1494, %v1451
  %1549 = vst.msk [vmem:[%s5 + $0x1b0] sm:$0xff] %vm1494, %v1456
  %1550 = vst.msk [vmem:[%s5 + $0x1b8] sm:$0xff] %vm1494, %v1459
  %1551 = vst.msk [vmem:[%s5 + $0x1c0] sm:$0xff] %vm1494, %v1464
  %1552 = vst.msk [vmem:[%s5 + $0x1c8] sm:$0xff] %vm1494, %v1467
  %1553 = vst.msk [vmem:[%s5 + $0x1d0] sm:$0xff] %vm1494, %v1472
  %1554 = vst.msk [vmem:[%s5 + $0x1d8] sm:$0xff] %vm1494, %v1475
  %1555 = vst.msk [vmem:[%s5 + $0x1e0] sm:$0xff] %vm1494, %v1480
  %1556 = vst.msk [vmem:[%s5 + $0x1e8] sm:$0xff] %vm1494, %v1483
  %1557 = vst.msk [vmem:[%s5 + $0x1f0] sm:$0xff] %vm1494, %v1488
  %1558 = vst.msk [vmem:[%s5 + $0x1f8] sm:$0xff] %vm1494, %v1491
  // Predicated region
  $region22: #{freqmoe_forward.19} parent=0 // pred_check
    _
  $region23: #{freqmoe_forward.19} parent=0 // pred_check_branch
    %1560 = sbr.rel (0) target = $region25
  $region24: #{freqmoe_forward.19} parent=0 // pred_region
    _
  $region25: #{freqmoe_forward.19} parent=0 // pred_fallthru
    _
  // Predicated region
  $region26: #{freqmoe_forward.19} parent=0 // pred_check
    _
  $region27: #{freqmoe_forward.19} parent=0 // pred_check_branch
    %1562 = sbr.rel (0) target = $region29
  $region28: #{freqmoe_forward.19} parent=0 // pred_region
    _
  $region29: #{freqmoe_forward.19} parent=0 // pred_fallthru
    _

</llo_original>
